<compile_context>
chip_gen: v5e
topology: v5e:2x2
jax: 0.10.0
libtpu: 0.0.40
codegen_flags: <defaults>
</compile_context>

<pallas_src>
import functools

import jax
import jax.numpy as jnp
from jax.experimental import pallas as pl
from jax.experimental.pallas import tpu as pltpu

LANE = 128        # lane padding for all weight output dims / MLP widths
C1_REAL = 32      # conv1 output channels
C2_REAL = 48      # conv2 output channels
HID = 100         # MLP hidden width
NCLS = 10         # classes
KSIZE = 5         # conv kernel size
OUT_ROWS = 16     # sublane-aligned row count of the head output (>= NCLS)


def _round_up(n, m):
    return (n + m - 1) // m * m


def _pad_last(a, width):
    pad = width - a.shape[-1]
    if pad == 0:
        return a
    return jnp.pad(a, [(0, 0)] * (a.ndim - 1) + [(0, pad)])


def _im2col_pool_ordered(x, ksize):
    """(B, H, W, C) -> (B, Ho*Wo, ksize*ksize*C) valid-conv patches (runs in XLA).

    Rows are ordered so that the four 2x2-maxpool partners of each pooled output pixel
    form four contiguous blocks of (Ho//2 * Wo//2) rows:
        row = q * (Ho//2 * Wo//2) + ho2 * (Wo//2) + wo2,   q = hp*2 + wp,
    which lets the Pallas kernel fuse the pool as 3 jnp.maximum on static slices.
    Columns are ordered (kh, kw, cin).
    """
    B, H, W, C = x.shape
    Ho, Wo = H - ksize + 1, W - ksize + 1
    assert Ho % 2 == 0 and Wo % 2 == 0, "2x2 pool needs an even conv output"
    taps = [x[:, kh:kh + Ho, kw:kw + Wo, :]
            for kh in range(ksize) for kw in range(ksize)]
    p = jnp.concatenate(taps, axis=-1)                       # (B, Ho, Wo, k*k*C)
    p = p.reshape(B, Ho // 2, 2, Wo // 2, 2, ksize * ksize * C)
    p = p.transpose(0, 2, 4, 1, 3, 5)                        # (B, hp, wp, ho2, wo2, K)
    return p.reshape(B, Ho * Wo, ksize * ksize * C)


# ----------------------------- Pallas kernels -----------------------------

def _conv_pool_kernel(p_ref, w_ref, b_ref, o_ref, *, bblk, c_real):
    """Fused conv (single matmul over folded taps) + 2x2 maxpool + bias + ReLU.

    p_ref: (bblk, M, K) bf16    w_ref: (K, 128) bf16    b_ref: (1, 128) f32
    o_ref: (bblk, M//4, c_real) bf16
    """
    m = p_ref.shape[1]
    k = p_ref.shape[2]
    pooled = m // 4
    x = p_ref[...].reshape(bblk * m, k)
    y = jnp.dot(x, w_ref[...], preferred_element_type=jnp.float32)     # (bblk*M, 128)
    y4 = y.reshape(bblk, 4, pooled, LANE)       # the 4 pool partners are contiguous blocks
    y = jnp.maximum(jnp.maximum(y4[:, 0], y4[:, 1]),
                    jnp.maximum(y4[:, 2], y4[:, 3]))                    # fused 2x2 maxpool
    y = jnp.maximum(y + b_ref[...], 0.0)                                # bias + ReLU
    o_ref[...] = y[:, :, :c_real].astype(o_ref.dtype)


def conv_pool_stage(patches, w, b, *, bblk, c_real):
    """private_layers: ConvBlock(k=5,s=1,p=0)+ReLU followed by MaxPool2d(2,2), fused."""
    B, M, K = patches.shape
    return pl.pallas_call(
        functools.partial(_conv_pool_kernel, bblk=bblk, c_real=c_real),
        out_shape=jax.ShapeDtypeStruct((B, M // 4, c_real), jnp.bfloat16),
        grid=(B // bblk,),
        in_specs=[pl.BlockSpec((bblk, M, K), lambda i: (i, 0, 0)),
                  pl.BlockSpec((K, LANE), lambda i: (0, 0)),      # weight stays resident
                  pl.BlockSpec((1, LANE), lambda i: (0, 0))],
        out_specs=pl.BlockSpec((bblk, M // 4, c_real), lambda i: (i, 0, 0)),
        compiler_params=pltpu.CompilerParams(dimension_semantics=("parallel",)),
    )(patches, w, b)


def _conv_pool_mlp_kernel(p_ref, w2_ref, b2_ref, w1_ref, c1_ref, wa_ref, ca_ref,
                          wb_ref, cb_ref, o_ref, *, bblk, h_pool, w_pool):
    """conv2 matmul + fused 2x2 maxpool + bias/ReLU + 3-layer MLP head + sigmoid.

    The head keeps the conv channel dim in lanes: the input is rearranged into
    R[w, (b,h)*128 + c] (128-aligned lane concat, no transpose), and each Linear is
    applied with its weight on the LEFT:  h <- W @ h + b  (W rows = out features).
    """
    m = p_ref.shape[1]
    k = p_ref.shape[2]
    pooled = m // 4                                           # = h_pool * w_pool
    x = p_ref[...].reshape(bblk * m, k)
    y = jnp.dot(x, w2_ref[...], preferred_element_type=jnp.float32)    # (bblk*M, 128)
    y4 = y.reshape(bblk, 4, pooled, LANE)
    y = jnp.maximum(jnp.maximum(y4[:, 0], y4[:, 1]),
                    jnp.maximum(y4[:, 2], y4[:, 3]))                    # 2x2 maxpool
    y = jnp.maximum(y + b2_ref[...], 0.0)                               # bias + ReLU
    y = y.reshape(bblk * pooled, LANE)
    # For every (image, pooled row) group the w_pool feature rows are contiguous;
    # concatenate them along lanes at 128-aligned offsets.
    cols = [y[g * w_pool:(g + 1) * w_pool, :] for g in range(bblk * h_pool)]
    r = jnp.concatenate(cols, axis=1).astype(jnp.bfloat16)    # (w_pool, bblk*h_pool*128)

    h = jnp.dot(w1_ref[...], r, preferred_element_type=jnp.float32) + c1_ref[...]
    h = jnp.where(h >= 0.0, h, 0.2 * h)                                 # LeakyReLU(0.2)
    h = jnp.dot(wa_ref[...], h.astype(jnp.bfloat16),
                preferred_element_type=jnp.float32) + ca_ref[...]
    h = jnp.where(h >= 0.0, h, 0.2 * h)                                 # LeakyReLU(0.2)
    h = jnp.dot(wb_ref[...], h.astype(jnp.bfloat16),
                preferred_element_type=jnp.float32) + cb_ref[...]
    h = 1.0 / (1.0 + jnp.exp(-h))                                       # exact sigmoid
    o_ref[...] = h[:OUT_ROWS, :]


def conv_pool_mlp_stage(patches, w2, b2, w_fc1, b_fc1, w_fc2, b_fc2, w_fc3, b_fc3,
                        *, bblk, h_pool, w_pool):
    """shared_layers: ConvBlock+ReLU, MaxPool, Linear+LeakyReLU x2, Linear, Sigmoid."""
    B, M, K = patches.shape
    n_cols = B * h_pool * LANE
    blk_cols = bblk * h_pool * LANE
    return pl.pallas_call(
        functools.partial(_conv_pool_mlp_kernel, bblk=bblk,
                          h_pool=h_pool, w_pool=w_pool),
        out_shape=jax.ShapeDtypeStruct((OUT_ROWS, n_cols), jnp.float32),
        grid=(B // bblk,),
        in_specs=[pl.BlockSpec((bblk, M, K), lambda i: (i, 0, 0)),
                  pl.BlockSpec(w2.shape, lambda i: (0, 0)),
                  pl.BlockSpec(b2.shape, lambda i: (0, 0)),
                  pl.BlockSpec(w_fc1.shape, lambda i: (0, 0)),
                  pl.BlockSpec(b_fc1.shape, lambda i: (0, 0)),
                  pl.BlockSpec(w_fc2.shape, lambda i: (0, 0)),
                  pl.BlockSpec(b_fc2.shape, lambda i: (0, 0)),
                  pl.BlockSpec(w_fc3.shape, lambda i: (0, 0)),
                  pl.BlockSpec(b_fc3.shape, lambda i: (0, 0))],
        out_specs=pl.BlockSpec((OUT_ROWS, blk_cols), lambda i: (0, i)),
        compiler_params=pltpu.CompilerParams(dimension_semantics=("parallel",)),
    )(patches, w2, b2, w_fc1, b_fc1, w_fc2, b_fc2, w_fc3, b_fc3)


# ----------------------------- Forward pass -----------------------------

def mnistm_classifier_forward(images_nchw, params, *, num_classes=NCLS):
    B = images_nchw.shape[0]
    bblk = max(d for d in (4, 2, 1) if B % d == 0)            # images per grid step
    x = jnp.transpose(images_nchw, (0, 2, 3, 1)).astype(jnp.float32)   # NHWC

    # private_layers: ConvBlock(in, 32, k5, s1, p0) + ReLU, MaxPool2d(2, 2)  (fused)
    k1 = params["w_conv1"].shape[0]
    p1 = _pad_last(_im2col_pool_ordered(x, KSIZE), k1).astype(jnp.bfloat16)
    h1 = conv_pool_stage(p1, params["w_conv1"], params["b_conv1"],
                         bblk=bblk, c_real=C1_REAL)            # (B, P1, 32) bf16

    # shared_layers: ConvBlock(32, 48, k5) + ReLU, MaxPool, Linear/LeakyReLU x2,
    # Linear, Sigmoid  (all fused in one pallas_call)
    hp1 = (x.shape[1] - KSIZE + 1) // 2                        # 12 for img_size 28
    x1 = h1.reshape(B, hp1, hp1, C1_REAL)
    k2 = params["w_conv2"].shape[0]
    p2 = _pad_last(_im2col_pool_ordered(x1, KSIZE), k2)        # (B, 64, 896) bf16
    h_pool = (hp1 - KSIZE + 1) // 2                            # 4
    out = conv_pool_mlp_stage(p2, params["w_conv2"], params["b_conv2"],
                              params["w_fc1"], params["b_fc1"],
                              params["w_fc2"], params["b_fc2"],
                              params["w_fc3"], params["b_fc3"],
                              bblk=bblk, h_pool=h_pool, w_pool=h_pool)
    # out: (OUT_ROWS, B*h_pool*128) with rows = classes, lanes = (b, h, channel)
    out = out.reshape(OUT_ROWS, B, h_pool, LANE)
    out = jnp.transpose(out, (1, 3, 2, 0))                     # (B, C, h, class)
    return out[:, :C2_REAL, :, :num_classes]


def init_params(key, in_chs, img_size):
    ks = jax.random.split(key, 10)
    k1 = _round_up(KSIZE * KSIZE * in_chs, LANE)               # 128
    k2 = _round_up(KSIZE * KSIZE * C1_REAL, LANE)              # 896
    fc1_in = (img_size - 12) // 4  # actual conv/pool output width (see TODO above)

    def u(k, shape, fan_in):
        bound = 1.0 / jnp.sqrt(jnp.float32(fan_in))
        return jax.random.uniform(k, shape, jnp.float32, -bound, bound)

    def padded(real, full_shape, idx):
        return jnp.zeros(full_shape, jnp.float32).at[idx].set(real)

    # conv weights: rows = (kh, kw, cin) flattened, cols = cout (zero padded)
    w_conv1 = padded(u(ks[0], (KSIZE * KSIZE * in_chs, C1_REAL), KSIZE * KSIZE * in_chs),
                     (k1, LANE), (slice(0, KSIZE * KSIZE * in_chs), slice(0, C1_REAL)))
    b_conv1 = padded(u(ks[1], (C1_REAL,), KSIZE * KSIZE * in_chs),
                     (1, LANE), (0, slice(0, C1_REAL)))
    w_conv2 = padded(u(ks[2], (KSIZE * KSIZE * C1_REAL, C2_REAL), KSIZE * KSIZE * C1_REAL),
                     (k2, LANE), (slice(0, KSIZE * KSIZE * C1_REAL), slice(0, C2_REAL)))
    b_conv2 = padded(u(ks[3], (C2_REAL,), KSIZE * KSIZE * C1_REAL),
                     (1, LANE), (0, slice(0, C2_REAL)))
    # MLP weights in (out_features, in_features) layout (= PyTorch nn.Linear.weight)
    w_fc1 = padded(u(ks[4], (HID, fc1_in), fc1_in), (LANE, fc1_in),
                   (slice(0, HID), slice(None)))
    b_fc1 = padded(u(ks[5], (HID,), fc1_in), (LANE, 1), (slice(0, HID), 0))
    w_fc2 = padded(u(ks[6], (HID, HID), HID), (LANE, LANE),
                   (slice(0, HID), slice(0, HID)))
    b_fc2 = padded(u(ks[7], (HID,), HID), (LANE, 1), (slice(0, HID), 0))
    w_fc3 = padded(u(ks[8], (NCLS, HID), HID), (LANE, LANE),
                   (slice(0, NCLS), slice(0, HID)))
    b_fc3 = padded(u(ks[9], (NCLS,), HID), (LANE, 1), (slice(0, NCLS), 0))

    bf = lambda a: a.astype(jnp.bfloat16)  # MXU operands in bf16; accumulation stays f32
    return dict(
        w_conv1=bf(w_conv1), b_conv1=b_conv1,
        w_conv2=bf(w_conv2), b_conv2=b_conv2,
        w_fc1=bf(w_fc1), b_fc1=b_fc1,
        w_fc2=bf(w_fc2), b_fc2=b_fc2,
        w_fc3=bf(w_fc3), b_fc3=b_fc3,
    )


if __name__ == "__main__":
    B, in_chs, img_size, num_classes = 16, 3, 28, 10
    key = jax.random.PRNGKey(0)
    k_img, k_par = jax.random.split(key)

    images = jax.random.normal(k_img, (B, in_chs, img_size, img_size), jnp.float32)
    params = init_params(k_par, in_chs, img_size)

    fwd = jax.jit(lambda imgs: mnistm_classifier_forward(imgs, params))
    out = jax.block_until_ready(fwd(images))

    expect = (B, C2_REAL, (img_size - 12) // 4, num_classes)
    assert out.shape == expect, out.shape
    assert bool(jnp.all(jnp.isfinite(out)))
    print("KERNEL_OK")
</pallas_src>

<mosaic_0001>
module attributes {stable_mosaic.version = 11 : i64} {
  func.func @_conv_pool_kernel(%arg0: i32, %arg1: memref<4x576x128xbf16, #tpu.memory_space<vmem>>, %arg2: memref<128x128xbf16, #tpu.memory_space<vmem>>, %arg3: memref<1x128xf32, #tpu.memory_space<vmem>>, %arg4: memref<4x144x32xbf16, #tpu.memory_space<vmem>>) attributes {dimension_semantics = [#tpu.dimension_semantics<parallel>], iteration_bounds = array<i64: 4>, scalar_prefetch = 0 : i64, scratch_operands = 0 : i64, tpu.core_type = #tpu.core_type<tc>, window_params = [{transform_indices = @transform_0, window_bounds = array<i64: 4, 576, 128>}, {pipeline_mode = #tpu.pipeline_mode<synchronous>, transform_indices = @transform_1, window_bounds = array<i64: 128, 128>}, {pipeline_mode = #tpu.pipeline_mode<synchronous>, transform_indices = @transform_2, window_bounds = array<i64: 1, 128>}, {transform_indices = @transform_3, window_bounds = array<i64: 4, 144, 32>}]} {
    %c0 = arith.constant 0 : index
    %c0_0 = arith.constant 0 : index
    %c0_1 = arith.constant 0 : index
    %0 = vector.load %arg1[%c0, %c0_0, %c0_1] : memref<4x576x128xbf16, #tpu.memory_space<vmem>>, vector<4x576x128xbf16>
    %1 = vector.shape_cast %0 : vector<4x576x128xbf16> to vector<2304x128xbf16>
    %c0_2 = arith.constant 0 : index
    %c0_3 = arith.constant 0 : index
    %2 = vector.load %arg2[%c0_2, %c0_3] : memref<128x128xbf16, #tpu.memory_space<vmem>>, vector<128x128xbf16>
    %cst = arith.constant dense<0.000000e+00> : vector<2304x128xf32>
    %3 = tpu.matmul %1, %2, %cst {dimension_numbers = #tpu.dot_dimension_numbers<[1], [0], [0], [1], [0, 0, 1, 1], [], []>} : vector<2304x128xbf16>, vector<128x128xbf16>, vector<2304x128xf32> -> vector<2304x128xf32>
    %4 = vector.shape_cast %3 : vector<2304x128xf32> to vector<4x4x144x128xf32>
    %5 = vector.extract_strided_slice %4 {offsets = [0, 0, 0, 0], sizes = [4, 1, 144, 128], strides = [1, 1, 1, 1]} : vector<4x4x144x128xf32> to vector<4x1x144x128xf32>
    %6 = vector.shape_cast %5 : vector<4x1x144x128xf32> to vector<4x144x128xf32>
    %7 = vector.extract_strided_slice %4 {offsets = [0, 1, 0, 0], sizes = [4, 1, 144, 128], strides = [1, 1, 1, 1]} : vector<4x4x144x128xf32> to vector<4x1x144x128xf32>
    %8 = vector.shape_cast %7 : vector<4x1x144x128xf32> to vector<4x144x128xf32>
    %9 = arith.maximumf %6, %8 : vector<4x144x128xf32>
    %10 = vector.extract_strided_slice %4 {offsets = [0, 2, 0, 0], sizes = [4, 1, 144, 128], strides = [1, 1, 1, 1]} : vector<4x4x144x128xf32> to vector<4x1x144x128xf32>
    %11 = vector.shape_cast %10 : vector<4x1x144x128xf32> to vector<4x144x128xf32>
    %12 = vector.extract_strided_slice %4 {offsets = [0, 3, 0, 0], sizes = [4, 1, 144, 128], strides = [1, 1, 1, 1]} : vector<4x4x144x128xf32> to vector<4x1x144x128xf32>
    %13 = vector.shape_cast %12 : vector<4x1x144x128xf32> to vector<4x144x128xf32>
    %14 = arith.maximumf %11, %13 : vector<4x144x128xf32>
    %15 = arith.maximumf %9, %14 : vector<4x144x128xf32>
    %c0_4 = arith.constant 0 : index
    %c0_5 = arith.constant 0 : index
    %16 = vector.load %arg3[%c0_4, %c0_5] : memref<1x128xf32, #tpu.memory_space<vmem>>, vector<1x128xf32>
    %17 = vector.shape_cast %16 : vector<1x128xf32> to vector<1x1x128xf32>
    %18 = vector.broadcast %17 : vector<1x1x128xf32> to vector<4x144x128xf32>
    %19 = arith.addf %15, %18 : vector<4x144x128xf32>
    %cst_6 = arith.constant 0.000000e+00 : f32
    %20 = vector.broadcast %cst_6 : f32 to vector<4x144x128xf32>
    %21 = arith.maximumf %19, %20 : vector<4x144x128xf32>
    %22 = vector.extract_strided_slice %21 {offsets = [0, 0, 0], sizes = [4, 144, 32], strides = [1, 1, 1]} : vector<4x144x128xf32> to vector<4x144x32xf32>
    %23 = arith.truncf %22 : vector<4x144x32xf32> to vector<4x144x32xbf16>
    %c0_7 = arith.constant 0 : index
    %c0_8 = arith.constant 0 : index
    %c0_9 = arith.constant 0 : index
    %24 = vector.load %arg4[%c0_7, %c0_8, %c0_9] : memref<4x144x32xbf16, #tpu.memory_space<vmem>>, vector<4x144x32xbf16>
    tpu.vector_store %arg4[%c0_7, %c0_8, %c0_9], %23 {strides = array<i32>} : memref<4x144x32xbf16, #tpu.memory_space<vmem>>, vector<4x144x32xbf16>,
    return
  }
  func.func @transform_0(%arg0: i32) -> (i32, i32, i32) {
    %c0_i32 = arith.constant 0 : i32
    %c0_i32_0 = arith.constant 0 : i32
    %c0_i32_1 = arith.constant 0 : i32
    return %arg0, %c0_i32, %c0_i32_0 : i32, i32, i32
  }
  func.func @transform_1(%arg0: i32) -> (i32, i32) {
    %c0_i32 = arith.constant 0 : i32
    %c0_i32_0 = arith.constant 0 : i32
    %c0_i32_1 = arith.constant 0 : i32
    return %c0_i32, %c0_i32_0 : i32, i32
  }
  func.func @transform_2(%arg0: i32) -> (i32, i32) {
    %c0_i32 = arith.constant 0 : i32
    %c0_i32_0 = arith.constant 0 : i32
    %c0_i32_1 = arith.constant 0 : i32
    return %c0_i32, %c0_i32_0 : i32, i32
  }
  func.func @transform_3(%arg0: i32) -> (i32, i32, i32) {
    %c0_i32 = arith.constant 0 : i32
    %c0_i32_0 = arith.constant 0 : i32
    %c0_i32_1 = arith.constant 0 : i32
    return %arg0, %c0_i32, %c0_i32_0 : i32, i32, i32
  }
}

module attributes {stable_mosaic.version = 11 : i64} {
  func.func @_conv_pool_mlp_kernel(%arg0: i32, %arg1: memref<4x64x896xbf16, #tpu.memory_space<vmem>>, %arg2: memref<896x128xbf16, #tpu.memory_space<vmem>>, %arg3: memref<1x128xf32, #tpu.memory_space<vmem>>, %arg4: memref<128x4xbf16, #tpu.memory_space<vmem>>, %arg5: memref<128x1xf32, #tpu.memory_space<vmem>>, %arg6: memref<128x128xbf16, #tpu.memory_space<vmem>>, %arg7: memref<128x1xf32, #tpu.memory_space<vmem>>, %arg8: memref<128x128xbf16, #tpu.memory_space<vmem>>, %arg9: memref<128x1xf32, #tpu.memory_space<vmem>>, %arg10: memref<16x2048xf32, #tpu.memory_space<vmem>>) attributes {dimension_semantics = [#tpu.dimension_semantics<parallel>], iteration_bounds = array<i64: 4>, scalar_prefetch = 0 : i64, scratch_operands = 0 : i64, tpu.core_type = #tpu.core_type<tc>, window_params = [{transform_indices = @transform_0, window_bounds = array<i64: 4, 64, 896>}, {pipeline_mode = #tpu.pipeline_mode<synchronous>, transform_indices = @transform_1, window_bounds = array<i64: 896, 128>}, {pipeline_mode = #tpu.pipeline_mode<synchronous>, transform_indices = @transform_2, window_bounds = array<i64: 1, 128>}, {pipeline_mode = #tpu.pipeline_mode<synchronous>, transform_indices = @transform_3, window_bounds = array<i64: 128, 4>}, {pipeline_mode = #tpu.pipeline_mode<synchronous>, transform_indices = @transform_4, window_bounds = array<i64: 128, 1>}, {pipeline_mode = #tpu.pipeline_mode<synchronous>, transform_indices = @transform_5, window_bounds = array<i64: 128, 128>}, {pipeline_mode = #tpu.pipeline_mode<synchronous>, transform_indices = @transform_6, window_bounds = array<i64: 128, 1>}, {pipeline_mode = #tpu.pipeline_mode<synchronous>, transform_indices = @transform_7, window_bounds = array<i64: 128, 128>}, {pipeline_mode = #tpu.pipeline_mode<synchronous>, transform_indices = @transform_8, window_bounds = array<i64: 128, 1>}, {transform_indices = @transform_9, window_bounds = array<i64: 16, 2048>}]} {
    %c0 = arith.constant 0 : index
    %c0_0 = arith.constant 0 : index
    %c0_1 = arith.constant 0 : index
    %0 = vector.load %arg1[%c0, %c0_0, %c0_1] : memref<4x64x896xbf16, #tpu.memory_space<vmem>>, vector<4x64x896xbf16>
    %1 = vector.shape_cast %0 : vector<4x64x896xbf16> to vector<256x896xbf16>
    %c0_2 = arith.constant 0 : index
    %c0_3 = arith.constant 0 : index
    %2 = vector.load %arg2[%c0_2, %c0_3] : memref<896x128xbf16, #tpu.memory_space<vmem>>, vector<896x128xbf16>
    %cst = arith.constant dense<0.000000e+00> : vector<256x128xf32>
    %3 = tpu.matmul %1, %2, %cst {dimension_numbers = #tpu.dot_dimension_numbers<[1], [0], [0], [1], [0, 0, 1, 1], [], []>} : vector<256x896xbf16>, vector<896x128xbf16>, vector<256x128xf32> -> vector<256x128xf32>
    %4 = vector.shape_cast %3 : vector<256x128xf32> to vector<4x4x16x128xf32>
    %5 = vector.extract_strided_slice %4 {offsets = [0, 0, 0, 0], sizes = [4, 1, 16, 128], strides = [1, 1, 1, 1]} : vector<4x4x16x128xf32> to vector<4x1x16x128xf32>
    %6 = vector.shape_cast %5 : vector<4x1x16x128xf32> to vector<4x16x128xf32>
    %7 = vector.extract_strided_slice %4 {offsets = [0, 1, 0, 0], sizes = [4, 1, 16, 128], strides = [1, 1, 1, 1]} : vector<4x4x16x128xf32> to vector<4x1x16x128xf32>
    %8 = vector.shape_cast %7 : vector<4x1x16x128xf32> to vector<4x16x128xf32>
    %9 = arith.maximumf %6, %8 : vector<4x16x128xf32>
    %10 = vector.extract_strided_slice %4 {offsets = [0, 2, 0, 0], sizes = [4, 1, 16, 128], strides = [1, 1, 1, 1]} : vector<4x4x16x128xf32> to vector<4x1x16x128xf32>
    %11 = vector.shape_cast %10 : vector<4x1x16x128xf32> to vector<4x16x128xf32>
    %12 = vector.extract_strided_slice %4 {offsets = [0, 3, 0, 0], sizes = [4, 1, 16, 128], strides = [1, 1, 1, 1]} : vector<4x4x16x128xf32> to vector<4x1x16x128xf32>
    %13 = vector.shape_cast %12 : vector<4x1x16x128xf32> to vector<4x16x128xf32>
    %14 = arith.maximumf %11, %13 : vector<4x16x128xf32>
    %15 = arith.maximumf %9, %14 : vector<4x16x128xf32>
    %c0_4 = arith.constant 0 : index
    %c0_5 = arith.constant 0 : index
    %16 = vector.load %arg3[%c0_4, %c0_5] : memref<1x128xf32, #tpu.memory_space<vmem>>, vector<1x128xf32>
    %17 = vector.shape_cast %16 : vector<1x128xf32> to vector<1x1x128xf32>
    %18 = vector.broadcast %17 : vector<1x1x128xf32> to vector<4x16x128xf32>
    %19 = arith.addf %15, %18 : vector<4x16x128xf32>
    %cst_6 = arith.constant 0.000000e+00 : f32
    %20 = vector.broadcast %cst_6 : f32 to vector<4x16x128xf32>
    %21 = arith.maximumf %19, %20 : vector<4x16x128xf32>
    %22 = vector.shape_cast %21 : vector<4x16x128xf32> to vector<64x128xf32>
    %23 = vector.extract_strided_slice %22 {offsets = [0, 0], sizes = [4, 128], strides = [1, 1]} : vector<64x128xf32> to vector<4x128xf32>
    %24 = vector.extract_strided_slice %22 {offsets = [4, 0], sizes = [4, 128], strides = [1, 1]} : vector<64x128xf32> to vector<4x128xf32>
    %25 = vector.extract_strided_slice %22 {offsets = [8, 0], sizes = [4, 128], strides = [1, 1]} : vector<64x128xf32> to vector<4x128xf32>
    %26 = vector.extract_strided_slice %22 {offsets = [12, 0], sizes = [4, 128], strides = [1, 1]} : vector<64x128xf32> to vector<4x128xf32>
    %27 = vector.extract_strided_slice %22 {offsets = [16, 0], sizes = [4, 128], strides = [1, 1]} : vector<64x128xf32> to vector<4x128xf32>
    %28 = vector.extract_strided_slice %22 {offsets = [20, 0], sizes = [4, 128], strides = [1, 1]} : vector<64x128xf32> to vector<4x128xf32>
    %29 = vector.extract_strided_slice %22 {offsets = [24, 0], sizes = [4, 128], strides = [1, 1]} : vector<64x128xf32> to vector<4x128xf32>
    %30 = vector.extract_strided_slice %22 {offsets = [28, 0], sizes = [4, 128], strides = [1, 1]} : vector<64x128xf32> to vector<4x128xf32>
    %31 = vector.extract_strided_slice %22 {offsets = [32, 0], sizes = [4, 128], strides = [1, 1]} : vector<64x128xf32> to vector<4x128xf32>
    %32 = vector.extract_strided_slice %22 {offsets = [36, 0], sizes = [4, 128], strides = [1, 1]} : vector<64x128xf32> to vector<4x128xf32>
    %33 = vector.extract_strided_slice %22 {offsets = [40, 0], sizes = [4, 128], strides = [1, 1]} : vector<64x128xf32> to vector<4x128xf32>
    %34 = vector.extract_strided_slice %22 {offsets = [44, 0], sizes = [4, 128], strides = [1, 1]} : vector<64x128xf32> to vector<4x128xf32>
    %35 = vector.extract_strided_slice %22 {offsets = [48, 0], sizes = [4, 128], strides = [1, 1]} : vector<64x128xf32> to vector<4x128xf32>
    %36 = vector.extract_strided_slice %22 {offsets = [52, 0], sizes = [4, 128], strides = [1, 1]} : vector<64x128xf32> to vector<4x128xf32>
    %37 = vector.extract_strided_slice %22 {offsets = [56, 0], sizes = [4, 128], strides = [1, 1]} : vector<64x128xf32> to vector<4x128xf32>
    %38 = vector.extract_strided_slice %22 {offsets = [60, 0], sizes = [4, 128], strides = [1, 1]} : vector<64x128xf32> to vector<4x128xf32>
    %39 = tpu.concatenate %23, %24, %25, %26, %27, %28, %29, %30, %31, %32, %33, %34, %35, %36, %37, %38 in 1 : vector<4x128xf32>, vector<4x128xf32>, vector<4x128xf32>, vector<4x128xf32>, vector<4x128xf32>, vector<4x128xf32>, vector<4x128xf32>, vector<4x128xf32>, vector<4x128xf32>, vector<4x128xf32>, vector<4x128xf32>, vector<4x128xf32>, vector<4x128xf32>, vector<4x128xf32>, vector<4x128xf32>, vector<4x128xf32> -> vector<4x2048xf32>
    %40 = arith.truncf %39 : vector<4x2048xf32> to vector<4x2048xbf16>
    %c0_7 = arith.constant 0 : index
    %c0_8 = arith.constant 0 : index
    %41 = vector.load %arg4[%c0_7, %c0_8] : memref<128x4xbf16, #tpu.memory_space<vmem>>, vector<128x4xbf16>
    %cst_9 = arith.constant dense<0.000000e+00> : vector<128x2048xf32>
    %42 = tpu.matmul %41, %40, %cst_9 {dimension_numbers = #tpu.dot_dimension_numbers<[1], [0], [0], [1], [0, 0, 1, 1], [], []>} : vector<128x4xbf16>, vector<4x2048xbf16>, vector<128x2048xf32> -> vector<128x2048xf32>
    %c0_10 = arith.constant 0 : index
    %c0_11 = arith.constant 0 : index
    %43 = vector.load %arg5[%c0_10, %c0_11] : memref<128x1xf32, #tpu.memory_space<vmem>>, vector<128x1xf32>
    %44 = vector.broadcast %43 : vector<128x1xf32> to vector<128x2048xf32>
    %45 = arith.addf %42, %44 : vector<128x2048xf32>
    %cst_12 = arith.constant 0.000000e+00 : f32
    %46 = vector.broadcast %cst_12 : f32 to vector<128x2048xf32>
    %47 = arith.cmpf oge, %45, %46 : vector<128x2048xf32>
    %cst_13 = arith.constant 2.000000e-01 : f32
    %48 = vector.broadcast %cst_13 : f32 to vector<128x2048xf32>
    %49 = arith.mulf %48, %45 : vector<128x2048xf32>
    %50 = arith.select %47, %45, %49 : vector<128x2048xi1>, vector<128x2048xf32>
    %c0_14 = arith.constant 0 : index
    %c0_15 = arith.constant 0 : index
    %51 = vector.load %arg6[%c0_14, %c0_15] : memref<128x128xbf16, #tpu.memory_space<vmem>>, vector<128x128xbf16>
    %52 = arith.truncf %50 : vector<128x2048xf32> to vector<128x2048xbf16>
    %cst_16 = arith.constant dense<0.000000e+00> : vector<128x2048xf32>
    %53 = tpu.matmul %51, %52, %cst_16 {dimension_numbers = #tpu.dot_dimension_numbers<[1], [0], [0], [1], [0, 0, 1, 1], [], []>} : vector<128x128xbf16>, vector<128x2048xbf16>, vector<128x2048xf32> -> vector<128x2048xf32>
    %c0_17 = arith.constant 0 : index
    %c0_18 = arith.constant 0 : index
    %54 = vector.load %arg7[%c0_17, %c0_18] : memref<128x1xf32, #tpu.memory_space<vmem>>, vector<128x1xf32>
    %55 = vector.broadcast %54 : vector<128x1xf32> to vector<128x2048xf32>
    %56 = arith.addf %53, %55 : vector<128x2048xf32>
    %cst_19 = arith.constant 0.000000e+00 : f32
    %57 = vector.broadcast %cst_19 : f32 to vector<128x2048xf32>
    %58 = arith.cmpf oge, %56, %57 : vector<128x2048xf32>
    %cst_20 = arith.constant 2.000000e-01 : f32
    %59 = vector.broadcast %cst_20 : f32 to vector<128x2048xf32>
    %60 = arith.mulf %59, %56 : vector<128x2048xf32>
    %61 = arith.select %58, %56, %60 : vector<128x2048xi1>, vector<128x2048xf32>
    %c0_21 = arith.constant 0 : index
    %c0_22 = arith.constant 0 : index
    %62 = vector.load %arg8[%c0_21, %c0_22] : memref<128x128xbf16, #tpu.memory_space<vmem>>, vector<128x128xbf16>
    %63 = arith.truncf %61 : vector<128x2048xf32> to vector<128x2048xbf16>
    %cst_23 = arith.constant dense<0.000000e+00> : vector<128x2048xf32>
    %64 = tpu.matmul %62, %63, %cst_23 {dimension_numbers = #tpu.dot_dimension_numbers<[1], [0], [0], [1], [0, 0, 1, 1], [], []>} : vector<128x128xbf16>, vector<128x2048xbf16>, vector<128x2048xf32> -> vector<128x2048xf32>
    %c0_24 = arith.constant 0 : index
    %c0_25 = arith.constant 0 : index
    %65 = vector.load %arg9[%c0_24, %c0_25] : memref<128x1xf32, #tpu.memory_space<vmem>>, vector<128x1xf32>
    %66 = vector.broadcast %65 : vector<128x1xf32> to vector<128x2048xf32>
    %67 = arith.addf %64, %66 : vector<128x2048xf32>
    %cst_26 = arith.constant 0.000000e+00 : f32
    %68 = vector.broadcast %cst_26 : f32 to vector<128x2048xf32>
    %69 = arith.subf %68, %67 : vector<128x2048xf32>
    %70 = math.exp %69 : vector<128x2048xf32>
    %cst_27 = arith.constant 1.000000e+00 : f32
    %71 = vector.broadcast %cst_27 : f32 to vector<128x2048xf32>
    %72 = arith.addf %71, %70 : vector<128x2048xf32>
    %cst_28 = arith.constant 1.000000e+00 : f32
    %73 = vector.broadcast %cst_28 : f32 to vector<128x2048xf32>
    %74 = arith.divf %73, %72 : vector<128x2048xf32>
    %75 = vector.extract_strided_slice %74 {offsets = [0, 0], sizes = [16, 2048], strides = [1, 1]} : vector<128x2048xf32> to vector<16x2048xf32>
    %c0_29 = arith.constant 0 : index
    %c0_30 = arith.constant 0 : index
    %76 = vector.load %arg10[%c0_29, %c0_30] : memref<16x2048xf32, #tpu.memory_space<vmem>>, vector<16x2048xf32>
    tpu.vector_store %arg10[%c0_29, %c0_30], %75 {strides = array<i32>} : memref<16x2048xf32, #tpu.memory_space<vmem>>, vector<16x2048xf32>,
    return
  }
  func.func @transform_0(%arg0: i32) -> (i32, i32, i32) {
    %c0_i32 = arith.constant 0 : i32
    %c0_i32_0 = arith.constant 0 : i32
    %c0_i32_1 = arith.constant 0 : i32
    return %arg0, %c0_i32, %c0_i32_0 : i32, i32, i32
  }
  func.func @transform_1(%arg0: i32) -> (i32, i32) {
    %c0_i32 = arith.constant 0 : i32
    %c0_i32_0 = arith.constant 0 : i32
    %c0_i32_1 = arith.constant 0 : i32
    return %c0_i32, %c0_i32_0 : i32, i32
  }
  func.func @transform_2(%arg0: i32) -> (i32, i32) {
    %c0_i32 = arith.constant 0 : i32
    %c0_i32_0 = arith.constant 0 : i32
    %c0_i32_1 = arith.constant 0 : i32
    return %c0_i32, %c0_i32_0 : i32, i32
  }
  func.func @transform_3(%arg0: i32) -> (i32, i32) {
    %c0_i32 = arith.constant 0 : i32
    %c0_i32_0 = arith.constant 0 : i32
    %c0_i32_1 = arith.constant 0 : i32
    return %c0_i32, %c0_i32_0 : i32, i32
  }
  func.func @transform_4(%arg0: i32) -> (i32, i32) {
    %c0_i32 = arith.constant 0 : i32
    %c0_i32_0 = arith.constant 0 : i32
    %c0_i32_1 = arith.constant 0 : i32
    return %c0_i32, %c0_i32_0 : i32, i32
  }
  func.func @transform_5(%arg0: i32) -> (i32, i32) {
    %c0_i32 = arith.constant 0 : i32
    %c0_i32_0 = arith.constant 0 : i32
    %c0_i32_1 = arith.constant 0 : i32
    return %c0_i32, %c0_i32_0 : i32, i32
  }
  func.func @transform_6(%arg0: i32) -> (i32, i32) {
    %c0_i32 = arith.constant 0 : i32
    %c0_i32_0 = arith.constant 0 : i32
    %c0_i32_1 = arith.constant 0 : i32
    return %c0_i32, %c0_i32_0 : i32, i32
  }
  func.func @transform_7(%arg0: i32) -> (i32, i32) {
    %c0_i32 = arith.constant 0 : i32
    %c0_i32_0 = arith.constant 0 : i32
    %c0_i32_1 = arith.constant 0 : i32
    return %c0_i32, %c0_i32_0 : i32, i32
  }
  func.func @transform_8(%arg0: i32) -> (i32, i32) {
    %c0_i32 = arith.constant 0 : i32
    %c0_i32_0 = arith.constant 0 : i32
    %c0_i32_1 = arith.constant 0 : i32
    return %c0_i32, %c0_i32_0 : i32, i32
  }
  func.func @transform_9(%arg0: i32) -> (i32, i32) {
    %c0_i32 = arith.constant 0 : i32
    %c0_i32_0 = arith.constant 0 : i32
    return %c0_i32, %arg0 : i32, i32
  }
}

</mosaic_0001>

<llo_original>
// kernel: _lambda_.2
$region0: #{_lambda_.2}
  #allocation0 [shape = 'u32[]', space=smem, size = 0x4, offset = 0x4, fixed_abs, tag = 'smem constant byte address 0x4 - core index']
  #allocation1 [shape = 'u32[72,128]{1,0:T(1,128)}', space=vmem, size = 0x9000, scoped, tag = 'internal scratch']
  %s0 = inlined_call_operand.vmem [shape: bf16[16,576,128], index: 0, kind: input, shape index: {}]
  %s1 = inlined_call_operand.vmem [shape: bf16[128,128], index: 1, kind: input, shape index: {}]
  %s2 = inlined_call_operand.vmem [shape: f32[1,128], index: 2, kind: input, shape index: {}]
  %s3 = inlined_call_operand.vmem [shape: bf16[16,144,32], index: 3, kind: output, shape index: {}]
  %s4 = sld [smem:[#allocation0]]
  $region45: #{_lambda_.2} parent=0
    _
  %s6 = ssub.s32 1, %s4
  %s7 = scalar_select 0, %s6, %s4
  loop: start=0, step=1, limit=6
  $region2: #{_lambda_.2} parent=0 // loop_pre_header
    _
  $region3: #{_lambda_.2} parent=0 // loop_header
    %s9 = sphi 0, %s13
    %p10 = scmp.ge.s32.totalorder %s9, 6
    %s19 = sphi 0, %s21
    %s22 = sphi 0, %s19
    %s23 = sphi 0, %s22
    %s39 = sphi 0, %s23
    %s43 = sphi 0, %s43
    %s45 = sphi 0, %s43
    %s46 = sphi 0, %s45
    %s60 = sphi 0, %s46
    %s64 = sphi 0, %s64
    %s66 = sphi 0, %s64
    %s67 = sphi 0, %s66
    %s81 = sphi 0, %s67
    %s87 = sphi 0, %s89
    %s90 = sphi 0, %s87
    %s91 = sphi 0, %s90
    %s107 = sphi 0, %s91
  $region4: #{_lambda_.2} parent=0 // loop_header_branch
    %12 = sbr.rel (%p10) target = $region8
  $region5: #{_lambda_.2} parent=0 // loop_body
    %s14 = ssub.s32 %s9, 1
    %s15 = ssub.s32 %s9, 2
    %s16 = sadd.s32 %s9, 1
    %s17 = ssub.s32 %s9, %s16
    %p18 = scmp.eq.s32.totalorder %s17, 0
    %s20 = sadd.s32 %s19, 1
    %s21 = scalar_select %p18, %s19, %s20
    %p24 = pneg %p18
    %p25 = scmp.eq.s32.totalorder %s9, 3
    %p26 = por %p24, %p25
    %p27 = scmp.ne.s32.totalorder %s19, %s22
    %p28 = scmp.eq.s32.totalorder %s9, 0
    %p29 = por %p27, %p28
    %p30 = scmp.ne.s32.totalorder %s19, %s22
    %p31 = scmp.eq.s32.totalorder %s14, 3
    %p32 = por %p30, %p31
    %p33 = scmp.ne.s32.totalorder %s22, %s23
    %p34 = scmp.eq.s32.totalorder %s14, 0
    %p35 = por %p33, %p34
    %p36 = scmp.ne.s32.totalorder %s22, %s23
    %p37 = scmp.eq.s32.totalorder %s15, 3
    %p38 = por %p36, %p37
    %p40 = scmp.ne.s32.totalorder %s23, %s39
    %p41 = scmp.eq.s32.totalorder %s15, 0
    %p42 = por %p40, %p41
    %s44 = sadd.s32 %s43, 1
    %p47 = scmp.eq.s32.totalorder %s9, 3
    %p48 = scmp.ne.s32.totalorder %s43, %s45
    %p49 = scmp.eq.s32.totalorder %s9, 0
    %p50 = por %p48, %p49
    %p51 = scmp.ne.s32.totalorder %s43, %s45
    %p52 = scmp.eq.s32.totalorder %s14, 3
    %p53 = por %p51, %p52
    %p54 = scmp.ne.s32.totalorder %s45, %s46
    %p55 = scmp.eq.s32.totalorder %s14, 0
    %p56 = por %p54, %p55
    %p57 = scmp.ne.s32.totalorder %s45, %s46
    %p58 = scmp.eq.s32.totalorder %s15, 3
    %p59 = por %p57, %p58
    %p61 = scmp.ne.s32.totalorder %s46, %s60
    %p62 = scmp.eq.s32.totalorder %s15, 0
    %p63 = por %p61, %p62
    %s65 = sadd.s32 %s64, 1
    %p68 = scmp.eq.s32.totalorder %s9, 3
    %p69 = scmp.ne.s32.totalorder %s64, %s66
    %p70 = scmp.eq.s32.totalorder %s9, 0
    %p71 = por %p69, %p70
    %p72 = scmp.ne.s32.totalorder %s64, %s66
    %p73 = scmp.eq.s32.totalorder %s14, 3
    %p74 = por %p72, %p73
    %p75 = scmp.ne.s32.totalorder %s66, %s67
    %p76 = scmp.eq.s32.totalorder %s14, 0
    %p77 = por %p75, %p76
    %p78 = scmp.ne.s32.totalorder %s66, %s67
    %p79 = scmp.eq.s32.totalorder %s15, 3
    %p80 = por %p78, %p79
    %p82 = scmp.ne.s32.totalorder %s67, %s81
    %p83 = scmp.eq.s32.totalorder %s15, 0
    %p84 = por %p82, %p83
    %s85 = ssub.s32 %s9, %s16
    %p86 = scmp.eq.s32.totalorder %s85, 0
    %s88 = sadd.s32 %s87, 1
    %s89 = scalar_select %p86, %s87, %s88
    %p92 = pneg %p86
    %p93 = scmp.eq.s32.totalorder %s9, 3
    %p94 = por %p92, %p93
    %p95 = scmp.ne.s32.totalorder %s87, %s90
    %p96 = scmp.eq.s32.totalorder %s9, 0
    %p97 = por %p95, %p96
    %p98 = scmp.ne.s32.totalorder %s87, %s90
    %p99 = scmp.eq.s32.totalorder %s14, 3
    %p100 = por %p98, %p99
    %p101 = scmp.ne.s32.totalorder %s90, %s91
    %p102 = scmp.eq.s32.totalorder %s14, 0
    %p103 = por %p101, %p102
    %p104 = scmp.ne.s32.totalorder %s90, %s91
    %p105 = scmp.eq.s32.totalorder %s15, 3
    %p106 = por %p104, %p105
    %p108 = scmp.ne.s32.totalorder %s91, %s107
    %p109 = scmp.eq.s32.totalorder %s15, 0
    %p110 = por %p108, %p109
    %p111 = scmp.le.s32.totalorder 1, %s9
    %p112 = scmp.lt.s32.totalorder %s9, 5
    %p113 = pnand %p111, %p112
    %p114 = pneg %p113
    // Predicated region
    $region9: #{_lambda_.2} parent=5 // pred_check
      _
    $region10: #{_lambda_.2} parent=5 // pred_check_branch
      %116 = sbr.rel (%p113) target = $region12
    $region11: #{_lambda_.2} parent=5 // pred_region
      %s117 = ssub.s32 %s9, 1
      // Predicated region
      $region13: #{_lambda_.2} parent=11 // pred_check
        %p118 = pneg %p56
      $region14: #{_lambda_.2} parent=11 // pred_check_branch
        %120 = sbr.rel (%p118) target = $region16
      $region15: #{_lambda_.2} parent=11 // pred_region
        _
      $region16: #{_lambda_.2} parent=11 // pred_fallthru
        _
      // Predicated region
      $region17: #{_lambda_.2} parent=11 // pred_check
        %p121 = pneg %p77
      $region18: #{_lambda_.2} parent=11 // pred_check_branch
        %123 = sbr.rel (%p121) target = $region20
      $region19: #{_lambda_.2} parent=11 // pred_region
        _
      $region20: #{_lambda_.2} parent=11 // pred_fallthru
        _
    $region12: #{_lambda_.2} parent=5 // pred_fallthru
      _
    %p124 = scmp.lt.s32.totalorder %s9, 4
    // Predicated region
    $region21: #{_lambda_.2} parent=5 // pred_check
      %p125 = pneg %p124
    $region22: #{_lambda_.2} parent=5 // pred_check_branch
      %127 = sbr.rel (%p125) target = $region24
    $region23: #{_lambda_.2} parent=5 // pred_region
      // Predicated region
      $region25: #{_lambda_.2} parent=23 // pred_check
        %p128 = pneg %p29
      $region26: #{_lambda_.2} parent=23 // pred_check_branch
        %130 = sbr.rel (%p128) target = $region28
      $region27: #{_lambda_.2} parent=23 // pred_region
        %s131 = smul.u32 4, %s9
        %p132 = scmp.lt.s32.totalorder %s131, 15
        %s133 = scalar_select %p132, %s131, 15
        %s134 = smul.addr %s133, 72
        %s135 = smul.addr %s134, 4
        %s136 = scalar_lea.vmem %s0, %s135
        %s137 = smul.u32 4, %s9
      $region28: #{_lambda_.2} parent=23 // pred_fallthru
        _
    $region24: #{_lambda_.2} parent=5 // pred_fallthru
      _
    %p138 = scmp.le.s32.totalorder 1, %s9
    %p139 = scmp.lt.s32.totalorder %s9, 5
    %p140 = pnand %p138, %p139
    %p141 = pneg %p140
    // Predicated region
    $region29: #{_lambda_.2} parent=5 // pred_check
      _
    $region30: #{_lambda_.2} parent=5 // pred_check_branch
      %143 = sbr.rel (%p140) target = $region32
    $region31: #{_lambda_.2} parent=5 // pred_region
      %s144 = ssub.s32 %s9, 1
      %s145 = smul.u32 4, %s14
      %p146 = scmp.lt.s32.totalorder %s145, 15
      %s147 = scalar_select %p146, %s145, 15
      %s148 = smul.addr %s147, 72
      %s149 = smul.addr %s148, 4
      %s150 = scalar_lea.vmem %s0, %s149
      %p151 = pneg %p35
      %p152 = pneg %p32
      %p153 = pneg %p56
      %p154 = pneg %p53
      %p155 = pneg %p77
      %p156 = pneg %p74
      %p157 = pneg %p103
      %p158 = pneg %p100
      %s159 = smul.u32 4, %s14
      %p160 = scmp.lt.s32.totalorder %s159, 15
      %s161 = scalar_select %p160, %s159, 15
      %s162 = smul.addr %s161, 18
      %s163 = smul.addr %s162, 4
      %s164 = scalar_lea.vmem %s3, %s163
      %s165 = smul.u32 4, %s14
      %p166 = scmp.lt.s32.totalorder %s165, 15
      %s167 = scalar_select %p166, %s165, 15
      %s168 = smul.addr %s167, 72
      %s169 = smul.addr %s168, 4
      %s170 = scalar_lea.vmem %s0, %s169
      %s171 = smul.u32 4, %s14
      %s172 = smul.u32 4, %s14
      %p173 = scmp.lt.s32.totalorder %s172, 15
      %s174 = scalar_select %p173, %s172, 15
      %s175 = smul.addr %s174, 18
      %s176 = smul.addr %s175, 4
      %s177 = scalar_lea.vmem %s3, %s176
      %s178 = smul.u32 4, %s14
      %v179 = vld [vmem:[%s170] sm:$0xf]
      %v180 = vld [vmem:[%s170 + $0x4] sm:$0xf]
      %v181 = vld [vmem:[%s170 + $0x8] sm:$0xf]
      %v182 = vld [vmem:[%s170 + $0xc] sm:$0xf]
      %v183 = vld [vmem:[%s170 + $0x10] sm:$0xf]
      %v184 = vld [vmem:[%s170 + $0x14] sm:$0xf]
      %v185 = vld [vmem:[%s170 + $0x18] sm:$0xf]
      %v186 = vld [vmem:[%s170 + $0x1c] sm:$0xf]
      %v187 = vld [vmem:[%s170 + $0x20] sm:$0xf]
      %v188 = vld [vmem:[%s170 + $0x24] sm:$0xf]
      %v189 = vld [vmem:[%s170 + $0x28] sm:$0xf]
      %v190 = vld [vmem:[%s170 + $0x2c] sm:$0xf]
      %v191 = vld [vmem:[%s170 + $0x30] sm:$0xf]
      %v192 = vld [vmem:[%s170 + $0x34] sm:$0xf]
      %v193 = vld [vmem:[%s170 + $0x38] sm:$0xf]
      %v194 = vld [vmem:[%s170 + $0x3c] sm:$0xf]
      %v195 = vld [vmem:[%s170 + $0x40] sm:$0xf]
      %v196 = vld [vmem:[%s170 + $0x44] sm:$0xf]
      %v197 = vld [vmem:[%s170 + $0x48] sm:$0xf]
      %v198 = vld [vmem:[%s170 + $0x4c] sm:$0xf]
      %v199 = vld [vmem:[%s170 + $0x50] sm:$0xf]
      %v200 = vld [vmem:[%s170 + $0x54] sm:$0xf]
      %v201 = vld [vmem:[%s170 + $0x58] sm:$0xf]
      %v202 = vld [vmem:[%s170 + $0x5c] sm:$0xf]
      %v203 = vld [vmem:[%s170 + $0x60] sm:$0xf]
      %v204 = vld [vmem:[%s170 + $0x64] sm:$0xf]
      %v205 = vld [vmem:[%s170 + $0x68] sm:$0xf]
      %v206 = vld [vmem:[%s170 + $0x6c] sm:$0xf]
      %v207 = vld [vmem:[%s170 + $0x70] sm:$0xf]
      %v208 = vld [vmem:[%s170 + $0x74] sm:$0xf]
      %v209 = vld [vmem:[%s170 + $0x78] sm:$0xf]
      %v210 = vld [vmem:[%s170 + $0x7c] sm:$0xf]
      %v211 = vld [vmem:[%s170 + $0x80] sm:$0xf]
      %v212 = vld [vmem:[%s170 + $0x84] sm:$0xf]
      %v213 = vld [vmem:[%s170 + $0x88] sm:$0xf]
      %v214 = vld [vmem:[%s170 + $0x8c] sm:$0xf]
      %v215 = vld [vmem:[%s170 + $0x90] sm:$0xf]
      %v216 = vld [vmem:[%s170 + $0x94] sm:$0xf]
      %v217 = vld [vmem:[%s170 + $0x98] sm:$0xf]
      %v218 = vld [vmem:[%s170 + $0x9c] sm:$0xf]
      %v219 = vld [vmem:[%s170 + $0xa0] sm:$0xf]
      %v220 = vld [vmem:[%s170 + $0xa4] sm:$0xf]
      %v221 = vld [vmem:[%s170 + $0xa8] sm:$0xf]
      %v222 = vld [vmem:[%s170 + $0xac] sm:$0xf]
      %v223 = vld [vmem:[%s170 + $0xb0] sm:$0xf]
      %v224 = vld [vmem:[%s170 + $0xb4] sm:$0xf]
      %v225 = vld [vmem:[%s170 + $0xb8] sm:$0xf]
      %v226 = vld [vmem:[%s170 + $0xbc] sm:$0xf]
      %v227 = vld [vmem:[%s170 + $0xc0] sm:$0xf]
      %v228 = vld [vmem:[%s170 + $0xc4] sm:$0xf]
      %v229 = vld [vmem:[%s170 + $0xc8] sm:$0xf]
      %v230 = vld [vmem:[%s170 + $0xcc] sm:$0xf]
      %v231 = vld [vmem:[%s170 + $0xd0] sm:$0xf]
      %v232 = vld [vmem:[%s170 + $0xd4] sm:$0xf]
      %v233 = vld [vmem:[%s170 + $0xd8] sm:$0xf]
      %v234 = vld [vmem:[%s170 + $0xdc] sm:$0xf]
      %v235 = vld [vmem:[%s170 + $0xe0] sm:$0xf]
      %v236 = vld [vmem:[%s170 + $0xe4] sm:$0xf]
      %v237 = vld [vmem:[%s170 + $0xe8] sm:$0xf]
      %v238 = vld [vmem:[%s170 + $0xec] sm:$0xf]
      %v239 = vld [vmem:[%s170 + $0xf0] sm:$0xf]
      %v240 = vld [vmem:[%s170 + $0xf4] sm:$0xf]
      %v241 = vld [vmem:[%s170 + $0xf8] sm:$0xf]
      %v242 = vld [vmem:[%s170 + $0xfc] sm:$0xf]
      %v243 = vld [vmem:[%s170 + $0x100] sm:$0xf]
      %v244 = vld [vmem:[%s170 + $0x104] sm:$0xf]
      %v245 = vld [vmem:[%s170 + $0x108] sm:$0xf]
      %v246 = vld [vmem:[%s170 + $0x10c] sm:$0xf]
      %v247 = vld [vmem:[%s170 + $0x110] sm:$0xf]
      %v248 = vld [vmem:[%s170 + $0x114] sm:$0xf]
      %v249 = vld [vmem:[%s170 + $0x118] sm:$0xf]
      %v250 = vld [vmem:[%s170 + $0x11c] sm:$0xf]
      %v251 = vld [vmem:[%s170 + $0x120] sm:$0xf]
      %v252 = vld [vmem:[%s170 + $0x124] sm:$0xf]
      %v253 = vld [vmem:[%s170 + $0x128] sm:$0xf]
      %v254 = vld [vmem:[%s170 + $0x12c] sm:$0xf]
      %v255 = vld [vmem:[%s170 + $0x130] sm:$0xf]
      %v256 = vld [vmem:[%s170 + $0x134] sm:$0xf]
      %v257 = vld [vmem:[%s170 + $0x138] sm:$0xf]
      %v258 = vld [vmem:[%s170 + $0x13c] sm:$0xf]
      %v259 = vld [vmem:[%s170 + $0x140] sm:$0xf]
      %v260 = vld [vmem:[%s170 + $0x144] sm:$0xf]
      %v261 = vld [vmem:[%s170 + $0x148] sm:$0xf]
      %v262 = vld [vmem:[%s170 + $0x14c] sm:$0xf]
      %v263 = vld [vmem:[%s170 + $0x150] sm:$0xf]
      %v264 = vld [vmem:[%s170 + $0x154] sm:$0xf]
      %v265 = vld [vmem:[%s170 + $0x158] sm:$0xf]
      %v266 = vld [vmem:[%s170 + $0x15c] sm:$0xf]
      %v267 = vld [vmem:[%s170 + $0x160] sm:$0xf]
      %v268 = vld [vmem:[%s170 + $0x164] sm:$0xf]
      %v269 = vld [vmem:[%s170 + $0x168] sm:$0xf]
      %v270 = vld [vmem:[%s170 + $0x16c] sm:$0xf]
      %v271 = vld [vmem:[%s170 + $0x170] sm:$0xf]
      %v272 = vld [vmem:[%s170 + $0x174] sm:$0xf]
      %v273 = vld [vmem:[%s170 + $0x178] sm:$0xf]
      %v274 = vld [vmem:[%s170 + $0x17c] sm:$0xf]
      %v275 = vld [vmem:[%s170 + $0x180] sm:$0xf]
      %v276 = vld [vmem:[%s170 + $0x184] sm:$0xf]
      %v277 = vld [vmem:[%s170 + $0x188] sm:$0xf]
      %v278 = vld [vmem:[%s170 + $0x18c] sm:$0xf]
      %v279 = vld [vmem:[%s170 + $0x190] sm:$0xf]
      %v280 = vld [vmem:[%s170 + $0x194] sm:$0xf]
      %v281 = vld [vmem:[%s170 + $0x198] sm:$0xf]
      %v282 = vld [vmem:[%s170 + $0x19c] sm:$0xf]
      %v283 = vld [vmem:[%s170 + $0x1a0] sm:$0xf]
      %v284 = vld [vmem:[%s170 + $0x1a4] sm:$0xf]
      %v285 = vld [vmem:[%s170 + $0x1a8] sm:$0xf]
      %v286 = vld [vmem:[%s170 + $0x1ac] sm:$0xf]
      %v287 = vld [vmem:[%s170 + $0x1b0] sm:$0xf]
      %v288 = vld [vmem:[%s170 + $0x1b4] sm:$0xf]
      %v289 = vld [vmem:[%s170 + $0x1b8] sm:$0xf]
      %v290 = vld [vmem:[%s170 + $0x1bc] sm:$0xf]
      %v291 = vld [vmem:[%s170 + $0x1c0] sm:$0xf]
      %v292 = vld [vmem:[%s170 + $0x1c4] sm:$0xf]
      %v293 = vld [vmem:[%s170 + $0x1c8] sm:$0xf]
      %v294 = vld [vmem:[%s170 + $0x1cc] sm:$0xf]
      %v295 = vld [vmem:[%s170 + $0x1d0] sm:$0xf]
      %v296 = vld [vmem:[%s170 + $0x1d4] sm:$0xf]
      %v297 = vld [vmem:[%s170 + $0x1d8] sm:$0xf]
      %v298 = vld [vmem:[%s170 + $0x1dc] sm:$0xf]
      %v299 = vld [vmem:[%s170 + $0x1e0] sm:$0xf]
      %v300 = vld [vmem:[%s170 + $0x1e4] sm:$0xf]
      %v301 = vld [vmem:[%s170 + $0x1e8] sm:$0xf]
      %v302 = vld [vmem:[%s170 + $0x1ec] sm:$0xf]
      %v303 = vld [vmem:[%s170 + $0x1f0] sm:$0xf]
      %v304 = vld [vmem:[%s170 + $0x1f4] sm:$0xf]
      %v305 = vld [vmem:[%s170 + $0x1f8] sm:$0xf]
      %v306 = vld [vmem:[%s170 + $0x1fc] sm:$0xf]
      %v307 = vld [vmem:[%s170 + $0x200] sm:$0xf]
      %v308 = vld [vmem:[%s170 + $0x204] sm:$0xf]
      %v309 = vld [vmem:[%s170 + $0x208] sm:$0xf]
      %v310 = vld [vmem:[%s170 + $0x20c] sm:$0xf]
      %v311 = vld [vmem:[%s170 + $0x210] sm:$0xf]
      %v312 = vld [vmem:[%s170 + $0x214] sm:$0xf]
      %v313 = vld [vmem:[%s170 + $0x218] sm:$0xf]
      %v314 = vld [vmem:[%s170 + $0x21c] sm:$0xf]
      %v315 = vld [vmem:[%s170 + $0x220] sm:$0xf]
      %v316 = vld [vmem:[%s170 + $0x224] sm:$0xf]
      %v317 = vld [vmem:[%s170 + $0x228] sm:$0xf]
      %v318 = vld [vmem:[%s170 + $0x22c] sm:$0xf]
      %v319 = vld [vmem:[%s170 + $0x230] sm:$0xf]
      %v320 = vld [vmem:[%s170 + $0x234] sm:$0xf]
      %v321 = vld [vmem:[%s170 + $0x238] sm:$0xf]
      %v322 = vld [vmem:[%s170 + $0x23c] sm:$0xf]
      %v323 = vld [vmem:[%s170 + $0x240] sm:$0xf]
      %v324 = vld [vmem:[%s170 + $0x244] sm:$0xf]
      %v325 = vld [vmem:[%s170 + $0x248] sm:$0xf]
      %v326 = vld [vmem:[%s170 + $0x24c] sm:$0xf]
      %v327 = vld [vmem:[%s170 + $0x250] sm:$0xf]
      %v328 = vld [vmem:[%s170 + $0x254] sm:$0xf]
      %v329 = vld [vmem:[%s170 + $0x258] sm:$0xf]
      %v330 = vld [vmem:[%s170 + $0x25c] sm:$0xf]
      %v331 = vld [vmem:[%s170 + $0x260] sm:$0xf]
      %v332 = vld [vmem:[%s170 + $0x264] sm:$0xf]
      %v333 = vld [vmem:[%s170 + $0x268] sm:$0xf]
      %v334 = vld [vmem:[%s170 + $0x26c] sm:$0xf]
      %v335 = vld [vmem:[%s170 + $0x270] sm:$0xf]
      %v336 = vld [vmem:[%s170 + $0x274] sm:$0xf]
      %v337 = vld [vmem:[%s170 + $0x278] sm:$0xf]
      %v338 = vld [vmem:[%s170 + $0x27c] sm:$0xf]
      %v339 = vld [vmem:[%s170 + $0x280] sm:$0xf]
      %v340 = vld [vmem:[%s170 + $0x284] sm:$0xf]
      %v341 = vld [vmem:[%s170 + $0x288] sm:$0xf]
      %v342 = vld [vmem:[%s170 + $0x28c] sm:$0xf]
      %v343 = vld [vmem:[%s170 + $0x290] sm:$0xf]
      %v344 = vld [vmem:[%s170 + $0x294] sm:$0xf]
      %v345 = vld [vmem:[%s170 + $0x298] sm:$0xf]
      %v346 = vld [vmem:[%s170 + $0x29c] sm:$0xf]
      %v347 = vld [vmem:[%s170 + $0x2a0] sm:$0xf]
      %v348 = vld [vmem:[%s170 + $0x2a4] sm:$0xf]
      %v349 = vld [vmem:[%s170 + $0x2a8] sm:$0xf]
      %v350 = vld [vmem:[%s170 + $0x2ac] sm:$0xf]
      %v351 = vld [vmem:[%s170 + $0x2b0] sm:$0xf]
      %v352 = vld [vmem:[%s170 + $0x2b4] sm:$0xf]
      %v353 = vld [vmem:[%s170 + $0x2b8] sm:$0xf]
      %v354 = vld [vmem:[%s170 + $0x2bc] sm:$0xf]
      %v355 = vld [vmem:[%s170 + $0x2c0] sm:$0xf]
      %v356 = vld [vmem:[%s170 + $0x2c4] sm:$0xf]
      %v357 = vld [vmem:[%s170 + $0x2c8] sm:$0xf]
      %v358 = vld [vmem:[%s170 + $0x2cc] sm:$0xf]
      %v359 = vld [vmem:[%s170 + $0x2d0] sm:$0xf]
      %v360 = vld [vmem:[%s170 + $0x2d4] sm:$0xf]
      %v361 = vld [vmem:[%s170 + $0x2d8] sm:$0xf]
      %v362 = vld [vmem:[%s170 + $0x2dc] sm:$0xf]
      %v363 = vld [vmem:[%s170 + $0x2e0] sm:$0xf]
      %v364 = vld [vmem:[%s170 + $0x2e4] sm:$0xf]
      %v365 = vld [vmem:[%s170 + $0x2e8] sm:$0xf]
      %v366 = vld [vmem:[%s170 + $0x2ec] sm:$0xf]
      %v367 = vld [vmem:[%s170 + $0x2f0] sm:$0xf]
      %v368 = vld [vmem:[%s170 + $0x2f4] sm:$0xf]
      %v369 = vld [vmem:[%s170 + $0x2f8] sm:$0xf]
      %v370 = vld [vmem:[%s170 + $0x2fc] sm:$0xf]
      %v371 = vld [vmem:[%s170 + $0x300] sm:$0xf]
      %v372 = vld [vmem:[%s170 + $0x304] sm:$0xf]
      %v373 = vld [vmem:[%s170 + $0x308] sm:$0xf]
      %v374 = vld [vmem:[%s170 + $0x30c] sm:$0xf]
      %v375 = vld [vmem:[%s170 + $0x310] sm:$0xf]
      %v376 = vld [vmem:[%s170 + $0x314] sm:$0xf]
      %v377 = vld [vmem:[%s170 + $0x318] sm:$0xf]
      %v378 = vld [vmem:[%s170 + $0x31c] sm:$0xf]
      %v379 = vld [vmem:[%s170 + $0x320] sm:$0xf]
      %v380 = vld [vmem:[%s170 + $0x324] sm:$0xf]
      %v381 = vld [vmem:[%s170 + $0x328] sm:$0xf]
      %v382 = vld [vmem:[%s170 + $0x32c] sm:$0xf]
      %v383 = vld [vmem:[%s170 + $0x330] sm:$0xf]
      %v384 = vld [vmem:[%s170 + $0x334] sm:$0xf]
      %v385 = vld [vmem:[%s170 + $0x338] sm:$0xf]
      %v386 = vld [vmem:[%s170 + $0x33c] sm:$0xf]
      %v387 = vld [vmem:[%s170 + $0x340] sm:$0xf]
      %v388 = vld [vmem:[%s170 + $0x344] sm:$0xf]
      %v389 = vld [vmem:[%s170 + $0x348] sm:$0xf]
      %v390 = vld [vmem:[%s170 + $0x34c] sm:$0xf]
      %v391 = vld [vmem:[%s170 + $0x350] sm:$0xf]
      %v392 = vld [vmem:[%s170 + $0x354] sm:$0xf]
      %v393 = vld [vmem:[%s170 + $0x358] sm:$0xf]
      %v394 = vld [vmem:[%s170 + $0x35c] sm:$0xf]
      %v395 = vld [vmem:[%s170 + $0x360] sm:$0xf]
      %v396 = vld [vmem:[%s170 + $0x364] sm:$0xf]
      %v397 = vld [vmem:[%s170 + $0x368] sm:$0xf]
      %v398 = vld [vmem:[%s170 + $0x36c] sm:$0xf]
      %v399 = vld [vmem:[%s170 + $0x370] sm:$0xf]
      %v400 = vld [vmem:[%s170 + $0x374] sm:$0xf]
      %v401 = vld [vmem:[%s170 + $0x378] sm:$0xf]
      %v402 = vld [vmem:[%s170 + $0x37c] sm:$0xf]
      %v403 = vld [vmem:[%s170 + $0x380] sm:$0xf]
      %v404 = vld [vmem:[%s170 + $0x384] sm:$0xf]
      %v405 = vld [vmem:[%s170 + $0x388] sm:$0xf]
      %v406 = vld [vmem:[%s170 + $0x38c] sm:$0xf]
      %v407 = vld [vmem:[%s170 + $0x390] sm:$0xf]
      %v408 = vld [vmem:[%s170 + $0x394] sm:$0xf]
      %v409 = vld [vmem:[%s170 + $0x398] sm:$0xf]
      %v410 = vld [vmem:[%s170 + $0x39c] sm:$0xf]
      %v411 = vld [vmem:[%s170 + $0x3a0] sm:$0xf]
      %v412 = vld [vmem:[%s170 + $0x3a4] sm:$0xf]
      %v413 = vld [vmem:[%s170 + $0x3a8] sm:$0xf]
      %v414 = vld [vmem:[%s170 + $0x3ac] sm:$0xf]
      %v415 = vld [vmem:[%s170 + $0x3b0] sm:$0xf]
      %v416 = vld [vmem:[%s170 + $0x3b4] sm:$0xf]
      %v417 = vld [vmem:[%s170 + $0x3b8] sm:$0xf]
      %v418 = vld [vmem:[%s170 + $0x3bc] sm:$0xf]
      %v419 = vld [vmem:[%s170 + $0x3c0] sm:$0xf]
      %v420 = vld [vmem:[%s170 + $0x3c4] sm:$0xf]
      %v421 = vld [vmem:[%s170 + $0x3c8] sm:$0xf]
      %v422 = vld [vmem:[%s170 + $0x3cc] sm:$0xf]
      %v423 = vld [vmem:[%s170 + $0x3d0] sm:$0xf]
      %v424 = vld [vmem:[%s170 + $0x3d4] sm:$0xf]
      %v425 = vld [vmem:[%s170 + $0x3d8] sm:$0xf]
      %v426 = vld [vmem:[%s170 + $0x3dc] sm:$0xf]
      %v427 = vld [vmem:[%s170 + $0x3e0] sm:$0xf]
      %v428 = vld [vmem:[%s170 + $0x3e4] sm:$0xf]
      %v429 = vld [vmem:[%s170 + $0x3e8] sm:$0xf]
      %v430 = vld [vmem:[%s170 + $0x3ec] sm:$0xf]
      %v431 = vld [vmem:[%s170 + $0x3f0] sm:$0xf]
      %v432 = vld [vmem:[%s170 + $0x3f4] sm:$0xf]
      %v433 = vld [vmem:[%s170 + $0x3f8] sm:$0xf]
      %v434 = vld [vmem:[%s170 + $0x3fc] sm:$0xf]
      %v435 = vld [vmem:[%s170 + $0x400] sm:$0xf]
      %v436 = vld [vmem:[%s170 + $0x404] sm:$0xf]
      %v437 = vld [vmem:[%s170 + $0x408] sm:$0xf]
      %v438 = vld [vmem:[%s170 + $0x40c] sm:$0xf]
      %v439 = vld [vmem:[%s170 + $0x410] sm:$0xf]
      %v440 = vld [vmem:[%s170 + $0x414] sm:$0xf]
      %v441 = vld [vmem:[%s170 + $0x418] sm:$0xf]
      %v442 = vld [vmem:[%s170 + $0x41c] sm:$0xf]
      %v443 = vld [vmem:[%s170 + $0x420] sm:$0xf]
      %v444 = vld [vmem:[%s170 + $0x424] sm:$0xf]
      %v445 = vld [vmem:[%s170 + $0x428] sm:$0xf]
      %v446 = vld [vmem:[%s170 + $0x42c] sm:$0xf]
      %v447 = vld [vmem:[%s170 + $0x430] sm:$0xf]
      %v448 = vld [vmem:[%s170 + $0x434] sm:$0xf]
      %v449 = vld [vmem:[%s170 + $0x438] sm:$0xf]
      %v450 = vld [vmem:[%s170 + $0x43c] sm:$0xf]
      %v451 = vld [vmem:[%s170 + $0x440] sm:$0xf]
      %v452 = vld [vmem:[%s170 + $0x444] sm:$0xf]
      %v453 = vld [vmem:[%s170 + $0x448] sm:$0xf]
      %v454 = vld [vmem:[%s170 + $0x44c] sm:$0xf]
      %v455 = vld [vmem:[%s170 + $0x450] sm:$0xf]
      %v456 = vld [vmem:[%s170 + $0x454] sm:$0xf]
      %v457 = vld [vmem:[%s170 + $0x458] sm:$0xf]
      %v458 = vld [vmem:[%s170 + $0x45c] sm:$0xf]
      %v459 = vld [vmem:[%s170 + $0x460] sm:$0xf]
      %v460 = vld [vmem:[%s170 + $0x464] sm:$0xf]
      %v461 = vld [vmem:[%s170 + $0x468] sm:$0xf]
      %v462 = vld [vmem:[%s170 + $0x46c] sm:$0xf]
      %v463 = vld [vmem:[%s170 + $0x470] sm:$0xf]
      %v464 = vld [vmem:[%s170 + $0x474] sm:$0xf]
      %v465 = vld [vmem:[%s170 + $0x478] sm:$0xf]
      %v466 = vld [vmem:[%s170 + $0x47c] sm:$0xf]
      %v467 = vld [vmem:[%s1] sm:$0xf]
      %v468 = vld [vmem:[%s1 + $0x4] sm:$0xf]
      %v469 = vld [vmem:[%s1 + $0x8] sm:$0xf]
      %v470 = vld [vmem:[%s1 + $0xc] sm:$0xf]
      %v471 = vld [vmem:[%s1 + $0x10] sm:$0xf]
      %v472 = vld [vmem:[%s1 + $0x14] sm:$0xf]
      %v473 = vld [vmem:[%s1 + $0x18] sm:$0xf]
      %v474 = vld [vmem:[%s1 + $0x1c] sm:$0xf]
      %v475 = vld [vmem:[%s1 + $0x20] sm:$0xf]
      %v476 = vld [vmem:[%s1 + $0x24] sm:$0xf]
      %v477 = vld [vmem:[%s1 + $0x28] sm:$0xf]
      %v478 = vld [vmem:[%s1 + $0x2c] sm:$0xf]
      %v479 = vld [vmem:[%s1 + $0x30] sm:$0xf]
      %v480 = vld [vmem:[%s1 + $0x34] sm:$0xf]
      %v481 = vld [vmem:[%s1 + $0x38] sm:$0xf]
      %v482 = vld [vmem:[%s1 + $0x3c] sm:$0xf]
      %v771 = vunpack.c.l.b16 %v179
      %v772 = vunpack.c.l.b16 %v180
      %v773 = vunpack.c.l.b16 %v181
      %v774 = vunpack.c.l.b16 %v182
      %v775 = vunpack.c.l.b16 %v183
      %v776 = vunpack.c.l.b16 %v184
      %v777 = vunpack.c.l.b16 %v185
      %v778 = vunpack.c.l.b16 %v186
      %v779 = vunpack.c.l.b16 %v187
      %v780 = vunpack.c.l.b16 %v188
      %v781 = vunpack.c.l.b16 %v189
      %v782 = vunpack.c.l.b16 %v190
      %v783 = vunpack.c.l.b16 %v191
      %v784 = vunpack.c.l.b16 %v192
      %v785 = vunpack.c.l.b16 %v193
      %v786 = vunpack.c.l.b16 %v194
      %v787 = vunpack.c.l.b16 %v195
      %v788 = vunpack.c.l.b16 %v196
      %v789 = vunpack.c.l.b16 %v197
      %v790 = vunpack.c.l.b16 %v198
      %v791 = vunpack.c.l.b16 %v199
      %v792 = vunpack.c.l.b16 %v200
      %v793 = vunpack.c.l.b16 %v201
      %v794 = vunpack.c.l.b16 %v202
      %v795 = vunpack.c.l.b16 %v203
      %v796 = vunpack.c.l.b16 %v204
      %v797 = vunpack.c.l.b16 %v205
      %v798 = vunpack.c.l.b16 %v206
      %v799 = vunpack.c.l.b16 %v207
      %v800 = vunpack.c.l.b16 %v208
      %v801 = vunpack.c.l.b16 %v209
      %v802 = vunpack.c.l.b16 %v210
      %v803 = vunpack.c.l.b16 %v211
      %v804 = vunpack.c.l.b16 %v212
      %v805 = vunpack.c.l.b16 %v213
      %v806 = vunpack.c.l.b16 %v214
      %v807 = vunpack.c.l.b16 %v215
      %v808 = vunpack.c.l.b16 %v216
      %v809 = vunpack.c.l.b16 %v217
      %v810 = vunpack.c.l.b16 %v218
      %v811 = vunpack.c.l.b16 %v219
      %v812 = vunpack.c.l.b16 %v220
      %v813 = vunpack.c.l.b16 %v221
      %v814 = vunpack.c.l.b16 %v222
      %v815 = vunpack.c.l.b16 %v223
      %v816 = vunpack.c.l.b16 %v224
      %v817 = vunpack.c.l.b16 %v225
      %v818 = vunpack.c.l.b16 %v226
      %v819 = vunpack.c.l.b16 %v227
      %v820 = vunpack.c.l.b16 %v228
      %v821 = vunpack.c.l.b16 %v229
      %v822 = vunpack.c.l.b16 %v230
      %v823 = vunpack.c.l.b16 %v231
      %v824 = vunpack.c.l.b16 %v232
      %v825 = vunpack.c.l.b16 %v233
      %v826 = vunpack.c.l.b16 %v234
      %v827 = vunpack.c.l.b16 %v235
      %v828 = vunpack.c.l.b16 %v236
      %v829 = vunpack.c.l.b16 %v237
      %v830 = vunpack.c.l.b16 %v238
      %v831 = vunpack.c.l.b16 %v239
      %v832 = vunpack.c.l.b16 %v240
      %v833 = vunpack.c.l.b16 %v241
      %v834 = vunpack.c.l.b16 %v242
      %v835 = vunpack.c.l.b16 %v243
      %v836 = vunpack.c.l.b16 %v244
      %v837 = vunpack.c.l.b16 %v245
      %v838 = vunpack.c.l.b16 %v246
      %v839 = vunpack.c.l.b16 %v247
      %v840 = vunpack.c.l.b16 %v248
      %v841 = vunpack.c.l.b16 %v249
      %v842 = vunpack.c.l.b16 %v250
      %v843 = vunpack.c.l.b16 %v251
      %v844 = vunpack.c.l.b16 %v252
      %v845 = vunpack.c.l.b16 %v253
      %v846 = vunpack.c.l.b16 %v254
      %v847 = vunpack.c.l.b16 %v255
      %v848 = vunpack.c.l.b16 %v256
      %v849 = vunpack.c.l.b16 %v257
      %v850 = vunpack.c.l.b16 %v258
      %v851 = vunpack.c.l.b16 %v259
      %v852 = vunpack.c.l.b16 %v260
      %v853 = vunpack.c.l.b16 %v261
      %v854 = vunpack.c.l.b16 %v262
      %v855 = vunpack.c.l.b16 %v263
      %v856 = vunpack.c.l.b16 %v264
      %v857 = vunpack.c.l.b16 %v265
      %v858 = vunpack.c.l.b16 %v266
      %v859 = vunpack.c.l.b16 %v267
      %v860 = vunpack.c.l.b16 %v268
      %v861 = vunpack.c.l.b16 %v269
      %v862 = vunpack.c.l.b16 %v270
      %v863 = vunpack.c.l.b16 %v271
      %v864 = vunpack.c.l.b16 %v272
      %v865 = vunpack.c.l.b16 %v273
      %v866 = vunpack.c.l.b16 %v274
      %v867 = vunpack.c.l.b16 %v275
      %v868 = vunpack.c.l.b16 %v276
      %v869 = vunpack.c.l.b16 %v277
      %v870 = vunpack.c.l.b16 %v278
      %v871 = vunpack.c.l.b16 %v279
      %v872 = vunpack.c.l.b16 %v280
      %v873 = vunpack.c.l.b16 %v281
      %v874 = vunpack.c.l.b16 %v282
      %v875 = vunpack.c.l.b16 %v283
      %v876 = vunpack.c.l.b16 %v284
      %v877 = vunpack.c.l.b16 %v285
      %v878 = vunpack.c.l.b16 %v286
      %v879 = vunpack.c.l.b16 %v287
      %v880 = vunpack.c.l.b16 %v288
      %v881 = vunpack.c.l.b16 %v289
      %v882 = vunpack.c.l.b16 %v290
      %v883 = vunpack.c.l.b16 %v291
      %v884 = vunpack.c.l.b16 %v292
      %v885 = vunpack.c.l.b16 %v293
      %v886 = vunpack.c.l.b16 %v294
      %v887 = vunpack.c.l.b16 %v295
      %v888 = vunpack.c.l.b16 %v296
      %v889 = vunpack.c.l.b16 %v297
      %v890 = vunpack.c.l.b16 %v298
      %v891 = vunpack.c.l.b16 %v299
      %v892 = vunpack.c.l.b16 %v300
      %v893 = vunpack.c.l.b16 %v301
      %v894 = vunpack.c.l.b16 %v302
      %v895 = vunpack.c.l.b16 %v303
      %v896 = vunpack.c.l.b16 %v304
      %v897 = vunpack.c.l.b16 %v305
      %v898 = vunpack.c.l.b16 %v306
      %v899 = vunpack.c.l.b16 %v307
      %v900 = vunpack.c.l.b16 %v308
      %v901 = vunpack.c.l.b16 %v309
      %v902 = vunpack.c.l.b16 %v310
      %v903 = vunpack.c.l.b16 %v311
      %v904 = vunpack.c.l.b16 %v312
      %v905 = vunpack.c.l.b16 %v313
      %v906 = vunpack.c.l.b16 %v314
      %v907 = vunpack.c.l.b16 %v315
      %v908 = vunpack.c.l.b16 %v316
      %v909 = vunpack.c.l.b16 %v317
      %v910 = vunpack.c.l.b16 %v318
      %v911 = vunpack.c.l.b16 %v319
      %v912 = vunpack.c.l.b16 %v320
      %v913 = vunpack.c.l.b16 %v321
      %v914 = vunpack.c.l.b16 %v322
      %v915 = vunpack.c.l.b16 %v323
      %v916 = vunpack.c.l.b16 %v324
      %v917 = vunpack.c.l.b16 %v325
      %v918 = vunpack.c.l.b16 %v326
      %v919 = vunpack.c.l.b16 %v327
      %v920 = vunpack.c.l.b16 %v328
      %v921 = vunpack.c.l.b16 %v329
      %v922 = vunpack.c.l.b16 %v330
      %v923 = vunpack.c.l.b16 %v331
      %v924 = vunpack.c.l.b16 %v332
      %v925 = vunpack.c.l.b16 %v333
      %v926 = vunpack.c.l.b16 %v334
      %v927 = vunpack.c.l.b16 %v335
      %v928 = vunpack.c.l.b16 %v336
      %v929 = vunpack.c.l.b16 %v337
      %v930 = vunpack.c.l.b16 %v338
      %v931 = vunpack.c.l.b16 %v339
      %v932 = vunpack.c.l.b16 %v340
      %v933 = vunpack.c.l.b16 %v341
      %v934 = vunpack.c.l.b16 %v342
      %v935 = vunpack.c.l.b16 %v343
      %v936 = vunpack.c.l.b16 %v344
      %v937 = vunpack.c.l.b16 %v345
      %v938 = vunpack.c.l.b16 %v346
      %v939 = vunpack.c.l.b16 %v347
      %v940 = vunpack.c.l.b16 %v348
      %v941 = vunpack.c.l.b16 %v349
      %v942 = vunpack.c.l.b16 %v350
      %v943 = vunpack.c.l.b16 %v351
      %v944 = vunpack.c.l.b16 %v352
      %v945 = vunpack.c.l.b16 %v353
      %v946 = vunpack.c.l.b16 %v354
      %v947 = vunpack.c.l.b16 %v355
      %v948 = vunpack.c.l.b16 %v356
      %v949 = vunpack.c.l.b16 %v357
      %v950 = vunpack.c.l.b16 %v358
      %v951 = vunpack.c.l.b16 %v359
      %v952 = vunpack.c.l.b16 %v360
      %v953 = vunpack.c.l.b16 %v361
      %v954 = vunpack.c.l.b16 %v362
      %v955 = vunpack.c.l.b16 %v363
      %v956 = vunpack.c.l.b16 %v364
      %v957 = vunpack.c.l.b16 %v365
      %v958 = vunpack.c.l.b16 %v366
      %v959 = vunpack.c.l.b16 %v367
      %v960 = vunpack.c.l.b16 %v368
      %v961 = vunpack.c.l.b16 %v369
      %v962 = vunpack.c.l.b16 %v370
      %v963 = vunpack.c.l.b16 %v371
      %v964 = vunpack.c.l.b16 %v372
      %v965 = vunpack.c.l.b16 %v373
      %v966 = vunpack.c.l.b16 %v374
      %v967 = vunpack.c.l.b16 %v375
      %v968 = vunpack.c.l.b16 %v376
      %v969 = vunpack.c.l.b16 %v377
      %v970 = vunpack.c.l.b16 %v378
      %v971 = vunpack.c.l.b16 %v379
      %v972 = vunpack.c.l.b16 %v380
      %v973 = vunpack.c.l.b16 %v381
      %v974 = vunpack.c.l.b16 %v382
      %v975 = vunpack.c.l.b16 %v383
      %v976 = vunpack.c.l.b16 %v384
      %v977 = vunpack.c.l.b16 %v385
      %v978 = vunpack.c.l.b16 %v386
      %v979 = vunpack.c.l.b16 %v387
      %v980 = vunpack.c.l.b16 %v388
      %v981 = vunpack.c.l.b16 %v389
      %v982 = vunpack.c.l.b16 %v390
      %v983 = vunpack.c.l.b16 %v391
      %v984 = vunpack.c.l.b16 %v392
      %v985 = vunpack.c.l.b16 %v393
      %v986 = vunpack.c.l.b16 %v394
      %v987 = vunpack.c.l.b16 %v395
      %v988 = vunpack.c.l.b16 %v396
      %v989 = vunpack.c.l.b16 %v397
      %v990 = vunpack.c.l.b16 %v398
      %v991 = vunpack.c.l.b16 %v399
      %v992 = vunpack.c.l.b16 %v400
      %v993 = vunpack.c.l.b16 %v401
      %v994 = vunpack.c.l.b16 %v402
      %v995 = vunpack.c.l.b16 %v403
      %v996 = vunpack.c.l.b16 %v404
      %v997 = vunpack.c.l.b16 %v405
      %v998 = vunpack.c.l.b16 %v406
      %v999 = vunpack.c.l.b16 %v407
      %v1000 = vunpack.c.l.b16 %v408
      %v1001 = vunpack.c.l.b16 %v409
      %v1002 = vunpack.c.l.b16 %v410
      %v1003 = vunpack.c.l.b16 %v411
      %v1004 = vunpack.c.l.b16 %v412
      %v1005 = vunpack.c.l.b16 %v413
      %v1006 = vunpack.c.l.b16 %v414
      %v1007 = vunpack.c.l.b16 %v415
      %v1008 = vunpack.c.l.b16 %v416
      %v1009 = vunpack.c.l.b16 %v417
      %v1010 = vunpack.c.l.b16 %v418
      %v1011 = vunpack.c.l.b16 %v419
      %v1012 = vunpack.c.l.b16 %v420
      %v1013 = vunpack.c.l.b16 %v421
      %v1014 = vunpack.c.l.b16 %v422
      %v1015 = vunpack.c.l.b16 %v423
      %v1016 = vunpack.c.l.b16 %v424
      %v1017 = vunpack.c.l.b16 %v425
      %v1018 = vunpack.c.l.b16 %v426
      %v1019 = vunpack.c.l.b16 %v427
      %v1020 = vunpack.c.l.b16 %v428
      %v1021 = vunpack.c.l.b16 %v429
      %v1022 = vunpack.c.l.b16 %v430
      %v1023 = vunpack.c.l.b16 %v431
      %v1024 = vunpack.c.l.b16 %v432
      %v1025 = vunpack.c.l.b16 %v433
      %v1026 = vunpack.c.l.b16 %v434
      %v1027 = vunpack.c.l.b16 %v435
      %v1028 = vunpack.c.l.b16 %v436
      %v1029 = vunpack.c.l.b16 %v437
      %v1030 = vunpack.c.l.b16 %v438
      %v1031 = vunpack.c.l.b16 %v439
      %v1032 = vunpack.c.l.b16 %v440
      %v1033 = vunpack.c.l.b16 %v441
      %v1034 = vunpack.c.l.b16 %v442
      %v1035 = vunpack.c.l.b16 %v443
      %v1036 = vunpack.c.l.b16 %v444
      %v1037 = vunpack.c.l.b16 %v445
      %v1038 = vunpack.c.l.b16 %v446
      %v1039 = vunpack.c.l.b16 %v447
      %v1040 = vunpack.c.l.b16 %v448
      %v1041 = vunpack.c.l.b16 %v449
      %v1042 = vunpack.c.l.b16 %v450
      %v1043 = vunpack.c.l.b16 %v451
      %v1044 = vunpack.c.l.b16 %v452
      %v1045 = vunpack.c.l.b16 %v453
      %v1046 = vunpack.c.l.b16 %v454
      %v1047 = vunpack.c.l.b16 %v455
      %v1048 = vunpack.c.l.b16 %v456
      %v1049 = vunpack.c.l.b16 %v457
      %v1050 = vunpack.c.l.b16 %v458
      %v1051 = vunpack.c.l.b16 %v459
      %v1052 = vunpack.c.l.b16 %v460
      %v1053 = vunpack.c.l.b16 %v461
      %v1054 = vunpack.c.l.b16 %v462
      %v1055 = vunpack.c.l.b16 %v463
      %v1056 = vunpack.c.l.b16 %v464
      %v1057 = vunpack.c.l.b16 %v465
      %v1058 = vunpack.c.l.b16 %v466
      %v1059 = vpack.c.b16 %v772, %v771
      %v1060 = vpack.c.b16 %v774, %v773
      %v1061 = vpack.c.b16 %v776, %v775
      %v1062 = vpack.c.b16 %v778, %v777
      %v1063 = vpack.c.b16 %v780, %v779
      %v1064 = vpack.c.b16 %v782, %v781
      %v1065 = vpack.c.b16 %v784, %v783
      %v1066 = vpack.c.b16 %v786, %v785
      %v1067 = vpack.c.b16 %v788, %v787
      %v1068 = vpack.c.b16 %v790, %v789
      %v1069 = vpack.c.b16 %v792, %v791
      %v1070 = vpack.c.b16 %v794, %v793
      %v1071 = vpack.c.b16 %v796, %v795
      %v1072 = vpack.c.b16 %v798, %v797
      %v1073 = vpack.c.b16 %v800, %v799
      %v1074 = vpack.c.b16 %v802, %v801
      %v1075 = vpack.c.b16 %v804, %v803
      %v1076 = vpack.c.b16 %v806, %v805
      %v1077 = vpack.c.b16 %v808, %v807
      %v1078 = vpack.c.b16 %v810, %v809
      %v1079 = vpack.c.b16 %v812, %v811
      %v1080 = vpack.c.b16 %v814, %v813
      %v1081 = vpack.c.b16 %v816, %v815
      %v1082 = vpack.c.b16 %v818, %v817
      %v1083 = vpack.c.b16 %v820, %v819
      %v1084 = vpack.c.b16 %v822, %v821
      %v1085 = vpack.c.b16 %v824, %v823
      %v1086 = vpack.c.b16 %v826, %v825
      %v1087 = vpack.c.b16 %v828, %v827
      %v1088 = vpack.c.b16 %v830, %v829
      %v1089 = vpack.c.b16 %v832, %v831
      %v1090 = vpack.c.b16 %v834, %v833
      %v1091 = vpack.c.b16 %v836, %v835
      %v1092 = vpack.c.b16 %v838, %v837
      %v1093 = vpack.c.b16 %v840, %v839
      %v1094 = vpack.c.b16 %v842, %v841
      %v1095 = vpack.c.b16 %v844, %v843
      %v1096 = vpack.c.b16 %v846, %v845
      %v1097 = vpack.c.b16 %v848, %v847
      %v1098 = vpack.c.b16 %v850, %v849
      %v1099 = vpack.c.b16 %v852, %v851
      %v1100 = vpack.c.b16 %v854, %v853
      %v1101 = vpack.c.b16 %v856, %v855
      %v1102 = vpack.c.b16 %v858, %v857
      %v1103 = vpack.c.b16 %v860, %v859
      %v1104 = vpack.c.b16 %v862, %v861
      %v1105 = vpack.c.b16 %v864, %v863
      %v1106 = vpack.c.b16 %v866, %v865
      %v1107 = vpack.c.b16 %v868, %v867
      %v1108 = vpack.c.b16 %v870, %v869
      %v1109 = vpack.c.b16 %v872, %v871
      %v1110 = vpack.c.b16 %v874, %v873
      %v1111 = vpack.c.b16 %v876, %v875
      %v1112 = vpack.c.b16 %v878, %v877
      %v1113 = vpack.c.b16 %v880, %v879
      %v1114 = vpack.c.b16 %v882, %v881
      %v1115 = vpack.c.b16 %v884, %v883
      %v1116 = vpack.c.b16 %v886, %v885
      %v1117 = vpack.c.b16 %v888, %v887
      %v1118 = vpack.c.b16 %v890, %v889
      %v1119 = vpack.c.b16 %v892, %v891
      %v1120 = vpack.c.b16 %v894, %v893
      %v1121 = vpack.c.b16 %v896, %v895
      %v1122 = vpack.c.b16 %v898, %v897
      %v1123 = vpack.c.b16 %v900, %v899
      %v1124 = vpack.c.b16 %v902, %v901
      %v1125 = vpack.c.b16 %v904, %v903
      %v1126 = vpack.c.b16 %v906, %v905
      %v1127 = vpack.c.b16 %v908, %v907
      %v1128 = vpack.c.b16 %v910, %v909
      %v1129 = vpack.c.b16 %v912, %v911
      %v1130 = vpack.c.b16 %v914, %v913
      %v1131 = vpack.c.b16 %v916, %v915
      %v1132 = vpack.c.b16 %v918, %v917
      %v1133 = vpack.c.b16 %v920, %v919
      %v1134 = vpack.c.b16 %v922, %v921
      %v1135 = vpack.c.b16 %v924, %v923
      %v1136 = vpack.c.b16 %v926, %v925
      %v1137 = vpack.c.b16 %v928, %v927
      %v1138 = vpack.c.b16 %v930, %v929
      %v1139 = vpack.c.b16 %v932, %v931
      %v1140 = vpack.c.b16 %v934, %v933
      %v1141 = vpack.c.b16 %v936, %v935
      %v1142 = vpack.c.b16 %v938, %v937
      %v1143 = vpack.c.b16 %v940, %v939
      %v1144 = vpack.c.b16 %v942, %v941
      %v1145 = vpack.c.b16 %v944, %v943
      %v1146 = vpack.c.b16 %v946, %v945
      %v1147 = vpack.c.b16 %v948, %v947
      %v1148 = vpack.c.b16 %v950, %v949
      %v1149 = vpack.c.b16 %v952, %v951
      %v1150 = vpack.c.b16 %v954, %v953
      %v1151 = vpack.c.b16 %v956, %v955
      %v1152 = vpack.c.b16 %v958, %v957
      %v1153 = vpack.c.b16 %v960, %v959
      %v1154 = vpack.c.b16 %v962, %v961
      %v1155 = vpack.c.b16 %v964, %v963
      %v1156 = vpack.c.b16 %v966, %v965
      %v1157 = vpack.c.b16 %v968, %v967
      %v1158 = vpack.c.b16 %v970, %v969
      %v1159 = vpack.c.b16 %v972, %v971
      %v1160 = vpack.c.b16 %v974, %v973
      %v1161 = vpack.c.b16 %v976, %v975
      %v1162 = vpack.c.b16 %v978, %v977
      %v1163 = vpack.c.b16 %v980, %v979
      %v1164 = vpack.c.b16 %v982, %v981
      %v1165 = vpack.c.b16 %v984, %v983
      %v1166 = vpack.c.b16 %v986, %v985
      %v1167 = vpack.c.b16 %v988, %v987
      %v1168 = vpack.c.b16 %v990, %v989
      %v1169 = vpack.c.b16 %v992, %v991
      %v1170 = vpack.c.b16 %v994, %v993
      %v1171 = vpack.c.b16 %v996, %v995
      %v1172 = vpack.c.b16 %v998, %v997
      %v1173 = vpack.c.b16 %v1000, %v999
      %v1174 = vpack.c.b16 %v1002, %v1001
      %v1175 = vpack.c.b16 %v1004, %v1003
      %v1176 = vpack.c.b16 %v1006, %v1005
      %v1177 = vpack.c.b16 %v1008, %v1007
      %v1178 = vpack.c.b16 %v1010, %v1009
      %v1179 = vpack.c.b16 %v1012, %v1011
      %v1180 = vpack.c.b16 %v1014, %v1013
      %v1181 = vpack.c.b16 %v1016, %v1015
      %v1182 = vpack.c.b16 %v1018, %v1017
      %v1183 = vpack.c.b16 %v1020, %v1019
      %v1184 = vpack.c.b16 %v1022, %v1021
      %v1185 = vpack.c.b16 %v1024, %v1023
      %v1186 = vpack.c.b16 %v1026, %v1025
      %v1187 = vpack.c.b16 %v1028, %v1027
      %v1188 = vpack.c.b16 %v1030, %v1029
      %v1189 = vpack.c.b16 %v1032, %v1031
      %v1190 = vpack.c.b16 %v1034, %v1033
      %v1191 = vpack.c.b16 %v1036, %v1035
      %v1192 = vpack.c.b16 %v1038, %v1037
      %v1193 = vpack.c.b16 %v1040, %v1039
      %v1194 = vpack.c.b16 %v1042, %v1041
      %v1195 = vpack.c.b16 %v1044, %v1043
      %v1196 = vpack.c.b16 %v1046, %v1045
      %v1197 = vpack.c.b16 %v1048, %v1047
      %v1198 = vpack.c.b16 %v1050, %v1049
      %v1199 = vpack.c.b16 %v1052, %v1051
      %v1200 = vpack.c.b16 %v1054, %v1053
      %v1201 = vpack.c.b16 %v1056, %v1055
      %v1202 = vpack.c.b16 %v1058, %v1057
      %v1363 = vunpack.c.l.b16 %v467
      %v1364 = vunpack.c.l.b16 %v468
      %v1365 = vunpack.c.l.b16 %v469
      %v1366 = vunpack.c.l.b16 %v470
      %v1367 = vunpack.c.l.b16 %v471
      %v1368 = vunpack.c.l.b16 %v472
      %v1369 = vunpack.c.l.b16 %v473
      %v1370 = vunpack.c.l.b16 %v474
      %v1371 = vunpack.c.l.b16 %v475
      %v1372 = vunpack.c.l.b16 %v476
      %v1373 = vunpack.c.l.b16 %v477
      %v1374 = vunpack.c.l.b16 %v478
      %v1375 = vunpack.c.l.b16 %v479
      %v1376 = vunpack.c.l.b16 %v480
      %v1377 = vunpack.c.l.b16 %v481
      %v1378 = vunpack.c.l.b16 %v482
      %v1379 = vpack.c.b16 %v1364, %v1363
      %v1380 = vpack.c.b16 %v1366, %v1365
      %v1381 = vpack.c.b16 %v1368, %v1367
      %v1382 = vpack.c.b16 %v1370, %v1369
      %v1383 = vpack.c.b16 %v1372, %v1371
      %v1384 = vpack.c.b16 %v1374, %v1373
      %v1385 = vpack.c.b16 %v1376, %v1375
      %v1386 = vpack.c.b16 %v1378, %v1377
      %1395 = vmatpush.bf16.msra.mxu0 %v1386
      %1396 = vmatpush.bf16.msra.mxu0 %v1385
      %1397 = vmatpush.bf16.msra.mxu0 %v1384
      %1398 = vmatpush.bf16.msra.mxu0 %v1383
      %1399 = vmatpush.bf16.msra.mxu0 %v1382
      %1400 = vmatpush.bf16.msra.mxu0 %v1381
      %1401 = vmatpush.bf16.msra.mxu0 %v1380
      %1402 = vmatpush.bf16.msra.mxu0 %v1379
      %1403 = vmatmul.bf16.gmra.mxu0 %v1059
      %v1404 = vpop.f32.mrf.mxu0
      %v1405 = vadd.f32 0.0, %v1404
      %v1406 = vpop.f32.mrf.mxu0
      %v1407 = vadd.f32 0.0, %v1406
      %1408 = vmatmul.bf16.gmra.mxu0 %v1060
      %v1409 = vpop.f32.mrf.mxu0
      %v1410 = vadd.f32 0.0, %v1409
      %v1411 = vpop.f32.mrf.mxu0
      %v1412 = vadd.f32 0.0, %v1411
      %1413 = vmatmul.bf16.gmra.mxu0 %v1061
      %v1414 = vpop.f32.mrf.mxu0
      %v1415 = vadd.f32 0.0, %v1414
      %v1416 = vpop.f32.mrf.mxu0
      %v1417 = vadd.f32 0.0, %v1416
      %1418 = vmatmul.bf16.gmra.mxu0 %v1062
      %v1419 = vpop.f32.mrf.mxu0
      %v1420 = vadd.f32 0.0, %v1419
      %v1421 = vpop.f32.mrf.mxu0
      %v1422 = vadd.f32 0.0, %v1421
      %1423 = vmatmul.bf16.gmra.mxu0 %v1063
      %v1424 = vpop.f32.mrf.mxu0
      %v1425 = vadd.f32 0.0, %v1424
      %v1426 = vpop.f32.mrf.mxu0
      %v1427 = vadd.f32 0.0, %v1426
      %1428 = vmatmul.bf16.gmra.mxu0 %v1064
      %v1429 = vpop.f32.mrf.mxu0
      %v1430 = vadd.f32 0.0, %v1429
      %v1431 = vpop.f32.mrf.mxu0
      %v1432 = vadd.f32 0.0, %v1431
      %1433 = vmatmul.bf16.gmra.mxu0 %v1065
      %v1434 = vpop.f32.mrf.mxu0
      %v1435 = vadd.f32 0.0, %v1434
      %v1436 = vpop.f32.mrf.mxu0
      %v1437 = vadd.f32 0.0, %v1436
      %1438 = vmatmul.bf16.gmra.mxu0 %v1066
      %v1439 = vpop.f32.mrf.mxu0
      %v1440 = vadd.f32 0.0, %v1439
      %v1441 = vpop.f32.mrf.mxu0
      %v1442 = vadd.f32 0.0, %v1441
      %1443 = vmatmul.bf16.gmra.mxu0 %v1067
      %v1444 = vpop.f32.mrf.mxu0
      %v1445 = vadd.f32 0.0, %v1444
      %v1446 = vpop.f32.mrf.mxu0
      %v1447 = vadd.f32 0.0, %v1446
      %1448 = vmatmul.bf16.gmra.mxu0 %v1068
      %v1449 = vpop.f32.mrf.mxu0
      %v1450 = vadd.f32 0.0, %v1449
      %v1451 = vpop.f32.mrf.mxu0
      %v1452 = vadd.f32 0.0, %v1451
      %1453 = vmatmul.bf16.gmra.mxu0 %v1069
      %v1454 = vpop.f32.mrf.mxu0
      %v1455 = vadd.f32 0.0, %v1454
      %v1456 = vpop.f32.mrf.mxu0
      %v1457 = vadd.f32 0.0, %v1456
      %1458 = vmatmul.bf16.gmra.mxu0 %v1070
      %v1459 = vpop.f32.mrf.mxu0
      %v1460 = vadd.f32 0.0, %v1459
      %v1461 = vpop.f32.mrf.mxu0
      %v1462 = vadd.f32 0.0, %v1461
      %1463 = vmatmul.bf16.gmra.mxu0 %v1071
      %v1464 = vpop.f32.mrf.mxu0
      %v1465 = vadd.f32 0.0, %v1464
      %v1466 = vpop.f32.mrf.mxu0
      %v1467 = vadd.f32 0.0, %v1466
      %1468 = vmatmul.bf16.gmra.mxu0 %v1072
      %v1469 = vpop.f32.mrf.mxu0
      %v1470 = vadd.f32 0.0, %v1469
      %v1471 = vpop.f32.mrf.mxu0
      %v1472 = vadd.f32 0.0, %v1471
      %1473 = vmatmul.bf16.gmra.mxu0 %v1073
      %v1474 = vpop.f32.mrf.mxu0
      %v1475 = vadd.f32 0.0, %v1474
      %v1476 = vpop.f32.mrf.mxu0
      %v1477 = vadd.f32 0.0, %v1476
      %1478 = vmatmul.bf16.gmra.mxu0 %v1074
      %v1479 = vpop.f32.mrf.mxu0
      %v1480 = vadd.f32 0.0, %v1479
      %v1481 = vpop.f32.mrf.mxu0
      %v1482 = vadd.f32 0.0, %v1481
      %1483 = vmatmul.bf16.gmra.mxu0 %v1075
      %v1484 = vpop.f32.mrf.mxu0
      %v1485 = vadd.f32 0.0, %v1484
      %v1486 = vpop.f32.mrf.mxu0
      %v1487 = vadd.f32 0.0, %v1486
      %1488 = vmatmul.bf16.gmra.mxu0 %v1076
      %v1489 = vpop.f32.mrf.mxu0
      %v1490 = vadd.f32 0.0, %v1489
      %v1491 = vpop.f32.mrf.mxu0
      %v1492 = vadd.f32 0.0, %v1491
      %1493 = vmatmul.bf16.gmra.mxu0 %v1077
      %v1494 = vpop.f32.mrf.mxu0
      %v1495 = vadd.f32 0.0, %v1494
      %v1496 = vpop.f32.mrf.mxu0
      %v1497 = vadd.f32 0.0, %v1496
      %1498 = vmatmul.bf16.gmra.mxu0 %v1078
      %v1499 = vpop.f32.mrf.mxu0
      %v1500 = vadd.f32 0.0, %v1499
      %v1501 = vpop.f32.mrf.mxu0
      %v1502 = vadd.f32 0.0, %v1501
      %1503 = vmatmul.bf16.gmra.mxu0 %v1079
      %v1504 = vpop.f32.mrf.mxu0
      %v1505 = vadd.f32 0.0, %v1504
      %v1506 = vpop.f32.mrf.mxu0
      %v1507 = vadd.f32 0.0, %v1506
      %1508 = vmatmul.bf16.gmra.mxu0 %v1080
      %v1509 = vpop.f32.mrf.mxu0
      %v1510 = vadd.f32 0.0, %v1509
      %v1511 = vpop.f32.mrf.mxu0
      %v1512 = vadd.f32 0.0, %v1511
      %1513 = vmatmul.bf16.gmra.mxu0 %v1081
      %v1514 = vpop.f32.mrf.mxu0
      %v1515 = vadd.f32 0.0, %v1514
      %v1516 = vpop.f32.mrf.mxu0
      %v1517 = vadd.f32 0.0, %v1516
      %1518 = vmatmul.bf16.gmra.mxu0 %v1082
      %v1519 = vpop.f32.mrf.mxu0
      %v1520 = vadd.f32 0.0, %v1519
      %v1521 = vpop.f32.mrf.mxu0
      %v1522 = vadd.f32 0.0, %v1521
      %1523 = vmatmul.bf16.gmra.mxu0 %v1083
      %v1524 = vpop.f32.mrf.mxu0
      %v1525 = vadd.f32 0.0, %v1524
      %v1526 = vpop.f32.mrf.mxu0
      %v1527 = vadd.f32 0.0, %v1526
      %1528 = vmatmul.bf16.gmra.mxu0 %v1084
      %v1529 = vpop.f32.mrf.mxu0
      %v1530 = vadd.f32 0.0, %v1529
      %v1531 = vpop.f32.mrf.mxu0
      %v1532 = vadd.f32 0.0, %v1531
      %1533 = vmatmul.bf16.gmra.mxu0 %v1085
      %v1534 = vpop.f32.mrf.mxu0
      %v1535 = vadd.f32 0.0, %v1534
      %v1536 = vpop.f32.mrf.mxu0
      %v1537 = vadd.f32 0.0, %v1536
      %1538 = vmatmul.bf16.gmra.mxu0 %v1086
      %v1539 = vpop.f32.mrf.mxu0
      %v1540 = vadd.f32 0.0, %v1539
      %v1541 = vpop.f32.mrf.mxu0
      %v1542 = vadd.f32 0.0, %v1541
      %1543 = vmatmul.bf16.gmra.mxu0 %v1087
      %v1544 = vpop.f32.mrf.mxu0
      %v1545 = vadd.f32 0.0, %v1544
      %v1546 = vpop.f32.mrf.mxu0
      %v1547 = vadd.f32 0.0, %v1546
      %1548 = vmatmul.bf16.gmra.mxu0 %v1088
      %v1549 = vpop.f32.mrf.mxu0
      %v1550 = vadd.f32 0.0, %v1549
      %v1551 = vpop.f32.mrf.mxu0
      %v1552 = vadd.f32 0.0, %v1551
      %1553 = vmatmul.bf16.gmra.mxu0 %v1089
      %v1554 = vpop.f32.mrf.mxu0
      %v1555 = vadd.f32 0.0, %v1554
      %v1556 = vpop.f32.mrf.mxu0
      %v1557 = vadd.f32 0.0, %v1556
      %1558 = vmatmul.bf16.gmra.mxu0 %v1090
      %v1559 = vpop.f32.mrf.mxu0
      %v1560 = vadd.f32 0.0, %v1559
      %v1561 = vpop.f32.mrf.mxu0
      %v1562 = vadd.f32 0.0, %v1561
      %1563 = vmatmul.bf16.gmra.mxu0 %v1091
      %v1564 = vpop.f32.mrf.mxu0
      %v1565 = vadd.f32 0.0, %v1564
      %v1566 = vpop.f32.mrf.mxu0
      %v1567 = vadd.f32 0.0, %v1566
      %1568 = vmatmul.bf16.gmra.mxu0 %v1092
      %v1569 = vpop.f32.mrf.mxu0
      %v1570 = vadd.f32 0.0, %v1569
      %v1571 = vpop.f32.mrf.mxu0
      %v1572 = vadd.f32 0.0, %v1571
      %1573 = vmatmul.bf16.gmra.mxu0 %v1093
      %v1574 = vpop.f32.mrf.mxu0
      %v1575 = vadd.f32 0.0, %v1574
      %v1576 = vpop.f32.mrf.mxu0
      %v1577 = vadd.f32 0.0, %v1576
      %1578 = vmatmul.bf16.gmra.mxu0 %v1094
      %v1579 = vpop.f32.mrf.mxu0
      %v1580 = vadd.f32 0.0, %v1579
      %v1581 = vpop.f32.mrf.mxu0
      %v1582 = vadd.f32 0.0, %v1581
      %1583 = vmatmul.bf16.gmra.mxu0 %v1095
      %v1584 = vpop.f32.mrf.mxu0
      %v1585 = vadd.f32 0.0, %v1584
      %v1586 = vpop.f32.mrf.mxu0
      %v1587 = vadd.f32 0.0, %v1586
      %1588 = vmatmul.bf16.gmra.mxu0 %v1096
      %v1589 = vpop.f32.mrf.mxu0
      %v1590 = vadd.f32 0.0, %v1589
      %v1591 = vpop.f32.mrf.mxu0
      %v1592 = vadd.f32 0.0, %v1591
      %1593 = vmatmul.bf16.gmra.mxu0 %v1097
      %v1594 = vpop.f32.mrf.mxu0
      %v1595 = vadd.f32 0.0, %v1594
      %v1596 = vpop.f32.mrf.mxu0
      %v1597 = vadd.f32 0.0, %v1596
      %1598 = vmatmul.bf16.gmra.mxu0 %v1098
      %v1599 = vpop.f32.mrf.mxu0
      %v1600 = vadd.f32 0.0, %v1599
      %v1601 = vpop.f32.mrf.mxu0
      %v1602 = vadd.f32 0.0, %v1601
      %1603 = vmatmul.bf16.gmra.mxu0 %v1099
      %v1604 = vpop.f32.mrf.mxu0
      %v1605 = vadd.f32 0.0, %v1604
      %v1606 = vpop.f32.mrf.mxu0
      %v1607 = vadd.f32 0.0, %v1606
      %1608 = vmatmul.bf16.gmra.mxu0 %v1100
      %v1609 = vpop.f32.mrf.mxu0
      %v1610 = vadd.f32 0.0, %v1609
      %v1611 = vpop.f32.mrf.mxu0
      %v1612 = vadd.f32 0.0, %v1611
      %1613 = vmatmul.bf16.gmra.mxu0 %v1101
      %v1614 = vpop.f32.mrf.mxu0
      %v1615 = vadd.f32 0.0, %v1614
      %v1616 = vpop.f32.mrf.mxu0
      %v1617 = vadd.f32 0.0, %v1616
      %1618 = vmatmul.bf16.gmra.mxu0 %v1102
      %v1619 = vpop.f32.mrf.mxu0
      %v1620 = vadd.f32 0.0, %v1619
      %v1621 = vpop.f32.mrf.mxu0
      %v1622 = vadd.f32 0.0, %v1621
      %1623 = vmatmul.bf16.gmra.mxu0 %v1103
      %v1624 = vpop.f32.mrf.mxu0
      %v1625 = vadd.f32 0.0, %v1624
      %v1626 = vpop.f32.mrf.mxu0
      %v1627 = vadd.f32 0.0, %v1626
      %1628 = vmatmul.bf16.gmra.mxu0 %v1104
      %v1629 = vpop.f32.mrf.mxu0
      %v1630 = vadd.f32 0.0, %v1629
      %v1631 = vpop.f32.mrf.mxu0
      %v1632 = vadd.f32 0.0, %v1631
      %1633 = vmatmul.bf16.gmra.mxu0 %v1105
      %v1634 = vpop.f32.mrf.mxu0
      %v1635 = vadd.f32 0.0, %v1634
      %v1636 = vpop.f32.mrf.mxu0
      %v1637 = vadd.f32 0.0, %v1636
      %1638 = vmatmul.bf16.gmra.mxu0 %v1106
      %v1639 = vpop.f32.mrf.mxu0
      %v1640 = vadd.f32 0.0, %v1639
      %v1641 = vpop.f32.mrf.mxu0
      %v1642 = vadd.f32 0.0, %v1641
      %1643 = vmatmul.bf16.gmra.mxu0 %v1107
      %v1644 = vpop.f32.mrf.mxu0
      %v1645 = vadd.f32 0.0, %v1644
      %v1646 = vpop.f32.mrf.mxu0
      %v1647 = vadd.f32 0.0, %v1646
      %1648 = vmatmul.bf16.gmra.mxu0 %v1108
      %v1649 = vpop.f32.mrf.mxu0
      %v1650 = vadd.f32 0.0, %v1649
      %v1651 = vpop.f32.mrf.mxu0
      %v1652 = vadd.f32 0.0, %v1651
      %1653 = vmatmul.bf16.gmra.mxu0 %v1109
      %v1654 = vpop.f32.mrf.mxu0
      %v1655 = vadd.f32 0.0, %v1654
      %v1656 = vpop.f32.mrf.mxu0
      %v1657 = vadd.f32 0.0, %v1656
      %1658 = vmatmul.bf16.gmra.mxu0 %v1110
      %v1659 = vpop.f32.mrf.mxu0
      %v1660 = vadd.f32 0.0, %v1659
      %v1661 = vpop.f32.mrf.mxu0
      %v1662 = vadd.f32 0.0, %v1661
      %1663 = vmatmul.bf16.gmra.mxu0 %v1111
      %v1664 = vpop.f32.mrf.mxu0
      %v1665 = vadd.f32 0.0, %v1664
      %v1666 = vpop.f32.mrf.mxu0
      %v1667 = vadd.f32 0.0, %v1666
      %1668 = vmatmul.bf16.gmra.mxu0 %v1112
      %v1669 = vpop.f32.mrf.mxu0
      %v1670 = vadd.f32 0.0, %v1669
      %v1671 = vpop.f32.mrf.mxu0
      %v1672 = vadd.f32 0.0, %v1671
      %1673 = vmatmul.bf16.gmra.mxu0 %v1113
      %v1674 = vpop.f32.mrf.mxu0
      %v1675 = vadd.f32 0.0, %v1674
      %v1676 = vpop.f32.mrf.mxu0
      %v1677 = vadd.f32 0.0, %v1676
      %1678 = vmatmul.bf16.gmra.mxu0 %v1114
      %v1679 = vpop.f32.mrf.mxu0
      %v1680 = vadd.f32 0.0, %v1679
      %v1681 = vpop.f32.mrf.mxu0
      %v1682 = vadd.f32 0.0, %v1681
      %1683 = vmatmul.bf16.gmra.mxu0 %v1115
      %v1684 = vpop.f32.mrf.mxu0
      %v1685 = vadd.f32 0.0, %v1684
      %v1686 = vpop.f32.mrf.mxu0
      %v1687 = vadd.f32 0.0, %v1686
      %1688 = vmatmul.bf16.gmra.mxu0 %v1116
      %v1689 = vpop.f32.mrf.mxu0
      %v1690 = vadd.f32 0.0, %v1689
      %v1691 = vpop.f32.mrf.mxu0
      %v1692 = vadd.f32 0.0, %v1691
      %1693 = vmatmul.bf16.gmra.mxu0 %v1117
      %v1694 = vpop.f32.mrf.mxu0
      %v1695 = vadd.f32 0.0, %v1694
      %v1696 = vpop.f32.mrf.mxu0
      %v1697 = vadd.f32 0.0, %v1696
      %1698 = vmatmul.bf16.gmra.mxu0 %v1118
      %v1699 = vpop.f32.mrf.mxu0
      %v1700 = vadd.f32 0.0, %v1699
      %v1701 = vpop.f32.mrf.mxu0
      %v1702 = vadd.f32 0.0, %v1701
      %1703 = vmatmul.bf16.gmra.mxu0 %v1119
      %v1704 = vpop.f32.mrf.mxu0
      %v1705 = vadd.f32 0.0, %v1704
      %v1706 = vpop.f32.mrf.mxu0
      %v1707 = vadd.f32 0.0, %v1706
      %1708 = vmatmul.bf16.gmra.mxu0 %v1120
      %v1709 = vpop.f32.mrf.mxu0
      %v1710 = vadd.f32 0.0, %v1709
      %v1711 = vpop.f32.mrf.mxu0
      %v1712 = vadd.f32 0.0, %v1711
      %1713 = vmatmul.bf16.gmra.mxu0 %v1121
      %v1714 = vpop.f32.mrf.mxu0
      %v1715 = vadd.f32 0.0, %v1714
      %v1716 = vpop.f32.mrf.mxu0
      %v1717 = vadd.f32 0.0, %v1716
      %1718 = vmatmul.bf16.gmra.mxu0 %v1122
      %v1719 = vpop.f32.mrf.mxu0
      %v1720 = vadd.f32 0.0, %v1719
      %v1721 = vpop.f32.mrf.mxu0
      %v1722 = vadd.f32 0.0, %v1721
      %1723 = vmatmul.bf16.gmra.mxu0 %v1123
      %v1724 = vpop.f32.mrf.mxu0
      %v1725 = vadd.f32 0.0, %v1724
      %v1726 = vpop.f32.mrf.mxu0
      %v1727 = vadd.f32 0.0, %v1726
      %1728 = vmatmul.bf16.gmra.mxu0 %v1124
      %v1729 = vpop.f32.mrf.mxu0
      %v1730 = vadd.f32 0.0, %v1729
      %v1731 = vpop.f32.mrf.mxu0
      %v1732 = vadd.f32 0.0, %v1731
      %1733 = vmatmul.bf16.gmra.mxu0 %v1125
      %v1734 = vpop.f32.mrf.mxu0
      %v1735 = vadd.f32 0.0, %v1734
      %v1736 = vpop.f32.mrf.mxu0
      %v1737 = vadd.f32 0.0, %v1736
      %1738 = vmatmul.bf16.gmra.mxu0 %v1126
      %v1739 = vpop.f32.mrf.mxu0
      %v1740 = vadd.f32 0.0, %v1739
      %v1741 = vpop.f32.mrf.mxu0
      %v1742 = vadd.f32 0.0, %v1741
      %1743 = vmatmul.bf16.gmra.mxu0 %v1127
      %v1744 = vpop.f32.mrf.mxu0
      %v1745 = vadd.f32 0.0, %v1744
      %v1746 = vpop.f32.mrf.mxu0
      %v1747 = vadd.f32 0.0, %v1746
      %1748 = vmatmul.bf16.gmra.mxu0 %v1128
      %v1749 = vpop.f32.mrf.mxu0
      %v1750 = vadd.f32 0.0, %v1749
      %v1751 = vpop.f32.mrf.mxu0
      %v1752 = vadd.f32 0.0, %v1751
      %1753 = vmatmul.bf16.gmra.mxu0 %v1129
      %v1754 = vpop.f32.mrf.mxu0
      %v1755 = vadd.f32 0.0, %v1754
      %v1756 = vpop.f32.mrf.mxu0
      %v1757 = vadd.f32 0.0, %v1756
      %1758 = vmatmul.bf16.gmra.mxu0 %v1130
      %v1759 = vpop.f32.mrf.mxu0
      %v1760 = vadd.f32 0.0, %v1759
      %v1761 = vpop.f32.mrf.mxu0
      %v1762 = vadd.f32 0.0, %v1761
      %1763 = vmatmul.bf16.gmra.mxu0 %v1131
      %v1764 = vpop.f32.mrf.mxu0
      %v1765 = vadd.f32 0.0, %v1764
      %v1766 = vpop.f32.mrf.mxu0
      %v1767 = vadd.f32 0.0, %v1766
      %1768 = vmatmul.bf16.gmra.mxu0 %v1132
      %v1769 = vpop.f32.mrf.mxu0
      %v1770 = vadd.f32 0.0, %v1769
      %v1771 = vpop.f32.mrf.mxu0
      %v1772 = vadd.f32 0.0, %v1771
      %1773 = vmatmul.bf16.gmra.mxu0 %v1133
      %v1774 = vpop.f32.mrf.mxu0
      %v1775 = vadd.f32 0.0, %v1774
      %v1776 = vpop.f32.mrf.mxu0
      %v1777 = vadd.f32 0.0, %v1776
      %1778 = vmatmul.bf16.gmra.mxu0 %v1134
      %v1779 = vpop.f32.mrf.mxu0
      %v1780 = vadd.f32 0.0, %v1779
      %v1781 = vpop.f32.mrf.mxu0
      %v1782 = vadd.f32 0.0, %v1781
      %1783 = vmatmul.bf16.gmra.mxu0 %v1135
      %v1784 = vpop.f32.mrf.mxu0
      %v1785 = vadd.f32 0.0, %v1784
      %v1786 = vpop.f32.mrf.mxu0
      %v1787 = vadd.f32 0.0, %v1786
      %1788 = vmatmul.bf16.gmra.mxu0 %v1136
      %v1789 = vpop.f32.mrf.mxu0
      %v1790 = vadd.f32 0.0, %v1789
      %v1791 = vpop.f32.mrf.mxu0
      %v1792 = vadd.f32 0.0, %v1791
      %1793 = vmatmul.bf16.gmra.mxu0 %v1137
      %v1794 = vpop.f32.mrf.mxu0
      %v1795 = vadd.f32 0.0, %v1794
      %v1796 = vpop.f32.mrf.mxu0
      %v1797 = vadd.f32 0.0, %v1796
      %1798 = vmatmul.bf16.gmra.mxu0 %v1138
      %v1799 = vpop.f32.mrf.mxu0
      %v1800 = vadd.f32 0.0, %v1799
      %v1801 = vpop.f32.mrf.mxu0
      %v1802 = vadd.f32 0.0, %v1801
      %1803 = vmatmul.bf16.gmra.mxu0 %v1139
      %v1804 = vpop.f32.mrf.mxu0
      %v1805 = vadd.f32 0.0, %v1804
      %v1806 = vpop.f32.mrf.mxu0
      %v1807 = vadd.f32 0.0, %v1806
      %1808 = vmatmul.bf16.gmra.mxu0 %v1140
      %v1809 = vpop.f32.mrf.mxu0
      %v1810 = vadd.f32 0.0, %v1809
      %v1811 = vpop.f32.mrf.mxu0
      %v1812 = vadd.f32 0.0, %v1811
      %1813 = vmatmul.bf16.gmra.mxu0 %v1141
      %v1814 = vpop.f32.mrf.mxu0
      %v1815 = vadd.f32 0.0, %v1814
      %v1816 = vpop.f32.mrf.mxu0
      %v1817 = vadd.f32 0.0, %v1816
      %1818 = vmatmul.bf16.gmra.mxu0 %v1142
      %v1819 = vpop.f32.mrf.mxu0
      %v1820 = vadd.f32 0.0, %v1819
      %v1821 = vpop.f32.mrf.mxu0
      %v1822 = vadd.f32 0.0, %v1821
      %1823 = vmatmul.bf16.gmra.mxu0 %v1143
      %v1824 = vpop.f32.mrf.mxu0
      %v1825 = vadd.f32 0.0, %v1824
      %v1826 = vpop.f32.mrf.mxu0
      %v1827 = vadd.f32 0.0, %v1826
      %1828 = vmatmul.bf16.gmra.mxu0 %v1144
      %v1829 = vpop.f32.mrf.mxu0
      %v1830 = vadd.f32 0.0, %v1829
      %v1831 = vpop.f32.mrf.mxu0
      %v1832 = vadd.f32 0.0, %v1831
      %1833 = vmatmul.bf16.gmra.mxu0 %v1145
      %v1834 = vpop.f32.mrf.mxu0
      %v1835 = vadd.f32 0.0, %v1834
      %v1836 = vpop.f32.mrf.mxu0
      %v1837 = vadd.f32 0.0, %v1836
      %1838 = vmatmul.bf16.gmra.mxu0 %v1146
      %v1839 = vpop.f32.mrf.mxu0
      %v1840 = vadd.f32 0.0, %v1839
      %v1841 = vpop.f32.mrf.mxu0
      %v1842 = vadd.f32 0.0, %v1841
      %1843 = vmatmul.bf16.gmra.mxu0 %v1147
      %v1844 = vpop.f32.mrf.mxu0
      %v1845 = vadd.f32 0.0, %v1844
      %v1846 = vpop.f32.mrf.mxu0
      %v1847 = vadd.f32 0.0, %v1846
      %1848 = vmatmul.bf16.gmra.mxu0 %v1148
      %v1849 = vpop.f32.mrf.mxu0
      %v1850 = vadd.f32 0.0, %v1849
      %v1851 = vpop.f32.mrf.mxu0
      %v1852 = vadd.f32 0.0, %v1851
      %1853 = vmatmul.bf16.gmra.mxu0 %v1149
      %v1854 = vpop.f32.mrf.mxu0
      %v1855 = vadd.f32 0.0, %v1854
      %v1856 = vpop.f32.mrf.mxu0
      %v1857 = vadd.f32 0.0, %v1856
      %1858 = vmatmul.bf16.gmra.mxu0 %v1150
      %v1859 = vpop.f32.mrf.mxu0
      %v1860 = vadd.f32 0.0, %v1859
      %v1861 = vpop.f32.mrf.mxu0
      %v1862 = vadd.f32 0.0, %v1861
      %1863 = vmatmul.bf16.gmra.mxu0 %v1151
      %v1864 = vpop.f32.mrf.mxu0
      %v1865 = vadd.f32 0.0, %v1864
      %v1866 = vpop.f32.mrf.mxu0
      %v1867 = vadd.f32 0.0, %v1866
      %1868 = vmatmul.bf16.gmra.mxu0 %v1152
      %v1869 = vpop.f32.mrf.mxu0
      %v1870 = vadd.f32 0.0, %v1869
      %v1871 = vpop.f32.mrf.mxu0
      %v1872 = vadd.f32 0.0, %v1871
      %1873 = vmatmul.bf16.gmra.mxu0 %v1153
      %v1874 = vpop.f32.mrf.mxu0
      %v1875 = vadd.f32 0.0, %v1874
      %v1876 = vpop.f32.mrf.mxu0
      %v1877 = vadd.f32 0.0, %v1876
      %1878 = vmatmul.bf16.gmra.mxu0 %v1154
      %v1879 = vpop.f32.mrf.mxu0
      %v1880 = vadd.f32 0.0, %v1879
      %v1881 = vpop.f32.mrf.mxu0
      %v1882 = vadd.f32 0.0, %v1881
      %1883 = vmatmul.bf16.gmra.mxu0 %v1155
      %v1884 = vpop.f32.mrf.mxu0
      %v1885 = vadd.f32 0.0, %v1884
      %v1886 = vpop.f32.mrf.mxu0
      %v1887 = vadd.f32 0.0, %v1886
      %1888 = vmatmul.bf16.gmra.mxu0 %v1156
      %v1889 = vpop.f32.mrf.mxu0
      %v1890 = vadd.f32 0.0, %v1889
      %v1891 = vpop.f32.mrf.mxu0
      %v1892 = vadd.f32 0.0, %v1891
      %1893 = vmatmul.bf16.gmra.mxu0 %v1157
      %v1894 = vpop.f32.mrf.mxu0
      %v1895 = vadd.f32 0.0, %v1894
      %v1896 = vpop.f32.mrf.mxu0
      %v1897 = vadd.f32 0.0, %v1896
      %1898 = vmatmul.bf16.gmra.mxu0 %v1158
      %v1899 = vpop.f32.mrf.mxu0
      %v1900 = vadd.f32 0.0, %v1899
      %v1901 = vpop.f32.mrf.mxu0
      %v1902 = vadd.f32 0.0, %v1901
      %1903 = vmatmul.bf16.gmra.mxu0 %v1159
      %v1904 = vpop.f32.mrf.mxu0
      %v1905 = vadd.f32 0.0, %v1904
      %v1906 = vpop.f32.mrf.mxu0
      %v1907 = vadd.f32 0.0, %v1906
      %1908 = vmatmul.bf16.gmra.mxu0 %v1160
      %v1909 = vpop.f32.mrf.mxu0
      %v1910 = vadd.f32 0.0, %v1909
      %v1911 = vpop.f32.mrf.mxu0
      %v1912 = vadd.f32 0.0, %v1911
      %1913 = vmatmul.bf16.gmra.mxu0 %v1161
      %v1914 = vpop.f32.mrf.mxu0
      %v1915 = vadd.f32 0.0, %v1914
      %v1916 = vpop.f32.mrf.mxu0
      %v1917 = vadd.f32 0.0, %v1916
      %1918 = vmatmul.bf16.gmra.mxu0 %v1162
      %v1919 = vpop.f32.mrf.mxu0
      %v1920 = vadd.f32 0.0, %v1919
      %v1921 = vpop.f32.mrf.mxu0
      %v1922 = vadd.f32 0.0, %v1921
      %1923 = vmatmul.bf16.gmra.mxu0 %v1163
      %v1924 = vpop.f32.mrf.mxu0
      %v1925 = vadd.f32 0.0, %v1924
      %v1926 = vpop.f32.mrf.mxu0
      %v1927 = vadd.f32 0.0, %v1926
      %1928 = vmatmul.bf16.gmra.mxu0 %v1164
      %v1929 = vpop.f32.mrf.mxu0
      %v1930 = vadd.f32 0.0, %v1929
      %v1931 = vpop.f32.mrf.mxu0
      %v1932 = vadd.f32 0.0, %v1931
      %1933 = vmatmul.bf16.gmra.mxu0 %v1165
      %v1934 = vpop.f32.mrf.mxu0
      %v1935 = vadd.f32 0.0, %v1934
      %v1936 = vpop.f32.mrf.mxu0
      %v1937 = vadd.f32 0.0, %v1936
      %1938 = vmatmul.bf16.gmra.mxu0 %v1166
      %v1939 = vpop.f32.mrf.mxu0
      %v1940 = vadd.f32 0.0, %v1939
      %v1941 = vpop.f32.mrf.mxu0
      %v1942 = vadd.f32 0.0, %v1941
      %1943 = vmatmul.bf16.gmra.mxu0 %v1167
      %v1944 = vpop.f32.mrf.mxu0
      %v1945 = vadd.f32 0.0, %v1944
      %v1946 = vpop.f32.mrf.mxu0
      %v1947 = vadd.f32 0.0, %v1946
      %1948 = vmatmul.bf16.gmra.mxu0 %v1168
      %v1949 = vpop.f32.mrf.mxu0
      %v1950 = vadd.f32 0.0, %v1949
      %v1951 = vpop.f32.mrf.mxu0
      %v1952 = vadd.f32 0.0, %v1951
      %1953 = vmatmul.bf16.gmra.mxu0 %v1169
      %v1954 = vpop.f32.mrf.mxu0
      %v1955 = vadd.f32 0.0, %v1954
      %v1956 = vpop.f32.mrf.mxu0
      %v1957 = vadd.f32 0.0, %v1956
      %1958 = vmatmul.bf16.gmra.mxu0 %v1170
      %v1959 = vpop.f32.mrf.mxu0
      %v1960 = vadd.f32 0.0, %v1959
      %v1961 = vpop.f32.mrf.mxu0
      %v1962 = vadd.f32 0.0, %v1961
      %1963 = vmatmul.bf16.gmra.mxu0 %v1171
      %v1964 = vpop.f32.mrf.mxu0
      %v1965 = vadd.f32 0.0, %v1964
      %v1966 = vpop.f32.mrf.mxu0
      %v1967 = vadd.f32 0.0, %v1966
      %1968 = vmatmul.bf16.gmra.mxu0 %v1172
      %v1969 = vpop.f32.mrf.mxu0
      %v1970 = vadd.f32 0.0, %v1969
      %v1971 = vpop.f32.mrf.mxu0
      %v1972 = vadd.f32 0.0, %v1971
      %1973 = vmatmul.bf16.gmra.mxu0 %v1173
      %v1974 = vpop.f32.mrf.mxu0
      %v1975 = vadd.f32 0.0, %v1974
      %v1976 = vpop.f32.mrf.mxu0
      %v1977 = vadd.f32 0.0, %v1976
      %1978 = vmatmul.bf16.gmra.mxu0 %v1174
      %v1979 = vpop.f32.mrf.mxu0
      %v1980 = vadd.f32 0.0, %v1979
      %v1981 = vpop.f32.mrf.mxu0
      %v1982 = vadd.f32 0.0, %v1981
      %1983 = vmatmul.bf16.gmra.mxu0 %v1175
      %v1984 = vpop.f32.mrf.mxu0
      %v1985 = vadd.f32 0.0, %v1984
      %v1986 = vpop.f32.mrf.mxu0
      %v1987 = vadd.f32 0.0, %v1986
      %1988 = vmatmul.bf16.gmra.mxu0 %v1176
      %v1989 = vpop.f32.mrf.mxu0
      %v1990 = vadd.f32 0.0, %v1989
      %v1991 = vpop.f32.mrf.mxu0
      %v1992 = vadd.f32 0.0, %v1991
      %1993 = vmatmul.bf16.gmra.mxu0 %v1177
      %v1994 = vpop.f32.mrf.mxu0
      %v1995 = vadd.f32 0.0, %v1994
      %v1996 = vpop.f32.mrf.mxu0
      %v1997 = vadd.f32 0.0, %v1996
      %1998 = vmatmul.bf16.gmra.mxu0 %v1178
      %v1999 = vpop.f32.mrf.mxu0
      %v2000 = vadd.f32 0.0, %v1999
      %v2001 = vpop.f32.mrf.mxu0
      %v2002 = vadd.f32 0.0, %v2001
      %2003 = vmatmul.bf16.gmra.mxu0 %v1179
      %v2004 = vpop.f32.mrf.mxu0
      %v2005 = vadd.f32 0.0, %v2004
      %v2006 = vpop.f32.mrf.mxu0
      %v2007 = vadd.f32 0.0, %v2006
      %2008 = vmatmul.bf16.gmra.mxu0 %v1180
      %v2009 = vpop.f32.mrf.mxu0
      %v2010 = vadd.f32 0.0, %v2009
      %v2011 = vpop.f32.mrf.mxu0
      %v2012 = vadd.f32 0.0, %v2011
      %2013 = vmatmul.bf16.gmra.mxu0 %v1181
      %v2014 = vpop.f32.mrf.mxu0
      %v2015 = vadd.f32 0.0, %v2014
      %v2016 = vpop.f32.mrf.mxu0
      %v2017 = vadd.f32 0.0, %v2016
      %2018 = vmatmul.bf16.gmra.mxu0 %v1182
      %v2019 = vpop.f32.mrf.mxu0
      %v2020 = vadd.f32 0.0, %v2019
      %v2021 = vpop.f32.mrf.mxu0
      %v2022 = vadd.f32 0.0, %v2021
      %2023 = vmatmul.bf16.gmra.mxu0 %v1183
      %v2024 = vpop.f32.mrf.mxu0
      %v2025 = vadd.f32 0.0, %v2024
      %v2026 = vpop.f32.mrf.mxu0
      %v2027 = vadd.f32 0.0, %v2026
      %2028 = vmatmul.bf16.gmra.mxu0 %v1184
      %v2029 = vpop.f32.mrf.mxu0
      %v2030 = vadd.f32 0.0, %v2029
      %v2031 = vpop.f32.mrf.mxu0
      %v2032 = vadd.f32 0.0, %v2031
      %2033 = vmatmul.bf16.gmra.mxu0 %v1185
      %v2034 = vpop.f32.mrf.mxu0
      %v2035 = vadd.f32 0.0, %v2034
      %v2036 = vpop.f32.mrf.mxu0
      %v2037 = vadd.f32 0.0, %v2036
      %2038 = vmatmul.bf16.gmra.mxu0 %v1186
      %v2039 = vpop.f32.mrf.mxu0
      %v2040 = vadd.f32 0.0, %v2039
      %v2041 = vpop.f32.mrf.mxu0
      %v2042 = vadd.f32 0.0, %v2041
      %2043 = vmatmul.bf16.gmra.mxu0 %v1187
      %v2044 = vpop.f32.mrf.mxu0
      %v2045 = vadd.f32 0.0, %v2044
      %v2046 = vpop.f32.mrf.mxu0
      %v2047 = vadd.f32 0.0, %v2046
      %2048 = vmatmul.bf16.gmra.mxu0 %v1188
      %v2049 = vpop.f32.mrf.mxu0
      %v2050 = vadd.f32 0.0, %v2049
      %v2051 = vpop.f32.mrf.mxu0
      %v2052 = vadd.f32 0.0, %v2051
      %2053 = vmatmul.bf16.gmra.mxu0 %v1189
      %v2054 = vpop.f32.mrf.mxu0
      %v2055 = vadd.f32 0.0, %v2054
      %v2056 = vpop.f32.mrf.mxu0
      %v2057 = vadd.f32 0.0, %v2056
      %2058 = vmatmul.bf16.gmra.mxu0 %v1190
      %v2059 = vpop.f32.mrf.mxu0
      %v2060 = vadd.f32 0.0, %v2059
      %v2061 = vpop.f32.mrf.mxu0
      %v2062 = vadd.f32 0.0, %v2061
      %2063 = vmatmul.bf16.gmra.mxu0 %v1191
      %v2064 = vpop.f32.mrf.mxu0
      %v2065 = vadd.f32 0.0, %v2064
      %v2066 = vpop.f32.mrf.mxu0
      %v2067 = vadd.f32 0.0, %v2066
      %2068 = vmatmul.bf16.gmra.mxu0 %v1192
      %v2069 = vpop.f32.mrf.mxu0
      %v2070 = vadd.f32 0.0, %v2069
      %v2071 = vpop.f32.mrf.mxu0
      %v2072 = vadd.f32 0.0, %v2071
      %2073 = vmatmul.bf16.gmra.mxu0 %v1193
      %v2074 = vpop.f32.mrf.mxu0
      %v2075 = vadd.f32 0.0, %v2074
      %v2076 = vpop.f32.mrf.mxu0
      %v2077 = vadd.f32 0.0, %v2076
      %2078 = vmatmul.bf16.gmra.mxu0 %v1194
      %v2079 = vpop.f32.mrf.mxu0
      %v2080 = vadd.f32 0.0, %v2079
      %v2081 = vpop.f32.mrf.mxu0
      %v2082 = vadd.f32 0.0, %v2081
      %2083 = vmatmul.bf16.gmra.mxu0 %v1195
      %v2084 = vpop.f32.mrf.mxu0
      %v2085 = vadd.f32 0.0, %v2084
      %v2086 = vpop.f32.mrf.mxu0
      %v2087 = vadd.f32 0.0, %v2086
      %2088 = vmatmul.bf16.gmra.mxu0 %v1196
      %v2089 = vpop.f32.mrf.mxu0
      %v2090 = vadd.f32 0.0, %v2089
      %v2091 = vpop.f32.mrf.mxu0
      %v2092 = vadd.f32 0.0, %v2091
      %2093 = vmatmul.bf16.gmra.mxu0 %v1197
      %v2094 = vpop.f32.mrf.mxu0
      %v2095 = vadd.f32 0.0, %v2094
      %v2096 = vpop.f32.mrf.mxu0
      %v2097 = vadd.f32 0.0, %v2096
      %2098 = vmatmul.bf16.gmra.mxu0 %v1198
      %v2099 = vpop.f32.mrf.mxu0
      %v2100 = vadd.f32 0.0, %v2099
      %v2101 = vpop.f32.mrf.mxu0
      %v2102 = vadd.f32 0.0, %v2101
      %2103 = vmatmul.bf16.gmra.mxu0 %v1199
      %v2104 = vpop.f32.mrf.mxu0
      %v2105 = vadd.f32 0.0, %v2104
      %v2106 = vpop.f32.mrf.mxu0
      %v2107 = vadd.f32 0.0, %v2106
      %2108 = vmatmul.bf16.gmra.mxu0 %v1200
      %v2109 = vpop.f32.mrf.mxu0
      %v2110 = vadd.f32 0.0, %v2109
      %v2111 = vpop.f32.mrf.mxu0
      %v2112 = vadd.f32 0.0, %v2111
      %2113 = vmatmul.bf16.gmra.mxu0 %v1201
      %v2114 = vpop.f32.mrf.mxu0
      %v2115 = vadd.f32 0.0, %v2114
      %v2116 = vpop.f32.mrf.mxu0
      %v2117 = vadd.f32 0.0, %v2116
      %2118 = vmatmul.bf16.gmra.mxu0 %v1202
      %v2119 = vpop.f32.mrf.mxu0
      %v2120 = vadd.f32 0.0, %v2119
      %v2121 = vpop.f32.mrf.mxu0
      %v2122 = vadd.f32 0.0, %v2121
      %2123 = vdwg.mxu0
      %v2124 = vmax.f32 %v1405, %v1450
      %v2125 = vmax.f32 %v1407, %v1452
      %v2126 = vmax.f32 %v1410, %v1455
      %v2127 = vmax.f32 %v1412, %v1457
      %v2128 = vmax.f32 %v1415, %v1460
      %v2129 = vmax.f32 %v1417, %v1462
      %v2130 = vmax.f32 %v1420, %v1465
      %v2131 = vmax.f32 %v1422, %v1467
      %v2132 = vmax.f32 %v1425, %v1470
      %v2133 = vmax.f32 %v1427, %v1472
      %v2134 = vmax.f32 %v1430, %v1475
      %v2135 = vmax.f32 %v1432, %v1477
      %v2136 = vmax.f32 %v1435, %v1480
      %v2137 = vmax.f32 %v1437, %v1482
      %v2138 = vmax.f32 %v1440, %v1485
      %v2139 = vmax.f32 %v1442, %v1487
      %v2140 = vmax.f32 %v1445, %v1490
      %v2141 = vmax.f32 %v1447, %v1492
      %v2142 = vmax.f32 %v1585, %v1630
      %v2143 = vmax.f32 %v1587, %v1632
      %v2144 = vmax.f32 %v1590, %v1635
      %v2145 = vmax.f32 %v1592, %v1637
      %v2146 = vmax.f32 %v1595, %v1640
      %v2147 = vmax.f32 %v1597, %v1642
      %v2148 = vmax.f32 %v1600, %v1645
      %v2149 = vmax.f32 %v1602, %v1647
      %v2150 = vmax.f32 %v1605, %v1650
      %v2151 = vmax.f32 %v1607, %v1652
      %v2152 = vmax.f32 %v1610, %v1655
      %v2153 = vmax.f32 %v1612, %v1657
      %v2154 = vmax.f32 %v1615, %v1660
      %v2155 = vmax.f32 %v1617, %v1662
      %v2156 = vmax.f32 %v1620, %v1665
      %v2157 = vmax.f32 %v1622, %v1667
      %v2158 = vmax.f32 %v1625, %v1670
      %v2159 = vmax.f32 %v1627, %v1672
      %v2160 = vmax.f32 %v1765, %v1810
      %v2161 = vmax.f32 %v1767, %v1812
      %v2162 = vmax.f32 %v1770, %v1815
      %v2163 = vmax.f32 %v1772, %v1817
      %v2164 = vmax.f32 %v1775, %v1820
      %v2165 = vmax.f32 %v1777, %v1822
      %v2166 = vmax.f32 %v1780, %v1825
      %v2167 = vmax.f32 %v1782, %v1827
      %v2168 = vmax.f32 %v1785, %v1830
      %v2169 = vmax.f32 %v1787, %v1832
      %v2170 = vmax.f32 %v1790, %v1835
      %v2171 = vmax.f32 %v1792, %v1837
      %v2172 = vmax.f32 %v1795, %v1840
      %v2173 = vmax.f32 %v1797, %v1842
      %v2174 = vmax.f32 %v1800, %v1845
      %v2175 = vmax.f32 %v1802, %v1847
      %v2176 = vmax.f32 %v1805, %v1850
      %v2177 = vmax.f32 %v1807, %v1852
      %v2178 = vmax.f32 %v1945, %v1990
      %v2179 = vmax.f32 %v1947, %v1992
      %v2180 = vmax.f32 %v1950, %v1995
      %v2181 = vmax.f32 %v1952, %v1997
      %v2182 = vmax.f32 %v1955, %v2000
      %v2183 = vmax.f32 %v1957, %v2002
      %v2184 = vmax.f32 %v1960, %v2005
      %v2185 = vmax.f32 %v1962, %v2007
      %v2186 = vmax.f32 %v1965, %v2010
      %v2187 = vmax.f32 %v1967, %v2012
      %v2188 = vmax.f32 %v1970, %v2015
      %v2189 = vmax.f32 %v1972, %v2017
      %v2190 = vmax.f32 %v1975, %v2020
      %v2191 = vmax.f32 %v1977, %v2022
      %v2192 = vmax.f32 %v1980, %v2025
      %v2193 = vmax.f32 %v1982, %v2027
      %v2194 = vmax.f32 %v1985, %v2030
      %v2195 = vmax.f32 %v1987, %v2032
      %v2196 = vmax.f32 %v1495, %v1540
      %v2197 = vmax.f32 %v1497, %v1542
      %v2198 = vmax.f32 %v1500, %v1545
      %v2199 = vmax.f32 %v1502, %v1547
      %v2200 = vmax.f32 %v1505, %v1550
      %v2201 = vmax.f32 %v1507, %v1552
      %v2202 = vmax.f32 %v1510, %v1555
      %v2203 = vmax.f32 %v1512, %v1557
      %v2204 = vmax.f32 %v1515, %v1560
      %v2205 = vmax.f32 %v1517, %v1562
      %v2206 = vmax.f32 %v1520, %v1565
      %v2207 = vmax.f32 %v1522, %v1567
      %v2208 = vmax.f32 %v1525, %v1570
      %v2209 = vmax.f32 %v1527, %v1572
      %v2210 = vmax.f32 %v1530, %v1575
      %v2211 = vmax.f32 %v1532, %v1577
      %v2212 = vmax.f32 %v1535, %v1580
      %v2213 = vmax.f32 %v1537, %v1582
      %v2214 = vmax.f32 %v1675, %v1720
      %v2215 = vmax.f32 %v1677, %v1722
      %v2216 = vmax.f32 %v1680, %v1725
      %v2217 = vmax.f32 %v1682, %v1727
      %v2218 = vmax.f32 %v1685, %v1730
      %v2219 = vmax.f32 %v1687, %v1732
      %v2220 = vmax.f32 %v1690, %v1735
      %v2221 = vmax.f32 %v1692, %v1737
      %v2222 = vmax.f32 %v1695, %v1740
      %v2223 = vmax.f32 %v1697, %v1742
      %v2224 = vmax.f32 %v1700, %v1745
      %v2225 = vmax.f32 %v1702, %v1747
      %v2226 = vmax.f32 %v1705, %v1750
      %v2227 = vmax.f32 %v1707, %v1752
      %v2228 = vmax.f32 %v1710, %v1755
      %v2229 = vmax.f32 %v1712, %v1757
      %v2230 = vmax.f32 %v1715, %v1760
      %v2231 = vmax.f32 %v1717, %v1762
      %v2232 = vmax.f32 %v1855, %v1900
      %v2233 = vmax.f32 %v1857, %v1902
      %v2234 = vmax.f32 %v1860, %v1905
      %v2235 = vmax.f32 %v1862, %v1907
      %v2236 = vmax.f32 %v1865, %v1910
      %v2237 = vmax.f32 %v1867, %v1912
      %v2238 = vmax.f32 %v1870, %v1915
      %v2239 = vmax.f32 %v1872, %v1917
      %v2240 = vmax.f32 %v1875, %v1920
      %v2241 = vmax.f32 %v1877, %v1922
      %v2242 = vmax.f32 %v1880, %v1925
      %v2243 = vmax.f32 %v1882, %v1927
      %v2244 = vmax.f32 %v1885, %v1930
      %v2245 = vmax.f32 %v1887, %v1932
      %v2246 = vmax.f32 %v1890, %v1935
      %v2247 = vmax.f32 %v1892, %v1937
      %v2248 = vmax.f32 %v1895, %v1940
      %v2249 = vmax.f32 %v1897, %v1942
      %v2250 = vmax.f32 %v2035, %v2080
      %v2251 = vmax.f32 %v2037, %v2082
      %v2252 = vmax.f32 %v2040, %v2085
      %v2253 = vmax.f32 %v2042, %v2087
      %v2254 = vmax.f32 %v2045, %v2090
      %v2255 = vmax.f32 %v2047, %v2092
      %v2256 = vmax.f32 %v2050, %v2095
      %v2257 = vmax.f32 %v2052, %v2097
      %v2258 = vmax.f32 %v2055, %v2100
      %v2259 = vmax.f32 %v2057, %v2102
      %v2260 = vmax.f32 %v2060, %v2105
      %v2261 = vmax.f32 %v2062, %v2107
      %v2262 = vmax.f32 %v2065, %v2110
      %v2263 = vmax.f32 %v2067, %v2112
      %v2264 = vmax.f32 %v2070, %v2115
      %v2265 = vmax.f32 %v2072, %v2117
      %v2266 = vmax.f32 %v2075, %v2120
      %v2267 = vmax.f32 %v2077, %v2122
      %v2268 = vmax.f32 %v2124, %v2196
      %v2269 = vmax.f32 %v2125, %v2197
      %v2270 = vmax.f32 %v2126, %v2198
      %v2271 = vmax.f32 %v2127, %v2199
      %v2272 = vmax.f32 %v2128, %v2200
      %v2273 = vmax.f32 %v2129, %v2201
      %v2274 = vmax.f32 %v2130, %v2202
      %v2275 = vmax.f32 %v2131, %v2203
      %v2276 = vmax.f32 %v2132, %v2204
      %v2277 = vmax.f32 %v2133, %v2205
      %v2278 = vmax.f32 %v2134, %v2206
      %v2279 = vmax.f32 %v2135, %v2207
      %v2280 = vmax.f32 %v2136, %v2208
      %v2281 = vmax.f32 %v2137, %v2209
      %v2282 = vmax.f32 %v2138, %v2210
      %v2283 = vmax.f32 %v2139, %v2211
      %v2284 = vmax.f32 %v2140, %v2212
      %v2285 = vmax.f32 %v2141, %v2213
      %v2286 = vmax.f32 %v2142, %v2214
      %v2287 = vmax.f32 %v2143, %v2215
      %v2288 = vmax.f32 %v2144, %v2216
      %v2289 = vmax.f32 %v2145, %v2217
      %v2290 = vmax.f32 %v2146, %v2218
      %v2291 = vmax.f32 %v2147, %v2219
      %v2292 = vmax.f32 %v2148, %v2220
      %v2293 = vmax.f32 %v2149, %v2221
      %v2294 = vmax.f32 %v2150, %v2222
      %v2295 = vmax.f32 %v2151, %v2223
      %v2296 = vmax.f32 %v2152, %v2224
      %v2297 = vmax.f32 %v2153, %v2225
      %v2298 = vmax.f32 %v2154, %v2226
      %v2299 = vmax.f32 %v2155, %v2227
      %v2300 = vmax.f32 %v2156, %v2228
      %v2301 = vmax.f32 %v2157, %v2229
      %v2302 = vmax.f32 %v2158, %v2230
      %v2303 = vmax.f32 %v2159, %v2231
      %v2304 = vmax.f32 %v2160, %v2232
      %v2305 = vmax.f32 %v2161, %v2233
      %v2306 = vmax.f32 %v2162, %v2234
      %v2307 = vmax.f32 %v2163, %v2235
      %v2308 = vmax.f32 %v2164, %v2236
      %v2309 = vmax.f32 %v2165, %v2237
      %v2310 = vmax.f32 %v2166, %v2238
      %v2311 = vmax.f32 %v2167, %v2239
      %v2312 = vmax.f32 %v2168, %v2240
      %v2313 = vmax.f32 %v2169, %v2241
      %v2314 = vmax.f32 %v2170, %v2242
      %v2315 = vmax.f32 %v2171, %v2243
      %v2316 = vmax.f32 %v2172, %v2244
      %v2317 = vmax.f32 %v2173, %v2245
      %v2318 = vmax.f32 %v2174, %v2246
      %v2319 = vmax.f32 %v2175, %v2247
      %v2320 = vmax.f32 %v2176, %v2248
      %v2321 = vmax.f32 %v2177, %v2249
      %v2322 = vmax.f32 %v2178, %v2250
      %v2323 = vmax.f32 %v2179, %v2251
      %v2324 = vmax.f32 %v2180, %v2252
      %v2325 = vmax.f32 %v2181, %v2253
      %v2326 = vmax.f32 %v2182, %v2254
      %v2327 = vmax.f32 %v2183, %v2255
      %v2328 = vmax.f32 %v2184, %v2256
      %v2329 = vmax.f32 %v2185, %v2257
      %v2330 = vmax.f32 %v2186, %v2258
      %v2331 = vmax.f32 %v2187, %v2259
      %v2332 = vmax.f32 %v2188, %v2260
      %v2333 = vmax.f32 %v2189, %v2261
      %v2334 = vmax.f32 %v2190, %v2262
      %v2335 = vmax.f32 %v2191, %v2263
      %v2336 = vmax.f32 %v2192, %v2264
      %v2337 = vmax.f32 %v2193, %v2265
      %v2338 = vmax.f32 %v2194, %v2266
      %v2339 = vmax.f32 %v2195, %v2267
      %v2340 = vld [vmem:[%s2] sm:$0x1]
      %v2342 = vperm.slane %v2340, 0
      %v2344 = vadd.f32 %v2268, %v2342
      %v2345 = vadd.f32 %v2269, %v2342
      %v2346 = vadd.f32 %v2270, %v2342
      %v2347 = vadd.f32 %v2271, %v2342
      %v2348 = vadd.f32 %v2272, %v2342
      %v2349 = vadd.f32 %v2273, %v2342
      %v2350 = vadd.f32 %v2274, %v2342
      %v2351 = vadd.f32 %v2275, %v2342
      %v2352 = vadd.f32 %v2276, %v2342
      %v2353 = vadd.f32 %v2277, %v2342
      %v2354 = vadd.f32 %v2278, %v2342
      %v2355 = vadd.f32 %v2279, %v2342
      %v2356 = vadd.f32 %v2280, %v2342
      %v2357 = vadd.f32 %v2281, %v2342
      %v2358 = vadd.f32 %v2282, %v2342
      %v2359 = vadd.f32 %v2283, %v2342
      %v2360 = vadd.f32 %v2284, %v2342
      %v2361 = vadd.f32 %v2285, %v2342
      %v2362 = vadd.f32 %v2286, %v2342
      %v2363 = vadd.f32 %v2287, %v2342
      %v2364 = vadd.f32 %v2288, %v2342
      %v2365 = vadd.f32 %v2289, %v2342
      %v2366 = vadd.f32 %v2290, %v2342
      %v2367 = vadd.f32 %v2291, %v2342
      %v2368 = vadd.f32 %v2292, %v2342
      %v2369 = vadd.f32 %v2293, %v2342
      %v2370 = vadd.f32 %v2294, %v2342
      %v2371 = vadd.f32 %v2295, %v2342
      %v2372 = vadd.f32 %v2296, %v2342
      %v2373 = vadd.f32 %v2297, %v2342
      %v2374 = vadd.f32 %v2298, %v2342
      %v2375 = vadd.f32 %v2299, %v2342
      %v2376 = vadd.f32 %v2300, %v2342
      %v2377 = vadd.f32 %v2301, %v2342
      %v2378 = vadd.f32 %v2302, %v2342
      %v2379 = vadd.f32 %v2303, %v2342
      %v2380 = vadd.f32 %v2304, %v2342
      %v2381 = vadd.f32 %v2305, %v2342
      %v2382 = vadd.f32 %v2306, %v2342
      %v2383 = vadd.f32 %v2307, %v2342
      %v2384 = vadd.f32 %v2308, %v2342
      %v2385 = vadd.f32 %v2309, %v2342
      %v2386 = vadd.f32 %v2310, %v2342
      %v2387 = vadd.f32 %v2311, %v2342
      %v2388 = vadd.f32 %v2312, %v2342
      %v2389 = vadd.f32 %v2313, %v2342
      %v2390 = vadd.f32 %v2314, %v2342
      %v2391 = vadd.f32 %v2315, %v2342
      %v2392 = vadd.f32 %v2316, %v2342
      %v2393 = vadd.f32 %v2317, %v2342
      %v2394 = vadd.f32 %v2318, %v2342
      %v2395 = vadd.f32 %v2319, %v2342
      %v2396 = vadd.f32 %v2320, %v2342
      %v2397 = vadd.f32 %v2321, %v2342
      %v2398 = vadd.f32 %v2322, %v2342
      %v2399 = vadd.f32 %v2323, %v2342
      %v2400 = vadd.f32 %v2324, %v2342
      %v2401 = vadd.f32 %v2325, %v2342
      %v2402 = vadd.f32 %v2326, %v2342
      %v2403 = vadd.f32 %v2327, %v2342
      %v2404 = vadd.f32 %v2328, %v2342
      %v2405 = vadd.f32 %v2329, %v2342
      %v2406 = vadd.f32 %v2330, %v2342
      %v2407 = vadd.f32 %v2331, %v2342
      %v2408 = vadd.f32 %v2332, %v2342
      %v2409 = vadd.f32 %v2333, %v2342
      %v2410 = vadd.f32 %v2334, %v2342
      %v2411 = vadd.f32 %v2335, %v2342
      %v2412 = vadd.f32 %v2336, %v2342
      %v2413 = vadd.f32 %v2337, %v2342
      %v2414 = vadd.f32 %v2338, %v2342
      %v2415 = vadd.f32 %v2339, %v2342
      %v2416 = vmax.f32 %v2344, 0.0
      %v2417 = vmax.f32 %v2345, 0.0
      %v2418 = vmax.f32 %v2346, 0.0
      %v2419 = vmax.f32 %v2347, 0.0
      %v2420 = vmax.f32 %v2348, 0.0
      %v2421 = vmax.f32 %v2349, 0.0
      %v2422 = vmax.f32 %v2350, 0.0
      %v2423 = vmax.f32 %v2351, 0.0
      %v2424 = vmax.f32 %v2352, 0.0
      %v2425 = vmax.f32 %v2353, 0.0
      %v2426 = vmax.f32 %v2354, 0.0
      %v2427 = vmax.f32 %v2355, 0.0
      %v2428 = vmax.f32 %v2356, 0.0
      %v2429 = vmax.f32 %v2357, 0.0
      %v2430 = vmax.f32 %v2358, 0.0
      %v2431 = vmax.f32 %v2359, 0.0
      %v2432 = vmax.f32 %v2360, 0.0
      %v2433 = vmax.f32 %v2361, 0.0
      %v2434 = vmax.f32 %v2362, 0.0
      %v2435 = vmax.f32 %v2363, 0.0
      %v2436 = vmax.f32 %v2364, 0.0
      %v2437 = vmax.f32 %v2365, 0.0
      %v2438 = vmax.f32 %v2366, 0.0
      %v2439 = vmax.f32 %v2367, 0.0
      %v2440 = vmax.f32 %v2368, 0.0
      %v2441 = vmax.f32 %v2369, 0.0
      %v2442 = vmax.f32 %v2370, 0.0
      %v2443 = vmax.f32 %v2371, 0.0
      %v2444 = vmax.f32 %v2372, 0.0
      %v2445 = vmax.f32 %v2373, 0.0
      %v2446 = vmax.f32 %v2374, 0.0
      %v2447 = vmax.f32 %v2375, 0.0
      %v2448 = vmax.f32 %v2376, 0.0
      %v2449 = vmax.f32 %v2377, 0.0
      %v2450 = vmax.f32 %v2378, 0.0
      %v2451 = vmax.f32 %v2379, 0.0
      %v2452 = vmax.f32 %v2380, 0.0
      %v2453 = vmax.f32 %v2381, 0.0
      %v2454 = vmax.f32 %v2382, 0.0
      %v2455 = vmax.f32 %v2383, 0.0
      %v2456 = vmax.f32 %v2384, 0.0
      %v2457 = vmax.f32 %v2385, 0.0
      %v2458 = vmax.f32 %v2386, 0.0
      %v2459 = vmax.f32 %v2387, 0.0
      %v2460 = vmax.f32 %v2388, 0.0
      %v2461 = vmax.f32 %v2389, 0.0
      %v2462 = vmax.f32 %v2390, 0.0
      %v2463 = vmax.f32 %v2391, 0.0
      %v2464 = vmax.f32 %v2392, 0.0
      %v2465 = vmax.f32 %v2393, 0.0
      %v2466 = vmax.f32 %v2394, 0.0
      %v2467 = vmax.f32 %v2395, 0.0
      %v2468 = vmax.f32 %v2396, 0.0
      %v2469 = vmax.f32 %v2397, 0.0
      %v2470 = vmax.f32 %v2398, 0.0
      %v2471 = vmax.f32 %v2399, 0.0
      %v2472 = vmax.f32 %v2400, 0.0
      %v2473 = vmax.f32 %v2401, 0.0
      %v2474 = vmax.f32 %v2402, 0.0
      %v2475 = vmax.f32 %v2403, 0.0
      %v2476 = vmax.f32 %v2404, 0.0
      %v2477 = vmax.f32 %v2405, 0.0
      %v2478 = vmax.f32 %v2406, 0.0
      %v2479 = vmax.f32 %v2407, 0.0
      %v2480 = vmax.f32 %v2408, 0.0
      %v2481 = vmax.f32 %v2409, 0.0
      %v2482 = vmax.f32 %v2410, 0.0
      %v2483 = vmax.f32 %v2411, 0.0
      %v2484 = vmax.f32 %v2412, 0.0
      %v2485 = vmax.f32 %v2413, 0.0
      %v2486 = vmax.f32 %v2414, 0.0
      %v2487 = vmax.f32 %v2415, 0.0
      %v2488 = vpack.c.bf16 %v2416, %v2416
      %v2489 = vpack.c.bf16 %v2417, %v2417
      %v2490 = vpack.c.bf16 %v2418, %v2418
      %v2491 = vpack.c.bf16 %v2419, %v2419
      %v2492 = vpack.c.bf16 %v2420, %v2420
      %v2493 = vpack.c.bf16 %v2421, %v2421
      %v2494 = vpack.c.bf16 %v2422, %v2422
      %v2495 = vpack.c.bf16 %v2423, %v2423
      %v2496 = vpack.c.bf16 %v2424, %v2424
      %v2497 = vpack.c.bf16 %v2425, %v2425
      %v2498 = vpack.c.bf16 %v2426, %v2426
      %v2499 = vpack.c.bf16 %v2427, %v2427
      %v2500 = vpack.c.bf16 %v2428, %v2428
      %v2501 = vpack.c.bf16 %v2429, %v2429
      %v2502 = vpack.c.bf16 %v2430, %v2430
      %v2503 = vpack.c.bf16 %v2431, %v2431
      %v2504 = vpack.c.bf16 %v2432, %v2432
      %v2505 = vpack.c.bf16 %v2433, %v2433
      %v2506 = vpack.c.bf16 %v2434, %v2434
      %v2507 = vpack.c.bf16 %v2435, %v2435
      %v2508 = vpack.c.bf16 %v2436, %v2436
      %v2509 = vpack.c.bf16 %v2437, %v2437
      %v2510 = vpack.c.bf16 %v2438, %v2438
      %v2511 = vpack.c.bf16 %v2439, %v2439
      %v2512 = vpack.c.bf16 %v2440, %v2440
      %v2513 = vpack.c.bf16 %v2441, %v2441
      %v2514 = vpack.c.bf16 %v2442, %v2442
      %v2515 = vpack.c.bf16 %v2443, %v2443
      %v2516 = vpack.c.bf16 %v2444, %v2444
      %v2517 = vpack.c.bf16 %v2445, %v2445
      %v2518 = vpack.c.bf16 %v2446, %v2446
      %v2519 = vpack.c.bf16 %v2447, %v2447
      %v2520 = vpack.c.bf16 %v2448, %v2448
      %v2521 = vpack.c.bf16 %v2449, %v2449
      %v2522 = vpack.c.bf16 %v2450, %v2450
      %v2523 = vpack.c.bf16 %v2451, %v2451
      %v2524 = vpack.c.bf16 %v2452, %v2452
      %v2525 = vpack.c.bf16 %v2453, %v2453
      %v2526 = vpack.c.bf16 %v2454, %v2454
      %v2527 = vpack.c.bf16 %v2455, %v2455
      %v2528 = vpack.c.bf16 %v2456, %v2456
      %v2529 = vpack.c.bf16 %v2457, %v2457
      %v2530 = vpack.c.bf16 %v2458, %v2458
      %v2531 = vpack.c.bf16 %v2459, %v2459
      %v2532 = vpack.c.bf16 %v2460, %v2460
      %v2533 = vpack.c.bf16 %v2461, %v2461
      %v2534 = vpack.c.bf16 %v2462, %v2462
      %v2535 = vpack.c.bf16 %v2463, %v2463
      %v2536 = vpack.c.bf16 %v2464, %v2464
      %v2537 = vpack.c.bf16 %v2465, %v2465
      %v2538 = vpack.c.bf16 %v2466, %v2466
      %v2539 = vpack.c.bf16 %v2467, %v2467
      %v2540 = vpack.c.bf16 %v2468, %v2468
      %v2541 = vpack.c.bf16 %v2469, %v2469
      %v2542 = vpack.c.bf16 %v2470, %v2470
      %v2543 = vpack.c.bf16 %v2471, %v2471
      %v2544 = vpack.c.bf16 %v2472, %v2472
      %v2545 = vpack.c.bf16 %v2473, %v2473
      %v2546 = vpack.c.bf16 %v2474, %v2474
      %v2547 = vpack.c.bf16 %v2475, %v2475
      %v2548 = vpack.c.bf16 %v2476, %v2476
      %v2549 = vpack.c.bf16 %v2477, %v2477
      %v2550 = vpack.c.bf16 %v2478, %v2478
      %v2551 = vpack.c.bf16 %v2479, %v2479
      %v2552 = vpack.c.bf16 %v2480, %v2480
      %v2553 = vpack.c.bf16 %v2481, %v2481
      %v2554 = vpack.c.bf16 %v2482, %v2482
      %v2555 = vpack.c.bf16 %v2483, %v2483
      %v2556 = vpack.c.bf16 %v2484, %v2484
      %v2557 = vpack.c.bf16 %v2485, %v2485
      %v2558 = vpack.c.bf16 %v2486, %v2486
      %v2559 = vpack.c.bf16 %v2487, %v2487
      %vm2560 = vcmask 257024
      %2561 = vst.msk [vmem:[%s177] sm:$0xf] %vm2560, %v2488
      %2562 = vst.msk [vmem:[%s177 + $0x4] sm:$0xf] %vm2560, %v2489
      %2563 = vst.msk [vmem:[%s177 + $0x8] sm:$0xf] %vm2560, %v2490
      %2564 = vst.msk [vmem:[%s177 + $0xc] sm:$0xf] %vm2560, %v2491
      %2565 = vst.msk [vmem:[%s177 + $0x10] sm:$0xf] %vm2560, %v2492
      %2566 = vst.msk [vmem:[%s177 + $0x14] sm:$0xf] %vm2560, %v2493
      %2567 = vst.msk [vmem:[%s177 + $0x18] sm:$0xf] %vm2560, %v2494
      %2568 = vst.msk [vmem:[%s177 + $0x1c] sm:$0xf] %vm2560, %v2495
      %2569 = vst.msk [vmem:[%s177 + $0x20] sm:$0xf] %vm2560, %v2496
      %2570 = vst.msk [vmem:[%s177 + $0x24] sm:$0xf] %vm2560, %v2497
      %2571 = vst.msk [vmem:[%s177 + $0x28] sm:$0xf] %vm2560, %v2498
      %2572 = vst.msk [vmem:[%s177 + $0x2c] sm:$0xf] %vm2560, %v2499
      %2573 = vst.msk [vmem:[%s177 + $0x30] sm:$0xf] %vm2560, %v2500
      %2574 = vst.msk [vmem:[%s177 + $0x34] sm:$0xf] %vm2560, %v2501
      %2575 = vst.msk [vmem:[%s177 + $0x38] sm:$0xf] %vm2560, %v2502
      %2576 = vst.msk [vmem:[%s177 + $0x3c] sm:$0xf] %vm2560, %v2503
      %2577 = vst.msk [vmem:[%s177 + $0x40] sm:$0xf] %vm2560, %v2504
      %2578 = vst.msk [vmem:[%s177 + $0x44] sm:$0xf] %vm2560, %v2505
      %2579 = vst.msk [vmem:[%s177 + $0x48] sm:$0xf] %vm2560, %v2506
      %2580 = vst.msk [vmem:[%s177 + $0x4c] sm:$0xf] %vm2560, %v2507
      %2581 = vst.msk [vmem:[%s177 + $0x50] sm:$0xf] %vm2560, %v2508
      %2582 = vst.msk [vmem:[%s177 + $0x54] sm:$0xf] %vm2560, %v2509
      %2583 = vst.msk [vmem:[%s177 + $0x58] sm:$0xf] %vm2560, %v2510
      %2584 = vst.msk [vmem:[%s177 + $0x5c] sm:$0xf] %vm2560, %v2511
      %2585 = vst.msk [vmem:[%s177 + $0x60] sm:$0xf] %vm2560, %v2512
      %2586 = vst.msk [vmem:[%s177 + $0x64] sm:$0xf] %vm2560, %v2513
      %2587 = vst.msk [vmem:[%s177 + $0x68] sm:$0xf] %vm2560, %v2514
      %2588 = vst.msk [vmem:[%s177 + $0x6c] sm:$0xf] %vm2560, %v2515
      %2589 = vst.msk [vmem:[%s177 + $0x70] sm:$0xf] %vm2560, %v2516
      %2590 = vst.msk [vmem:[%s177 + $0x74] sm:$0xf] %vm2560, %v2517
      %2591 = vst.msk [vmem:[%s177 + $0x78] sm:$0xf] %vm2560, %v2518
      %2592 = vst.msk [vmem:[%s177 + $0x7c] sm:$0xf] %vm2560, %v2519
      %2593 = vst.msk [vmem:[%s177 + $0x80] sm:$0xf] %vm2560, %v2520
      %2594 = vst.msk [vmem:[%s177 + $0x84] sm:$0xf] %vm2560, %v2521
      %2595 = vst.msk [vmem:[%s177 + $0x88] sm:$0xf] %vm2560, %v2522
      %2596 = vst.msk [vmem:[%s177 + $0x8c] sm:$0xf] %vm2560, %v2523
      %2597 = vst.msk [vmem:[%s177 + $0x90] sm:$0xf] %vm2560, %v2524
      %2598 = vst.msk [vmem:[%s177 + $0x94] sm:$0xf] %vm2560, %v2525
      %2599 = vst.msk [vmem:[%s177 + $0x98] sm:$0xf] %vm2560, %v2526
      %2600 = vst.msk [vmem:[%s177 + $0x9c] sm:$0xf] %vm2560, %v2527
      %2601 = vst.msk [vmem:[%s177 + $0xa0] sm:$0xf] %vm2560, %v2528
      %2602 = vst.msk [vmem:[%s177 + $0xa4] sm:$0xf] %vm2560, %v2529
      %2603 = vst.msk [vmem:[%s177 + $0xa8] sm:$0xf] %vm2560, %v2530
      %2604 = vst.msk [vmem:[%s177 + $0xac] sm:$0xf] %vm2560, %v2531
      %2605 = vst.msk [vmem:[%s177 + $0xb0] sm:$0xf] %vm2560, %v2532
      %2606 = vst.msk [vmem:[%s177 + $0xb4] sm:$0xf] %vm2560, %v2533
      %2607 = vst.msk [vmem:[%s177 + $0xb8] sm:$0xf] %vm2560, %v2534
      %2608 = vst.msk [vmem:[%s177 + $0xbc] sm:$0xf] %vm2560, %v2535
      %2609 = vst.msk [vmem:[%s177 + $0xc0] sm:$0xf] %vm2560, %v2536
      %2610 = vst.msk [vmem:[%s177 + $0xc4] sm:$0xf] %vm2560, %v2537
      %2611 = vst.msk [vmem:[%s177 + $0xc8] sm:$0xf] %vm2560, %v2538
      %2612 = vst.msk [vmem:[%s177 + $0xcc] sm:$0xf] %vm2560, %v2539
      %2613 = vst.msk [vmem:[%s177 + $0xd0] sm:$0xf] %vm2560, %v2540
      %2614 = vst.msk [vmem:[%s177 + $0xd4] sm:$0xf] %vm2560, %v2541
      %2615 = vst.msk [vmem:[%s177 + $0xd8] sm:$0xf] %vm2560, %v2542
      %2616 = vst.msk [vmem:[%s177 + $0xdc] sm:$0xf] %vm2560, %v2543
      %2617 = vst.msk [vmem:[%s177 + $0xe0] sm:$0xf] %vm2560, %v2544
      %2618 = vst.msk [vmem:[%s177 + $0xe4] sm:$0xf] %vm2560, %v2545
      %2619 = vst.msk [vmem:[%s177 + $0xe8] sm:$0xf] %vm2560, %v2546
      %2620 = vst.msk [vmem:[%s177 + $0xec] sm:$0xf] %vm2560, %v2547
      %2621 = vst.msk [vmem:[%s177 + $0xf0] sm:$0xf] %vm2560, %v2548
      %2622 = vst.msk [vmem:[%s177 + $0xf4] sm:$0xf] %vm2560, %v2549
      %2623 = vst.msk [vmem:[%s177 + $0xf8] sm:$0xf] %vm2560, %v2550
      %2624 = vst.msk [vmem:[%s177 + $0xfc] sm:$0xf] %vm2560, %v2551
      %2625 = vst.msk [vmem:[%s177 + $0x100] sm:$0xf] %vm2560, %v2552
      %2626 = vst.msk [vmem:[%s177 + $0x104] sm:$0xf] %vm2560, %v2553
      %2627 = vst.msk [vmem:[%s177 + $0x108] sm:$0xf] %vm2560, %v2554
      %2628 = vst.msk [vmem:[%s177 + $0x10c] sm:$0xf] %vm2560, %v2555
      %2629 = vst.msk [vmem:[%s177 + $0x110] sm:$0xf] %vm2560, %v2556
      %2630 = vst.msk [vmem:[%s177 + $0x114] sm:$0xf] %vm2560, %v2557
      %2631 = vst.msk [vmem:[%s177 + $0x118] sm:$0xf] %vm2560, %v2558
      %2632 = vst.msk [vmem:[%s177 + $0x11c] sm:$0xf] %vm2560, %v2559
      %s2633 = smul.u32 4, %s14
      %p2634 = scmp.lt.s32.totalorder %s2633, 15
      %s2635 = scalar_select %p2634, %s2633, 15
      %s2636 = smul.addr %s2635, 18
      %s2637 = smul.addr %s2636, 4
      %s2638 = scalar_lea.vmem %s3, %s2637
      // Predicated region
      $region33: #{_lambda_.2} parent=31 // pred_check
        %p2639 = pneg %p100
      $region34: #{_lambda_.2} parent=31 // pred_check_branch
        %2641 = sbr.rel (%p2639) target = $region36
      $region35: #{_lambda_.2} parent=31 // pred_region
        %s2642 = smul.u32 4, %s14
      $region36: #{_lambda_.2} parent=31 // pred_fallthru
        _
    $region32: #{_lambda_.2} parent=5 // pred_fallthru
      _
    %p2643 = scmp.le.s32.totalorder 2, %s9
    // Predicated region
    $region37: #{_lambda_.2} parent=5 // pred_check
      %p2644 = pneg %p2643
    $region38: #{_lambda_.2} parent=5 // pred_check_branch
      %2646 = sbr.rel (%p2644) target = $region40
    $region39: #{_lambda_.2} parent=5 // pred_region
      %s2647 = ssub.s32 %s9, 2
      // Predicated region
      $region41: #{_lambda_.2} parent=39 // pred_check
        %p2648 = pneg %p106
      $region42: #{_lambda_.2} parent=39 // pred_check_branch
        %2650 = sbr.rel (%p2648) target = $region44
      $region43: #{_lambda_.2} parent=39 // pred_region
        %s2651 = smul.u32 4, %s15
        %p2652 = scmp.lt.s32.totalorder %s2651, 15
        %s2653 = scalar_select %p2652, %s2651, 15
        %s2654 = smul.addr %s2653, 18
        %s2655 = smul.addr %s2654, 4
        %s2656 = scalar_lea.vmem %s3, %s2655
      $region44: #{_lambda_.2} parent=39 // pred_fallthru
        _
    $region40: #{_lambda_.2} parent=5 // pred_fallthru
      _
  $region6: #{_lambda_.2} parent=0 // loop_footer
    %s13 = sadd.s32 1, %s9
  $region7: #{_lambda_.2} parent=0 // loop_footer_branch
    %8 = sbr.rel target = $region3
  $region8: #{_lambda_.2} parent=0 // loop_exit
    _

// kernel: _lambda_.3
$region0: #{_lambda_.3}
  #allocation0 [shape = 'u32[]', space=smem, size = 0x4, offset = 0x4, fixed_abs, tag = 'smem constant byte address 0x4 - core index']
  #allocation1 [shape = 'u32[72,128]{1,0:T(1,128)}', space=vmem, size = 0x9000, scoped, tag = 'internal scratch']
  %s0 = inlined_call_operand.vmem [shape: bf16[16,64,896], index: 0, kind: input, shape index: {}]
  %s1 = inlined_call_operand.vmem [shape: bf16[896,128], index: 1, kind: input, shape index: {}]
  %s2 = inlined_call_operand.vmem [shape: f32[1,128], index: 2, kind: input, shape index: {}]
  %s3 = inlined_call_operand.vmem [shape: bf16[128,4], index: 3, kind: input, shape index: {}]
  %s4 = inlined_call_operand.vmem [shape: f32[128,1], index: 4, kind: input, shape index: {}]
  %s5 = inlined_call_operand.vmem [shape: bf16[128,128], index: 5, kind: input, shape index: {}]
  %s6 = inlined_call_operand.vmem [shape: f32[128,1], index: 6, kind: input, shape index: {}]
  %s7 = inlined_call_operand.vmem [shape: bf16[128,128], index: 7, kind: input, shape index: {}]
  %s8 = inlined_call_operand.vmem [shape: f32[128,1], index: 8, kind: input, shape index: {}]
  %s9 = inlined_call_operand.vmem [shape: f32[16,8192], index: 9, kind: output, shape index: {}]
  %s10 = sld [smem:[#allocation0]]
  $region88: #{_lambda_.3} parent=0
    _
  %s12 = ssub.s32 1, %s10
  %s13 = scalar_select 0, %s12, %s10
  $region1: #{_lambda_.3} parent=0
    #allocation2 [shape = 'u8[262144]{0}', space=vmem, size = 0x40000, scoped, tag = 'output window, operand 0']
    loop: start=0, step=1, limit=6
    $region2: #{_lambda_.3} parent=1 // loop_pre_header
      _
    $region3: #{_lambda_.3} parent=1 // loop_header
      %s15 = sphi 0, %s19
      %p16 = scmp.ge.s32.totalorder %s15, 6
      %s25 = sphi 0, %s27
      %s28 = sphi 0, %s25
      %s29 = sphi 0, %s28
      %s45 = sphi 0, %s29
      %s49 = sphi 0, %s49
      %s51 = sphi 0, %s49
      %s52 = sphi 0, %s51
      %s66 = sphi 0, %s52
      %s70 = sphi 0, %s70
      %s72 = sphi 0, %s70
      %s73 = sphi 0, %s72
      %s87 = sphi 0, %s73
      %s91 = sphi 0, %s91
      %s93 = sphi 0, %s91
      %s94 = sphi 0, %s93
      %s108 = sphi 0, %s94
      %s112 = sphi 0, %s112
      %s114 = sphi 0, %s112
      %s115 = sphi 0, %s114
      %s129 = sphi 0, %s115
      %s133 = sphi 0, %s133
      %s135 = sphi 0, %s133
      %s136 = sphi 0, %s135
      %s150 = sphi 0, %s136
      %s154 = sphi 0, %s154
      %s156 = sphi 0, %s154
      %s157 = sphi 0, %s156
      %s171 = sphi 0, %s157
      %s175 = sphi 0, %s175
      %s177 = sphi 0, %s175
      %s178 = sphi 0, %s177
      %s192 = sphi 0, %s178
      %s196 = sphi 0, %s196
      %s198 = sphi 0, %s196
      %s199 = sphi 0, %s198
      %s213 = sphi 0, %s199
      %s219 = sphi 0, %s221
      %s222 = sphi 0, %s219
      %s223 = sphi 0, %s222
      %s239 = sphi 0, %s223
    $region4: #{_lambda_.3} parent=1 // loop_header_branch
      %18 = sbr.rel (%p16) target = $region8
    $region5: #{_lambda_.3} parent=1 // loop_body
      %s20 = ssub.s32 %s15, 1
      %s21 = ssub.s32 %s15, 2
      %s22 = sadd.s32 %s15, 1
      %s23 = ssub.s32 %s15, %s22
      %p24 = scmp.eq.s32.totalorder %s23, 0
      %s26 = sadd.s32 %s25, 1
      %s27 = scalar_select %p24, %s25, %s26
      %p30 = pneg %p24
      %p31 = scmp.eq.s32.totalorder %s15, 3
      %p32 = por %p30, %p31
      %p33 = scmp.ne.s32.totalorder %s25, %s28
      %p34 = scmp.eq.s32.totalorder %s15, 0
      %p35 = por %p33, %p34
      %p36 = scmp.ne.s32.totalorder %s25, %s28
      %p37 = scmp.eq.s32.totalorder %s20, 3
      %p38 = por %p36, %p37
      %p39 = scmp.ne.s32.totalorder %s28, %s29
      %p40 = scmp.eq.s32.totalorder %s20, 0
      %p41 = por %p39, %p40
      %p42 = scmp.ne.s32.totalorder %s28, %s29
      %p43 = scmp.eq.s32.totalorder %s21, 3
      %p44 = por %p42, %p43
      %p46 = scmp.ne.s32.totalorder %s29, %s45
      %p47 = scmp.eq.s32.totalorder %s21, 0
      %p48 = por %p46, %p47
      %s50 = sadd.s32 %s49, 1
      %p53 = scmp.eq.s32.totalorder %s15, 3
      %p54 = scmp.ne.s32.totalorder %s49, %s51
      %p55 = scmp.eq.s32.totalorder %s15, 0
      %p56 = por %p54, %p55
      %p57 = scmp.ne.s32.totalorder %s49, %s51
      %p58 = scmp.eq.s32.totalorder %s20, 3
      %p59 = por %p57, %p58
      %p60 = scmp.ne.s32.totalorder %s51, %s52
      %p61 = scmp.eq.s32.totalorder %s20, 0
      %p62 = por %p60, %p61
      %p63 = scmp.ne.s32.totalorder %s51, %s52
      %p64 = scmp.eq.s32.totalorder %s21, 3
      %p65 = por %p63, %p64
      %p67 = scmp.ne.s32.totalorder %s52, %s66
      %p68 = scmp.eq.s32.totalorder %s21, 0
      %p69 = por %p67, %p68
      %s71 = sadd.s32 %s70, 1
      %p74 = scmp.eq.s32.totalorder %s15, 3
      %p75 = scmp.ne.s32.totalorder %s70, %s72
      %p76 = scmp.eq.s32.totalorder %s15, 0
      %p77 = por %p75, %p76
      %p78 = scmp.ne.s32.totalorder %s70, %s72
      %p79 = scmp.eq.s32.totalorder %s20, 3
      %p80 = por %p78, %p79
      %p81 = scmp.ne.s32.totalorder %s72, %s73
      %p82 = scmp.eq.s32.totalorder %s20, 0
      %p83 = por %p81, %p82
      %p84 = scmp.ne.s32.totalorder %s72, %s73
      %p85 = scmp.eq.s32.totalorder %s21, 3
      %p86 = por %p84, %p85
      %p88 = scmp.ne.s32.totalorder %s73, %s87
      %p89 = scmp.eq.s32.totalorder %s21, 0
      %p90 = por %p88, %p89
      %s92 = sadd.s32 %s91, 1
      %p95 = scmp.eq.s32.totalorder %s15, 3
      %p96 = scmp.ne.s32.totalorder %s91, %s93
      %p97 = scmp.eq.s32.totalorder %s15, 0
      %p98 = por %p96, %p97
      %p99 = scmp.ne.s32.totalorder %s91, %s93
      %p100 = scmp.eq.s32.totalorder %s20, 3
      %p101 = por %p99, %p100
      %p102 = scmp.ne.s32.totalorder %s93, %s94
      %p103 = scmp.eq.s32.totalorder %s20, 0
      %p104 = por %p102, %p103
      %p105 = scmp.ne.s32.totalorder %s93, %s94
      %p106 = scmp.eq.s32.totalorder %s21, 3
      %p107 = por %p105, %p106
      %p109 = scmp.ne.s32.totalorder %s94, %s108
      %p110 = scmp.eq.s32.totalorder %s21, 0
      %p111 = por %p109, %p110
      %s113 = sadd.s32 %s112, 1
      %p116 = scmp.eq.s32.totalorder %s15, 3
      %p117 = scmp.ne.s32.totalorder %s112, %s114
      %p118 = scmp.eq.s32.totalorder %s15, 0
      %p119 = por %p117, %p118
      %p120 = scmp.ne.s32.totalorder %s112, %s114
      %p121 = scmp.eq.s32.totalorder %s20, 3
      %p122 = por %p120, %p121
      %p123 = scmp.ne.s32.totalorder %s114, %s115
      %p124 = scmp.eq.s32.totalorder %s20, 0
      %p125 = por %p123, %p124
      %p126 = scmp.ne.s32.totalorder %s114, %s115
      %p127 = scmp.eq.s32.totalorder %s21, 3
      %p128 = por %p126, %p127
      %p130 = scmp.ne.s32.totalorder %s115, %s129
      %p131 = scmp.eq.s32.totalorder %s21, 0
      %p132 = por %p130, %p131
      %s134 = sadd.s32 %s133, 1
      %p137 = scmp.eq.s32.totalorder %s15, 3
      %p138 = scmp.ne.s32.totalorder %s133, %s135
      %p139 = scmp.eq.s32.totalorder %s15, 0
      %p140 = por %p138, %p139
      %p141 = scmp.ne.s32.totalorder %s133, %s135
      %p142 = scmp.eq.s32.totalorder %s20, 3
      %p143 = por %p141, %p142
      %p144 = scmp.ne.s32.totalorder %s135, %s136
      %p145 = scmp.eq.s32.totalorder %s20, 0
      %p146 = por %p144, %p145
      %p147 = scmp.ne.s32.totalorder %s135, %s136
      %p148 = scmp.eq.s32.totalorder %s21, 3
      %p149 = por %p147, %p148
      %p151 = scmp.ne.s32.totalorder %s136, %s150
      %p152 = scmp.eq.s32.totalorder %s21, 0
      %p153 = por %p151, %p152
      %s155 = sadd.s32 %s154, 1
      %p158 = scmp.eq.s32.totalorder %s15, 3
      %p159 = scmp.ne.s32.totalorder %s154, %s156
      %p160 = scmp.eq.s32.totalorder %s15, 0
      %p161 = por %p159, %p160
      %p162 = scmp.ne.s32.totalorder %s154, %s156
      %p163 = scmp.eq.s32.totalorder %s20, 3
      %p164 = por %p162, %p163
      %p165 = scmp.ne.s32.totalorder %s156, %s157
      %p166 = scmp.eq.s32.totalorder %s20, 0
      %p167 = por %p165, %p166
      %p168 = scmp.ne.s32.totalorder %s156, %s157
      %p169 = scmp.eq.s32.totalorder %s21, 3
      %p170 = por %p168, %p169
      %p172 = scmp.ne.s32.totalorder %s157, %s171
      %p173 = scmp.eq.s32.totalorder %s21, 0
      %p174 = por %p172, %p173
      %s176 = sadd.s32 %s175, 1
      %p179 = scmp.eq.s32.totalorder %s15, 3
      %p180 = scmp.ne.s32.totalorder %s175, %s177
      %p181 = scmp.eq.s32.totalorder %s15, 0
      %p182 = por %p180, %p181
      %p183 = scmp.ne.s32.totalorder %s175, %s177
      %p184 = scmp.eq.s32.totalorder %s20, 3
      %p185 = por %p183, %p184
      %p186 = scmp.ne.s32.totalorder %s177, %s178
      %p187 = scmp.eq.s32.totalorder %s20, 0
      %p188 = por %p186, %p187
      %p189 = scmp.ne.s32.totalorder %s177, %s178
      %p190 = scmp.eq.s32.totalorder %s21, 3
      %p191 = por %p189, %p190
      %p193 = scmp.ne.s32.totalorder %s178, %s192
      %p194 = scmp.eq.s32.totalorder %s21, 0
      %p195 = por %p193, %p194
      %s197 = sadd.s32 %s196, 1
      %p200 = scmp.eq.s32.totalorder %s15, 3
      %p201 = scmp.ne.s32.totalorder %s196, %s198
      %p202 = scmp.eq.s32.totalorder %s15, 0
      %p203 = por %p201, %p202
      %p204 = scmp.ne.s32.totalorder %s196, %s198
      %p205 = scmp.eq.s32.totalorder %s20, 3
      %p206 = por %p204, %p205
      %p207 = scmp.ne.s32.totalorder %s198, %s199
      %p208 = scmp.eq.s32.totalorder %s20, 0
      %p209 = por %p207, %p208
      %p210 = scmp.ne.s32.totalorder %s198, %s199
      %p211 = scmp.eq.s32.totalorder %s21, 3
      %p212 = por %p210, %p211
      %p214 = scmp.ne.s32.totalorder %s199, %s213
      %p215 = scmp.eq.s32.totalorder %s21, 0
      %p216 = por %p214, %p215
      %s217 = ssub.s32 %s15, %s22
      %p218 = scmp.eq.s32.totalorder %s217, 0
      %s220 = sadd.s32 %s219, 1
      %s221 = scalar_select %p218, %s219, %s220
      %p224 = pneg %p218
      %p225 = scmp.eq.s32.totalorder %s15, 3
      %p226 = por %p224, %p225
      %p227 = scmp.ne.s32.totalorder %s219, %s222
      %p228 = scmp.eq.s32.totalorder %s15, 0
      %p229 = por %p227, %p228
      %p230 = scmp.ne.s32.totalorder %s219, %s222
      %p231 = scmp.eq.s32.totalorder %s20, 3
      %p232 = por %p230, %p231
      %p233 = scmp.ne.s32.totalorder %s222, %s223
      %p234 = scmp.eq.s32.totalorder %s20, 0
      %p235 = por %p233, %p234
      %p236 = scmp.ne.s32.totalorder %s222, %s223
      %p237 = scmp.eq.s32.totalorder %s21, 3
      %p238 = por %p236, %p237
      %p240 = scmp.ne.s32.totalorder %s223, %s239
      %p241 = scmp.eq.s32.totalorder %s21, 0
      %p242 = por %p240, %p241
      %p243 = scmp.le.s32.totalorder 1, %s15
      %p244 = scmp.lt.s32.totalorder %s15, 5
      %p245 = pnand %p243, %p244
      %p246 = pneg %p245
      // Predicated region
      $region9: #{_lambda_.3} parent=5 // pred_check
        _
      $region10: #{_lambda_.3} parent=5 // pred_check_branch
        %248 = sbr.rel (%p245) target = $region12
      $region11: #{_lambda_.3} parent=5 // pred_region
        %s249 = ssub.s32 %s15, 1
        // Predicated region
        $region13: #{_lambda_.3} parent=11 // pred_check
          %p250 = pneg %p62
        $region14: #{_lambda_.3} parent=11 // pred_check_branch
          %252 = sbr.rel (%p250) target = $region16
        $region15: #{_lambda_.3} parent=11 // pred_region
          _
        $region16: #{_lambda_.3} parent=11 // pred_fallthru
          _
        // Predicated region
        $region17: #{_lambda_.3} parent=11 // pred_check
          %p253 = pneg %p83
        $region18: #{_lambda_.3} parent=11 // pred_check_branch
          %255 = sbr.rel (%p253) target = $region20
        $region19: #{_lambda_.3} parent=11 // pred_region
          _
        $region20: #{_lambda_.3} parent=11 // pred_fallthru
          _
        // Predicated region
        $region21: #{_lambda_.3} parent=11 // pred_check
          %p256 = pneg %p104
        $region22: #{_lambda_.3} parent=11 // pred_check_branch
          %258 = sbr.rel (%p256) target = $region24
        $region23: #{_lambda_.3} parent=11 // pred_region
          _
        $region24: #{_lambda_.3} parent=11 // pred_fallthru
          _
        // Predicated region
        $region25: #{_lambda_.3} parent=11 // pred_check
          %p259 = pneg %p125
        $region26: #{_lambda_.3} parent=11 // pred_check_branch
          %261 = sbr.rel (%p259) target = $region28
        $region27: #{_lambda_.3} parent=11 // pred_region
          _
        $region28: #{_lambda_.3} parent=11 // pred_fallthru
          _
        // Predicated region
        $region29: #{_lambda_.3} parent=11 // pred_check
          %p262 = pneg %p146
        $region30: #{_lambda_.3} parent=11 // pred_check_branch
          %264 = sbr.rel (%p262) target = $region32
        $region31: #{_lambda_.3} parent=11 // pred_region
          _
        $region32: #{_lambda_.3} parent=11 // pred_fallthru
          _
        // Predicated region
        $region33: #{_lambda_.3} parent=11 // pred_check
          %p265 = pneg %p167
        $region34: #{_lambda_.3} parent=11 // pred_check_branch
          %267 = sbr.rel (%p265) target = $region36
        $region35: #{_lambda_.3} parent=11 // pred_region
          _
        $region36: #{_lambda_.3} parent=11 // pred_fallthru
          _
        // Predicated region
        $region37: #{_lambda_.3} parent=11 // pred_check
          %p268 = pneg %p188
        $region38: #{_lambda_.3} parent=11 // pred_check_branch
          %270 = sbr.rel (%p268) target = $region40
        $region39: #{_lambda_.3} parent=11 // pred_region
          _
        $region40: #{_lambda_.3} parent=11 // pred_fallthru
          _
        // Predicated region
        $region41: #{_lambda_.3} parent=11 // pred_check
          %p271 = pneg %p209
        $region42: #{_lambda_.3} parent=11 // pred_check_branch
          %273 = sbr.rel (%p271) target = $region44
        $region43: #{_lambda_.3} parent=11 // pred_region
          _
        $region44: #{_lambda_.3} parent=11 // pred_fallthru
          _
      $region12: #{_lambda_.3} parent=5 // pred_fallthru
        _
      %p274 = scmp.lt.s32.totalorder %s15, 4
      // Predicated region
      $region45: #{_lambda_.3} parent=5 // pred_check
        %p275 = pneg %p274
      $region46: #{_lambda_.3} parent=5 // pred_check_branch
        %277 = sbr.rel (%p275) target = $region48
      $region47: #{_lambda_.3} parent=5 // pred_region
        // Predicated region
        $region49: #{_lambda_.3} parent=47 // pred_check
          %p278 = pneg %p35
        $region50: #{_lambda_.3} parent=47 // pred_check_branch
          %280 = sbr.rel (%p278) target = $region52
        $region51: #{_lambda_.3} parent=47 // pred_region
          %s281 = smul.u32 4, %s15
          %p282 = scmp.lt.s32.totalorder %s281, 15
          %s283 = scalar_select %p282, %s281, 15
          %s284 = smul.addr %s283, 56
          %s285 = smul.addr %s284, 4
          %s286 = scalar_lea.vmem %s0, %s285
          %s287 = smul.u32 4, %s15
        $region52: #{_lambda_.3} parent=47 // pred_fallthru
          _
      $region48: #{_lambda_.3} parent=5 // pred_fallthru
        _
      %p288 = scmp.le.s32.totalorder 1, %s15
      %p289 = scmp.lt.s32.totalorder %s15, 5
      %p290 = pnand %p288, %p289
      %p291 = pneg %p290
      // Predicated region
      $region53: #{_lambda_.3} parent=5 // pred_check
        _
      $region54: #{_lambda_.3} parent=5 // pred_check_branch
        %293 = sbr.rel (%p290) target = $region56
      $region55: #{_lambda_.3} parent=5 // pred_region
        %s294 = ssub.s32 %s15, 1
        %s295 = smul.u32 4, %s20
        %p296 = scmp.lt.s32.totalorder %s295, 15
        %s297 = scalar_select %p296, %s295, 15
        %s298 = smul.addr %s297, 56
        %s299 = smul.addr %s298, 4
        %s300 = scalar_lea.vmem %s0, %s299
        %p301 = pneg %p41
        %p302 = pneg %p38
        %p303 = pneg %p62
        %p304 = pneg %p59
        %p305 = pneg %p83
        %p306 = pneg %p80
        %p307 = pneg %p104
        %p308 = pneg %p101
        %p309 = pneg %p125
        %p310 = pneg %p122
        %p311 = pneg %p146
        %p312 = pneg %p143
        %p313 = pneg %p167
        %p314 = pneg %p164
        %p315 = pneg %p188
        %p316 = pneg %p185
        %p317 = pneg %p209
        %p318 = pneg %p206
        %p319 = pneg %p235
        %p320 = pneg %p232
        %s321 = sand.u32 %s222, 1
        %s322 = sand.u32 %s222, 1
        %s323 = smul.addr %s322, 256
        %s324 = scalar_lea.vmem [#allocation2], %s323
        %s325 = smul.u32 4, %s20
        %p326 = scmp.lt.s32.totalorder %s325, 15
        %s327 = scalar_select %p326, %s325, 15
        %s328 = smul.addr %s327, 56
        %s329 = smul.addr %s328, 4
        %s330 = scalar_lea.vmem %s0, %s329
        %s331 = smul.u32 4, %s20
        %s332 = smul.u32 16, %s20
        %v334 = vld [vmem:[%s330] sm:$0xff]
        %v335 = vld [vmem:[%s330 + $0x8] sm:$0xff]
        %v336 = vld [vmem:[%s330 + $0x10] sm:$0xff]
        %v337 = vld [vmem:[%s330 + $0x18] sm:$0xf]
        %v338 = vld [vmem:[%s330 + $0x1c] sm:$0xff]
        %v339 = vld [vmem:[%s330 + $0x24] sm:$0xff]
        %v340 = vld [vmem:[%s330 + $0x2c] sm:$0xff]
        %v341 = vld [vmem:[%s330 + $0x34] sm:$0xf]
        %v342 = vld [vmem:[%s330 + $0x38] sm:$0xff]
        %v343 = vld [vmem:[%s330 + $0x40] sm:$0xff]
        %v344 = vld [vmem:[%s330 + $0x48] sm:$0xff]
        %v345 = vld [vmem:[%s330 + $0x50] sm:$0xf]
        %v346 = vld [vmem:[%s330 + $0x54] sm:$0xff]
        %v347 = vld [vmem:[%s330 + $0x5c] sm:$0xff]
        %v348 = vld [vmem:[%s330 + $0x64] sm:$0xff]
        %v349 = vld [vmem:[%s330 + $0x6c] sm:$0xf]
        %v350 = vld [vmem:[%s330 + $0x70] sm:$0xff]
        %v351 = vld [vmem:[%s330 + $0x78] sm:$0xff]
        %v352 = vld [vmem:[%s330 + $0x80] sm:$0xff]
        %v353 = vld [vmem:[%s330 + $0x88] sm:$0xf]
        %v354 = vld [vmem:[%s330 + $0x8c] sm:$0xff]
        %v355 = vld [vmem:[%s330 + $0x94] sm:$0xff]
        %v356 = vld [vmem:[%s330 + $0x9c] sm:$0xff]
        %v357 = vld [vmem:[%s330 + $0xa4] sm:$0xf]
        %v358 = vld [vmem:[%s330 + $0xa8] sm:$0xff]
        %v359 = vld [vmem:[%s330 + $0xb0] sm:$0xff]
        %v360 = vld [vmem:[%s330 + $0xb8] sm:$0xff]
        %v361 = vld [vmem:[%s330 + $0xc0] sm:$0xf]
        %v362 = vld [vmem:[%s330 + $0xc4] sm:$0xff]
        %v363 = vld [vmem:[%s330 + $0xcc] sm:$0xff]
        %v364 = vld [vmem:[%s330 + $0xd4] sm:$0xff]
        %v365 = vld [vmem:[%s330 + $0xdc] sm:$0xf]
        %v366 = vld [vmem:[%s330 + $0xe0] sm:$0xff]
        %v367 = vld [vmem:[%s330 + $0xe8] sm:$0xff]
        %v368 = vld [vmem:[%s330 + $0xf0] sm:$0xff]
        %v369 = vld [vmem:[%s330 + $0xf8] sm:$0xf]
        %v370 = vld [vmem:[%s330 + $0xfc] sm:$0xff]
        %v371 = vld [vmem:[%s330 + $0x104] sm:$0xff]
        %v372 = vld [vmem:[%s330 + $0x10c] sm:$0xff]
        %v373 = vld [vmem:[%s330 + $0x114] sm:$0xf]
        %v374 = vld [vmem:[%s330 + $0x118] sm:$0xff]
        %v375 = vld [vmem:[%s330 + $0x120] sm:$0xff]
        %v376 = vld [vmem:[%s330 + $0x128] sm:$0xff]
        %v377 = vld [vmem:[%s330 + $0x130] sm:$0xf]
        %v378 = vld [vmem:[%s330 + $0x134] sm:$0xff]
        %v379 = vld [vmem:[%s330 + $0x13c] sm:$0xff]
        %v380 = vld [vmem:[%s330 + $0x144] sm:$0xff]
        %v381 = vld [vmem:[%s330 + $0x14c] sm:$0xf]
        %v382 = vld [vmem:[%s330 + $0x150] sm:$0xff]
        %v383 = vld [vmem:[%s330 + $0x158] sm:$0xff]
        %v384 = vld [vmem:[%s330 + $0x160] sm:$0xff]
        %v385 = vld [vmem:[%s330 + $0x168] sm:$0xf]
        %v386 = vld [vmem:[%s330 + $0x16c] sm:$0xff]
        %v387 = vld [vmem:[%s330 + $0x174] sm:$0xff]
        %v388 = vld [vmem:[%s330 + $0x17c] sm:$0xff]
        %v389 = vld [vmem:[%s330 + $0x184] sm:$0xf]
        %v390 = vld [vmem:[%s330 + $0x188] sm:$0xff]
        %v391 = vld [vmem:[%s330 + $0x190] sm:$0xff]
        %v392 = vld [vmem:[%s330 + $0x198] sm:$0xff]
        %v393 = vld [vmem:[%s330 + $0x1a0] sm:$0xf]
        %v394 = vld [vmem:[%s330 + $0x1a4] sm:$0xff]
        %v395 = vld [vmem:[%s330 + $0x1ac] sm:$0xff]
        %v396 = vld [vmem:[%s330 + $0x1b4] sm:$0xff]
        %v397 = vld [vmem:[%s330 + $0x1bc] sm:$0xf]
        %v398 = vld [vmem:[%s330 + $0x1c0] sm:$0xff]
        %v399 = vld [vmem:[%s330 + $0x1c8] sm:$0xff]
        %v400 = vld [vmem:[%s330 + $0x1d0] sm:$0xff]
        %v401 = vld [vmem:[%s330 + $0x1d8] sm:$0xf]
        %v402 = vld [vmem:[%s330 + $0x1dc] sm:$0xff]
        %v403 = vld [vmem:[%s330 + $0x1e4] sm:$0xff]
        %v404 = vld [vmem:[%s330 + $0x1ec] sm:$0xff]
        %v405 = vld [vmem:[%s330 + $0x1f4] sm:$0xf]
        %v406 = vld [vmem:[%s330 + $0x1f8] sm:$0xff]
        %v407 = vld [vmem:[%s330 + $0x200] sm:$0xff]
        %v408 = vld [vmem:[%s330 + $0x208] sm:$0xff]
        %v409 = vld [vmem:[%s330 + $0x210] sm:$0xf]
        %v410 = vld [vmem:[%s330 + $0x214] sm:$0xff]
        %v411 = vld [vmem:[%s330 + $0x21c] sm:$0xff]
        %v412 = vld [vmem:[%s330 + $0x224] sm:$0xff]
        %v413 = vld [vmem:[%s330 + $0x22c] sm:$0xf]
        %v414 = vld [vmem:[%s330 + $0x230] sm:$0xff]
        %v415 = vld [vmem:[%s330 + $0x238] sm:$0xff]
        %v416 = vld [vmem:[%s330 + $0x240] sm:$0xff]
        %v417 = vld [vmem:[%s330 + $0x248] sm:$0xf]
        %v418 = vld [vmem:[%s330 + $0x24c] sm:$0xff]
        %v419 = vld [vmem:[%s330 + $0x254] sm:$0xff]
        %v420 = vld [vmem:[%s330 + $0x25c] sm:$0xff]
        %v421 = vld [vmem:[%s330 + $0x264] sm:$0xf]
        %v422 = vld [vmem:[%s330 + $0x268] sm:$0xff]
        %v423 = vld [vmem:[%s330 + $0x270] sm:$0xff]
        %v424 = vld [vmem:[%s330 + $0x278] sm:$0xff]
        %v425 = vld [vmem:[%s330 + $0x280] sm:$0xf]
        %v426 = vld [vmem:[%s330 + $0x284] sm:$0xff]
        %v427 = vld [vmem:[%s330 + $0x28c] sm:$0xff]
        %v428 = vld [vmem:[%s330 + $0x294] sm:$0xff]
        %v429 = vld [vmem:[%s330 + $0x29c] sm:$0xf]
        %v430 = vld [vmem:[%s330 + $0x2a0] sm:$0xff]
        %v431 = vld [vmem:[%s330 + $0x2a8] sm:$0xff]
        %v432 = vld [vmem:[%s330 + $0x2b0] sm:$0xff]
        %v433 = vld [vmem:[%s330 + $0x2b8] sm:$0xf]
        %v434 = vld [vmem:[%s330 + $0x2bc] sm:$0xff]
        %v435 = vld [vmem:[%s330 + $0x2c4] sm:$0xff]
        %v436 = vld [vmem:[%s330 + $0x2cc] sm:$0xff]
        %v437 = vld [vmem:[%s330 + $0x2d4] sm:$0xf]
        %v438 = vld [vmem:[%s330 + $0x2d8] sm:$0xff]
        %v439 = vld [vmem:[%s330 + $0x2e0] sm:$0xff]
        %v440 = vld [vmem:[%s330 + $0x2e8] sm:$0xff]
        %v441 = vld [vmem:[%s330 + $0x2f0] sm:$0xf]
        %v442 = vld [vmem:[%s330 + $0x2f4] sm:$0xff]
        %v443 = vld [vmem:[%s330 + $0x2fc] sm:$0xff]
        %v444 = vld [vmem:[%s330 + $0x304] sm:$0xff]
        %v445 = vld [vmem:[%s330 + $0x30c] sm:$0xf]
        %v446 = vld [vmem:[%s330 + $0x310] sm:$0xff]
        %v447 = vld [vmem:[%s330 + $0x318] sm:$0xff]
        %v448 = vld [vmem:[%s330 + $0x320] sm:$0xff]
        %v449 = vld [vmem:[%s330 + $0x328] sm:$0xf]
        %v450 = vld [vmem:[%s330 + $0x32c] sm:$0xff]
        %v451 = vld [vmem:[%s330 + $0x334] sm:$0xff]
        %v452 = vld [vmem:[%s330 + $0x33c] sm:$0xff]
        %v453 = vld [vmem:[%s330 + $0x344] sm:$0xf]
        %v454 = vld [vmem:[%s330 + $0x348] sm:$0xff]
        %v455 = vld [vmem:[%s330 + $0x350] sm:$0xff]
        %v456 = vld [vmem:[%s330 + $0x358] sm:$0xff]
        %v457 = vld [vmem:[%s330 + $0x360] sm:$0xf]
        %v458 = vld [vmem:[%s330 + $0x364] sm:$0xff]
        %v459 = vld [vmem:[%s330 + $0x36c] sm:$0xff]
        %v460 = vld [vmem:[%s330 + $0x374] sm:$0xff]
        %v461 = vld [vmem:[%s330 + $0x37c] sm:$0xf]
        %v462 = vld [vmem:[%s1] sm:$0xf]
        %v463 = vld [vmem:[%s1 + $0x4] sm:$0xf]
        %v464 = vld [vmem:[%s1 + $0x8] sm:$0xf]
        %v465 = vld [vmem:[%s1 + $0xc] sm:$0xf]
        %v466 = vld [vmem:[%s1 + $0x10] sm:$0xf]
        %v467 = vld [vmem:[%s1 + $0x14] sm:$0xf]
        %v468 = vld [vmem:[%s1 + $0x18] sm:$0xf]
        %v469 = vld [vmem:[%s1 + $0x1c] sm:$0xf]
        %v470 = vld [vmem:[%s1 + $0x20] sm:$0xf]
        %v471 = vld [vmem:[%s1 + $0x24] sm:$0xf]
        %v472 = vld [vmem:[%s1 + $0x28] sm:$0xf]
        %v473 = vld [vmem:[%s1 + $0x2c] sm:$0xf]
        %v474 = vld [vmem:[%s1 + $0x30] sm:$0xf]
        %v475 = vld [vmem:[%s1 + $0x34] sm:$0xf]
        %v476 = vld [vmem:[%s1 + $0x38] sm:$0xf]
        %v477 = vld [vmem:[%s1 + $0x3c] sm:$0xf]
        %v478 = vld [vmem:[%s1 + $0x40] sm:$0xf]
        %v479 = vld [vmem:[%s1 + $0x44] sm:$0xf]
        %v480 = vld [vmem:[%s1 + $0x48] sm:$0xf]
        %v481 = vld [vmem:[%s1 + $0x4c] sm:$0xf]
        %v482 = vld [vmem:[%s1 + $0x50] sm:$0xf]
        %v483 = vld [vmem:[%s1 + $0x54] sm:$0xf]
        %v484 = vld [vmem:[%s1 + $0x58] sm:$0xf]
        %v485 = vld [vmem:[%s1 + $0x5c] sm:$0xf]
        %v486 = vld [vmem:[%s1 + $0x60] sm:$0xf]
        %v487 = vld [vmem:[%s1 + $0x64] sm:$0xf]
        %v488 = vld [vmem:[%s1 + $0x68] sm:$0xf]
        %v489 = vld [vmem:[%s1 + $0x6c] sm:$0xf]
        %v490 = vld [vmem:[%s1 + $0x70] sm:$0xf]
        %v491 = vld [vmem:[%s1 + $0x74] sm:$0xf]
        %v492 = vld [vmem:[%s1 + $0x78] sm:$0xf]
        %v493 = vld [vmem:[%s1 + $0x7c] sm:$0xf]
        %v494 = vld [vmem:[%s1 + $0x80] sm:$0xf]
        %v495 = vld [vmem:[%s1 + $0x84] sm:$0xf]
        %v496 = vld [vmem:[%s1 + $0x88] sm:$0xf]
        %v497 = vld [vmem:[%s1 + $0x8c] sm:$0xf]
        %v498 = vld [vmem:[%s1 + $0x90] sm:$0xf]
        %v499 = vld [vmem:[%s1 + $0x94] sm:$0xf]
        %v500 = vld [vmem:[%s1 + $0x98] sm:$0xf]
        %v501 = vld [vmem:[%s1 + $0x9c] sm:$0xf]
        %v502 = vld [vmem:[%s1 + $0xa0] sm:$0xf]
        %v503 = vld [vmem:[%s1 + $0xa4] sm:$0xf]
        %v504 = vld [vmem:[%s1 + $0xa8] sm:$0xf]
        %v505 = vld [vmem:[%s1 + $0xac] sm:$0xf]
        %v506 = vld [vmem:[%s1 + $0xb0] sm:$0xf]
        %v507 = vld [vmem:[%s1 + $0xb4] sm:$0xf]
        %v508 = vld [vmem:[%s1 + $0xb8] sm:$0xf]
        %v509 = vld [vmem:[%s1 + $0xbc] sm:$0xf]
        %v510 = vld [vmem:[%s1 + $0xc0] sm:$0xf]
        %v511 = vld [vmem:[%s1 + $0xc4] sm:$0xf]
        %v512 = vld [vmem:[%s1 + $0xc8] sm:$0xf]
        %v513 = vld [vmem:[%s1 + $0xcc] sm:$0xf]
        %v514 = vld [vmem:[%s1 + $0xd0] sm:$0xf]
        %v515 = vld [vmem:[%s1 + $0xd4] sm:$0xf]
        %v516 = vld [vmem:[%s1 + $0xd8] sm:$0xf]
        %v517 = vld [vmem:[%s1 + $0xdc] sm:$0xf]
        %v518 = vld [vmem:[%s1 + $0xe0] sm:$0xf]
        %v519 = vld [vmem:[%s1 + $0xe4] sm:$0xf]
        %v520 = vld [vmem:[%s1 + $0xe8] sm:$0xf]
        %v521 = vld [vmem:[%s1 + $0xec] sm:$0xf]
        %v522 = vld [vmem:[%s1 + $0xf0] sm:$0xf]
        %v523 = vld [vmem:[%s1 + $0xf4] sm:$0xf]
        %v524 = vld [vmem:[%s1 + $0xf8] sm:$0xf]
        %v525 = vld [vmem:[%s1 + $0xfc] sm:$0xf]
        %v526 = vld [vmem:[%s1 + $0x100] sm:$0xf]
        %v527 = vld [vmem:[%s1 + $0x104] sm:$0xf]
        %v528 = vld [vmem:[%s1 + $0x108] sm:$0xf]
        %v529 = vld [vmem:[%s1 + $0x10c] sm:$0xf]
        %v530 = vld [vmem:[%s1 + $0x110] sm:$0xf]
        %v531 = vld [vmem:[%s1 + $0x114] sm:$0xf]
        %v532 = vld [vmem:[%s1 + $0x118] sm:$0xf]
        %v533 = vld [vmem:[%s1 + $0x11c] sm:$0xf]
        %v534 = vld [vmem:[%s1 + $0x120] sm:$0xf]
        %v535 = vld [vmem:[%s1 + $0x124] sm:$0xf]
        %v536 = vld [vmem:[%s1 + $0x128] sm:$0xf]
        %v537 = vld [vmem:[%s1 + $0x12c] sm:$0xf]
        %v538 = vld [vmem:[%s1 + $0x130] sm:$0xf]
        %v539 = vld [vmem:[%s1 + $0x134] sm:$0xf]
        %v540 = vld [vmem:[%s1 + $0x138] sm:$0xf]
        %v541 = vld [vmem:[%s1 + $0x13c] sm:$0xf]
        %v542 = vld [vmem:[%s1 + $0x140] sm:$0xf]
        %v543 = vld [vmem:[%s1 + $0x144] sm:$0xf]
        %v544 = vld [vmem:[%s1 + $0x148] sm:$0xf]
        %v545 = vld [vmem:[%s1 + $0x14c] sm:$0xf]
        %v546 = vld [vmem:[%s1 + $0x150] sm:$0xf]
        %v547 = vld [vmem:[%s1 + $0x154] sm:$0xf]
        %v548 = vld [vmem:[%s1 + $0x158] sm:$0xf]
        %v549 = vld [vmem:[%s1 + $0x15c] sm:$0xf]
        %v550 = vld [vmem:[%s1 + $0x160] sm:$0xf]
        %v551 = vld [vmem:[%s1 + $0x164] sm:$0xf]
        %v552 = vld [vmem:[%s1 + $0x168] sm:$0xf]
        %v553 = vld [vmem:[%s1 + $0x16c] sm:$0xf]
        %v554 = vld [vmem:[%s1 + $0x170] sm:$0xf]
        %v555 = vld [vmem:[%s1 + $0x174] sm:$0xf]
        %v556 = vld [vmem:[%s1 + $0x178] sm:$0xf]
        %v557 = vld [vmem:[%s1 + $0x17c] sm:$0xf]
        %v558 = vld [vmem:[%s1 + $0x180] sm:$0xf]
        %v559 = vld [vmem:[%s1 + $0x184] sm:$0xf]
        %v560 = vld [vmem:[%s1 + $0x188] sm:$0xf]
        %v561 = vld [vmem:[%s1 + $0x18c] sm:$0xf]
        %v562 = vld [vmem:[%s1 + $0x190] sm:$0xf]
        %v563 = vld [vmem:[%s1 + $0x194] sm:$0xf]
        %v564 = vld [vmem:[%s1 + $0x198] sm:$0xf]
        %v565 = vld [vmem:[%s1 + $0x19c] sm:$0xf]
        %v566 = vld [vmem:[%s1 + $0x1a0] sm:$0xf]
        %v567 = vld [vmem:[%s1 + $0x1a4] sm:$0xf]
        %v568 = vld [vmem:[%s1 + $0x1a8] sm:$0xf]
        %v569 = vld [vmem:[%s1 + $0x1ac] sm:$0xf]
        %v570 = vld [vmem:[%s1 + $0x1b0] sm:$0xf]
        %v571 = vld [vmem:[%s1 + $0x1b4] sm:$0xf]
        %v572 = vld [vmem:[%s1 + $0x1b8] sm:$0xf]
        %v573 = vld [vmem:[%s1 + $0x1bc] sm:$0xf]
        %v702 = vunpack.c.l.b16 %v334
        %v703 = vunpack.c.h.b16 %v334
        %v704 = vunpack.c.l.b16 %v335
        %v705 = vunpack.c.h.b16 %v335
        %v706 = vunpack.c.l.b16 %v336
        %v707 = vunpack.c.h.b16 %v336
        %v708 = vunpack.c.l.b16 %v337
        %v709 = vunpack.c.l.b16 %v338
        %v710 = vunpack.c.h.b16 %v338
        %v711 = vunpack.c.l.b16 %v339
        %v712 = vunpack.c.h.b16 %v339
        %v713 = vunpack.c.l.b16 %v340
        %v714 = vunpack.c.h.b16 %v340
        %v715 = vunpack.c.l.b16 %v341
        %v716 = vunpack.c.l.b16 %v342
        %v717 = vunpack.c.h.b16 %v342
        %v718 = vunpack.c.l.b16 %v343
        %v719 = vunpack.c.h.b16 %v343
        %v720 = vunpack.c.l.b16 %v344
        %v721 = vunpack.c.h.b16 %v344
        %v722 = vunpack.c.l.b16 %v345
        %v723 = vunpack.c.l.b16 %v346
        %v724 = vunpack.c.h.b16 %v346
        %v725 = vunpack.c.l.b16 %v347
        %v726 = vunpack.c.h.b16 %v347
        %v727 = vunpack.c.l.b16 %v348
        %v728 = vunpack.c.h.b16 %v348
        %v729 = vunpack.c.l.b16 %v349
        %v730 = vunpack.c.l.b16 %v350
        %v731 = vunpack.c.h.b16 %v350
        %v732 = vunpack.c.l.b16 %v351
        %v733 = vunpack.c.h.b16 %v351
        %v734 = vunpack.c.l.b16 %v352
        %v735 = vunpack.c.h.b16 %v352
        %v736 = vunpack.c.l.b16 %v353
        %v737 = vunpack.c.l.b16 %v354
        %v738 = vunpack.c.h.b16 %v354
        %v739 = vunpack.c.l.b16 %v355
        %v740 = vunpack.c.h.b16 %v355
        %v741 = vunpack.c.l.b16 %v356
        %v742 = vunpack.c.h.b16 %v356
        %v743 = vunpack.c.l.b16 %v357
        %v744 = vunpack.c.l.b16 %v358
        %v745 = vunpack.c.h.b16 %v358
        %v746 = vunpack.c.l.b16 %v359
        %v747 = vunpack.c.h.b16 %v359
        %v748 = vunpack.c.l.b16 %v360
        %v749 = vunpack.c.h.b16 %v360
        %v750 = vunpack.c.l.b16 %v361
        %v751 = vunpack.c.l.b16 %v362
        %v752 = vunpack.c.h.b16 %v362
        %v753 = vunpack.c.l.b16 %v363
        %v754 = vunpack.c.h.b16 %v363
        %v755 = vunpack.c.l.b16 %v364
        %v756 = vunpack.c.h.b16 %v364
        %v757 = vunpack.c.l.b16 %v365
        %v758 = vunpack.c.l.b16 %v366
        %v759 = vunpack.c.h.b16 %v366
        %v760 = vunpack.c.l.b16 %v367
        %v761 = vunpack.c.h.b16 %v367
        %v762 = vunpack.c.l.b16 %v368
        %v763 = vunpack.c.h.b16 %v368
        %v764 = vunpack.c.l.b16 %v369
        %v765 = vunpack.c.l.b16 %v370
        %v766 = vunpack.c.h.b16 %v370
        %v767 = vunpack.c.l.b16 %v371
        %v768 = vunpack.c.h.b16 %v371
        %v769 = vunpack.c.l.b16 %v372
        %v770 = vunpack.c.h.b16 %v372
        %v771 = vunpack.c.l.b16 %v373
        %v772 = vunpack.c.l.b16 %v374
        %v773 = vunpack.c.h.b16 %v374
        %v774 = vunpack.c.l.b16 %v375
        %v775 = vunpack.c.h.b16 %v375
        %v776 = vunpack.c.l.b16 %v376
        %v777 = vunpack.c.h.b16 %v376
        %v778 = vunpack.c.l.b16 %v377
        %v779 = vunpack.c.l.b16 %v378
        %v780 = vunpack.c.h.b16 %v378
        %v781 = vunpack.c.l.b16 %v379
        %v782 = vunpack.c.h.b16 %v379
        %v783 = vunpack.c.l.b16 %v380
        %v784 = vunpack.c.h.b16 %v380
        %v785 = vunpack.c.l.b16 %v381
        %v786 = vunpack.c.l.b16 %v382
        %v787 = vunpack.c.h.b16 %v382
        %v788 = vunpack.c.l.b16 %v383
        %v789 = vunpack.c.h.b16 %v383
        %v790 = vunpack.c.l.b16 %v384
        %v791 = vunpack.c.h.b16 %v384
        %v792 = vunpack.c.l.b16 %v385
        %v793 = vunpack.c.l.b16 %v386
        %v794 = vunpack.c.h.b16 %v386
        %v795 = vunpack.c.l.b16 %v387
        %v796 = vunpack.c.h.b16 %v387
        %v797 = vunpack.c.l.b16 %v388
        %v798 = vunpack.c.h.b16 %v388
        %v799 = vunpack.c.l.b16 %v389
        %v800 = vunpack.c.l.b16 %v390
        %v801 = vunpack.c.h.b16 %v390
        %v802 = vunpack.c.l.b16 %v391
        %v803 = vunpack.c.h.b16 %v391
        %v804 = vunpack.c.l.b16 %v392
        %v805 = vunpack.c.h.b16 %v392
        %v806 = vunpack.c.l.b16 %v393
        %v807 = vunpack.c.l.b16 %v394
        %v808 = vunpack.c.h.b16 %v394
        %v809 = vunpack.c.l.b16 %v395
        %v810 = vunpack.c.h.b16 %v395
        %v811 = vunpack.c.l.b16 %v396
        %v812 = vunpack.c.h.b16 %v396
        %v813 = vunpack.c.l.b16 %v397
        %v814 = vunpack.c.l.b16 %v398
        %v815 = vunpack.c.h.b16 %v398
        %v816 = vunpack.c.l.b16 %v399
        %v817 = vunpack.c.h.b16 %v399
        %v818 = vunpack.c.l.b16 %v400
        %v819 = vunpack.c.h.b16 %v400
        %v820 = vunpack.c.l.b16 %v401
        %v821 = vunpack.c.l.b16 %v402
        %v822 = vunpack.c.h.b16 %v402
        %v823 = vunpack.c.l.b16 %v403
        %v824 = vunpack.c.h.b16 %v403
        %v825 = vunpack.c.l.b16 %v404
        %v826 = vunpack.c.h.b16 %v404
        %v827 = vunpack.c.l.b16 %v405
        %v828 = vunpack.c.l.b16 %v406
        %v829 = vunpack.c.h.b16 %v406
        %v830 = vunpack.c.l.b16 %v407
        %v831 = vunpack.c.h.b16 %v407
        %v832 = vunpack.c.l.b16 %v408
        %v833 = vunpack.c.h.b16 %v408
        %v834 = vunpack.c.l.b16 %v409
        %v835 = vunpack.c.l.b16 %v410
        %v836 = vunpack.c.h.b16 %v410
        %v837 = vunpack.c.l.b16 %v411
        %v838 = vunpack.c.h.b16 %v411
        %v839 = vunpack.c.l.b16 %v412
        %v840 = vunpack.c.h.b16 %v412
        %v841 = vunpack.c.l.b16 %v413
        %v842 = vunpack.c.l.b16 %v414
        %v843 = vunpack.c.h.b16 %v414
        %v844 = vunpack.c.l.b16 %v415
        %v845 = vunpack.c.h.b16 %v415
        %v846 = vunpack.c.l.b16 %v416
        %v847 = vunpack.c.h.b16 %v416
        %v848 = vunpack.c.l.b16 %v417
        %v849 = vunpack.c.l.b16 %v418
        %v850 = vunpack.c.h.b16 %v418
        %v851 = vunpack.c.l.b16 %v419
        %v852 = vunpack.c.h.b16 %v419
        %v853 = vunpack.c.l.b16 %v420
        %v854 = vunpack.c.h.b16 %v420
        %v855 = vunpack.c.l.b16 %v421
        %v856 = vunpack.c.l.b16 %v422
        %v857 = vunpack.c.h.b16 %v422
        %v858 = vunpack.c.l.b16 %v423
        %v859 = vunpack.c.h.b16 %v423
        %v860 = vunpack.c.l.b16 %v424
        %v861 = vunpack.c.h.b16 %v424
        %v862 = vunpack.c.l.b16 %v425
        %v863 = vunpack.c.l.b16 %v426
        %v864 = vunpack.c.h.b16 %v426
        %v865 = vunpack.c.l.b16 %v427
        %v866 = vunpack.c.h.b16 %v427
        %v867 = vunpack.c.l.b16 %v428
        %v868 = vunpack.c.h.b16 %v428
        %v869 = vunpack.c.l.b16 %v429
        %v870 = vunpack.c.l.b16 %v430
        %v871 = vunpack.c.h.b16 %v430
        %v872 = vunpack.c.l.b16 %v431
        %v873 = vunpack.c.h.b16 %v431
        %v874 = vunpack.c.l.b16 %v432
        %v875 = vunpack.c.h.b16 %v432
        %v876 = vunpack.c.l.b16 %v433
        %v877 = vunpack.c.l.b16 %v434
        %v878 = vunpack.c.h.b16 %v434
        %v879 = vunpack.c.l.b16 %v435
        %v880 = vunpack.c.h.b16 %v435
        %v881 = vunpack.c.l.b16 %v436
        %v882 = vunpack.c.h.b16 %v436
        %v883 = vunpack.c.l.b16 %v437
        %v884 = vunpack.c.l.b16 %v438
        %v885 = vunpack.c.h.b16 %v438
        %v886 = vunpack.c.l.b16 %v439
        %v887 = vunpack.c.h.b16 %v439
        %v888 = vunpack.c.l.b16 %v440
        %v889 = vunpack.c.h.b16 %v440
        %v890 = vunpack.c.l.b16 %v441
        %v891 = vunpack.c.l.b16 %v442
        %v892 = vunpack.c.h.b16 %v442
        %v893 = vunpack.c.l.b16 %v443
        %v894 = vunpack.c.h.b16 %v443
        %v895 = vunpack.c.l.b16 %v444
        %v896 = vunpack.c.h.b16 %v444
        %v897 = vunpack.c.l.b16 %v445
        %v898 = vunpack.c.l.b16 %v446
        %v899 = vunpack.c.h.b16 %v446
        %v900 = vunpack.c.l.b16 %v447
        %v901 = vunpack.c.h.b16 %v447
        %v902 = vunpack.c.l.b16 %v448
        %v903 = vunpack.c.h.b16 %v448
        %v904 = vunpack.c.l.b16 %v449
        %v905 = vunpack.c.l.b16 %v450
        %v906 = vunpack.c.h.b16 %v450
        %v907 = vunpack.c.l.b16 %v451
        %v908 = vunpack.c.h.b16 %v451
        %v909 = vunpack.c.l.b16 %v452
        %v910 = vunpack.c.h.b16 %v452
        %v911 = vunpack.c.l.b16 %v453
        %v912 = vunpack.c.l.b16 %v454
        %v913 = vunpack.c.h.b16 %v454
        %v914 = vunpack.c.l.b16 %v455
        %v915 = vunpack.c.h.b16 %v455
        %v916 = vunpack.c.l.b16 %v456
        %v917 = vunpack.c.h.b16 %v456
        %v918 = vunpack.c.l.b16 %v457
        %v919 = vunpack.c.l.b16 %v458
        %v920 = vunpack.c.h.b16 %v458
        %v921 = vunpack.c.l.b16 %v459
        %v922 = vunpack.c.h.b16 %v459
        %v923 = vunpack.c.l.b16 %v460
        %v924 = vunpack.c.h.b16 %v460
        %v925 = vunpack.c.l.b16 %v461
        %v926 = vpack.c.b16 %v709, %v702
        %v927 = vpack.c.b16 %v710, %v703
        %v928 = vpack.c.b16 %v711, %v704
        %v929 = vpack.c.b16 %v712, %v705
        %v930 = vpack.c.b16 %v713, %v706
        %v931 = vpack.c.b16 %v714, %v707
        %v932 = vpack.c.b16 %v715, %v708
        %v933 = vpack.c.b16 %v723, %v716
        %v934 = vpack.c.b16 %v724, %v717
        %v935 = vpack.c.b16 %v725, %v718
        %v936 = vpack.c.b16 %v726, %v719
        %v937 = vpack.c.b16 %v727, %v720
        %v938 = vpack.c.b16 %v728, %v721
        %v939 = vpack.c.b16 %v729, %v722
        %v940 = vpack.c.b16 %v737, %v730
        %v941 = vpack.c.b16 %v738, %v731
        %v942 = vpack.c.b16 %v739, %v732
        %v943 = vpack.c.b16 %v740, %v733
        %v944 = vpack.c.b16 %v741, %v734
        %v945 = vpack.c.b16 %v742, %v735
        %v946 = vpack.c.b16 %v743, %v736
        %v947 = vpack.c.b16 %v751, %v744
        %v948 = vpack.c.b16 %v752, %v745
        %v949 = vpack.c.b16 %v753, %v746
        %v950 = vpack.c.b16 %v754, %v747
        %v951 = vpack.c.b16 %v755, %v748
        %v952 = vpack.c.b16 %v756, %v749
        %v953 = vpack.c.b16 %v757, %v750
        %v954 = vpack.c.b16 %v765, %v758
        %v955 = vpack.c.b16 %v766, %v759
        %v956 = vpack.c.b16 %v767, %v760
        %v957 = vpack.c.b16 %v768, %v761
        %v958 = vpack.c.b16 %v769, %v762
        %v959 = vpack.c.b16 %v770, %v763
        %v960 = vpack.c.b16 %v771, %v764
        %v961 = vpack.c.b16 %v779, %v772
        %v962 = vpack.c.b16 %v780, %v773
        %v963 = vpack.c.b16 %v781, %v774
        %v964 = vpack.c.b16 %v782, %v775
        %v965 = vpack.c.b16 %v783, %v776
        %v966 = vpack.c.b16 %v784, %v777
        %v967 = vpack.c.b16 %v785, %v778
        %v968 = vpack.c.b16 %v793, %v786
        %v969 = vpack.c.b16 %v794, %v787
        %v970 = vpack.c.b16 %v795, %v788
        %v971 = vpack.c.b16 %v796, %v789
        %v972 = vpack.c.b16 %v797, %v790
        %v973 = vpack.c.b16 %v798, %v791
        %v974 = vpack.c.b16 %v799, %v792
        %v975 = vpack.c.b16 %v807, %v800
        %v976 = vpack.c.b16 %v808, %v801
        %v977 = vpack.c.b16 %v809, %v802
        %v978 = vpack.c.b16 %v810, %v803
        %v979 = vpack.c.b16 %v811, %v804
        %v980 = vpack.c.b16 %v812, %v805
        %v981 = vpack.c.b16 %v813, %v806
        %v982 = vpack.c.b16 %v821, %v814
        %v983 = vpack.c.b16 %v822, %v815
        %v984 = vpack.c.b16 %v823, %v816
        %v985 = vpack.c.b16 %v824, %v817
        %v986 = vpack.c.b16 %v825, %v818
        %v987 = vpack.c.b16 %v826, %v819
        %v988 = vpack.c.b16 %v827, %v820
        %v989 = vpack.c.b16 %v835, %v828
        %v990 = vpack.c.b16 %v836, %v829
        %v991 = vpack.c.b16 %v837, %v830
        %v992 = vpack.c.b16 %v838, %v831
        %v993 = vpack.c.b16 %v839, %v832
        %v994 = vpack.c.b16 %v840, %v833
        %v995 = vpack.c.b16 %v841, %v834
        %v996 = vpack.c.b16 %v849, %v842
        %v997 = vpack.c.b16 %v850, %v843
        %v998 = vpack.c.b16 %v851, %v844
        %v999 = vpack.c.b16 %v852, %v845
        %v1000 = vpack.c.b16 %v853, %v846
        %v1001 = vpack.c.b16 %v854, %v847
        %v1002 = vpack.c.b16 %v855, %v848
        %v1003 = vpack.c.b16 %v863, %v856
        %v1004 = vpack.c.b16 %v864, %v857
        %v1005 = vpack.c.b16 %v865, %v858
        %v1006 = vpack.c.b16 %v866, %v859
        %v1007 = vpack.c.b16 %v867, %v860
        %v1008 = vpack.c.b16 %v868, %v861
        %v1009 = vpack.c.b16 %v869, %v862
        %v1010 = vpack.c.b16 %v877, %v870
        %v1011 = vpack.c.b16 %v878, %v871
        %v1012 = vpack.c.b16 %v879, %v872
        %v1013 = vpack.c.b16 %v880, %v873
        %v1014 = vpack.c.b16 %v881, %v874
        %v1015 = vpack.c.b16 %v882, %v875
        %v1016 = vpack.c.b16 %v883, %v876
        %v1017 = vpack.c.b16 %v891, %v884
        %v1018 = vpack.c.b16 %v892, %v885
        %v1019 = vpack.c.b16 %v893, %v886
        %v1020 = vpack.c.b16 %v894, %v887
        %v1021 = vpack.c.b16 %v895, %v888
        %v1022 = vpack.c.b16 %v896, %v889
        %v1023 = vpack.c.b16 %v897, %v890
        %v1024 = vpack.c.b16 %v905, %v898
        %v1025 = vpack.c.b16 %v906, %v899
        %v1026 = vpack.c.b16 %v907, %v900
        %v1027 = vpack.c.b16 %v908, %v901
        %v1028 = vpack.c.b16 %v909, %v902
        %v1029 = vpack.c.b16 %v910, %v903
        %v1030 = vpack.c.b16 %v911, %v904
        %v1031 = vpack.c.b16 %v919, %v912
        %v1032 = vpack.c.b16 %v920, %v913
        %v1033 = vpack.c.b16 %v921, %v914
        %v1034 = vpack.c.b16 %v922, %v915
        %v1035 = vpack.c.b16 %v923, %v916
        %v1036 = vpack.c.b16 %v924, %v917
        %v1037 = vpack.c.b16 %v925, %v918
        %v1262 = vunpack.c.l.b16 %v462
        %v1263 = vunpack.c.l.b16 %v463
        %v1264 = vunpack.c.l.b16 %v464
        %v1265 = vunpack.c.l.b16 %v465
        %v1266 = vunpack.c.l.b16 %v466
        %v1267 = vunpack.c.l.b16 %v467
        %v1268 = vunpack.c.l.b16 %v468
        %v1269 = vunpack.c.l.b16 %v469
        %v1270 = vunpack.c.l.b16 %v470
        %v1271 = vunpack.c.l.b16 %v471
        %v1272 = vunpack.c.l.b16 %v472
        %v1273 = vunpack.c.l.b16 %v473
        %v1274 = vunpack.c.l.b16 %v474
        %v1275 = vunpack.c.l.b16 %v475
        %v1276 = vunpack.c.l.b16 %v476
        %v1277 = vunpack.c.l.b16 %v477
        %v1278 = vunpack.c.l.b16 %v478
        %v1279 = vunpack.c.l.b16 %v479
        %v1280 = vunpack.c.l.b16 %v480
        %v1281 = vunpack.c.l.b16 %v481
        %v1282 = vunpack.c.l.b16 %v482
        %v1283 = vunpack.c.l.b16 %v483
        %v1284 = vunpack.c.l.b16 %v484
        %v1285 = vunpack.c.l.b16 %v485
        %v1286 = vunpack.c.l.b16 %v486
        %v1287 = vunpack.c.l.b16 %v487
        %v1288 = vunpack.c.l.b16 %v488
        %v1289 = vunpack.c.l.b16 %v489
        %v1290 = vunpack.c.l.b16 %v490
        %v1291 = vunpack.c.l.b16 %v491
        %v1292 = vunpack.c.l.b16 %v492
        %v1293 = vunpack.c.l.b16 %v493
        %v1294 = vunpack.c.l.b16 %v494
        %v1295 = vunpack.c.l.b16 %v495
        %v1296 = vunpack.c.l.b16 %v496
        %v1297 = vunpack.c.l.b16 %v497
        %v1298 = vunpack.c.l.b16 %v498
        %v1299 = vunpack.c.l.b16 %v499
        %v1300 = vunpack.c.l.b16 %v500
        %v1301 = vunpack.c.l.b16 %v501
        %v1302 = vunpack.c.l.b16 %v502
        %v1303 = vunpack.c.l.b16 %v503
        %v1304 = vunpack.c.l.b16 %v504
        %v1305 = vunpack.c.l.b16 %v505
        %v1306 = vunpack.c.l.b16 %v506
        %v1307 = vunpack.c.l.b16 %v507
        %v1308 = vunpack.c.l.b16 %v508
        %v1309 = vunpack.c.l.b16 %v509
        %v1310 = vunpack.c.l.b16 %v510
        %v1311 = vunpack.c.l.b16 %v511
        %v1312 = vunpack.c.l.b16 %v512
        %v1313 = vunpack.c.l.b16 %v513
        %v1314 = vunpack.c.l.b16 %v514
        %v1315 = vunpack.c.l.b16 %v515
        %v1316 = vunpack.c.l.b16 %v516
        %v1317 = vunpack.c.l.b16 %v517
        %v1318 = vunpack.c.l.b16 %v518
        %v1319 = vunpack.c.l.b16 %v519
        %v1320 = vunpack.c.l.b16 %v520
        %v1321 = vunpack.c.l.b16 %v521
        %v1322 = vunpack.c.l.b16 %v522
        %v1323 = vunpack.c.l.b16 %v523
        %v1324 = vunpack.c.l.b16 %v524
        %v1325 = vunpack.c.l.b16 %v525
        %v1326 = vunpack.c.l.b16 %v526
        %v1327 = vunpack.c.l.b16 %v527
        %v1328 = vunpack.c.l.b16 %v528
        %v1329 = vunpack.c.l.b16 %v529
        %v1330 = vunpack.c.l.b16 %v530
        %v1331 = vunpack.c.l.b16 %v531
        %v1332 = vunpack.c.l.b16 %v532
        %v1333 = vunpack.c.l.b16 %v533
        %v1334 = vunpack.c.l.b16 %v534
        %v1335 = vunpack.c.l.b16 %v535
        %v1336 = vunpack.c.l.b16 %v536
        %v1337 = vunpack.c.l.b16 %v537
        %v1338 = vunpack.c.l.b16 %v538
        %v1339 = vunpack.c.l.b16 %v539
        %v1340 = vunpack.c.l.b16 %v540
        %v1341 = vunpack.c.l.b16 %v541
        %v1342 = vunpack.c.l.b16 %v542
        %v1343 = vunpack.c.l.b16 %v543
        %v1344 = vunpack.c.l.b16 %v544
        %v1345 = vunpack.c.l.b16 %v545
        %v1346 = vunpack.c.l.b16 %v546
        %v1347 = vunpack.c.l.b16 %v547
        %v1348 = vunpack.c.l.b16 %v548
        %v1349 = vunpack.c.l.b16 %v549
        %v1350 = vunpack.c.l.b16 %v550
        %v1351 = vunpack.c.l.b16 %v551
        %v1352 = vunpack.c.l.b16 %v552
        %v1353 = vunpack.c.l.b16 %v553
        %v1354 = vunpack.c.l.b16 %v554
        %v1355 = vunpack.c.l.b16 %v555
        %v1356 = vunpack.c.l.b16 %v556
        %v1357 = vunpack.c.l.b16 %v557
        %v1358 = vunpack.c.l.b16 %v558
        %v1359 = vunpack.c.l.b16 %v559
        %v1360 = vunpack.c.l.b16 %v560
        %v1361 = vunpack.c.l.b16 %v561
        %v1362 = vunpack.c.l.b16 %v562
        %v1363 = vunpack.c.l.b16 %v563
        %v1364 = vunpack.c.l.b16 %v564
        %v1365 = vunpack.c.l.b16 %v565
        %v1366 = vunpack.c.l.b16 %v566
        %v1367 = vunpack.c.l.b16 %v567
        %v1368 = vunpack.c.l.b16 %v568
        %v1369 = vunpack.c.l.b16 %v569
        %v1370 = vunpack.c.l.b16 %v570
        %v1371 = vunpack.c.l.b16 %v571
        %v1372 = vunpack.c.l.b16 %v572
        %v1373 = vunpack.c.l.b16 %v573
        %v1374 = vpack.c.b16 %v1263, %v1262
        %v1375 = vpack.c.b16 %v1265, %v1264
        %v1376 = vpack.c.b16 %v1267, %v1266
        %v1377 = vpack.c.b16 %v1269, %v1268
        %v1378 = vpack.c.b16 %v1271, %v1270
        %v1379 = vpack.c.b16 %v1273, %v1272
        %v1380 = vpack.c.b16 %v1275, %v1274
        %v1381 = vpack.c.b16 %v1277, %v1276
        %v1382 = vpack.c.b16 %v1279, %v1278
        %v1383 = vpack.c.b16 %v1281, %v1280
        %v1384 = vpack.c.b16 %v1283, %v1282
        %v1385 = vpack.c.b16 %v1285, %v1284
        %v1386 = vpack.c.b16 %v1287, %v1286
        %v1387 = vpack.c.b16 %v1289, %v1288
        %v1388 = vpack.c.b16 %v1291, %v1290
        %v1389 = vpack.c.b16 %v1293, %v1292
        %v1390 = vpack.c.b16 %v1295, %v1294
        %v1391 = vpack.c.b16 %v1297, %v1296
        %v1392 = vpack.c.b16 %v1299, %v1298
        %v1393 = vpack.c.b16 %v1301, %v1300
        %v1394 = vpack.c.b16 %v1303, %v1302
        %v1395 = vpack.c.b16 %v1305, %v1304
        %v1396 = vpack.c.b16 %v1307, %v1306
        %v1397 = vpack.c.b16 %v1309, %v1308
        %v1398 = vpack.c.b16 %v1311, %v1310
        %v1399 = vpack.c.b16 %v1313, %v1312
        %v1400 = vpack.c.b16 %v1315, %v1314
        %v1401 = vpack.c.b16 %v1317, %v1316
        %v1402 = vpack.c.b16 %v1319, %v1318
        %v1403 = vpack.c.b16 %v1321, %v1320
        %v1404 = vpack.c.b16 %v1323, %v1322
        %v1405 = vpack.c.b16 %v1325, %v1324
        %v1406 = vpack.c.b16 %v1327, %v1326
        %v1407 = vpack.c.b16 %v1329, %v1328
        %v1408 = vpack.c.b16 %v1331, %v1330
        %v1409 = vpack.c.b16 %v1333, %v1332
        %v1410 = vpack.c.b16 %v1335, %v1334
        %v1411 = vpack.c.b16 %v1337, %v1336
        %v1412 = vpack.c.b16 %v1339, %v1338
        %v1413 = vpack.c.b16 %v1341, %v1340
        %v1414 = vpack.c.b16 %v1343, %v1342
        %v1415 = vpack.c.b16 %v1345, %v1344
        %v1416 = vpack.c.b16 %v1347, %v1346
        %v1417 = vpack.c.b16 %v1349, %v1348
        %v1418 = vpack.c.b16 %v1351, %v1350
        %v1419 = vpack.c.b16 %v1353, %v1352
        %v1420 = vpack.c.b16 %v1355, %v1354
        %v1421 = vpack.c.b16 %v1357, %v1356
        %v1422 = vpack.c.b16 %v1359, %v1358
        %v1423 = vpack.c.b16 %v1361, %v1360
        %v1424 = vpack.c.b16 %v1363, %v1362
        %v1425 = vpack.c.b16 %v1365, %v1364
        %v1426 = vpack.c.b16 %v1367, %v1366
        %v1427 = vpack.c.b16 %v1369, %v1368
        %v1428 = vpack.c.b16 %v1371, %v1370
        %v1429 = vpack.c.b16 %v1373, %v1372
        %1486 = vmatpush.bf16.msra.mxu0 %v1381
        %1487 = vmatpush.bf16.msra.mxu0 %v1380
        %1488 = vmatpush.bf16.msra.mxu0 %v1379
        %1489 = vmatpush.bf16.msra.mxu0 %v1378
        %1490 = vmatpush.bf16.msra.mxu0 %v1377
        %1491 = vmatpush.bf16.msra.mxu0 %v1376
        %1492 = vmatpush.bf16.msra.mxu0 %v1375
        %1493 = vmatpush.bf16.msra.mxu0 %v1374
        %1494 = vmatmul.bf16.gmra.mxu0 %v926
        %v1495 = vpop.f32.mrf.mxu0
        %v1496 = vadd.f32 0.0, %v1495
        %v1497 = vpop.f32.mrf.mxu0
        %v1498 = vadd.f32 0.0, %v1497
        %1499 = vmatmul.bf16.gmra.mxu0 %v933
        %v1500 = vpop.f32.mrf.mxu0
        %v1501 = vadd.f32 0.0, %v1500
        %v1502 = vpop.f32.mrf.mxu0
        %v1503 = vadd.f32 0.0, %v1502
        %1504 = vmatmul.bf16.gmra.mxu0 %v940
        %v1505 = vpop.f32.mrf.mxu0
        %v1506 = vadd.f32 0.0, %v1505
        %v1507 = vpop.f32.mrf.mxu0
        %v1508 = vadd.f32 0.0, %v1507
        %1509 = vmatmul.bf16.gmra.mxu0 %v947
        %v1510 = vpop.f32.mrf.mxu0
        %v1511 = vadd.f32 0.0, %v1510
        %v1512 = vpop.f32.mrf.mxu0
        %v1513 = vadd.f32 0.0, %v1512
        %1514 = vmatmul.bf16.gmra.mxu0 %v954
        %v1515 = vpop.f32.mrf.mxu0
        %v1516 = vadd.f32 0.0, %v1515
        %v1517 = vpop.f32.mrf.mxu0
        %v1518 = vadd.f32 0.0, %v1517
        %1519 = vmatmul.bf16.gmra.mxu0 %v961
        %v1520 = vpop.f32.mrf.mxu0
        %v1521 = vadd.f32 0.0, %v1520
        %v1522 = vpop.f32.mrf.mxu0
        %v1523 = vadd.f32 0.0, %v1522
        %1524 = vmatmul.bf16.gmra.mxu0 %v968
        %v1525 = vpop.f32.mrf.mxu0
        %v1526 = vadd.f32 0.0, %v1525
        %v1527 = vpop.f32.mrf.mxu0
        %v1528 = vadd.f32 0.0, %v1527
        %1529 = vmatmul.bf16.gmra.mxu0 %v975
        %v1530 = vpop.f32.mrf.mxu0
        %v1531 = vadd.f32 0.0, %v1530
        %v1532 = vpop.f32.mrf.mxu0
        %v1533 = vadd.f32 0.0, %v1532
        %1534 = vmatmul.bf16.gmra.mxu0 %v982
        %v1535 = vpop.f32.mrf.mxu0
        %v1536 = vadd.f32 0.0, %v1535
        %v1537 = vpop.f32.mrf.mxu0
        %v1538 = vadd.f32 0.0, %v1537
        %1539 = vmatmul.bf16.gmra.mxu0 %v989
        %v1540 = vpop.f32.mrf.mxu0
        %v1541 = vadd.f32 0.0, %v1540
        %v1542 = vpop.f32.mrf.mxu0
        %v1543 = vadd.f32 0.0, %v1542
        %1544 = vmatmul.bf16.gmra.mxu0 %v996
        %v1545 = vpop.f32.mrf.mxu0
        %v1546 = vadd.f32 0.0, %v1545
        %v1547 = vpop.f32.mrf.mxu0
        %v1548 = vadd.f32 0.0, %v1547
        %1549 = vmatmul.bf16.gmra.mxu0 %v1003
        %v1550 = vpop.f32.mrf.mxu0
        %v1551 = vadd.f32 0.0, %v1550
        %v1552 = vpop.f32.mrf.mxu0
        %v1553 = vadd.f32 0.0, %v1552
        %1554 = vmatmul.bf16.gmra.mxu0 %v1010
        %v1555 = vpop.f32.mrf.mxu0
        %v1556 = vadd.f32 0.0, %v1555
        %v1557 = vpop.f32.mrf.mxu0
        %v1558 = vadd.f32 0.0, %v1557
        %1559 = vmatmul.bf16.gmra.mxu0 %v1017
        %v1560 = vpop.f32.mrf.mxu0
        %v1561 = vadd.f32 0.0, %v1560
        %v1562 = vpop.f32.mrf.mxu0
        %v1563 = vadd.f32 0.0, %v1562
        %1564 = vmatmul.bf16.gmra.mxu0 %v1024
        %v1565 = vpop.f32.mrf.mxu0
        %v1566 = vadd.f32 0.0, %v1565
        %v1567 = vpop.f32.mrf.mxu0
        %v1568 = vadd.f32 0.0, %v1567
        %1569 = vmatmul.bf16.gmra.mxu0 %v1031
        %v1570 = vpop.f32.mrf.mxu0
        %v1571 = vadd.f32 0.0, %v1570
        %v1572 = vpop.f32.mrf.mxu0
        %v1573 = vadd.f32 0.0, %v1572
        %1574 = vdwg.mxu0
        %1575 = vmatpush.bf16.msra.mxu0 %v1389
        %1576 = vmatpush.bf16.msra.mxu0 %v1388
        %1577 = vmatpush.bf16.msra.mxu0 %v1387
        %1578 = vmatpush.bf16.msra.mxu0 %v1386
        %1579 = vmatpush.bf16.msra.mxu0 %v1385
        %1580 = vmatpush.bf16.msra.mxu0 %v1384
        %1581 = vmatpush.bf16.msra.mxu0 %v1383
        %1582 = vmatpush.bf16.msra.mxu0 %v1382
        %1583 = vmatmul.bf16.gmra.mxu0 %v927
        %v1584 = vpop.f32.mrf.mxu0
        %v1585 = vadd.f32 %v1496, %v1584
        %v1586 = vpop.f32.mrf.mxu0
        %v1587 = vadd.f32 %v1498, %v1586
        %1588 = vmatmul.bf16.gmra.mxu0 %v934
        %v1589 = vpop.f32.mrf.mxu0
        %v1590 = vadd.f32 %v1501, %v1589
        %v1591 = vpop.f32.mrf.mxu0
        %v1592 = vadd.f32 %v1503, %v1591
        %1593 = vmatmul.bf16.gmra.mxu0 %v941
        %v1594 = vpop.f32.mrf.mxu0
        %v1595 = vadd.f32 %v1506, %v1594
        %v1596 = vpop.f32.mrf.mxu0
        %v1597 = vadd.f32 %v1508, %v1596
        %1598 = vmatmul.bf16.gmra.mxu0 %v948
        %v1599 = vpop.f32.mrf.mxu0
        %v1600 = vadd.f32 %v1511, %v1599
        %v1601 = vpop.f32.mrf.mxu0
        %v1602 = vadd.f32 %v1513, %v1601
        %1603 = vmatmul.bf16.gmra.mxu0 %v955
        %v1604 = vpop.f32.mrf.mxu0
        %v1605 = vadd.f32 %v1516, %v1604
        %v1606 = vpop.f32.mrf.mxu0
        %v1607 = vadd.f32 %v1518, %v1606
        %1608 = vmatmul.bf16.gmra.mxu0 %v962
        %v1609 = vpop.f32.mrf.mxu0
        %v1610 = vadd.f32 %v1521, %v1609
        %v1611 = vpop.f32.mrf.mxu0
        %v1612 = vadd.f32 %v1523, %v1611
        %1613 = vmatmul.bf16.gmra.mxu0 %v969
        %v1614 = vpop.f32.mrf.mxu0
        %v1615 = vadd.f32 %v1526, %v1614
        %v1616 = vpop.f32.mrf.mxu0
        %v1617 = vadd.f32 %v1528, %v1616
        %1618 = vmatmul.bf16.gmra.mxu0 %v976
        %v1619 = vpop.f32.mrf.mxu0
        %v1620 = vadd.f32 %v1531, %v1619
        %v1621 = vpop.f32.mrf.mxu0
        %v1622 = vadd.f32 %v1533, %v1621
        %1623 = vmatmul.bf16.gmra.mxu0 %v983
        %v1624 = vpop.f32.mrf.mxu0
        %v1625 = vadd.f32 %v1536, %v1624
        %v1626 = vpop.f32.mrf.mxu0
        %v1627 = vadd.f32 %v1538, %v1626
        %1628 = vmatmul.bf16.gmra.mxu0 %v990
        %v1629 = vpop.f32.mrf.mxu0
        %v1630 = vadd.f32 %v1541, %v1629
        %v1631 = vpop.f32.mrf.mxu0
        %v1632 = vadd.f32 %v1543, %v1631
        %1633 = vmatmul.bf16.gmra.mxu0 %v997
        %v1634 = vpop.f32.mrf.mxu0
        %v1635 = vadd.f32 %v1546, %v1634
        %v1636 = vpop.f32.mrf.mxu0
        %v1637 = vadd.f32 %v1548, %v1636
        %1638 = vmatmul.bf16.gmra.mxu0 %v1004
        %v1639 = vpop.f32.mrf.mxu0
        %v1640 = vadd.f32 %v1551, %v1639
        %v1641 = vpop.f32.mrf.mxu0
        %v1642 = vadd.f32 %v1553, %v1641
        %1643 = vmatmul.bf16.gmra.mxu0 %v1011
        %v1644 = vpop.f32.mrf.mxu0
        %v1645 = vadd.f32 %v1556, %v1644
        %v1646 = vpop.f32.mrf.mxu0
        %v1647 = vadd.f32 %v1558, %v1646
        %1648 = vmatmul.bf16.gmra.mxu0 %v1018
        %v1649 = vpop.f32.mrf.mxu0
        %v1650 = vadd.f32 %v1561, %v1649
        %v1651 = vpop.f32.mrf.mxu0
        %v1652 = vadd.f32 %v1563, %v1651
        %1653 = vmatmul.bf16.gmra.mxu0 %v1025
        %v1654 = vpop.f32.mrf.mxu0
        %v1655 = vadd.f32 %v1566, %v1654
        %v1656 = vpop.f32.mrf.mxu0
        %v1657 = vadd.f32 %v1568, %v1656
        %1658 = vmatmul.bf16.gmra.mxu0 %v1032
        %v1659 = vpop.f32.mrf.mxu0
        %v1660 = vadd.f32 %v1571, %v1659
        %v1661 = vpop.f32.mrf.mxu0
        %v1662 = vadd.f32 %v1573, %v1661
        %1663 = vdwg.mxu0
        %1664 = vmatpush.bf16.msra.mxu0 %v1397
        %1665 = vmatpush.bf16.msra.mxu0 %v1396
        %1666 = vmatpush.bf16.msra.mxu0 %v1395
        %1667 = vmatpush.bf16.msra.mxu0 %v1394
        %1668 = vmatpush.bf16.msra.mxu0 %v1393
        %1669 = vmatpush.bf16.msra.mxu0 %v1392
        %1670 = vmatpush.bf16.msra.mxu0 %v1391
        %1671 = vmatpush.bf16.msra.mxu0 %v1390
        %1672 = vmatmul.bf16.gmra.mxu0 %v928
        %v1673 = vpop.f32.mrf.mxu0
        %v1674 = vadd.f32 %v1585, %v1673
        %v1675 = vpop.f32.mrf.mxu0
        %v1676 = vadd.f32 %v1587, %v1675
        %1677 = vmatmul.bf16.gmra.mxu0 %v935
        %v1678 = vpop.f32.mrf.mxu0
        %v1679 = vadd.f32 %v1590, %v1678
        %v1680 = vpop.f32.mrf.mxu0
        %v1681 = vadd.f32 %v1592, %v1680
        %1682 = vmatmul.bf16.gmra.mxu0 %v942
        %v1683 = vpop.f32.mrf.mxu0
        %v1684 = vadd.f32 %v1595, %v1683
        %v1685 = vpop.f32.mrf.mxu0
        %v1686 = vadd.f32 %v1597, %v1685
        %1687 = vmatmul.bf16.gmra.mxu0 %v949
        %v1688 = vpop.f32.mrf.mxu0
        %v1689 = vadd.f32 %v1600, %v1688
        %v1690 = vpop.f32.mrf.mxu0
        %v1691 = vadd.f32 %v1602, %v1690
        %1692 = vmatmul.bf16.gmra.mxu0 %v956
        %v1693 = vpop.f32.mrf.mxu0
        %v1694 = vadd.f32 %v1605, %v1693
        %v1695 = vpop.f32.mrf.mxu0
        %v1696 = vadd.f32 %v1607, %v1695
        %1697 = vmatmul.bf16.gmra.mxu0 %v963
        %v1698 = vpop.f32.mrf.mxu0
        %v1699 = vadd.f32 %v1610, %v1698
        %v1700 = vpop.f32.mrf.mxu0
        %v1701 = vadd.f32 %v1612, %v1700
        %1702 = vmatmul.bf16.gmra.mxu0 %v970
        %v1703 = vpop.f32.mrf.mxu0
        %v1704 = vadd.f32 %v1615, %v1703
        %v1705 = vpop.f32.mrf.mxu0
        %v1706 = vadd.f32 %v1617, %v1705
        %1707 = vmatmul.bf16.gmra.mxu0 %v977
        %v1708 = vpop.f32.mrf.mxu0
        %v1709 = vadd.f32 %v1620, %v1708
        %v1710 = vpop.f32.mrf.mxu0
        %v1711 = vadd.f32 %v1622, %v1710
        %1712 = vmatmul.bf16.gmra.mxu0 %v984
        %v1713 = vpop.f32.mrf.mxu0
        %v1714 = vadd.f32 %v1625, %v1713
        %v1715 = vpop.f32.mrf.mxu0
        %v1716 = vadd.f32 %v1627, %v1715
        %1717 = vmatmul.bf16.gmra.mxu0 %v991
        %v1718 = vpop.f32.mrf.mxu0
        %v1719 = vadd.f32 %v1630, %v1718
        %v1720 = vpop.f32.mrf.mxu0
        %v1721 = vadd.f32 %v1632, %v1720
        %1722 = vmatmul.bf16.gmra.mxu0 %v998
        %v1723 = vpop.f32.mrf.mxu0
        %v1724 = vadd.f32 %v1635, %v1723
        %v1725 = vpop.f32.mrf.mxu0
        %v1726 = vadd.f32 %v1637, %v1725
        %1727 = vmatmul.bf16.gmra.mxu0 %v1005
        %v1728 = vpop.f32.mrf.mxu0
        %v1729 = vadd.f32 %v1640, %v1728
        %v1730 = vpop.f32.mrf.mxu0
        %v1731 = vadd.f32 %v1642, %v1730
        %1732 = vmatmul.bf16.gmra.mxu0 %v1012
        %v1733 = vpop.f32.mrf.mxu0
        %v1734 = vadd.f32 %v1645, %v1733
        %v1735 = vpop.f32.mrf.mxu0
        %v1736 = vadd.f32 %v1647, %v1735
        %1737 = vmatmul.bf16.gmra.mxu0 %v1019
        %v1738 = vpop.f32.mrf.mxu0
        %v1739 = vadd.f32 %v1650, %v1738
        %v1740 = vpop.f32.mrf.mxu0
        %v1741 = vadd.f32 %v1652, %v1740
        %1742 = vmatmul.bf16.gmra.mxu0 %v1026
        %v1743 = vpop.f32.mrf.mxu0
        %v1744 = vadd.f32 %v1655, %v1743
        %v1745 = vpop.f32.mrf.mxu0
        %v1746 = vadd.f32 %v1657, %v1745
        %1747 = vmatmul.bf16.gmra.mxu0 %v1033
        %v1748 = vpop.f32.mrf.mxu0
        %v1749 = vadd.f32 %v1660, %v1748
        %v1750 = vpop.f32.mrf.mxu0
        %v1751 = vadd.f32 %v1662, %v1750
        %1752 = vdwg.mxu0
        %1753 = vmatpush.bf16.msra.mxu0 %v1405
        %1754 = vmatpush.bf16.msra.mxu0 %v1404
        %1755 = vmatpush.bf16.msra.mxu0 %v1403
        %1756 = vmatpush.bf16.msra.mxu0 %v1402
        %1757 = vmatpush.bf16.msra.mxu0 %v1401
        %1758 = vmatpush.bf16.msra.mxu0 %v1400
        %1759 = vmatpush.bf16.msra.mxu0 %v1399
        %1760 = vmatpush.bf16.msra.mxu0 %v1398
        %1761 = vmatmul.bf16.gmra.mxu0 %v929
        %v1762 = vpop.f32.mrf.mxu0
        %v1763 = vadd.f32 %v1674, %v1762
        %v1764 = vpop.f32.mrf.mxu0
        %v1765 = vadd.f32 %v1676, %v1764
        %1766 = vmatmul.bf16.gmra.mxu0 %v936
        %v1767 = vpop.f32.mrf.mxu0
        %v1768 = vadd.f32 %v1679, %v1767
        %v1769 = vpop.f32.mrf.mxu0
        %v1770 = vadd.f32 %v1681, %v1769
        %1771 = vmatmul.bf16.gmra.mxu0 %v943
        %v1772 = vpop.f32.mrf.mxu0
        %v1773 = vadd.f32 %v1684, %v1772
        %v1774 = vpop.f32.mrf.mxu0
        %v1775 = vadd.f32 %v1686, %v1774
        %1776 = vmatmul.bf16.gmra.mxu0 %v950
        %v1777 = vpop.f32.mrf.mxu0
        %v1778 = vadd.f32 %v1689, %v1777
        %v1779 = vpop.f32.mrf.mxu0
        %v1780 = vadd.f32 %v1691, %v1779
        %1781 = vmatmul.bf16.gmra.mxu0 %v957
        %v1782 = vpop.f32.mrf.mxu0
        %v1783 = vadd.f32 %v1694, %v1782
        %v1784 = vpop.f32.mrf.mxu0
        %v1785 = vadd.f32 %v1696, %v1784
        %1786 = vmatmul.bf16.gmra.mxu0 %v964
        %v1787 = vpop.f32.mrf.mxu0
        %v1788 = vadd.f32 %v1699, %v1787
        %v1789 = vpop.f32.mrf.mxu0
        %v1790 = vadd.f32 %v1701, %v1789
        %1791 = vmatmul.bf16.gmra.mxu0 %v971
        %v1792 = vpop.f32.mrf.mxu0
        %v1793 = vadd.f32 %v1704, %v1792
        %v1794 = vpop.f32.mrf.mxu0
        %v1795 = vadd.f32 %v1706, %v1794
        %1796 = vmatmul.bf16.gmra.mxu0 %v978
        %v1797 = vpop.f32.mrf.mxu0
        %v1798 = vadd.f32 %v1709, %v1797
        %v1799 = vpop.f32.mrf.mxu0
        %v1800 = vadd.f32 %v1711, %v1799
        %1801 = vmatmul.bf16.gmra.mxu0 %v985
        %v1802 = vpop.f32.mrf.mxu0
        %v1803 = vadd.f32 %v1714, %v1802
        %v1804 = vpop.f32.mrf.mxu0
        %v1805 = vadd.f32 %v1716, %v1804
        %1806 = vmatmul.bf16.gmra.mxu0 %v992
        %v1807 = vpop.f32.mrf.mxu0
        %v1808 = vadd.f32 %v1719, %v1807
        %v1809 = vpop.f32.mrf.mxu0
        %v1810 = vadd.f32 %v1721, %v1809
        %1811 = vmatmul.bf16.gmra.mxu0 %v999
        %v1812 = vpop.f32.mrf.mxu0
        %v1813 = vadd.f32 %v1724, %v1812
        %v1814 = vpop.f32.mrf.mxu0
        %v1815 = vadd.f32 %v1726, %v1814
        %1816 = vmatmul.bf16.gmra.mxu0 %v1006
        %v1817 = vpop.f32.mrf.mxu0
        %v1818 = vadd.f32 %v1729, %v1817
        %v1819 = vpop.f32.mrf.mxu0
        %v1820 = vadd.f32 %v1731, %v1819
        %1821 = vmatmul.bf16.gmra.mxu0 %v1013
        %v1822 = vpop.f32.mrf.mxu0
        %v1823 = vadd.f32 %v1734, %v1822
        %v1824 = vpop.f32.mrf.mxu0
        %v1825 = vadd.f32 %v1736, %v1824
        %1826 = vmatmul.bf16.gmra.mxu0 %v1020
        %v1827 = vpop.f32.mrf.mxu0
        %v1828 = vadd.f32 %v1739, %v1827
        %v1829 = vpop.f32.mrf.mxu0
        %v1830 = vadd.f32 %v1741, %v1829
        %1831 = vmatmul.bf16.gmra.mxu0 %v1027
        %v1832 = vpop.f32.mrf.mxu0
        %v1833 = vadd.f32 %v1744, %v1832
        %v1834 = vpop.f32.mrf.mxu0
        %v1835 = vadd.f32 %v1746, %v1834
        %1836 = vmatmul.bf16.gmra.mxu0 %v1034
        %v1837 = vpop.f32.mrf.mxu0
        %v1838 = vadd.f32 %v1749, %v1837
        %v1839 = vpop.f32.mrf.mxu0
        %v1840 = vadd.f32 %v1751, %v1839
        %1841 = vdwg.mxu0
        %1842 = vmatpush.bf16.msra.mxu0 %v1413
        %1843 = vmatpush.bf16.msra.mxu0 %v1412
        %1844 = vmatpush.bf16.msra.mxu0 %v1411
        %1845 = vmatpush.bf16.msra.mxu0 %v1410
        %1846 = vmatpush.bf16.msra.mxu0 %v1409
        %1847 = vmatpush.bf16.msra.mxu0 %v1408
        %1848 = vmatpush.bf16.msra.mxu0 %v1407
        %1849 = vmatpush.bf16.msra.mxu0 %v1406
        %1850 = vmatmul.bf16.gmra.mxu0 %v930
        %v1851 = vpop.f32.mrf.mxu0
        %v1852 = vadd.f32 %v1763, %v1851
        %v1853 = vpop.f32.mrf.mxu0
        %v1854 = vadd.f32 %v1765, %v1853
        %1855 = vmatmul.bf16.gmra.mxu0 %v937
        %v1856 = vpop.f32.mrf.mxu0
        %v1857 = vadd.f32 %v1768, %v1856
        %v1858 = vpop.f32.mrf.mxu0
        %v1859 = vadd.f32 %v1770, %v1858
        %1860 = vmatmul.bf16.gmra.mxu0 %v944
        %v1861 = vpop.f32.mrf.mxu0
        %v1862 = vadd.f32 %v1773, %v1861
        %v1863 = vpop.f32.mrf.mxu0
        %v1864 = vadd.f32 %v1775, %v1863
        %1865 = vmatmul.bf16.gmra.mxu0 %v951
        %v1866 = vpop.f32.mrf.mxu0
        %v1867 = vadd.f32 %v1778, %v1866
        %v1868 = vpop.f32.mrf.mxu0
        %v1869 = vadd.f32 %v1780, %v1868
        %1870 = vmatmul.bf16.gmra.mxu0 %v958
        %v1871 = vpop.f32.mrf.mxu0
        %v1872 = vadd.f32 %v1783, %v1871
        %v1873 = vpop.f32.mrf.mxu0
        %v1874 = vadd.f32 %v1785, %v1873
        %1875 = vmatmul.bf16.gmra.mxu0 %v965
        %v1876 = vpop.f32.mrf.mxu0
        %v1877 = vadd.f32 %v1788, %v1876
        %v1878 = vpop.f32.mrf.mxu0
        %v1879 = vadd.f32 %v1790, %v1878
        %1880 = vmatmul.bf16.gmra.mxu0 %v972
        %v1881 = vpop.f32.mrf.mxu0
        %v1882 = vadd.f32 %v1793, %v1881
        %v1883 = vpop.f32.mrf.mxu0
        %v1884 = vadd.f32 %v1795, %v1883
        %1885 = vmatmul.bf16.gmra.mxu0 %v979
        %v1886 = vpop.f32.mrf.mxu0
        %v1887 = vadd.f32 %v1798, %v1886
        %v1888 = vpop.f32.mrf.mxu0
        %v1889 = vadd.f32 %v1800, %v1888
        %1890 = vmatmul.bf16.gmra.mxu0 %v986
        %v1891 = vpop.f32.mrf.mxu0
        %v1892 = vadd.f32 %v1803, %v1891
        %v1893 = vpop.f32.mrf.mxu0
        %v1894 = vadd.f32 %v1805, %v1893
        %1895 = vmatmul.bf16.gmra.mxu0 %v993
        %v1896 = vpop.f32.mrf.mxu0
        %v1897 = vadd.f32 %v1808, %v1896
        %v1898 = vpop.f32.mrf.mxu0
        %v1899 = vadd.f32 %v1810, %v1898
        %1900 = vmatmul.bf16.gmra.mxu0 %v1000
        %v1901 = vpop.f32.mrf.mxu0
        %v1902 = vadd.f32 %v1813, %v1901
        %v1903 = vpop.f32.mrf.mxu0
        %v1904 = vadd.f32 %v1815, %v1903
        %1905 = vmatmul.bf16.gmra.mxu0 %v1007
        %v1906 = vpop.f32.mrf.mxu0
        %v1907 = vadd.f32 %v1818, %v1906
        %v1908 = vpop.f32.mrf.mxu0
        %v1909 = vadd.f32 %v1820, %v1908
        %1910 = vmatmul.bf16.gmra.mxu0 %v1014
        %v1911 = vpop.f32.mrf.mxu0
        %v1912 = vadd.f32 %v1823, %v1911
        %v1913 = vpop.f32.mrf.mxu0
        %v1914 = vadd.f32 %v1825, %v1913
        %1915 = vmatmul.bf16.gmra.mxu0 %v1021
        %v1916 = vpop.f32.mrf.mxu0
        %v1917 = vadd.f32 %v1828, %v1916
        %v1918 = vpop.f32.mrf.mxu0
        %v1919 = vadd.f32 %v1830, %v1918
        %1920 = vmatmul.bf16.gmra.mxu0 %v1028
        %v1921 = vpop.f32.mrf.mxu0
        %v1922 = vadd.f32 %v1833, %v1921
        %v1923 = vpop.f32.mrf.mxu0
        %v1924 = vadd.f32 %v1835, %v1923
        %1925 = vmatmul.bf16.gmra.mxu0 %v1035
        %v1926 = vpop.f32.mrf.mxu0
        %v1927 = vadd.f32 %v1838, %v1926
        %v1928 = vpop.f32.mrf.mxu0
        %v1929 = vadd.f32 %v1840, %v1928
        %1930 = vdwg.mxu0
        %1931 = vmatpush.bf16.msra.mxu0 %v1421
        %1932 = vmatpush.bf16.msra.mxu0 %v1420
        %1933 = vmatpush.bf16.msra.mxu0 %v1419
        %1934 = vmatpush.bf16.msra.mxu0 %v1418
        %1935 = vmatpush.bf16.msra.mxu0 %v1417
        %1936 = vmatpush.bf16.msra.mxu0 %v1416
        %1937 = vmatpush.bf16.msra.mxu0 %v1415
        %1938 = vmatpush.bf16.msra.mxu0 %v1414
        %1939 = vmatmul.bf16.gmra.mxu0 %v931
        %v1940 = vpop.f32.mrf.mxu0
        %v1941 = vadd.f32 %v1852, %v1940
        %v1942 = vpop.f32.mrf.mxu0
        %v1943 = vadd.f32 %v1854, %v1942
        %1944 = vmatmul.bf16.gmra.mxu0 %v938
        %v1945 = vpop.f32.mrf.mxu0
        %v1946 = vadd.f32 %v1857, %v1945
        %v1947 = vpop.f32.mrf.mxu0
        %v1948 = vadd.f32 %v1859, %v1947
        %1949 = vmatmul.bf16.gmra.mxu0 %v945
        %v1950 = vpop.f32.mrf.mxu0
        %v1951 = vadd.f32 %v1862, %v1950
        %v1952 = vpop.f32.mrf.mxu0
        %v1953 = vadd.f32 %v1864, %v1952
        %1954 = vmatmul.bf16.gmra.mxu0 %v952
        %v1955 = vpop.f32.mrf.mxu0
        %v1956 = vadd.f32 %v1867, %v1955
        %v1957 = vpop.f32.mrf.mxu0
        %v1958 = vadd.f32 %v1869, %v1957
        %1959 = vmatmul.bf16.gmra.mxu0 %v959
        %v1960 = vpop.f32.mrf.mxu0
        %v1961 = vadd.f32 %v1872, %v1960
        %v1962 = vpop.f32.mrf.mxu0
        %v1963 = vadd.f32 %v1874, %v1962
        %1964 = vmatmul.bf16.gmra.mxu0 %v966
        %v1965 = vpop.f32.mrf.mxu0
        %v1966 = vadd.f32 %v1877, %v1965
        %v1967 = vpop.f32.mrf.mxu0
        %v1968 = vadd.f32 %v1879, %v1967
        %1969 = vmatmul.bf16.gmra.mxu0 %v973
        %v1970 = vpop.f32.mrf.mxu0
        %v1971 = vadd.f32 %v1882, %v1970
        %v1972 = vpop.f32.mrf.mxu0
        %v1973 = vadd.f32 %v1884, %v1972
        %1974 = vmatmul.bf16.gmra.mxu0 %v980
        %v1975 = vpop.f32.mrf.mxu0
        %v1976 = vadd.f32 %v1887, %v1975
        %v1977 = vpop.f32.mrf.mxu0
        %v1978 = vadd.f32 %v1889, %v1977
        %1979 = vmatmul.bf16.gmra.mxu0 %v987
        %v1980 = vpop.f32.mrf.mxu0
        %v1981 = vadd.f32 %v1892, %v1980
        %v1982 = vpop.f32.mrf.mxu0
        %v1983 = vadd.f32 %v1894, %v1982
        %1984 = vmatmul.bf16.gmra.mxu0 %v994
        %v1985 = vpop.f32.mrf.mxu0
        %v1986 = vadd.f32 %v1897, %v1985
        %v1987 = vpop.f32.mrf.mxu0
        %v1988 = vadd.f32 %v1899, %v1987
        %1989 = vmatmul.bf16.gmra.mxu0 %v1001
        %v1990 = vpop.f32.mrf.mxu0
        %v1991 = vadd.f32 %v1902, %v1990
        %v1992 = vpop.f32.mrf.mxu0
        %v1993 = vadd.f32 %v1904, %v1992
        %1994 = vmatmul.bf16.gmra.mxu0 %v1008
        %v1995 = vpop.f32.mrf.mxu0
        %v1996 = vadd.f32 %v1907, %v1995
        %v1997 = vpop.f32.mrf.mxu0
        %v1998 = vadd.f32 %v1909, %v1997
        %1999 = vmatmul.bf16.gmra.mxu0 %v1015
        %v2000 = vpop.f32.mrf.mxu0
        %v2001 = vadd.f32 %v1912, %v2000
        %v2002 = vpop.f32.mrf.mxu0
        %v2003 = vadd.f32 %v1914, %v2002
        %2004 = vmatmul.bf16.gmra.mxu0 %v1022
        %v2005 = vpop.f32.mrf.mxu0
        %v2006 = vadd.f32 %v1917, %v2005
        %v2007 = vpop.f32.mrf.mxu0
        %v2008 = vadd.f32 %v1919, %v2007
        %2009 = vmatmul.bf16.gmra.mxu0 %v1029
        %v2010 = vpop.f32.mrf.mxu0
        %v2011 = vadd.f32 %v1922, %v2010
        %v2012 = vpop.f32.mrf.mxu0
        %v2013 = vadd.f32 %v1924, %v2012
        %2014 = vmatmul.bf16.gmra.mxu0 %v1036
        %v2015 = vpop.f32.mrf.mxu0
        %v2016 = vadd.f32 %v1927, %v2015
        %v2017 = vpop.f32.mrf.mxu0
        %v2018 = vadd.f32 %v1929, %v2017
        %2019 = vdwg.mxu0
        %2020 = vmatpush.bf16.msra.mxu0 %v1429
        %2021 = vmatpush.bf16.msra.mxu0 %v1428
        %2022 = vmatpush.bf16.msra.mxu0 %v1427
        %2023 = vmatpush.bf16.msra.mxu0 %v1426
        %2024 = vmatpush.bf16.msra.mxu0 %v1425
        %2025 = vmatpush.bf16.msra.mxu0 %v1424
        %2026 = vmatpush.bf16.msra.mxu0 %v1423
        %2027 = vmatpush.bf16.msra.mxu0 %v1422
        %2028 = vmatmul.bf16.gmra.mxu0 %v932
        %v2029 = vpop.f32.mrf.mxu0
        %v2030 = vadd.f32 %v1941, %v2029
        %v2031 = vpop.f32.mrf.mxu0
        %v2032 = vadd.f32 %v1943, %v2031
        %2033 = vmatmul.bf16.gmra.mxu0 %v939
        %v2034 = vpop.f32.mrf.mxu0
        %v2035 = vadd.f32 %v1946, %v2034
        %v2036 = vpop.f32.mrf.mxu0
        %v2037 = vadd.f32 %v1948, %v2036
        %2038 = vmatmul.bf16.gmra.mxu0 %v946
        %v2039 = vpop.f32.mrf.mxu0
        %v2040 = vadd.f32 %v1951, %v2039
        %v2041 = vpop.f32.mrf.mxu0
        %v2042 = vadd.f32 %v1953, %v2041
        %2043 = vmatmul.bf16.gmra.mxu0 %v953
        %v2044 = vpop.f32.mrf.mxu0
        %v2045 = vadd.f32 %v1956, %v2044
        %v2046 = vpop.f32.mrf.mxu0
        %v2047 = vadd.f32 %v1958, %v2046
        %2048 = vmatmul.bf16.gmra.mxu0 %v960
        %v2049 = vpop.f32.mrf.mxu0
        %v2050 = vadd.f32 %v1961, %v2049
        %v2051 = vpop.f32.mrf.mxu0
        %v2052 = vadd.f32 %v1963, %v2051
        %2053 = vmatmul.bf16.gmra.mxu0 %v967
        %v2054 = vpop.f32.mrf.mxu0
        %v2055 = vadd.f32 %v1966, %v2054
        %v2056 = vpop.f32.mrf.mxu0
        %v2057 = vadd.f32 %v1968, %v2056
        %2058 = vmatmul.bf16.gmra.mxu0 %v974
        %v2059 = vpop.f32.mrf.mxu0
        %v2060 = vadd.f32 %v1971, %v2059
        %v2061 = vpop.f32.mrf.mxu0
        %v2062 = vadd.f32 %v1973, %v2061
        %2063 = vmatmul.bf16.gmra.mxu0 %v981
        %v2064 = vpop.f32.mrf.mxu0
        %v2065 = vadd.f32 %v1976, %v2064
        %v2066 = vpop.f32.mrf.mxu0
        %v2067 = vadd.f32 %v1978, %v2066
        %2068 = vmatmul.bf16.gmra.mxu0 %v988
        %v2069 = vpop.f32.mrf.mxu0
        %v2070 = vadd.f32 %v1981, %v2069
        %v2071 = vpop.f32.mrf.mxu0
        %v2072 = vadd.f32 %v1983, %v2071
        %2073 = vmatmul.bf16.gmra.mxu0 %v995
        %v2074 = vpop.f32.mrf.mxu0
        %v2075 = vadd.f32 %v1986, %v2074
        %v2076 = vpop.f32.mrf.mxu0
        %v2077 = vadd.f32 %v1988, %v2076
        %2078 = vmatmul.bf16.gmra.mxu0 %v1002
        %v2079 = vpop.f32.mrf.mxu0
        %v2080 = vadd.f32 %v1991, %v2079
        %v2081 = vpop.f32.mrf.mxu0
        %v2082 = vadd.f32 %v1993, %v2081
        %2083 = vmatmul.bf16.gmra.mxu0 %v1009
        %v2084 = vpop.f32.mrf.mxu0
        %v2085 = vadd.f32 %v1996, %v2084
        %v2086 = vpop.f32.mrf.mxu0
        %v2087 = vadd.f32 %v1998, %v2086
        %2088 = vmatmul.bf16.gmra.mxu0 %v1016
        %v2089 = vpop.f32.mrf.mxu0
        %v2090 = vadd.f32 %v2001, %v2089
        %v2091 = vpop.f32.mrf.mxu0
        %v2092 = vadd.f32 %v2003, %v2091
        %2093 = vmatmul.bf16.gmra.mxu0 %v1023
        %v2094 = vpop.f32.mrf.mxu0
        %v2095 = vadd.f32 %v2006, %v2094
        %v2096 = vpop.f32.mrf.mxu0
        %v2097 = vadd.f32 %v2008, %v2096
        %2098 = vmatmul.bf16.gmra.mxu0 %v1030
        %v2099 = vpop.f32.mrf.mxu0
        %v2100 = vadd.f32 %v2011, %v2099
        %v2101 = vpop.f32.mrf.mxu0
        %v2102 = vadd.f32 %v2013, %v2101
        %2103 = vmatmul.bf16.gmra.mxu0 %v1037
        %v2104 = vpop.f32.mrf.mxu0
        %v2105 = vadd.f32 %v2016, %v2104
        %v2106 = vpop.f32.mrf.mxu0
        %v2107 = vadd.f32 %v2018, %v2106
        %2108 = vdwg.mxu0
        %v2109 = vmax.f32 %v2030, %v2035
        %v2110 = vmax.f32 %v2032, %v2037
        %v2111 = vmax.f32 %v2050, %v2055
        %v2112 = vmax.f32 %v2052, %v2057
        %v2113 = vmax.f32 %v2070, %v2075
        %v2114 = vmax.f32 %v2072, %v2077
        %v2115 = vmax.f32 %v2090, %v2095
        %v2116 = vmax.f32 %v2092, %v2097
        %v2117 = vmax.f32 %v2040, %v2045
        %v2118 = vmax.f32 %v2042, %v2047
        %v2119 = vmax.f32 %v2060, %v2065
        %v2120 = vmax.f32 %v2062, %v2067
        %v2121 = vmax.f32 %v2080, %v2085
        %v2122 = vmax.f32 %v2082, %v2087
        %v2123 = vmax.f32 %v2100, %v2105
        %v2124 = vmax.f32 %v2102, %v2107
        %v2125 = vmax.f32 %v2109, %v2117
        %v2126 = vmax.f32 %v2110, %v2118
        %v2127 = vmax.f32 %v2111, %v2119
        %v2128 = vmax.f32 %v2112, %v2120
        %v2129 = vmax.f32 %v2113, %v2121
        %v2130 = vmax.f32 %v2114, %v2122
        %v2131 = vmax.f32 %v2115, %v2123
        %v2132 = vmax.f32 %v2116, %v2124
        %v2133 = vld [vmem:[%s2] sm:$0x1]
        %v2135 = vperm.slane %v2133, 0
        %v2137 = vadd.f32 %v2125, %v2135
        %v2138 = vadd.f32 %v2126, %v2135
        %v2139 = vadd.f32 %v2127, %v2135
        %v2140 = vadd.f32 %v2128, %v2135
        %v2141 = vadd.f32 %v2129, %v2135
        %v2142 = vadd.f32 %v2130, %v2135
        %v2143 = vadd.f32 %v2131, %v2135
        %v2144 = vadd.f32 %v2132, %v2135
        %v2145 = vmax.f32 %v2137, 0.0
        %v2146 = vmax.f32 %v2138, 0.0
        %v2147 = vmax.f32 %v2139, 0.0
        %v2148 = vmax.f32 %v2140, 0.0
        %v2149 = vmax.f32 %v2141, 0.0
        %v2150 = vmax.f32 %v2142, 0.0
        %v2151 = vmax.f32 %v2143, 0.0
        %v2152 = vmax.f32 %v2144, 0.0
        %v2154 = vrot.slane %v2145, 4
        %v2157 = vrot.slane %v2146, 4
        %v2160 = vrot.slane %v2147, 4
        %v2163 = vrot.slane %v2148, 4
        %v2166 = vrot.slane %v2149, 4
        %v2169 = vrot.slane %v2150, 4
        %v2172 = vrot.slane %v2151, 4
        %v2175 = vrot.slane %v2152, 4
        %v2177 = vpack.c.bf16 %v2145, %v2145
        %v2178 = vpack.c.bf16 %v2154, %v2154
        %v2179 = vpack.c.bf16 %v2146, %v2146
        %v2180 = vpack.c.bf16 %v2157, %v2157
        %v2181 = vpack.c.bf16 %v2147, %v2147
        %v2182 = vpack.c.bf16 %v2160, %v2160
        %v2183 = vpack.c.bf16 %v2148, %v2148
        %v2184 = vpack.c.bf16 %v2163, %v2163
        %v2185 = vpack.c.bf16 %v2149, %v2149
        %v2186 = vpack.c.bf16 %v2166, %v2166
        %v2187 = vpack.c.bf16 %v2150, %v2150
        %v2188 = vpack.c.bf16 %v2169, %v2169
        %v2189 = vpack.c.bf16 %v2151, %v2151
        %v2190 = vpack.c.bf16 %v2172, %v2172
        %v2191 = vpack.c.bf16 %v2152, %v2152
        %v2192 = vpack.c.bf16 %v2175, %v2175
        %v2193 = vld [vmem:[%s3] sm:$0xf]
        %v2194 = vld [vmem:[%s3 + $0x4] sm:$0xf]
        %v2195 = vld [vmem:[%s3 + $0x8] sm:$0xf]
        %v2196 = vld [vmem:[%s3 + $0xc] sm:$0xf]
        %v2197 = vld [vmem:[%s3 + $0x10] sm:$0xf]
        %v2198 = vld [vmem:[%s3 + $0x14] sm:$0xf]
        %v2199 = vld [vmem:[%s3 + $0x18] sm:$0xf]
        %v2200 = vld [vmem:[%s3 + $0x1c] sm:$0xf]
        %v2201 = vld [vmem:[%s3 + $0x20] sm:$0xf]
        %v2202 = vld [vmem:[%s3 + $0x24] sm:$0xf]
        %v2203 = vld [vmem:[%s3 + $0x28] sm:$0xf]
        %v2204 = vld [vmem:[%s3 + $0x2c] sm:$0xf]
        %v2205 = vld [vmem:[%s3 + $0x30] sm:$0xf]
        %v2206 = vld [vmem:[%s3 + $0x34] sm:$0xf]
        %v2207 = vld [vmem:[%s3 + $0x38] sm:$0xf]
        %v2208 = vld [vmem:[%s3 + $0x3c] sm:$0xf]
        %v2209 = vld [vmem:[%s4] sm:$0xff]
        %v2210 = vld [vmem:[%s4 + $0x8] sm:$0xff]
        %v2211 = vld [vmem:[%s4 + $0x10] sm:$0xff]
        %v2212 = vld [vmem:[%s4 + $0x18] sm:$0xff]
        %v2213 = vld [vmem:[%s4 + $0x20] sm:$0xff]
        %v2214 = vld [vmem:[%s4 + $0x28] sm:$0xff]
        %v2215 = vld [vmem:[%s4 + $0x30] sm:$0xff]
        %v2216 = vld [vmem:[%s4 + $0x38] sm:$0xff]
        %v2217 = vld [vmem:[%s4 + $0x40] sm:$0xff]
        %v2218 = vld [vmem:[%s4 + $0x48] sm:$0xff]
        %v2219 = vld [vmem:[%s4 + $0x50] sm:$0xff]
        %v2220 = vld [vmem:[%s4 + $0x58] sm:$0xff]
        %v2221 = vld [vmem:[%s4 + $0x60] sm:$0xff]
        %v2222 = vld [vmem:[%s4 + $0x68] sm:$0xff]
        %v2223 = vld [vmem:[%s4 + $0x70] sm:$0xff]
        %v2224 = vld [vmem:[%s4 + $0x78] sm:$0xff]
        %2226 = vset.pattern.permute.xlu0 0
        %2227 = vperm.xlu0 %2226, %v2209
        %v2228 = vpop.permute.xlu0 %2227
        %2231 = vset.pattern.permute.xlu0 0
        %2232 = vperm.xlu0 %2231, %v2210
        %v2233 = vpop.permute.xlu0 %2232
        %2236 = vset.pattern.permute.xlu0 0
        %2237 = vperm.xlu0 %2236, %v2211
        %v2238 = vpop.permute.xlu0 %2237
        %2241 = vset.pattern.permute.xlu0 0
        %2242 = vperm.xlu0 %2241, %v2212
        %v2243 = vpop.permute.xlu0 %2242
        %2246 = vset.pattern.permute.xlu0 0
        %2247 = vperm.xlu0 %2246, %v2213
        %v2248 = vpop.permute.xlu0 %2247
        %2251 = vset.pattern.permute.xlu0 0
        %2252 = vperm.xlu0 %2251, %v2214
        %v2253 = vpop.permute.xlu0 %2252
        %2256 = vset.pattern.permute.xlu0 0
        %2257 = vperm.xlu0 %2256, %v2215
        %v2258 = vpop.permute.xlu0 %2257
        %2261 = vset.pattern.permute.xlu0 0
        %2262 = vperm.xlu0 %2261, %v2216
        %v2263 = vpop.permute.xlu0 %2262
        %2266 = vset.pattern.permute.xlu0 0
        %2267 = vperm.xlu0 %2266, %v2217
        %v2268 = vpop.permute.xlu0 %2267
        %2271 = vset.pattern.permute.xlu0 0
        %2272 = vperm.xlu0 %2271, %v2218
        %v2273 = vpop.permute.xlu0 %2272
        %2276 = vset.pattern.permute.xlu0 0
        %2277 = vperm.xlu0 %2276, %v2219
        %v2278 = vpop.permute.xlu0 %2277
        %2281 = vset.pattern.permute.xlu0 0
        %2282 = vperm.xlu0 %2281, %v2220
        %v2283 = vpop.permute.xlu0 %2282
        %2286 = vset.pattern.permute.xlu0 0
        %2287 = vperm.xlu0 %2286, %v2221
        %v2288 = vpop.permute.xlu0 %2287
        %2291 = vset.pattern.permute.xlu0 0
        %2292 = vperm.xlu0 %2291, %v2222
        %v2293 = vpop.permute.xlu0 %2292
        %2296 = vset.pattern.permute.xlu0 0
        %2297 = vperm.xlu0 %2296, %v2223
        %v2298 = vpop.permute.xlu0 %2297
        %2301 = vset.pattern.permute.xlu0 0
        %2302 = vperm.xlu0 %2301, %v2224
        %v2303 = vpop.permute.xlu0 %2302
        %v2321 = vunpack.c.l.b16 %v2193
        %v2322 = vunpack.c.l.b16 %v2194
        %v2323 = vunpack.c.l.b16 %v2195
        %v2324 = vunpack.c.l.b16 %v2196
        %v2325 = vunpack.c.l.b16 %v2197
        %v2326 = vunpack.c.l.b16 %v2198
        %v2327 = vunpack.c.l.b16 %v2199
        %v2328 = vunpack.c.l.b16 %v2200
        %v2329 = vunpack.c.l.b16 %v2201
        %v2330 = vunpack.c.l.b16 %v2202
        %v2331 = vunpack.c.l.b16 %v2203
        %v2332 = vunpack.c.l.b16 %v2204
        %v2333 = vunpack.c.l.b16 %v2205
        %v2334 = vunpack.c.l.b16 %v2206
        %v2335 = vunpack.c.l.b16 %v2207
        %v2336 = vunpack.c.l.b16 %v2208
        %v2337 = vpack.c.b16 %v2322, %v2321
        %v2338 = vpack.c.b16 %v2324, %v2323
        %v2339 = vpack.c.b16 %v2326, %v2325
        %v2340 = vpack.c.b16 %v2328, %v2327
        %v2341 = vpack.c.b16 %v2330, %v2329
        %v2342 = vpack.c.b16 %v2332, %v2331
        %v2343 = vpack.c.b16 %v2334, %v2333
        %v2344 = vpack.c.b16 %v2336, %v2335
        %vm2345 = vcmask 31744
        %v2347 = vsel %vm2345, %v2337, 0
        %v2350 = vsel %vm2345, %v2338, 0
        %v2353 = vsel %vm2345, %v2339, 0
        %v2356 = vsel %vm2345, %v2340, 0
        %v2359 = vsel %vm2345, %v2341, 0
        %v2362 = vsel %vm2345, %v2342, 0
        %v2365 = vsel %vm2345, %v2343, 0
        %v2368 = vsel %vm2345, %v2344, 0
        %vm2370 = vcmask 1041408
        %v2372 = vsel %vm2370, %v2177, 0
        %v2375 = vsel %vm2370, %v2178, 0
        %v2378 = vsel %vm2370, %v2179, 0
        %v2381 = vsel %vm2370, %v2180, 0
        %v2384 = vsel %vm2370, %v2181, 0
        %v2387 = vsel %vm2370, %v2182, 0
        %v2390 = vsel %vm2370, %v2183, 0
        %v2393 = vsel %vm2370, %v2184, 0
        %v2396 = vsel %vm2370, %v2185, 0
        %v2399 = vsel %vm2370, %v2186, 0
        %v2402 = vsel %vm2370, %v2187, 0
        %v2405 = vsel %vm2370, %v2188, 0
        %v2408 = vsel %vm2370, %v2189, 0
        %v2411 = vsel %vm2370, %v2190, 0
        %v2414 = vsel %vm2370, %v2191, 0
        %v2417 = vsel %vm2370, %v2192, 0
        %2419 = vmatpush.bf16.msra.mxu0 0
        %2420 = vmatpush.bf16.msra.mxu0 0
        %2421 = vmatpush.bf16.msra.mxu0 0
        %2422 = vmatpush.bf16.msra.mxu0 0
        %2423 = vmatpush.bf16.msra.mxu0 0
        %2424 = vmatpush.bf16.msra.mxu0 0
        %2425 = vmatpush.bf16.msra.mxu0 0
        %2426 = vmatpush.bf16.msra.mxu0 %v2372
        %2427 = vmatmul.bf16.gmra.mxu0 %v2347
        %v2428 = vpop.f32.mrf.mxu0
        %v2429 = vadd.f32 %v2228, %v2428
        %v2430 = vpop.f32.mrf.mxu0
        %v2431 = vadd.f32 %v2233, %v2430
        %2432 = vmatmul.bf16.gmra.mxu0 %v2350
        %v2433 = vpop.f32.mrf.mxu0
        %v2434 = vadd.f32 %v2238, %v2433
        %v2435 = vpop.f32.mrf.mxu0
        %v2436 = vadd.f32 %v2243, %v2435
        %2437 = vmatmul.bf16.gmra.mxu0 %v2353
        %v2438 = vpop.f32.mrf.mxu0
        %v2439 = vadd.f32 %v2248, %v2438
        %v2440 = vpop.f32.mrf.mxu0
        %v2441 = vadd.f32 %v2253, %v2440
        %2442 = vmatmul.bf16.gmra.mxu0 %v2356
        %v2443 = vpop.f32.mrf.mxu0
        %v2444 = vadd.f32 %v2258, %v2443
        %v2445 = vpop.f32.mrf.mxu0
        %v2446 = vadd.f32 %v2263, %v2445
        %2447 = vmatmul.bf16.gmra.mxu0 %v2359
        %v2448 = vpop.f32.mrf.mxu0
        %v2449 = vadd.f32 %v2268, %v2448
        %v2450 = vpop.f32.mrf.mxu0
        %v2451 = vadd.f32 %v2273, %v2450
        %2452 = vmatmul.bf16.gmra.mxu0 %v2362
        %v2453 = vpop.f32.mrf.mxu0
        %v2454 = vadd.f32 %v2278, %v2453
        %v2455 = vpop.f32.mrf.mxu0
        %v2456 = vadd.f32 %v2283, %v2455
        %2457 = vmatmul.bf16.gmra.mxu0 %v2365
        %v2458 = vpop.f32.mrf.mxu0
        %v2459 = vadd.f32 %v2288, %v2458
        %v2460 = vpop.f32.mrf.mxu0
        %v2461 = vadd.f32 %v2293, %v2460
        %2462 = vmatmul.bf16.gmra.mxu0 %v2368
        %v2463 = vpop.f32.mrf.mxu0
        %v2464 = vadd.f32 %v2298, %v2463
        %v2465 = vpop.f32.mrf.mxu0
        %v2466 = vadd.f32 %v2303, %v2465
        %2467 = vdwg.mxu0
        %2468 = vmatpush.bf16.msra.mxu0 0
        %2469 = vmatpush.bf16.msra.mxu0 0
        %2470 = vmatpush.bf16.msra.mxu0 0
        %2471 = vmatpush.bf16.msra.mxu0 0
        %2472 = vmatpush.bf16.msra.mxu0 0
        %2473 = vmatpush.bf16.msra.mxu0 0
        %2474 = vmatpush.bf16.msra.mxu0 0
        %2475 = vmatpush.bf16.msra.mxu0 %v2375
        %2476 = vmatmul.bf16.gmra.mxu0 %v2347
        %v2477 = vpop.f32.mrf.mxu0
        %v2478 = vadd.f32 %v2228, %v2477
        %v2479 = vpop.f32.mrf.mxu0
        %v2480 = vadd.f32 %v2233, %v2479
        %2481 = vmatmul.bf16.gmra.mxu0 %v2350
        %v2482 = vpop.f32.mrf.mxu0
        %v2483 = vadd.f32 %v2238, %v2482
        %v2484 = vpop.f32.mrf.mxu0
        %v2485 = vadd.f32 %v2243, %v2484
        %2486 = vmatmul.bf16.gmra.mxu0 %v2353
        %v2487 = vpop.f32.mrf.mxu0
        %v2488 = vadd.f32 %v2248, %v2487
        %v2489 = vpop.f32.mrf.mxu0
        %v2490 = vadd.f32 %v2253, %v2489
        %2491 = vmatmul.bf16.gmra.mxu0 %v2356
        %v2492 = vpop.f32.mrf.mxu0
        %v2493 = vadd.f32 %v2258, %v2492
        %v2494 = vpop.f32.mrf.mxu0
        %v2495 = vadd.f32 %v2263, %v2494
        %2496 = vmatmul.bf16.gmra.mxu0 %v2359
        %v2497 = vpop.f32.mrf.mxu0
        %v2498 = vadd.f32 %v2268, %v2497
        %v2499 = vpop.f32.mrf.mxu0
        %v2500 = vadd.f32 %v2273, %v2499
        %2501 = vmatmul.bf16.gmra.mxu0 %v2362
        %v2502 = vpop.f32.mrf.mxu0
        %v2503 = vadd.f32 %v2278, %v2502
        %v2504 = vpop.f32.mrf.mxu0
        %v2505 = vadd.f32 %v2283, %v2504
        %2506 = vmatmul.bf16.gmra.mxu0 %v2365
        %v2507 = vpop.f32.mrf.mxu0
        %v2508 = vadd.f32 %v2288, %v2507
        %v2509 = vpop.f32.mrf.mxu0
        %v2510 = vadd.f32 %v2293, %v2509
        %2511 = vmatmul.bf16.gmra.mxu0 %v2368
        %v2512 = vpop.f32.mrf.mxu0
        %v2513 = vadd.f32 %v2298, %v2512
        %v2514 = vpop.f32.mrf.mxu0
        %v2515 = vadd.f32 %v2303, %v2514
        %2516 = vdwg.mxu0
        %2517 = vmatpush.bf16.msra.mxu0 0
        %2518 = vmatpush.bf16.msra.mxu0 0
        %2519 = vmatpush.bf16.msra.mxu0 0
        %2520 = vmatpush.bf16.msra.mxu0 0
        %2521 = vmatpush.bf16.msra.mxu0 0
        %2522 = vmatpush.bf16.msra.mxu0 0
        %2523 = vmatpush.bf16.msra.mxu0 0
        %2524 = vmatpush.bf16.msra.mxu0 %v2378
        %2525 = vmatmul.bf16.gmra.mxu0 %v2347
        %v2526 = vpop.f32.mrf.mxu0
        %v2527 = vadd.f32 %v2228, %v2526
        %v2528 = vpop.f32.mrf.mxu0
        %v2529 = vadd.f32 %v2233, %v2528
        %2530 = vmatmul.bf16.gmra.mxu0 %v2350
        %v2531 = vpop.f32.mrf.mxu0
        %v2532 = vadd.f32 %v2238, %v2531
        %v2533 = vpop.f32.mrf.mxu0
        %v2534 = vadd.f32 %v2243, %v2533
        %2535 = vmatmul.bf16.gmra.mxu0 %v2353
        %v2536 = vpop.f32.mrf.mxu0
        %v2537 = vadd.f32 %v2248, %v2536
        %v2538 = vpop.f32.mrf.mxu0
        %v2539 = vadd.f32 %v2253, %v2538
        %2540 = vmatmul.bf16.gmra.mxu0 %v2356
        %v2541 = vpop.f32.mrf.mxu0
        %v2542 = vadd.f32 %v2258, %v2541
        %v2543 = vpop.f32.mrf.mxu0
        %v2544 = vadd.f32 %v2263, %v2543
        %2545 = vmatmul.bf16.gmra.mxu0 %v2359
        %v2546 = vpop.f32.mrf.mxu0
        %v2547 = vadd.f32 %v2268, %v2546
        %v2548 = vpop.f32.mrf.mxu0
        %v2549 = vadd.f32 %v2273, %v2548
        %2550 = vmatmul.bf16.gmra.mxu0 %v2362
        %v2551 = vpop.f32.mrf.mxu0
        %v2552 = vadd.f32 %v2278, %v2551
        %v2553 = vpop.f32.mrf.mxu0
        %v2554 = vadd.f32 %v2283, %v2553
        %2555 = vmatmul.bf16.gmra.mxu0 %v2365
        %v2556 = vpop.f32.mrf.mxu0
        %v2557 = vadd.f32 %v2288, %v2556
        %v2558 = vpop.f32.mrf.mxu0
        %v2559 = vadd.f32 %v2293, %v2558
        %2560 = vmatmul.bf16.gmra.mxu0 %v2368
        %v2561 = vpop.f32.mrf.mxu0
        %v2562 = vadd.f32 %v2298, %v2561
        %v2563 = vpop.f32.mrf.mxu0
        %v2564 = vadd.f32 %v2303, %v2563
        %2565 = vdwg.mxu0
        %2566 = vmatpush.bf16.msra.mxu0 0
        %2567 = vmatpush.bf16.msra.mxu0 0
        %2568 = vmatpush.bf16.msra.mxu0 0
        %2569 = vmatpush.bf16.msra.mxu0 0
        %2570 = vmatpush.bf16.msra.mxu0 0
        %2571 = vmatpush.bf16.msra.mxu0 0
        %2572 = vmatpush.bf16.msra.mxu0 0
        %2573 = vmatpush.bf16.msra.mxu0 %v2381
        %2574 = vmatmul.bf16.gmra.mxu0 %v2347
        %v2575 = vpop.f32.mrf.mxu0
        %v2576 = vadd.f32 %v2228, %v2575
        %v2577 = vpop.f32.mrf.mxu0
        %v2578 = vadd.f32 %v2233, %v2577
        %2579 = vmatmul.bf16.gmra.mxu0 %v2350
        %v2580 = vpop.f32.mrf.mxu0
        %v2581 = vadd.f32 %v2238, %v2580
        %v2582 = vpop.f32.mrf.mxu0
        %v2583 = vadd.f32 %v2243, %v2582
        %2584 = vmatmul.bf16.gmra.mxu0 %v2353
        %v2585 = vpop.f32.mrf.mxu0
        %v2586 = vadd.f32 %v2248, %v2585
        %v2587 = vpop.f32.mrf.mxu0
        %v2588 = vadd.f32 %v2253, %v2587
        %2589 = vmatmul.bf16.gmra.mxu0 %v2356
        %v2590 = vpop.f32.mrf.mxu0
        %v2591 = vadd.f32 %v2258, %v2590
        %v2592 = vpop.f32.mrf.mxu0
        %v2593 = vadd.f32 %v2263, %v2592
        %2594 = vmatmul.bf16.gmra.mxu0 %v2359
        %v2595 = vpop.f32.mrf.mxu0
        %v2596 = vadd.f32 %v2268, %v2595
        %v2597 = vpop.f32.mrf.mxu0
        %v2598 = vadd.f32 %v2273, %v2597
        %2599 = vmatmul.bf16.gmra.mxu0 %v2362
        %v2600 = vpop.f32.mrf.mxu0
        %v2601 = vadd.f32 %v2278, %v2600
        %v2602 = vpop.f32.mrf.mxu0
        %v2603 = vadd.f32 %v2283, %v2602
        %2604 = vmatmul.bf16.gmra.mxu0 %v2365
        %v2605 = vpop.f32.mrf.mxu0
        %v2606 = vadd.f32 %v2288, %v2605
        %v2607 = vpop.f32.mrf.mxu0
        %v2608 = vadd.f32 %v2293, %v2607
        %2609 = vmatmul.bf16.gmra.mxu0 %v2368
        %v2610 = vpop.f32.mrf.mxu0
        %v2611 = vadd.f32 %v2298, %v2610
        %v2612 = vpop.f32.mrf.mxu0
        %v2613 = vadd.f32 %v2303, %v2612
        %2614 = vdwg.mxu0
        %2615 = vmatpush.bf16.msra.mxu0 0
        %2616 = vmatpush.bf16.msra.mxu0 0
        %2617 = vmatpush.bf16.msra.mxu0 0
        %2618 = vmatpush.bf16.msra.mxu0 0
        %2619 = vmatpush.bf16.msra.mxu0 0
        %2620 = vmatpush.bf16.msra.mxu0 0
        %2621 = vmatpush.bf16.msra.mxu0 0
        %2622 = vmatpush.bf16.msra.mxu0 %v2384
        %2623 = vmatmul.bf16.gmra.mxu0 %v2347
        %v2624 = vpop.f32.mrf.mxu0
        %v2625 = vadd.f32 %v2228, %v2624
        %v2626 = vpop.f32.mrf.mxu0
        %v2627 = vadd.f32 %v2233, %v2626
        %2628 = vmatmul.bf16.gmra.mxu0 %v2350
        %v2629 = vpop.f32.mrf.mxu0
        %v2630 = vadd.f32 %v2238, %v2629
        %v2631 = vpop.f32.mrf.mxu0
        %v2632 = vadd.f32 %v2243, %v2631
        %2633 = vmatmul.bf16.gmra.mxu0 %v2353
        %v2634 = vpop.f32.mrf.mxu0
        %v2635 = vadd.f32 %v2248, %v2634
        %v2636 = vpop.f32.mrf.mxu0
        %v2637 = vadd.f32 %v2253, %v2636
        %2638 = vmatmul.bf16.gmra.mxu0 %v2356
        %v2639 = vpop.f32.mrf.mxu0
        %v2640 = vadd.f32 %v2258, %v2639
        %v2641 = vpop.f32.mrf.mxu0
        %v2642 = vadd.f32 %v2263, %v2641
        %2643 = vmatmul.bf16.gmra.mxu0 %v2359
        %v2644 = vpop.f32.mrf.mxu0
        %v2645 = vadd.f32 %v2268, %v2644
        %v2646 = vpop.f32.mrf.mxu0
        %v2647 = vadd.f32 %v2273, %v2646
        %2648 = vmatmul.bf16.gmra.mxu0 %v2362
        %v2649 = vpop.f32.mrf.mxu0
        %v2650 = vadd.f32 %v2278, %v2649
        %v2651 = vpop.f32.mrf.mxu0
        %v2652 = vadd.f32 %v2283, %v2651
        %2653 = vmatmul.bf16.gmra.mxu0 %v2365
        %v2654 = vpop.f32.mrf.mxu0
        %v2655 = vadd.f32 %v2288, %v2654
        %v2656 = vpop.f32.mrf.mxu0
        %v2657 = vadd.f32 %v2293, %v2656
        %2658 = vmatmul.bf16.gmra.mxu0 %v2368
        %v2659 = vpop.f32.mrf.mxu0
        %v2660 = vadd.f32 %v2298, %v2659
        %v2661 = vpop.f32.mrf.mxu0
        %v2662 = vadd.f32 %v2303, %v2661
        %2663 = vdwg.mxu0
        %2664 = vmatpush.bf16.msra.mxu0 0
        %2665 = vmatpush.bf16.msra.mxu0 0
        %2666 = vmatpush.bf16.msra.mxu0 0
        %2667 = vmatpush.bf16.msra.mxu0 0
        %2668 = vmatpush.bf16.msra.mxu0 0
        %2669 = vmatpush.bf16.msra.mxu0 0
        %2670 = vmatpush.bf16.msra.mxu0 0
        %2671 = vmatpush.bf16.msra.mxu0 %v2387
        %2672 = vmatmul.bf16.gmra.mxu0 %v2347
        %v2673 = vpop.f32.mrf.mxu0
        %v2674 = vadd.f32 %v2228, %v2673
        %v2675 = vpop.f32.mrf.mxu0
        %v2676 = vadd.f32 %v2233, %v2675
        %2677 = vmatmul.bf16.gmra.mxu0 %v2350
        %v2678 = vpop.f32.mrf.mxu0
        %v2679 = vadd.f32 %v2238, %v2678
        %v2680 = vpop.f32.mrf.mxu0
        %v2681 = vadd.f32 %v2243, %v2680
        %2682 = vmatmul.bf16.gmra.mxu0 %v2353
        %v2683 = vpop.f32.mrf.mxu0
        %v2684 = vadd.f32 %v2248, %v2683
        %v2685 = vpop.f32.mrf.mxu0
        %v2686 = vadd.f32 %v2253, %v2685
        %2687 = vmatmul.bf16.gmra.mxu0 %v2356
        %v2688 = vpop.f32.mrf.mxu0
        %v2689 = vadd.f32 %v2258, %v2688
        %v2690 = vpop.f32.mrf.mxu0
        %v2691 = vadd.f32 %v2263, %v2690
        %2692 = vmatmul.bf16.gmra.mxu0 %v2359
        %v2693 = vpop.f32.mrf.mxu0
        %v2694 = vadd.f32 %v2268, %v2693
        %v2695 = vpop.f32.mrf.mxu0
        %v2696 = vadd.f32 %v2273, %v2695
        %2697 = vmatmul.bf16.gmra.mxu0 %v2362
        %v2698 = vpop.f32.mrf.mxu0
        %v2699 = vadd.f32 %v2278, %v2698
        %v2700 = vpop.f32.mrf.mxu0
        %v2701 = vadd.f32 %v2283, %v2700
        %2702 = vmatmul.bf16.gmra.mxu0 %v2365
        %v2703 = vpop.f32.mrf.mxu0
        %v2704 = vadd.f32 %v2288, %v2703
        %v2705 = vpop.f32.mrf.mxu0
        %v2706 = vadd.f32 %v2293, %v2705
        %2707 = vmatmul.bf16.gmra.mxu0 %v2368
        %v2708 = vpop.f32.mrf.mxu0
        %v2709 = vadd.f32 %v2298, %v2708
        %v2710 = vpop.f32.mrf.mxu0
        %v2711 = vadd.f32 %v2303, %v2710
        %2712 = vdwg.mxu0
        %2713 = vmatpush.bf16.msra.mxu0 0
        %2714 = vmatpush.bf16.msra.mxu0 0
        %2715 = vmatpush.bf16.msra.mxu0 0
        %2716 = vmatpush.bf16.msra.mxu0 0
        %2717 = vmatpush.bf16.msra.mxu0 0
        %2718 = vmatpush.bf16.msra.mxu0 0
        %2719 = vmatpush.bf16.msra.mxu0 0
        %2720 = vmatpush.bf16.msra.mxu0 %v2390
        %2721 = vmatmul.bf16.gmra.mxu0 %v2347
        %v2722 = vpop.f32.mrf.mxu0
        %v2723 = vadd.f32 %v2228, %v2722
        %v2724 = vpop.f32.mrf.mxu0
        %v2725 = vadd.f32 %v2233, %v2724
        %2726 = vmatmul.bf16.gmra.mxu0 %v2350
        %v2727 = vpop.f32.mrf.mxu0
        %v2728 = vadd.f32 %v2238, %v2727
        %v2729 = vpop.f32.mrf.mxu0
        %v2730 = vadd.f32 %v2243, %v2729
        %2731 = vmatmul.bf16.gmra.mxu0 %v2353
        %v2732 = vpop.f32.mrf.mxu0
        %v2733 = vadd.f32 %v2248, %v2732
        %v2734 = vpop.f32.mrf.mxu0
        %v2735 = vadd.f32 %v2253, %v2734
        %2736 = vmatmul.bf16.gmra.mxu0 %v2356
        %v2737 = vpop.f32.mrf.mxu0
        %v2738 = vadd.f32 %v2258, %v2737
        %v2739 = vpop.f32.mrf.mxu0
        %v2740 = vadd.f32 %v2263, %v2739
        %2741 = vmatmul.bf16.gmra.mxu0 %v2359
        %v2742 = vpop.f32.mrf.mxu0
        %v2743 = vadd.f32 %v2268, %v2742
        %v2744 = vpop.f32.mrf.mxu0
        %v2745 = vadd.f32 %v2273, %v2744
        %2746 = vmatmul.bf16.gmra.mxu0 %v2362
        %v2747 = vpop.f32.mrf.mxu0
        %v2748 = vadd.f32 %v2278, %v2747
        %v2749 = vpop.f32.mrf.mxu0
        %v2750 = vadd.f32 %v2283, %v2749
        %2751 = vmatmul.bf16.gmra.mxu0 %v2365
        %v2752 = vpop.f32.mrf.mxu0
        %v2753 = vadd.f32 %v2288, %v2752
        %v2754 = vpop.f32.mrf.mxu0
        %v2755 = vadd.f32 %v2293, %v2754
        %2756 = vmatmul.bf16.gmra.mxu0 %v2368
        %v2757 = vpop.f32.mrf.mxu0
        %v2758 = vadd.f32 %v2298, %v2757
        %v2759 = vpop.f32.mrf.mxu0
        %v2760 = vadd.f32 %v2303, %v2759
        %2761 = vdwg.mxu0
        %2762 = vmatpush.bf16.msra.mxu0 0
        %2763 = vmatpush.bf16.msra.mxu0 0
        %2764 = vmatpush.bf16.msra.mxu0 0
        %2765 = vmatpush.bf16.msra.mxu0 0
        %2766 = vmatpush.bf16.msra.mxu0 0
        %2767 = vmatpush.bf16.msra.mxu0 0
        %2768 = vmatpush.bf16.msra.mxu0 0
        %2769 = vmatpush.bf16.msra.mxu0 %v2393
        %2770 = vmatmul.bf16.gmra.mxu0 %v2347
        %v2771 = vpop.f32.mrf.mxu0
        %v2772 = vadd.f32 %v2228, %v2771
        %v2773 = vpop.f32.mrf.mxu0
        %v2774 = vadd.f32 %v2233, %v2773
        %2775 = vmatmul.bf16.gmra.mxu0 %v2350
        %v2776 = vpop.f32.mrf.mxu0
        %v2777 = vadd.f32 %v2238, %v2776
        %v2778 = vpop.f32.mrf.mxu0
        %v2779 = vadd.f32 %v2243, %v2778
        %2780 = vmatmul.bf16.gmra.mxu0 %v2353
        %v2781 = vpop.f32.mrf.mxu0
        %v2782 = vadd.f32 %v2248, %v2781
        %v2783 = vpop.f32.mrf.mxu0
        %v2784 = vadd.f32 %v2253, %v2783
        %2785 = vmatmul.bf16.gmra.mxu0 %v2356
        %v2786 = vpop.f32.mrf.mxu0
        %v2787 = vadd.f32 %v2258, %v2786
        %v2788 = vpop.f32.mrf.mxu0
        %v2789 = vadd.f32 %v2263, %v2788
        %2790 = vmatmul.bf16.gmra.mxu0 %v2359
        %v2791 = vpop.f32.mrf.mxu0
        %v2792 = vadd.f32 %v2268, %v2791
        %v2793 = vpop.f32.mrf.mxu0
        %v2794 = vadd.f32 %v2273, %v2793
        %2795 = vmatmul.bf16.gmra.mxu0 %v2362
        %v2796 = vpop.f32.mrf.mxu0
        %v2797 = vadd.f32 %v2278, %v2796
        %v2798 = vpop.f32.mrf.mxu0
        %v2799 = vadd.f32 %v2283, %v2798
        %2800 = vmatmul.bf16.gmra.mxu0 %v2365
        %v2801 = vpop.f32.mrf.mxu0
        %v2802 = vadd.f32 %v2288, %v2801
        %v2803 = vpop.f32.mrf.mxu0
        %v2804 = vadd.f32 %v2293, %v2803
        %2805 = vmatmul.bf16.gmra.mxu0 %v2368
        %v2806 = vpop.f32.mrf.mxu0
        %v2807 = vadd.f32 %v2298, %v2806
        %v2808 = vpop.f32.mrf.mxu0
        %v2809 = vadd.f32 %v2303, %v2808
        %2810 = vdwg.mxu0
        %2811 = vmatpush.bf16.msra.mxu0 0
        %2812 = vmatpush.bf16.msra.mxu0 0
        %2813 = vmatpush.bf16.msra.mxu0 0
        %2814 = vmatpush.bf16.msra.mxu0 0
        %2815 = vmatpush.bf16.msra.mxu0 0
        %2816 = vmatpush.bf16.msra.mxu0 0
        %2817 = vmatpush.bf16.msra.mxu0 0
        %2818 = vmatpush.bf16.msra.mxu0 %v2396
        %2819 = vmatmul.bf16.gmra.mxu0 %v2347
        %v2820 = vpop.f32.mrf.mxu0
        %v2821 = vadd.f32 %v2228, %v2820
        %v2822 = vpop.f32.mrf.mxu0
        %v2823 = vadd.f32 %v2233, %v2822
        %2824 = vmatmul.bf16.gmra.mxu0 %v2350
        %v2825 = vpop.f32.mrf.mxu0
        %v2826 = vadd.f32 %v2238, %v2825
        %v2827 = vpop.f32.mrf.mxu0
        %v2828 = vadd.f32 %v2243, %v2827
        %2829 = vmatmul.bf16.gmra.mxu0 %v2353
        %v2830 = vpop.f32.mrf.mxu0
        %v2831 = vadd.f32 %v2248, %v2830
        %v2832 = vpop.f32.mrf.mxu0
        %v2833 = vadd.f32 %v2253, %v2832
        %2834 = vmatmul.bf16.gmra.mxu0 %v2356
        %v2835 = vpop.f32.mrf.mxu0
        %v2836 = vadd.f32 %v2258, %v2835
        %v2837 = vpop.f32.mrf.mxu0
        %v2838 = vadd.f32 %v2263, %v2837
        %2839 = vmatmul.bf16.gmra.mxu0 %v2359
        %v2840 = vpop.f32.mrf.mxu0
        %v2841 = vadd.f32 %v2268, %v2840
        %v2842 = vpop.f32.mrf.mxu0
        %v2843 = vadd.f32 %v2273, %v2842
        %2844 = vmatmul.bf16.gmra.mxu0 %v2362
        %v2845 = vpop.f32.mrf.mxu0
        %v2846 = vadd.f32 %v2278, %v2845
        %v2847 = vpop.f32.mrf.mxu0
        %v2848 = vadd.f32 %v2283, %v2847
        %2849 = vmatmul.bf16.gmra.mxu0 %v2365
        %v2850 = vpop.f32.mrf.mxu0
        %v2851 = vadd.f32 %v2288, %v2850
        %v2852 = vpop.f32.mrf.mxu0
        %v2853 = vadd.f32 %v2293, %v2852
        %2854 = vmatmul.bf16.gmra.mxu0 %v2368
        %v2855 = vpop.f32.mrf.mxu0
        %v2856 = vadd.f32 %v2298, %v2855
        %v2857 = vpop.f32.mrf.mxu0
        %v2858 = vadd.f32 %v2303, %v2857
        %2859 = vdwg.mxu0
        %2860 = vmatpush.bf16.msra.mxu0 0
        %2861 = vmatpush.bf16.msra.mxu0 0
        %2862 = vmatpush.bf16.msra.mxu0 0
        %2863 = vmatpush.bf16.msra.mxu0 0
        %2864 = vmatpush.bf16.msra.mxu0 0
        %2865 = vmatpush.bf16.msra.mxu0 0
        %2866 = vmatpush.bf16.msra.mxu0 0
        %2867 = vmatpush.bf16.msra.mxu0 %v2399
        %2868 = vmatmul.bf16.gmra.mxu0 %v2347
        %v2869 = vpop.f32.mrf.mxu0
        %v2870 = vadd.f32 %v2228, %v2869
        %v2871 = vpop.f32.mrf.mxu0
        %v2872 = vadd.f32 %v2233, %v2871
        %2873 = vmatmul.bf16.gmra.mxu0 %v2350
        %v2874 = vpop.f32.mrf.mxu0
        %v2875 = vadd.f32 %v2238, %v2874
        %v2876 = vpop.f32.mrf.mxu0
        %v2877 = vadd.f32 %v2243, %v2876
        %2878 = vmatmul.bf16.gmra.mxu0 %v2353
        %v2879 = vpop.f32.mrf.mxu0
        %v2880 = vadd.f32 %v2248, %v2879
        %v2881 = vpop.f32.mrf.mxu0
        %v2882 = vadd.f32 %v2253, %v2881
        %2883 = vmatmul.bf16.gmra.mxu0 %v2356
        %v2884 = vpop.f32.mrf.mxu0
        %v2885 = vadd.f32 %v2258, %v2884
        %v2886 = vpop.f32.mrf.mxu0
        %v2887 = vadd.f32 %v2263, %v2886
        %2888 = vmatmul.bf16.gmra.mxu0 %v2359
        %v2889 = vpop.f32.mrf.mxu0
        %v2890 = vadd.f32 %v2268, %v2889
        %v2891 = vpop.f32.mrf.mxu0
        %v2892 = vadd.f32 %v2273, %v2891
        %2893 = vmatmul.bf16.gmra.mxu0 %v2362
        %v2894 = vpop.f32.mrf.mxu0
        %v2895 = vadd.f32 %v2278, %v2894
        %v2896 = vpop.f32.mrf.mxu0
        %v2897 = vadd.f32 %v2283, %v2896
        %2898 = vmatmul.bf16.gmra.mxu0 %v2365
        %v2899 = vpop.f32.mrf.mxu0
        %v2900 = vadd.f32 %v2288, %v2899
        %v2901 = vpop.f32.mrf.mxu0
        %v2902 = vadd.f32 %v2293, %v2901
        %2903 = vmatmul.bf16.gmra.mxu0 %v2368
        %v2904 = vpop.f32.mrf.mxu0
        %v2905 = vadd.f32 %v2298, %v2904
        %v2906 = vpop.f32.mrf.mxu0
        %v2907 = vadd.f32 %v2303, %v2906
        %2908 = vdwg.mxu0
        %2909 = vmatpush.bf16.msra.mxu0 0
        %2910 = vmatpush.bf16.msra.mxu0 0
        %2911 = vmatpush.bf16.msra.mxu0 0
        %2912 = vmatpush.bf16.msra.mxu0 0
        %2913 = vmatpush.bf16.msra.mxu0 0
        %2914 = vmatpush.bf16.msra.mxu0 0
        %2915 = vmatpush.bf16.msra.mxu0 0
        %2916 = vmatpush.bf16.msra.mxu0 %v2402
        %2917 = vmatmul.bf16.gmra.mxu0 %v2347
        %v2918 = vpop.f32.mrf.mxu0
        %v2919 = vadd.f32 %v2228, %v2918
        %v2920 = vpop.f32.mrf.mxu0
        %v2921 = vadd.f32 %v2233, %v2920
        %2922 = vmatmul.bf16.gmra.mxu0 %v2350
        %v2923 = vpop.f32.mrf.mxu0
        %v2924 = vadd.f32 %v2238, %v2923
        %v2925 = vpop.f32.mrf.mxu0
        %v2926 = vadd.f32 %v2243, %v2925
        %2927 = vmatmul.bf16.gmra.mxu0 %v2353
        %v2928 = vpop.f32.mrf.mxu0
        %v2929 = vadd.f32 %v2248, %v2928
        %v2930 = vpop.f32.mrf.mxu0
        %v2931 = vadd.f32 %v2253, %v2930
        %2932 = vmatmul.bf16.gmra.mxu0 %v2356
        %v2933 = vpop.f32.mrf.mxu0
        %v2934 = vadd.f32 %v2258, %v2933
        %v2935 = vpop.f32.mrf.mxu0
        %v2936 = vadd.f32 %v2263, %v2935
        %2937 = vmatmul.bf16.gmra.mxu0 %v2359
        %v2938 = vpop.f32.mrf.mxu0
        %v2939 = vadd.f32 %v2268, %v2938
        %v2940 = vpop.f32.mrf.mxu0
        %v2941 = vadd.f32 %v2273, %v2940
        %2942 = vmatmul.bf16.gmra.mxu0 %v2362
        %v2943 = vpop.f32.mrf.mxu0
        %v2944 = vadd.f32 %v2278, %v2943
        %v2945 = vpop.f32.mrf.mxu0
        %v2946 = vadd.f32 %v2283, %v2945
        %2947 = vmatmul.bf16.gmra.mxu0 %v2365
        %v2948 = vpop.f32.mrf.mxu0
        %v2949 = vadd.f32 %v2288, %v2948
        %v2950 = vpop.f32.mrf.mxu0
        %v2951 = vadd.f32 %v2293, %v2950
        %2952 = vmatmul.bf16.gmra.mxu0 %v2368
        %v2953 = vpop.f32.mrf.mxu0
        %v2954 = vadd.f32 %v2298, %v2953
        %v2955 = vpop.f32.mrf.mxu0
        %v2956 = vadd.f32 %v2303, %v2955
        %2957 = vdwg.mxu0
        %2958 = vmatpush.bf16.msra.mxu0 0
        %2959 = vmatpush.bf16.msra.mxu0 0
        %2960 = vmatpush.bf16.msra.mxu0 0
        %2961 = vmatpush.bf16.msra.mxu0 0
        %2962 = vmatpush.bf16.msra.mxu0 0
        %2963 = vmatpush.bf16.msra.mxu0 0
        %2964 = vmatpush.bf16.msra.mxu0 0
        %2965 = vmatpush.bf16.msra.mxu0 %v2405
        %2966 = vmatmul.bf16.gmra.mxu0 %v2347
        %v2967 = vpop.f32.mrf.mxu0
        %v2968 = vadd.f32 %v2228, %v2967
        %v2969 = vpop.f32.mrf.mxu0
        %v2970 = vadd.f32 %v2233, %v2969
        %2971 = vmatmul.bf16.gmra.mxu0 %v2350
        %v2972 = vpop.f32.mrf.mxu0
        %v2973 = vadd.f32 %v2238, %v2972
        %v2974 = vpop.f32.mrf.mxu0
        %v2975 = vadd.f32 %v2243, %v2974
        %2976 = vmatmul.bf16.gmra.mxu0 %v2353
        %v2977 = vpop.f32.mrf.mxu0
        %v2978 = vadd.f32 %v2248, %v2977
        %v2979 = vpop.f32.mrf.mxu0
        %v2980 = vadd.f32 %v2253, %v2979
        %2981 = vmatmul.bf16.gmra.mxu0 %v2356
        %v2982 = vpop.f32.mrf.mxu0
        %v2983 = vadd.f32 %v2258, %v2982
        %v2984 = vpop.f32.mrf.mxu0
        %v2985 = vadd.f32 %v2263, %v2984
        %2986 = vmatmul.bf16.gmra.mxu0 %v2359
        %v2987 = vpop.f32.mrf.mxu0
        %v2988 = vadd.f32 %v2268, %v2987
        %v2989 = vpop.f32.mrf.mxu0
        %v2990 = vadd.f32 %v2273, %v2989
        %2991 = vmatmul.bf16.gmra.mxu0 %v2362
        %v2992 = vpop.f32.mrf.mxu0
        %v2993 = vadd.f32 %v2278, %v2992
        %v2994 = vpop.f32.mrf.mxu0
        %v2995 = vadd.f32 %v2283, %v2994
        %2996 = vmatmul.bf16.gmra.mxu0 %v2365
        %v2997 = vpop.f32.mrf.mxu0
        %v2998 = vadd.f32 %v2288, %v2997
        %v2999 = vpop.f32.mrf.mxu0
        %v3000 = vadd.f32 %v2293, %v2999
        %3001 = vmatmul.bf16.gmra.mxu0 %v2368
        %v3002 = vpop.f32.mrf.mxu0
        %v3003 = vadd.f32 %v2298, %v3002
        %v3004 = vpop.f32.mrf.mxu0
        %v3005 = vadd.f32 %v2303, %v3004
        %3006 = vdwg.mxu0
        %3007 = vmatpush.bf16.msra.mxu0 0
        %3008 = vmatpush.bf16.msra.mxu0 0
        %3009 = vmatpush.bf16.msra.mxu0 0
        %3010 = vmatpush.bf16.msra.mxu0 0
        %3011 = vmatpush.bf16.msra.mxu0 0
        %3012 = vmatpush.bf16.msra.mxu0 0
        %3013 = vmatpush.bf16.msra.mxu0 0
        %3014 = vmatpush.bf16.msra.mxu0 %v2408
        %3015 = vmatmul.bf16.gmra.mxu0 %v2347
        %v3016 = vpop.f32.mrf.mxu0
        %v3017 = vadd.f32 %v2228, %v3016
        %v3018 = vpop.f32.mrf.mxu0
        %v3019 = vadd.f32 %v2233, %v3018
        %3020 = vmatmul.bf16.gmra.mxu0 %v2350
        %v3021 = vpop.f32.mrf.mxu0
        %v3022 = vadd.f32 %v2238, %v3021
        %v3023 = vpop.f32.mrf.mxu0
        %v3024 = vadd.f32 %v2243, %v3023
        %3025 = vmatmul.bf16.gmra.mxu0 %v2353
        %v3026 = vpop.f32.mrf.mxu0
        %v3027 = vadd.f32 %v2248, %v3026
        %v3028 = vpop.f32.mrf.mxu0
        %v3029 = vadd.f32 %v2253, %v3028
        %3030 = vmatmul.bf16.gmra.mxu0 %v2356
        %v3031 = vpop.f32.mrf.mxu0
        %v3032 = vadd.f32 %v2258, %v3031
        %v3033 = vpop.f32.mrf.mxu0
        %v3034 = vadd.f32 %v2263, %v3033
        %3035 = vmatmul.bf16.gmra.mxu0 %v2359
        %v3036 = vpop.f32.mrf.mxu0
        %v3037 = vadd.f32 %v2268, %v3036
        %v3038 = vpop.f32.mrf.mxu0
        %v3039 = vadd.f32 %v2273, %v3038
        %3040 = vmatmul.bf16.gmra.mxu0 %v2362
        %v3041 = vpop.f32.mrf.mxu0
        %v3042 = vadd.f32 %v2278, %v3041
        %v3043 = vpop.f32.mrf.mxu0
        %v3044 = vadd.f32 %v2283, %v3043
        %3045 = vmatmul.bf16.gmra.mxu0 %v2365
        %v3046 = vpop.f32.mrf.mxu0
        %v3047 = vadd.f32 %v2288, %v3046
        %v3048 = vpop.f32.mrf.mxu0
        %v3049 = vadd.f32 %v2293, %v3048
        %3050 = vmatmul.bf16.gmra.mxu0 %v2368
        %v3051 = vpop.f32.mrf.mxu0
        %v3052 = vadd.f32 %v2298, %v3051
        %v3053 = vpop.f32.mrf.mxu0
        %v3054 = vadd.f32 %v2303, %v3053
        %3055 = vdwg.mxu0
        %3056 = vmatpush.bf16.msra.mxu0 0
        %3057 = vmatpush.bf16.msra.mxu0 0
        %3058 = vmatpush.bf16.msra.mxu0 0
        %3059 = vmatpush.bf16.msra.mxu0 0
        %3060 = vmatpush.bf16.msra.mxu0 0
        %3061 = vmatpush.bf16.msra.mxu0 0
        %3062 = vmatpush.bf16.msra.mxu0 0
        %3063 = vmatpush.bf16.msra.mxu0 %v2411
        %3064 = vmatmul.bf16.gmra.mxu0 %v2347
        %v3065 = vpop.f32.mrf.mxu0
        %v3066 = vadd.f32 %v2228, %v3065
        %v3067 = vpop.f32.mrf.mxu0
        %v3068 = vadd.f32 %v2233, %v3067
        %3069 = vmatmul.bf16.gmra.mxu0 %v2350
        %v3070 = vpop.f32.mrf.mxu0
        %v3071 = vadd.f32 %v2238, %v3070
        %v3072 = vpop.f32.mrf.mxu0
        %v3073 = vadd.f32 %v2243, %v3072
        %3074 = vmatmul.bf16.gmra.mxu0 %v2353
        %v3075 = vpop.f32.mrf.mxu0
        %v3076 = vadd.f32 %v2248, %v3075
        %v3077 = vpop.f32.mrf.mxu0
        %v3078 = vadd.f32 %v2253, %v3077
        %3079 = vmatmul.bf16.gmra.mxu0 %v2356
        %v3080 = vpop.f32.mrf.mxu0
        %v3081 = vadd.f32 %v2258, %v3080
        %v3082 = vpop.f32.mrf.mxu0
        %v3083 = vadd.f32 %v2263, %v3082
        %3084 = vmatmul.bf16.gmra.mxu0 %v2359
        %v3085 = vpop.f32.mrf.mxu0
        %v3086 = vadd.f32 %v2268, %v3085
        %v3087 = vpop.f32.mrf.mxu0
        %v3088 = vadd.f32 %v2273, %v3087
        %3089 = vmatmul.bf16.gmra.mxu0 %v2362
        %v3090 = vpop.f32.mrf.mxu0
        %v3091 = vadd.f32 %v2278, %v3090
        %v3092 = vpop.f32.mrf.mxu0
        %v3093 = vadd.f32 %v2283, %v3092
        %3094 = vmatmul.bf16.gmra.mxu0 %v2365
        %v3095 = vpop.f32.mrf.mxu0
        %v3096 = vadd.f32 %v2288, %v3095
        %v3097 = vpop.f32.mrf.mxu0
        %v3098 = vadd.f32 %v2293, %v3097
        %3099 = vmatmul.bf16.gmra.mxu0 %v2368
        %v3100 = vpop.f32.mrf.mxu0
        %v3101 = vadd.f32 %v2298, %v3100
        %v3102 = vpop.f32.mrf.mxu0
        %v3103 = vadd.f32 %v2303, %v3102
        %3104 = vdwg.mxu0
        %3105 = vmatpush.bf16.msra.mxu0 0
        %3106 = vmatpush.bf16.msra.mxu0 0
        %3107 = vmatpush.bf16.msra.mxu0 0
        %3108 = vmatpush.bf16.msra.mxu0 0
        %3109 = vmatpush.bf16.msra.mxu0 0
        %3110 = vmatpush.bf16.msra.mxu0 0
        %3111 = vmatpush.bf16.msra.mxu0 0
        %3112 = vmatpush.bf16.msra.mxu0 %v2414
        %3113 = vmatmul.bf16.gmra.mxu0 %v2347
        %v3114 = vpop.f32.mrf.mxu0
        %v3115 = vadd.f32 %v2228, %v3114
        %v3116 = vpop.f32.mrf.mxu0
        %v3117 = vadd.f32 %v2233, %v3116
        %3118 = vmatmul.bf16.gmra.mxu0 %v2350
        %v3119 = vpop.f32.mrf.mxu0
        %v3120 = vadd.f32 %v2238, %v3119
        %v3121 = vpop.f32.mrf.mxu0
        %v3122 = vadd.f32 %v2243, %v3121
        %3123 = vmatmul.bf16.gmra.mxu0 %v2353
        %v3124 = vpop.f32.mrf.mxu0
        %v3125 = vadd.f32 %v2248, %v3124
        %v3126 = vpop.f32.mrf.mxu0
        %v3127 = vadd.f32 %v2253, %v3126
        %3128 = vmatmul.bf16.gmra.mxu0 %v2356
        %v3129 = vpop.f32.mrf.mxu0
        %v3130 = vadd.f32 %v2258, %v3129
        %v3131 = vpop.f32.mrf.mxu0
        %v3132 = vadd.f32 %v2263, %v3131
        %3133 = vmatmul.bf16.gmra.mxu0 %v2359
        %v3134 = vpop.f32.mrf.mxu0
        %v3135 = vadd.f32 %v2268, %v3134
        %v3136 = vpop.f32.mrf.mxu0
        %v3137 = vadd.f32 %v2273, %v3136
        %3138 = vmatmul.bf16.gmra.mxu0 %v2362
        %v3139 = vpop.f32.mrf.mxu0
        %v3140 = vadd.f32 %v2278, %v3139
        %v3141 = vpop.f32.mrf.mxu0
        %v3142 = vadd.f32 %v2283, %v3141
        %3143 = vmatmul.bf16.gmra.mxu0 %v2365
        %v3144 = vpop.f32.mrf.mxu0
        %v3145 = vadd.f32 %v2288, %v3144
        %v3146 = vpop.f32.mrf.mxu0
        %v3147 = vadd.f32 %v2293, %v3146
        %3148 = vmatmul.bf16.gmra.mxu0 %v2368
        %v3149 = vpop.f32.mrf.mxu0
        %v3150 = vadd.f32 %v2298, %v3149
        %v3151 = vpop.f32.mrf.mxu0
        %v3152 = vadd.f32 %v2303, %v3151
        %3153 = vdwg.mxu0
        %3154 = vmatpush.bf16.msra.mxu0 0
        %3155 = vmatpush.bf16.msra.mxu0 0
        %3156 = vmatpush.bf16.msra.mxu0 0
        %3157 = vmatpush.bf16.msra.mxu0 0
        %3158 = vmatpush.bf16.msra.mxu0 0
        %3159 = vmatpush.bf16.msra.mxu0 0
        %3160 = vmatpush.bf16.msra.mxu0 0
        %3161 = vmatpush.bf16.msra.mxu0 %v2417
        %3162 = vmatmul.bf16.gmra.mxu0 %v2347
        %v3163 = vpop.f32.mrf.mxu0
        %v3164 = vadd.f32 %v2228, %v3163
        %v3165 = vpop.f32.mrf.mxu0
        %v3166 = vadd.f32 %v2233, %v3165
        %3167 = vmatmul.bf16.gmra.mxu0 %v2350
        %v3168 = vpop.f32.mrf.mxu0
        %v3169 = vadd.f32 %v2238, %v3168
        %v3170 = vpop.f32.mrf.mxu0
        %v3171 = vadd.f32 %v2243, %v3170
        %3172 = vmatmul.bf16.gmra.mxu0 %v2353
        %v3173 = vpop.f32.mrf.mxu0
        %v3174 = vadd.f32 %v2248, %v3173
        %v3175 = vpop.f32.mrf.mxu0
        %v3176 = vadd.f32 %v2253, %v3175
        %3177 = vmatmul.bf16.gmra.mxu0 %v2356
        %v3178 = vpop.f32.mrf.mxu0
        %v3179 = vadd.f32 %v2258, %v3178
        %v3180 = vpop.f32.mrf.mxu0
        %v3181 = vadd.f32 %v2263, %v3180
        %3182 = vmatmul.bf16.gmra.mxu0 %v2359
        %v3183 = vpop.f32.mrf.mxu0
        %v3184 = vadd.f32 %v2268, %v3183
        %v3185 = vpop.f32.mrf.mxu0
        %v3186 = vadd.f32 %v2273, %v3185
        %3187 = vmatmul.bf16.gmra.mxu0 %v2362
        %v3188 = vpop.f32.mrf.mxu0
        %v3189 = vadd.f32 %v2278, %v3188
        %v3190 = vpop.f32.mrf.mxu0
        %v3191 = vadd.f32 %v2283, %v3190
        %3192 = vmatmul.bf16.gmra.mxu0 %v2365
        %v3193 = vpop.f32.mrf.mxu0
        %v3194 = vadd.f32 %v2288, %v3193
        %v3195 = vpop.f32.mrf.mxu0
        %v3196 = vadd.f32 %v2293, %v3195
        %3197 = vmatmul.bf16.gmra.mxu0 %v2368
        %v3198 = vpop.f32.mrf.mxu0
        %v3199 = vadd.f32 %v2298, %v3198
        %v3200 = vpop.f32.mrf.mxu0
        %v3201 = vadd.f32 %v2303, %v3200
        %3202 = vdwg.mxu0
        %vm3203 = vcmp.ge.f32.partialorder %v2429, 0.0
        %vm3204 = vcmp.ge.f32.partialorder %v2478, 0.0
        %vm3205 = vcmp.ge.f32.partialorder %v2527, 0.0
        %vm3206 = vcmp.ge.f32.partialorder %v2576, 0.0
        %vm3207 = vcmp.ge.f32.partialorder %v2625, 0.0
        %vm3208 = vcmp.ge.f32.partialorder %v2674, 0.0
        %vm3209 = vcmp.ge.f32.partialorder %v2723, 0.0
        %vm3210 = vcmp.ge.f32.partialorder %v2772, 0.0
        %vm3211 = vcmp.ge.f32.partialorder %v2821, 0.0
        %vm3212 = vcmp.ge.f32.partialorder %v2870, 0.0
        %vm3213 = vcmp.ge.f32.partialorder %v2919, 0.0
        %vm3214 = vcmp.ge.f32.partialorder %v2968, 0.0
        %vm3215 = vcmp.ge.f32.partialorder %v3017, 0.0
        %vm3216 = vcmp.ge.f32.partialorder %v3066, 0.0
        %vm3217 = vcmp.ge.f32.partialorder %v3115, 0.0
        %vm3218 = vcmp.ge.f32.partialorder %v3164, 0.0
        %vm3219 = vcmp.ge.f32.partialorder %v2431, 0.0
        %vm3220 = vcmp.ge.f32.partialorder %v2480, 0.0
        %vm3221 = vcmp.ge.f32.partialorder %v2529, 0.0
        %vm3222 = vcmp.ge.f32.partialorder %v2578, 0.0
        %vm3223 = vcmp.ge.f32.partialorder %v2627, 0.0
        %vm3224 = vcmp.ge.f32.partialorder %v2676, 0.0
        %vm3225 = vcmp.ge.f32.partialorder %v2725, 0.0
        %vm3226 = vcmp.ge.f32.partialorder %v2774, 0.0
        %vm3227 = vcmp.ge.f32.partialorder %v2823, 0.0
        %vm3228 = vcmp.ge.f32.partialorder %v2872, 0.0
        %vm3229 = vcmp.ge.f32.partialorder %v2921, 0.0
        %vm3230 = vcmp.ge.f32.partialorder %v2970, 0.0
        %vm3231 = vcmp.ge.f32.partialorder %v3019, 0.0
        %vm3232 = vcmp.ge.f32.partialorder %v3068, 0.0
        %vm3233 = vcmp.ge.f32.partialorder %v3117, 0.0
        %vm3234 = vcmp.ge.f32.partialorder %v3166, 0.0
        %vm3235 = vcmp.ge.f32.partialorder %v2434, 0.0
        %vm3236 = vcmp.ge.f32.partialorder %v2483, 0.0
        %vm3237 = vcmp.ge.f32.partialorder %v2532, 0.0
        %vm3238 = vcmp.ge.f32.partialorder %v2581, 0.0
        %vm3239 = vcmp.ge.f32.partialorder %v2630, 0.0
        %vm3240 = vcmp.ge.f32.partialorder %v2679, 0.0
        %vm3241 = vcmp.ge.f32.partialorder %v2728, 0.0
        %vm3242 = vcmp.ge.f32.partialorder %v2777, 0.0
        %vm3243 = vcmp.ge.f32.partialorder %v2826, 0.0
        %vm3244 = vcmp.ge.f32.partialorder %v2875, 0.0
        %vm3245 = vcmp.ge.f32.partialorder %v2924, 0.0
        %vm3246 = vcmp.ge.f32.partialorder %v2973, 0.0
        %vm3247 = vcmp.ge.f32.partialorder %v3022, 0.0
        %vm3248 = vcmp.ge.f32.partialorder %v3071, 0.0
        %vm3249 = vcmp.ge.f32.partialorder %v3120, 0.0
        %vm3250 = vcmp.ge.f32.partialorder %v3169, 0.0
        %vm3251 = vcmp.ge.f32.partialorder %v2436, 0.0
        %vm3252 = vcmp.ge.f32.partialorder %v2485, 0.0
        %vm3253 = vcmp.ge.f32.partialorder %v2534, 0.0
        %vm3254 = vcmp.ge.f32.partialorder %v2583, 0.0
        %vm3255 = vcmp.ge.f32.partialorder %v2632, 0.0
        %vm3256 = vcmp.ge.f32.partialorder %v2681, 0.0
        %vm3257 = vcmp.ge.f32.partialorder %v2730, 0.0
        %vm3258 = vcmp.ge.f32.partialorder %v2779, 0.0
        %vm3259 = vcmp.ge.f32.partialorder %v2828, 0.0
        %vm3260 = vcmp.ge.f32.partialorder %v2877, 0.0
        %vm3261 = vcmp.ge.f32.partialorder %v2926, 0.0
        %vm3262 = vcmp.ge.f32.partialorder %v2975, 0.0
        %vm3263 = vcmp.ge.f32.partialorder %v3024, 0.0
        %vm3264 = vcmp.ge.f32.partialorder %v3073, 0.0
        %vm3265 = vcmp.ge.f32.partialorder %v3122, 0.0
        %vm3266 = vcmp.ge.f32.partialorder %v3171, 0.0
        %vm3267 = vcmp.ge.f32.partialorder %v2439, 0.0
        %vm3268 = vcmp.ge.f32.partialorder %v2488, 0.0
        %vm3269 = vcmp.ge.f32.partialorder %v2537, 0.0
        %vm3270 = vcmp.ge.f32.partialorder %v2586, 0.0
        %vm3271 = vcmp.ge.f32.partialorder %v2635, 0.0
        %vm3272 = vcmp.ge.f32.partialorder %v2684, 0.0
        %vm3273 = vcmp.ge.f32.partialorder %v2733, 0.0
        %vm3274 = vcmp.ge.f32.partialorder %v2782, 0.0
        %vm3275 = vcmp.ge.f32.partialorder %v2831, 0.0
        %vm3276 = vcmp.ge.f32.partialorder %v2880, 0.0
        %vm3277 = vcmp.ge.f32.partialorder %v2929, 0.0
        %vm3278 = vcmp.ge.f32.partialorder %v2978, 0.0
        %vm3279 = vcmp.ge.f32.partialorder %v3027, 0.0
        %vm3280 = vcmp.ge.f32.partialorder %v3076, 0.0
        %vm3281 = vcmp.ge.f32.partialorder %v3125, 0.0
        %vm3282 = vcmp.ge.f32.partialorder %v3174, 0.0
        %vm3283 = vcmp.ge.f32.partialorder %v2441, 0.0
        %vm3284 = vcmp.ge.f32.partialorder %v2490, 0.0
        %vm3285 = vcmp.ge.f32.partialorder %v2539, 0.0
        %vm3286 = vcmp.ge.f32.partialorder %v2588, 0.0
        %vm3287 = vcmp.ge.f32.partialorder %v2637, 0.0
        %vm3288 = vcmp.ge.f32.partialorder %v2686, 0.0
        %vm3289 = vcmp.ge.f32.partialorder %v2735, 0.0
        %vm3290 = vcmp.ge.f32.partialorder %v2784, 0.0
        %vm3291 = vcmp.ge.f32.partialorder %v2833, 0.0
        %vm3292 = vcmp.ge.f32.partialorder %v2882, 0.0
        %vm3293 = vcmp.ge.f32.partialorder %v2931, 0.0
        %vm3294 = vcmp.ge.f32.partialorder %v2980, 0.0
        %vm3295 = vcmp.ge.f32.partialorder %v3029, 0.0
        %vm3296 = vcmp.ge.f32.partialorder %v3078, 0.0
        %vm3297 = vcmp.ge.f32.partialorder %v3127, 0.0
        %vm3298 = vcmp.ge.f32.partialorder %v3176, 0.0
        %vm3299 = vcmp.ge.f32.partialorder %v2444, 0.0
        %vm3300 = vcmp.ge.f32.partialorder %v2493, 0.0
        %vm3301 = vcmp.ge.f32.partialorder %v2542, 0.0
        %vm3302 = vcmp.ge.f32.partialorder %v2591, 0.0
        %vm3303 = vcmp.ge.f32.partialorder %v2640, 0.0
        %vm3304 = vcmp.ge.f32.partialorder %v2689, 0.0
        %vm3305 = vcmp.ge.f32.partialorder %v2738, 0.0
        %vm3306 = vcmp.ge.f32.partialorder %v2787, 0.0
        %vm3307 = vcmp.ge.f32.partialorder %v2836, 0.0
        %vm3308 = vcmp.ge.f32.partialorder %v2885, 0.0
        %vm3309 = vcmp.ge.f32.partialorder %v2934, 0.0
        %vm3310 = vcmp.ge.f32.partialorder %v2983, 0.0
        %vm3311 = vcmp.ge.f32.partialorder %v3032, 0.0
        %vm3312 = vcmp.ge.f32.partialorder %v3081, 0.0
        %vm3313 = vcmp.ge.f32.partialorder %v3130, 0.0
        %vm3314 = vcmp.ge.f32.partialorder %v3179, 0.0
        %vm3315 = vcmp.ge.f32.partialorder %v2446, 0.0
        %vm3316 = vcmp.ge.f32.partialorder %v2495, 0.0
        %vm3317 = vcmp.ge.f32.partialorder %v2544, 0.0
        %vm3318 = vcmp.ge.f32.partialorder %v2593, 0.0
        %vm3319 = vcmp.ge.f32.partialorder %v2642, 0.0
        %vm3320 = vcmp.ge.f32.partialorder %v2691, 0.0
        %vm3321 = vcmp.ge.f32.partialorder %v2740, 0.0
        %vm3322 = vcmp.ge.f32.partialorder %v2789, 0.0
        %vm3323 = vcmp.ge.f32.partialorder %v2838, 0.0
        %vm3324 = vcmp.ge.f32.partialorder %v2887, 0.0
        %vm3325 = vcmp.ge.f32.partialorder %v2936, 0.0
        %vm3326 = vcmp.ge.f32.partialorder %v2985, 0.0
        %vm3327 = vcmp.ge.f32.partialorder %v3034, 0.0
        %vm3328 = vcmp.ge.f32.partialorder %v3083, 0.0
        %vm3329 = vcmp.ge.f32.partialorder %v3132, 0.0
        %vm3330 = vcmp.ge.f32.partialorder %v3181, 0.0
        %vm3331 = vcmp.ge.f32.partialorder %v2449, 0.0
        %vm3332 = vcmp.ge.f32.partialorder %v2498, 0.0
        %vm3333 = vcmp.ge.f32.partialorder %v2547, 0.0
        %vm3334 = vcmp.ge.f32.partialorder %v2596, 0.0
        %vm3335 = vcmp.ge.f32.partialorder %v2645, 0.0
        %vm3336 = vcmp.ge.f32.partialorder %v2694, 0.0
        %vm3337 = vcmp.ge.f32.partialorder %v2743, 0.0
        %vm3338 = vcmp.ge.f32.partialorder %v2792, 0.0
        %vm3339 = vcmp.ge.f32.partialorder %v2841, 0.0
        %vm3340 = vcmp.ge.f32.partialorder %v2890, 0.0
        %vm3341 = vcmp.ge.f32.partialorder %v2939, 0.0
        %vm3342 = vcmp.ge.f32.partialorder %v2988, 0.0
        %vm3343 = vcmp.ge.f32.partialorder %v3037, 0.0
        %vm3344 = vcmp.ge.f32.partialorder %v3086, 0.0
        %vm3345 = vcmp.ge.f32.partialorder %v3135, 0.0
        %vm3346 = vcmp.ge.f32.partialorder %v3184, 0.0
        %vm3347 = vcmp.ge.f32.partialorder %v2451, 0.0
        %vm3348 = vcmp.ge.f32.partialorder %v2500, 0.0
        %vm3349 = vcmp.ge.f32.partialorder %v2549, 0.0
        %vm3350 = vcmp.ge.f32.partialorder %v2598, 0.0
        %vm3351 = vcmp.ge.f32.partialorder %v2647, 0.0
        %vm3352 = vcmp.ge.f32.partialorder %v2696, 0.0
        %vm3353 = vcmp.ge.f32.partialorder %v2745, 0.0
        %vm3354 = vcmp.ge.f32.partialorder %v2794, 0.0
        %vm3355 = vcmp.ge.f32.partialorder %v2843, 0.0
        %vm3356 = vcmp.ge.f32.partialorder %v2892, 0.0
        %vm3357 = vcmp.ge.f32.partialorder %v2941, 0.0
        %vm3358 = vcmp.ge.f32.partialorder %v2990, 0.0
        %vm3359 = vcmp.ge.f32.partialorder %v3039, 0.0
        %vm3360 = vcmp.ge.f32.partialorder %v3088, 0.0
        %vm3361 = vcmp.ge.f32.partialorder %v3137, 0.0
        %vm3362 = vcmp.ge.f32.partialorder %v3186, 0.0
        %vm3363 = vcmp.ge.f32.partialorder %v2454, 0.0
        %vm3364 = vcmp.ge.f32.partialorder %v2503, 0.0
        %vm3365 = vcmp.ge.f32.partialorder %v2552, 0.0
        %vm3366 = vcmp.ge.f32.partialorder %v2601, 0.0
        %vm3367 = vcmp.ge.f32.partialorder %v2650, 0.0
        %vm3368 = vcmp.ge.f32.partialorder %v2699, 0.0
        %vm3369 = vcmp.ge.f32.partialorder %v2748, 0.0
        %vm3370 = vcmp.ge.f32.partialorder %v2797, 0.0
        %vm3371 = vcmp.ge.f32.partialorder %v2846, 0.0
        %vm3372 = vcmp.ge.f32.partialorder %v2895, 0.0
        %vm3373 = vcmp.ge.f32.partialorder %v2944, 0.0
        %vm3374 = vcmp.ge.f32.partialorder %v2993, 0.0
        %vm3375 = vcmp.ge.f32.partialorder %v3042, 0.0
        %vm3376 = vcmp.ge.f32.partialorder %v3091, 0.0
        %vm3377 = vcmp.ge.f32.partialorder %v3140, 0.0
        %vm3378 = vcmp.ge.f32.partialorder %v3189, 0.0
        %vm3379 = vcmp.ge.f32.partialorder %v2456, 0.0
        %vm3380 = vcmp.ge.f32.partialorder %v2505, 0.0
        %vm3381 = vcmp.ge.f32.partialorder %v2554, 0.0
        %vm3382 = vcmp.ge.f32.partialorder %v2603, 0.0
        %vm3383 = vcmp.ge.f32.partialorder %v2652, 0.0
        %vm3384 = vcmp.ge.f32.partialorder %v2701, 0.0
        %vm3385 = vcmp.ge.f32.partialorder %v2750, 0.0
        %vm3386 = vcmp.ge.f32.partialorder %v2799, 0.0
        %vm3387 = vcmp.ge.f32.partialorder %v2848, 0.0
        %vm3388 = vcmp.ge.f32.partialorder %v2897, 0.0
        %vm3389 = vcmp.ge.f32.partialorder %v2946, 0.0
        %vm3390 = vcmp.ge.f32.partialorder %v2995, 0.0
        %vm3391 = vcmp.ge.f32.partialorder %v3044, 0.0
        %vm3392 = vcmp.ge.f32.partialorder %v3093, 0.0
        %vm3393 = vcmp.ge.f32.partialorder %v3142, 0.0
        %vm3394 = vcmp.ge.f32.partialorder %v3191, 0.0
        %vm3395 = vcmp.ge.f32.partialorder %v2459, 0.0
        %vm3396 = vcmp.ge.f32.partialorder %v2508, 0.0
        %vm3397 = vcmp.ge.f32.partialorder %v2557, 0.0
        %vm3398 = vcmp.ge.f32.partialorder %v2606, 0.0
        %vm3399 = vcmp.ge.f32.partialorder %v2655, 0.0
        %vm3400 = vcmp.ge.f32.partialorder %v2704, 0.0
        %vm3401 = vcmp.ge.f32.partialorder %v2753, 0.0
        %vm3402 = vcmp.ge.f32.partialorder %v2802, 0.0
        %vm3403 = vcmp.ge.f32.partialorder %v2851, 0.0
        %vm3404 = vcmp.ge.f32.partialorder %v2900, 0.0
        %vm3405 = vcmp.ge.f32.partialorder %v2949, 0.0
        %vm3406 = vcmp.ge.f32.partialorder %v2998, 0.0
        %vm3407 = vcmp.ge.f32.partialorder %v3047, 0.0
        %vm3408 = vcmp.ge.f32.partialorder %v3096, 0.0
        %vm3409 = vcmp.ge.f32.partialorder %v3145, 0.0
        %vm3410 = vcmp.ge.f32.partialorder %v3194, 0.0
        %vm3411 = vcmp.ge.f32.partialorder %v2461, 0.0
        %vm3412 = vcmp.ge.f32.partialorder %v2510, 0.0
        %vm3413 = vcmp.ge.f32.partialorder %v2559, 0.0
        %vm3414 = vcmp.ge.f32.partialorder %v2608, 0.0
        %vm3415 = vcmp.ge.f32.partialorder %v2657, 0.0
        %vm3416 = vcmp.ge.f32.partialorder %v2706, 0.0
        %vm3417 = vcmp.ge.f32.partialorder %v2755, 0.0
        %vm3418 = vcmp.ge.f32.partialorder %v2804, 0.0
        %vm3419 = vcmp.ge.f32.partialorder %v2853, 0.0
        %vm3420 = vcmp.ge.f32.partialorder %v2902, 0.0
        %vm3421 = vcmp.ge.f32.partialorder %v2951, 0.0
        %vm3422 = vcmp.ge.f32.partialorder %v3000, 0.0
        %vm3423 = vcmp.ge.f32.partialorder %v3049, 0.0
        %vm3424 = vcmp.ge.f32.partialorder %v3098, 0.0
        %vm3425 = vcmp.ge.f32.partialorder %v3147, 0.0
        %vm3426 = vcmp.ge.f32.partialorder %v3196, 0.0
        %vm3427 = vcmp.ge.f32.partialorder %v2464, 0.0
        %vm3428 = vcmp.ge.f32.partialorder %v2513, 0.0
        %vm3429 = vcmp.ge.f32.partialorder %v2562, 0.0
        %vm3430 = vcmp.ge.f32.partialorder %v2611, 0.0
        %vm3431 = vcmp.ge.f32.partialorder %v2660, 0.0
        %vm3432 = vcmp.ge.f32.partialorder %v2709, 0.0
        %vm3433 = vcmp.ge.f32.partialorder %v2758, 0.0
        %vm3434 = vcmp.ge.f32.partialorder %v2807, 0.0
        %vm3435 = vcmp.ge.f32.partialorder %v2856, 0.0
        %vm3436 = vcmp.ge.f32.partialorder %v2905, 0.0
        %vm3437 = vcmp.ge.f32.partialorder %v2954, 0.0
        %vm3438 = vcmp.ge.f32.partialorder %v3003, 0.0
        %vm3439 = vcmp.ge.f32.partialorder %v3052, 0.0
        %vm3440 = vcmp.ge.f32.partialorder %v3101, 0.0
        %vm3441 = vcmp.ge.f32.partialorder %v3150, 0.0
        %vm3442 = vcmp.ge.f32.partialorder %v3199, 0.0
        %vm3443 = vcmp.ge.f32.partialorder %v2466, 0.0
        %vm3444 = vcmp.ge.f32.partialorder %v2515, 0.0
        %vm3445 = vcmp.ge.f32.partialorder %v2564, 0.0
        %vm3446 = vcmp.ge.f32.partialorder %v2613, 0.0
        %vm3447 = vcmp.ge.f32.partialorder %v2662, 0.0
        %vm3448 = vcmp.ge.f32.partialorder %v2711, 0.0
        %vm3449 = vcmp.ge.f32.partialorder %v2760, 0.0
        %vm3450 = vcmp.ge.f32.partialorder %v2809, 0.0
        %vm3451 = vcmp.ge.f32.partialorder %v2858, 0.0
        %vm3452 = vcmp.ge.f32.partialorder %v2907, 0.0
        %vm3453 = vcmp.ge.f32.partialorder %v2956, 0.0
        %vm3454 = vcmp.ge.f32.partialorder %v3005, 0.0
        %vm3455 = vcmp.ge.f32.partialorder %v3054, 0.0
        %vm3456 = vcmp.ge.f32.partialorder %v3103, 0.0
        %vm3457 = vcmp.ge.f32.partialorder %v3152, 0.0
        %vm3458 = vcmp.ge.f32.partialorder %v3201, 0.0
        %v3459 = vmul.f32 %v2429, 0.2
        %v3460 = vmul.f32 %v2478, 0.2
        %v3461 = vmul.f32 %v2527, 0.2
        %v3462 = vmul.f32 %v2576, 0.2
        %v3463 = vmul.f32 %v2625, 0.2
        %v3464 = vmul.f32 %v2674, 0.2
        %v3465 = vmul.f32 %v2723, 0.2
        %v3466 = vmul.f32 %v2772, 0.2
        %v3467 = vmul.f32 %v2821, 0.2
        %v3468 = vmul.f32 %v2870, 0.2
        %v3469 = vmul.f32 %v2919, 0.2
        %v3470 = vmul.f32 %v2968, 0.2
        %v3471 = vmul.f32 %v3017, 0.2
        %v3472 = vmul.f32 %v3066, 0.2
        %v3473 = vmul.f32 %v3115, 0.2
        %v3474 = vmul.f32 %v3164, 0.2
        %v3475 = vmul.f32 %v2431, 0.2
        %v3476 = vmul.f32 %v2480, 0.2
        %v3477 = vmul.f32 %v2529, 0.2
        %v3478 = vmul.f32 %v2578, 0.2
        %v3479 = vmul.f32 %v2627, 0.2
        %v3480 = vmul.f32 %v2676, 0.2
        %v3481 = vmul.f32 %v2725, 0.2
        %v3482 = vmul.f32 %v2774, 0.2
        %v3483 = vmul.f32 %v2823, 0.2
        %v3484 = vmul.f32 %v2872, 0.2
        %v3485 = vmul.f32 %v2921, 0.2
        %v3486 = vmul.f32 %v2970, 0.2
        %v3487 = vmul.f32 %v3019, 0.2
        %v3488 = vmul.f32 %v3068, 0.2
        %v3489 = vmul.f32 %v3117, 0.2
        %v3490 = vmul.f32 %v3166, 0.2
        %v3491 = vmul.f32 %v2434, 0.2
        %v3492 = vmul.f32 %v2483, 0.2
        %v3493 = vmul.f32 %v2532, 0.2
        %v3494 = vmul.f32 %v2581, 0.2
        %v3495 = vmul.f32 %v2630, 0.2
        %v3496 = vmul.f32 %v2679, 0.2
        %v3497 = vmul.f32 %v2728, 0.2
        %v3498 = vmul.f32 %v2777, 0.2
        %v3499 = vmul.f32 %v2826, 0.2
        %v3500 = vmul.f32 %v2875, 0.2
        %v3501 = vmul.f32 %v2924, 0.2
        %v3502 = vmul.f32 %v2973, 0.2
        %v3503 = vmul.f32 %v3022, 0.2
        %v3504 = vmul.f32 %v3071, 0.2
        %v3505 = vmul.f32 %v3120, 0.2
        %v3506 = vmul.f32 %v3169, 0.2
        %v3507 = vmul.f32 %v2436, 0.2
        %v3508 = vmul.f32 %v2485, 0.2
        %v3509 = vmul.f32 %v2534, 0.2
        %v3510 = vmul.f32 %v2583, 0.2
        %v3511 = vmul.f32 %v2632, 0.2
        %v3512 = vmul.f32 %v2681, 0.2
        %v3513 = vmul.f32 %v2730, 0.2
        %v3514 = vmul.f32 %v2779, 0.2
        %v3515 = vmul.f32 %v2828, 0.2
        %v3516 = vmul.f32 %v2877, 0.2
        %v3517 = vmul.f32 %v2926, 0.2
        %v3518 = vmul.f32 %v2975, 0.2
        %v3519 = vmul.f32 %v3024, 0.2
        %v3520 = vmul.f32 %v3073, 0.2
        %v3521 = vmul.f32 %v3122, 0.2
        %v3522 = vmul.f32 %v3171, 0.2
        %v3523 = vmul.f32 %v2439, 0.2
        %v3524 = vmul.f32 %v2488, 0.2
        %v3525 = vmul.f32 %v2537, 0.2
        %v3526 = vmul.f32 %v2586, 0.2
        %v3527 = vmul.f32 %v2635, 0.2
        %v3528 = vmul.f32 %v2684, 0.2
        %v3529 = vmul.f32 %v2733, 0.2
        %v3530 = vmul.f32 %v2782, 0.2
        %v3531 = vmul.f32 %v2831, 0.2
        %v3532 = vmul.f32 %v2880, 0.2
        %v3533 = vmul.f32 %v2929, 0.2
        %v3534 = vmul.f32 %v2978, 0.2
        %v3535 = vmul.f32 %v3027, 0.2
        %v3536 = vmul.f32 %v3076, 0.2
        %v3537 = vmul.f32 %v3125, 0.2
        %v3538 = vmul.f32 %v3174, 0.2
        %v3539 = vmul.f32 %v2441, 0.2
        %v3540 = vmul.f32 %v2490, 0.2
        %v3541 = vmul.f32 %v2539, 0.2
        %v3542 = vmul.f32 %v2588, 0.2
        %v3543 = vmul.f32 %v2637, 0.2
        %v3544 = vmul.f32 %v2686, 0.2
        %v3545 = vmul.f32 %v2735, 0.2
        %v3546 = vmul.f32 %v2784, 0.2
        %v3547 = vmul.f32 %v2833, 0.2
        %v3548 = vmul.f32 %v2882, 0.2
        %v3549 = vmul.f32 %v2931, 0.2
        %v3550 = vmul.f32 %v2980, 0.2
        %v3551 = vmul.f32 %v3029, 0.2
        %v3552 = vmul.f32 %v3078, 0.2
        %v3553 = vmul.f32 %v3127, 0.2
        %v3554 = vmul.f32 %v3176, 0.2
        %v3555 = vmul.f32 %v2444, 0.2
        %v3556 = vmul.f32 %v2493, 0.2
        %v3557 = vmul.f32 %v2542, 0.2
        %v3558 = vmul.f32 %v2591, 0.2
        %v3559 = vmul.f32 %v2640, 0.2
        %v3560 = vmul.f32 %v2689, 0.2
        %v3561 = vmul.f32 %v2738, 0.2
        %v3562 = vmul.f32 %v2787, 0.2
        %v3563 = vmul.f32 %v2836, 0.2
        %v3564 = vmul.f32 %v2885, 0.2
        %v3565 = vmul.f32 %v2934, 0.2
        %v3566 = vmul.f32 %v2983, 0.2
        %v3567 = vmul.f32 %v3032, 0.2
        %v3568 = vmul.f32 %v3081, 0.2
        %v3569 = vmul.f32 %v3130, 0.2
        %v3570 = vmul.f32 %v3179, 0.2
        %v3571 = vmul.f32 %v2446, 0.2
        %v3572 = vmul.f32 %v2495, 0.2
        %v3573 = vmul.f32 %v2544, 0.2
        %v3574 = vmul.f32 %v2593, 0.2
        %v3575 = vmul.f32 %v2642, 0.2
        %v3576 = vmul.f32 %v2691, 0.2
        %v3577 = vmul.f32 %v2740, 0.2
        %v3578 = vmul.f32 %v2789, 0.2
        %v3579 = vmul.f32 %v2838, 0.2
        %v3580 = vmul.f32 %v2887, 0.2
        %v3581 = vmul.f32 %v2936, 0.2
        %v3582 = vmul.f32 %v2985, 0.2
        %v3583 = vmul.f32 %v3034, 0.2
        %v3584 = vmul.f32 %v3083, 0.2
        %v3585 = vmul.f32 %v3132, 0.2
        %v3586 = vmul.f32 %v3181, 0.2
        %v3587 = vmul.f32 %v2449, 0.2
        %v3588 = vmul.f32 %v2498, 0.2
        %v3589 = vmul.f32 %v2547, 0.2
        %v3590 = vmul.f32 %v2596, 0.2
        %v3591 = vmul.f32 %v2645, 0.2
        %v3592 = vmul.f32 %v2694, 0.2
        %v3593 = vmul.f32 %v2743, 0.2
        %v3594 = vmul.f32 %v2792, 0.2
        %v3595 = vmul.f32 %v2841, 0.2
        %v3596 = vmul.f32 %v2890, 0.2
        %v3597 = vmul.f32 %v2939, 0.2
        %v3598 = vmul.f32 %v2988, 0.2
        %v3599 = vmul.f32 %v3037, 0.2
        %v3600 = vmul.f32 %v3086, 0.2
        %v3601 = vmul.f32 %v3135, 0.2
        %v3602 = vmul.f32 %v3184, 0.2
        %v3603 = vmul.f32 %v2451, 0.2
        %v3604 = vmul.f32 %v2500, 0.2
        %v3605 = vmul.f32 %v2549, 0.2
        %v3606 = vmul.f32 %v2598, 0.2
        %v3607 = vmul.f32 %v2647, 0.2
        %v3608 = vmul.f32 %v2696, 0.2
        %v3609 = vmul.f32 %v2745, 0.2
        %v3610 = vmul.f32 %v2794, 0.2
        %v3611 = vmul.f32 %v2843, 0.2
        %v3612 = vmul.f32 %v2892, 0.2
        %v3613 = vmul.f32 %v2941, 0.2
        %v3614 = vmul.f32 %v2990, 0.2
        %v3615 = vmul.f32 %v3039, 0.2
        %v3616 = vmul.f32 %v3088, 0.2
        %v3617 = vmul.f32 %v3137, 0.2
        %v3618 = vmul.f32 %v3186, 0.2
        %v3619 = vmul.f32 %v2454, 0.2
        %v3620 = vmul.f32 %v2503, 0.2
        %v3621 = vmul.f32 %v2552, 0.2
        %v3622 = vmul.f32 %v2601, 0.2
        %v3623 = vmul.f32 %v2650, 0.2
        %v3624 = vmul.f32 %v2699, 0.2
        %v3625 = vmul.f32 %v2748, 0.2
        %v3626 = vmul.f32 %v2797, 0.2
        %v3627 = vmul.f32 %v2846, 0.2
        %v3628 = vmul.f32 %v2895, 0.2
        %v3629 = vmul.f32 %v2944, 0.2
        %v3630 = vmul.f32 %v2993, 0.2
        %v3631 = vmul.f32 %v3042, 0.2
        %v3632 = vmul.f32 %v3091, 0.2
        %v3633 = vmul.f32 %v3140, 0.2
        %v3634 = vmul.f32 %v3189, 0.2
        %v3635 = vmul.f32 %v2456, 0.2
        %v3636 = vmul.f32 %v2505, 0.2
        %v3637 = vmul.f32 %v2554, 0.2
        %v3638 = vmul.f32 %v2603, 0.2
        %v3639 = vmul.f32 %v2652, 0.2
        %v3640 = vmul.f32 %v2701, 0.2
        %v3641 = vmul.f32 %v2750, 0.2
        %v3642 = vmul.f32 %v2799, 0.2
        %v3643 = vmul.f32 %v2848, 0.2
        %v3644 = vmul.f32 %v2897, 0.2
        %v3645 = vmul.f32 %v2946, 0.2
        %v3646 = vmul.f32 %v2995, 0.2
        %v3647 = vmul.f32 %v3044, 0.2
        %v3648 = vmul.f32 %v3093, 0.2
        %v3649 = vmul.f32 %v3142, 0.2
        %v3650 = vmul.f32 %v3191, 0.2
        %v3651 = vmul.f32 %v2459, 0.2
        %v3652 = vmul.f32 %v2508, 0.2
        %v3653 = vmul.f32 %v2557, 0.2
        %v3654 = vmul.f32 %v2606, 0.2
        %v3655 = vmul.f32 %v2655, 0.2
        %v3656 = vmul.f32 %v2704, 0.2
        %v3657 = vmul.f32 %v2753, 0.2
        %v3658 = vmul.f32 %v2802, 0.2
        %v3659 = vmul.f32 %v2851, 0.2
        %v3660 = vmul.f32 %v2900, 0.2
        %v3661 = vmul.f32 %v2949, 0.2
        %v3662 = vmul.f32 %v2998, 0.2
        %v3663 = vmul.f32 %v3047, 0.2
        %v3664 = vmul.f32 %v3096, 0.2
        %v3665 = vmul.f32 %v3145, 0.2
        %v3666 = vmul.f32 %v3194, 0.2
        %v3667 = vmul.f32 %v2461, 0.2
        %v3668 = vmul.f32 %v2510, 0.2
        %v3669 = vmul.f32 %v2559, 0.2
        %v3670 = vmul.f32 %v2608, 0.2
        %v3671 = vmul.f32 %v2657, 0.2
        %v3672 = vmul.f32 %v2706, 0.2
        %v3673 = vmul.f32 %v2755, 0.2
        %v3674 = vmul.f32 %v2804, 0.2
        %v3675 = vmul.f32 %v2853, 0.2
        %v3676 = vmul.f32 %v2902, 0.2
        %v3677 = vmul.f32 %v2951, 0.2
        %v3678 = vmul.f32 %v3000, 0.2
        %v3679 = vmul.f32 %v3049, 0.2
        %v3680 = vmul.f32 %v3098, 0.2
        %v3681 = vmul.f32 %v3147, 0.2
        %v3682 = vmul.f32 %v3196, 0.2
        %v3683 = vmul.f32 %v2464, 0.2
        %v3684 = vmul.f32 %v2513, 0.2
        %v3685 = vmul.f32 %v2562, 0.2
        %v3686 = vmul.f32 %v2611, 0.2
        %v3687 = vmul.f32 %v2660, 0.2
        %v3688 = vmul.f32 %v2709, 0.2
        %v3689 = vmul.f32 %v2758, 0.2
        %v3690 = vmul.f32 %v2807, 0.2
        %v3691 = vmul.f32 %v2856, 0.2
        %v3692 = vmul.f32 %v2905, 0.2
        %v3693 = vmul.f32 %v2954, 0.2
        %v3694 = vmul.f32 %v3003, 0.2
        %v3695 = vmul.f32 %v3052, 0.2
        %v3696 = vmul.f32 %v3101, 0.2
        %v3697 = vmul.f32 %v3150, 0.2
        %v3698 = vmul.f32 %v3199, 0.2
        %v3699 = vmul.f32 %v2466, 0.2
        %v3700 = vmul.f32 %v2515, 0.2
        %v3701 = vmul.f32 %v2564, 0.2
        %v3702 = vmul.f32 %v2613, 0.2
        %v3703 = vmul.f32 %v2662, 0.2
        %v3704 = vmul.f32 %v2711, 0.2
        %v3705 = vmul.f32 %v2760, 0.2
        %v3706 = vmul.f32 %v2809, 0.2
        %v3707 = vmul.f32 %v2858, 0.2
        %v3708 = vmul.f32 %v2907, 0.2
        %v3709 = vmul.f32 %v2956, 0.2
        %v3710 = vmul.f32 %v3005, 0.2
        %v3711 = vmul.f32 %v3054, 0.2
        %v3712 = vmul.f32 %v3103, 0.2
        %v3713 = vmul.f32 %v3152, 0.2
        %v3714 = vmul.f32 %v3201, 0.2
        %v3715 = vsel %vm3203, %v2429, %v3459
        %v3716 = vsel %vm3204, %v2478, %v3460
        %v3717 = vsel %vm3205, %v2527, %v3461
        %v3718 = vsel %vm3206, %v2576, %v3462
        %v3719 = vsel %vm3207, %v2625, %v3463
        %v3720 = vsel %vm3208, %v2674, %v3464
        %v3721 = vsel %vm3209, %v2723, %v3465
        %v3722 = vsel %vm3210, %v2772, %v3466
        %v3723 = vsel %vm3211, %v2821, %v3467
        %v3724 = vsel %vm3212, %v2870, %v3468
        %v3725 = vsel %vm3213, %v2919, %v3469
        %v3726 = vsel %vm3214, %v2968, %v3470
        %v3727 = vsel %vm3215, %v3017, %v3471
        %v3728 = vsel %vm3216, %v3066, %v3472
        %v3729 = vsel %vm3217, %v3115, %v3473
        %v3730 = vsel %vm3218, %v3164, %v3474
        %v3731 = vsel %vm3219, %v2431, %v3475
        %v3732 = vsel %vm3220, %v2480, %v3476
        %v3733 = vsel %vm3221, %v2529, %v3477
        %v3734 = vsel %vm3222, %v2578, %v3478
        %v3735 = vsel %vm3223, %v2627, %v3479
        %v3736 = vsel %vm3224, %v2676, %v3480
        %v3737 = vsel %vm3225, %v2725, %v3481
        %v3738 = vsel %vm3226, %v2774, %v3482
        %v3739 = vsel %vm3227, %v2823, %v3483
        %v3740 = vsel %vm3228, %v2872, %v3484
        %v3741 = vsel %vm3229, %v2921, %v3485
        %v3742 = vsel %vm3230, %v2970, %v3486
        %v3743 = vsel %vm3231, %v3019, %v3487
        %v3744 = vsel %vm3232, %v3068, %v3488
        %v3745 = vsel %vm3233, %v3117, %v3489
        %v3746 = vsel %vm3234, %v3166, %v3490
        %v3747 = vsel %vm3235, %v2434, %v3491
        %v3748 = vsel %vm3236, %v2483, %v3492
        %v3749 = vsel %vm3237, %v2532, %v3493
        %v3750 = vsel %vm3238, %v2581, %v3494
        %v3751 = vsel %vm3239, %v2630, %v3495
        %v3752 = vsel %vm3240, %v2679, %v3496
        %v3753 = vsel %vm3241, %v2728, %v3497
        %v3754 = vsel %vm3242, %v2777, %v3498
        %v3755 = vsel %vm3243, %v2826, %v3499
        %v3756 = vsel %vm3244, %v2875, %v3500
        %v3757 = vsel %vm3245, %v2924, %v3501
        %v3758 = vsel %vm3246, %v2973, %v3502
        %v3759 = vsel %vm3247, %v3022, %v3503
        %v3760 = vsel %vm3248, %v3071, %v3504
        %v3761 = vsel %vm3249, %v3120, %v3505
        %v3762 = vsel %vm3250, %v3169, %v3506
        %v3763 = vsel %vm3251, %v2436, %v3507
        %v3764 = vsel %vm3252, %v2485, %v3508
        %v3765 = vsel %vm3253, %v2534, %v3509
        %v3766 = vsel %vm3254, %v2583, %v3510
        %v3767 = vsel %vm3255, %v2632, %v3511
        %v3768 = vsel %vm3256, %v2681, %v3512
        %v3769 = vsel %vm3257, %v2730, %v3513
        %v3770 = vsel %vm3258, %v2779, %v3514
        %v3771 = vsel %vm3259, %v2828, %v3515
        %v3772 = vsel %vm3260, %v2877, %v3516
        %v3773 = vsel %vm3261, %v2926, %v3517
        %v3774 = vsel %vm3262, %v2975, %v3518
        %v3775 = vsel %vm3263, %v3024, %v3519
        %v3776 = vsel %vm3264, %v3073, %v3520
        %v3777 = vsel %vm3265, %v3122, %v3521
        %v3778 = vsel %vm3266, %v3171, %v3522
        %v3779 = vsel %vm3267, %v2439, %v3523
        %v3780 = vsel %vm3268, %v2488, %v3524
        %v3781 = vsel %vm3269, %v2537, %v3525
        %v3782 = vsel %vm3270, %v2586, %v3526
        %v3783 = vsel %vm3271, %v2635, %v3527
        %v3784 = vsel %vm3272, %v2684, %v3528
        %v3785 = vsel %vm3273, %v2733, %v3529
        %v3786 = vsel %vm3274, %v2782, %v3530
        %v3787 = vsel %vm3275, %v2831, %v3531
        %v3788 = vsel %vm3276, %v2880, %v3532
        %v3789 = vsel %vm3277, %v2929, %v3533
        %v3790 = vsel %vm3278, %v2978, %v3534
        %v3791 = vsel %vm3279, %v3027, %v3535
        %v3792 = vsel %vm3280, %v3076, %v3536
        %v3793 = vsel %vm3281, %v3125, %v3537
        %v3794 = vsel %vm3282, %v3174, %v3538
        %v3795 = vsel %vm3283, %v2441, %v3539
        %v3796 = vsel %vm3284, %v2490, %v3540
        %v3797 = vsel %vm3285, %v2539, %v3541
        %v3798 = vsel %vm3286, %v2588, %v3542
        %v3799 = vsel %vm3287, %v2637, %v3543
        %v3800 = vsel %vm3288, %v2686, %v3544
        %v3801 = vsel %vm3289, %v2735, %v3545
        %v3802 = vsel %vm3290, %v2784, %v3546
        %v3803 = vsel %vm3291, %v2833, %v3547
        %v3804 = vsel %vm3292, %v2882, %v3548
        %v3805 = vsel %vm3293, %v2931, %v3549
        %v3806 = vsel %vm3294, %v2980, %v3550
        %v3807 = vsel %vm3295, %v3029, %v3551
        %v3808 = vsel %vm3296, %v3078, %v3552
        %v3809 = vsel %vm3297, %v3127, %v3553
        %v3810 = vsel %vm3298, %v3176, %v3554
        %v3811 = vsel %vm3299, %v2444, %v3555
        %v3812 = vsel %vm3300, %v2493, %v3556
        %v3813 = vsel %vm3301, %v2542, %v3557
        %v3814 = vsel %vm3302, %v2591, %v3558
        %v3815 = vsel %vm3303, %v2640, %v3559
        %v3816 = vsel %vm3304, %v2689, %v3560
        %v3817 = vsel %vm3305, %v2738, %v3561
        %v3818 = vsel %vm3306, %v2787, %v3562
        %v3819 = vsel %vm3307, %v2836, %v3563
        %v3820 = vsel %vm3308, %v2885, %v3564
        %v3821 = vsel %vm3309, %v2934, %v3565
        %v3822 = vsel %vm3310, %v2983, %v3566
        %v3823 = vsel %vm3311, %v3032, %v3567
        %v3824 = vsel %vm3312, %v3081, %v3568
        %v3825 = vsel %vm3313, %v3130, %v3569
        %v3826 = vsel %vm3314, %v3179, %v3570
        %v3827 = vsel %vm3315, %v2446, %v3571
        %v3828 = vsel %vm3316, %v2495, %v3572
        %v3829 = vsel %vm3317, %v2544, %v3573
        %v3830 = vsel %vm3318, %v2593, %v3574
        %v3831 = vsel %vm3319, %v2642, %v3575
        %v3832 = vsel %vm3320, %v2691, %v3576
        %v3833 = vsel %vm3321, %v2740, %v3577
        %v3834 = vsel %vm3322, %v2789, %v3578
        %v3835 = vsel %vm3323, %v2838, %v3579
        %v3836 = vsel %vm3324, %v2887, %v3580
        %v3837 = vsel %vm3325, %v2936, %v3581
        %v3838 = vsel %vm3326, %v2985, %v3582
        %v3839 = vsel %vm3327, %v3034, %v3583
        %v3840 = vsel %vm3328, %v3083, %v3584
        %v3841 = vsel %vm3329, %v3132, %v3585
        %v3842 = vsel %vm3330, %v3181, %v3586
        %v3843 = vsel %vm3331, %v2449, %v3587
        %v3844 = vsel %vm3332, %v2498, %v3588
        %v3845 = vsel %vm3333, %v2547, %v3589
        %v3846 = vsel %vm3334, %v2596, %v3590
        %v3847 = vsel %vm3335, %v2645, %v3591
        %v3848 = vsel %vm3336, %v2694, %v3592
        %v3849 = vsel %vm3337, %v2743, %v3593
        %v3850 = vsel %vm3338, %v2792, %v3594
        %v3851 = vsel %vm3339, %v2841, %v3595
        %v3852 = vsel %vm3340, %v2890, %v3596
        %v3853 = vsel %vm3341, %v2939, %v3597
        %v3854 = vsel %vm3342, %v2988, %v3598
        %v3855 = vsel %vm3343, %v3037, %v3599
        %v3856 = vsel %vm3344, %v3086, %v3600
        %v3857 = vsel %vm3345, %v3135, %v3601
        %v3858 = vsel %vm3346, %v3184, %v3602
        %v3859 = vsel %vm3347, %v2451, %v3603
        %v3860 = vsel %vm3348, %v2500, %v3604
        %v3861 = vsel %vm3349, %v2549, %v3605
        %v3862 = vsel %vm3350, %v2598, %v3606
        %v3863 = vsel %vm3351, %v2647, %v3607
        %v3864 = vsel %vm3352, %v2696, %v3608
        %v3865 = vsel %vm3353, %v2745, %v3609
        %v3866 = vsel %vm3354, %v2794, %v3610
        %v3867 = vsel %vm3355, %v2843, %v3611
        %v3868 = vsel %vm3356, %v2892, %v3612
        %v3869 = vsel %vm3357, %v2941, %v3613
        %v3870 = vsel %vm3358, %v2990, %v3614
        %v3871 = vsel %vm3359, %v3039, %v3615
        %v3872 = vsel %vm3360, %v3088, %v3616
        %v3873 = vsel %vm3361, %v3137, %v3617
        %v3874 = vsel %vm3362, %v3186, %v3618
        %v3875 = vsel %vm3363, %v2454, %v3619
        %v3876 = vsel %vm3364, %v2503, %v3620
        %v3877 = vsel %vm3365, %v2552, %v3621
        %v3878 = vsel %vm3366, %v2601, %v3622
        %v3879 = vsel %vm3367, %v2650, %v3623
        %v3880 = vsel %vm3368, %v2699, %v3624
        %v3881 = vsel %vm3369, %v2748, %v3625
        %v3882 = vsel %vm3370, %v2797, %v3626
        %v3883 = vsel %vm3371, %v2846, %v3627
        %v3884 = vsel %vm3372, %v2895, %v3628
        %v3885 = vsel %vm3373, %v2944, %v3629
        %v3886 = vsel %vm3374, %v2993, %v3630
        %v3887 = vsel %vm3375, %v3042, %v3631
        %v3888 = vsel %vm3376, %v3091, %v3632
        %v3889 = vsel %vm3377, %v3140, %v3633
        %v3890 = vsel %vm3378, %v3189, %v3634
        %v3891 = vsel %vm3379, %v2456, %v3635
        %v3892 = vsel %vm3380, %v2505, %v3636
        %v3893 = vsel %vm3381, %v2554, %v3637
        %v3894 = vsel %vm3382, %v2603, %v3638
        %v3895 = vsel %vm3383, %v2652, %v3639
        %v3896 = vsel %vm3384, %v2701, %v3640
        %v3897 = vsel %vm3385, %v2750, %v3641
        %v3898 = vsel %vm3386, %v2799, %v3642
        %v3899 = vsel %vm3387, %v2848, %v3643
        %v3900 = vsel %vm3388, %v2897, %v3644
        %v3901 = vsel %vm3389, %v2946, %v3645
        %v3902 = vsel %vm3390, %v2995, %v3646
        %v3903 = vsel %vm3391, %v3044, %v3647
        %v3904 = vsel %vm3392, %v3093, %v3648
        %v3905 = vsel %vm3393, %v3142, %v3649
        %v3906 = vsel %vm3394, %v3191, %v3650
        %v3907 = vsel %vm3395, %v2459, %v3651
        %v3908 = vsel %vm3396, %v2508, %v3652
        %v3909 = vsel %vm3397, %v2557, %v3653
        %v3910 = vsel %vm3398, %v2606, %v3654
        %v3911 = vsel %vm3399, %v2655, %v3655
        %v3912 = vsel %vm3400, %v2704, %v3656
        %v3913 = vsel %vm3401, %v2753, %v3657
        %v3914 = vsel %vm3402, %v2802, %v3658
        %v3915 = vsel %vm3403, %v2851, %v3659
        %v3916 = vsel %vm3404, %v2900, %v3660
        %v3917 = vsel %vm3405, %v2949, %v3661
        %v3918 = vsel %vm3406, %v2998, %v3662
        %v3919 = vsel %vm3407, %v3047, %v3663
        %v3920 = vsel %vm3408, %v3096, %v3664
        %v3921 = vsel %vm3409, %v3145, %v3665
        %v3922 = vsel %vm3410, %v3194, %v3666
        %v3923 = vsel %vm3411, %v2461, %v3667
        %v3924 = vsel %vm3412, %v2510, %v3668
        %v3925 = vsel %vm3413, %v2559, %v3669
        %v3926 = vsel %vm3414, %v2608, %v3670
        %v3927 = vsel %vm3415, %v2657, %v3671
        %v3928 = vsel %vm3416, %v2706, %v3672
        %v3929 = vsel %vm3417, %v2755, %v3673
        %v3930 = vsel %vm3418, %v2804, %v3674
        %v3931 = vsel %vm3419, %v2853, %v3675
        %v3932 = vsel %vm3420, %v2902, %v3676
        %v3933 = vsel %vm3421, %v2951, %v3677
        %v3934 = vsel %vm3422, %v3000, %v3678
        %v3935 = vsel %vm3423, %v3049, %v3679
        %v3936 = vsel %vm3424, %v3098, %v3680
        %v3937 = vsel %vm3425, %v3147, %v3681
        %v3938 = vsel %vm3426, %v3196, %v3682
        %v3939 = vsel %vm3427, %v2464, %v3683
        %v3940 = vsel %vm3428, %v2513, %v3684
        %v3941 = vsel %vm3429, %v2562, %v3685
        %v3942 = vsel %vm3430, %v2611, %v3686
        %v3943 = vsel %vm3431, %v2660, %v3687
        %v3944 = vsel %vm3432, %v2709, %v3688
        %v3945 = vsel %vm3433, %v2758, %v3689
        %v3946 = vsel %vm3434, %v2807, %v3690
        %v3947 = vsel %vm3435, %v2856, %v3691
        %v3948 = vsel %vm3436, %v2905, %v3692
        %v3949 = vsel %vm3437, %v2954, %v3693
        %v3950 = vsel %vm3438, %v3003, %v3694
        %v3951 = vsel %vm3439, %v3052, %v3695
        %v3952 = vsel %vm3440, %v3101, %v3696
        %v3953 = vsel %vm3441, %v3150, %v3697
        %v3954 = vsel %vm3442, %v3199, %v3698
        %v3955 = vsel %vm3443, %v2466, %v3699
        %v3956 = vsel %vm3444, %v2515, %v3700
        %v3957 = vsel %vm3445, %v2564, %v3701
        %v3958 = vsel %vm3446, %v2613, %v3702
        %v3959 = vsel %vm3447, %v2662, %v3703
        %v3960 = vsel %vm3448, %v2711, %v3704
        %v3961 = vsel %vm3449, %v2760, %v3705
        %v3962 = vsel %vm3450, %v2809, %v3706
        %v3963 = vsel %vm3451, %v2858, %v3707
        %v3964 = vsel %vm3452, %v2907, %v3708
        %v3965 = vsel %vm3453, %v2956, %v3709
        %v3966 = vsel %vm3454, %v3005, %v3710
        %v3967 = vsel %vm3455, %v3054, %v3711
        %v3968 = vsel %vm3456, %v3103, %v3712
        %v3969 = vsel %vm3457, %v3152, %v3713
        %v3970 = vsel %vm3458, %v3201, %v3714
        %v3971 = vld [vmem:[%s5] sm:$0xf]
        %v3972 = vld [vmem:[%s5 + $0x4] sm:$0xf]
        %v3973 = vld [vmem:[%s5 + $0x8] sm:$0xf]
        %v3974 = vld [vmem:[%s5 + $0xc] sm:$0xf]
        %v3975 = vld [vmem:[%s5 + $0x10] sm:$0xf]
        %v3976 = vld [vmem:[%s5 + $0x14] sm:$0xf]
        %v3977 = vld [vmem:[%s5 + $0x18] sm:$0xf]
        %v3978 = vld [vmem:[%s5 + $0x1c] sm:$0xf]
        %v3979 = vld [vmem:[%s5 + $0x20] sm:$0xf]
        %v3980 = vld [vmem:[%s5 + $0x24] sm:$0xf]
        %v3981 = vld [vmem:[%s5 + $0x28] sm:$0xf]
        %v3982 = vld [vmem:[%s5 + $0x2c] sm:$0xf]
        %v3983 = vld [vmem:[%s5 + $0x30] sm:$0xf]
        %v3984 = vld [vmem:[%s5 + $0x34] sm:$0xf]
        %v3985 = vld [vmem:[%s5 + $0x38] sm:$0xf]
        %v3986 = vld [vmem:[%s5 + $0x3c] sm:$0xf]
        %v3987 = vpack.c.bf16 %v3731, %v3715
        %v3988 = vpack.c.bf16 %v3732, %v3716
        %v3989 = vpack.c.bf16 %v3733, %v3717
        %v3990 = vpack.c.bf16 %v3734, %v3718
        %v3991 = vpack.c.bf16 %v3735, %v3719
        %v3992 = vpack.c.bf16 %v3736, %v3720
        %v3993 = vpack.c.bf16 %v3737, %v3721
        %v3994 = vpack.c.bf16 %v3738, %v3722
        %v3995 = vpack.c.bf16 %v3739, %v3723
        %v3996 = vpack.c.bf16 %v3740, %v3724
        %v3997 = vpack.c.bf16 %v3741, %v3725
        %v3998 = vpack.c.bf16 %v3742, %v3726
        %v3999 = vpack.c.bf16 %v3743, %v3727
        %v4000 = vpack.c.bf16 %v3744, %v3728
        %v4001 = vpack.c.bf16 %v3745, %v3729
        %v4002 = vpack.c.bf16 %v3746, %v3730
        %v4003 = vpack.c.bf16 %v3763, %v3747
        %v4004 = vpack.c.bf16 %v3764, %v3748
        %v4005 = vpack.c.bf16 %v3765, %v3749
        %v4006 = vpack.c.bf16 %v3766, %v3750
        %v4007 = vpack.c.bf16 %v3767, %v3751
        %v4008 = vpack.c.bf16 %v3768, %v3752
        %v4009 = vpack.c.bf16 %v3769, %v3753
        %v4010 = vpack.c.bf16 %v3770, %v3754
        %v4011 = vpack.c.bf16 %v3771, %v3755
        %v4012 = vpack.c.bf16 %v3772, %v3756
        %v4013 = vpack.c.bf16 %v3773, %v3757
        %v4014 = vpack.c.bf16 %v3774, %v3758
        %v4015 = vpack.c.bf16 %v3775, %v3759
        %v4016 = vpack.c.bf16 %v3776, %v3760
        %v4017 = vpack.c.bf16 %v3777, %v3761
        %v4018 = vpack.c.bf16 %v3778, %v3762
        %v4019 = vpack.c.bf16 %v3795, %v3779
        %v4020 = vpack.c.bf16 %v3796, %v3780
        %v4021 = vpack.c.bf16 %v3797, %v3781
        %v4022 = vpack.c.bf16 %v3798, %v3782
        %v4023 = vpack.c.bf16 %v3799, %v3783
        %v4024 = vpack.c.bf16 %v3800, %v3784
        %v4025 = vpack.c.bf16 %v3801, %v3785
        %v4026 = vpack.c.bf16 %v3802, %v3786
        %v4027 = vpack.c.bf16 %v3803, %v3787
        %v4028 = vpack.c.bf16 %v3804, %v3788
        %v4029 = vpack.c.bf16 %v3805, %v3789
        %v4030 = vpack.c.bf16 %v3806, %v3790
        %v4031 = vpack.c.bf16 %v3807, %v3791
        %v4032 = vpack.c.bf16 %v3808, %v3792
        %v4033 = vpack.c.bf16 %v3809, %v3793
        %v4034 = vpack.c.bf16 %v3810, %v3794
        %v4035 = vpack.c.bf16 %v3827, %v3811
        %v4036 = vpack.c.bf16 %v3828, %v3812
        %v4037 = vpack.c.bf16 %v3829, %v3813
        %v4038 = vpack.c.bf16 %v3830, %v3814
        %v4039 = vpack.c.bf16 %v3831, %v3815
        %v4040 = vpack.c.bf16 %v3832, %v3816
        %v4041 = vpack.c.bf16 %v3833, %v3817
        %v4042 = vpack.c.bf16 %v3834, %v3818
        %v4043 = vpack.c.bf16 %v3835, %v3819
        %v4044 = vpack.c.bf16 %v3836, %v3820
        %v4045 = vpack.c.bf16 %v3837, %v3821
        %v4046 = vpack.c.bf16 %v3838, %v3822
        %v4047 = vpack.c.bf16 %v3839, %v3823
        %v4048 = vpack.c.bf16 %v3840, %v3824
        %v4049 = vpack.c.bf16 %v3841, %v3825
        %v4050 = vpack.c.bf16 %v3842, %v3826
        %v4051 = vpack.c.bf16 %v3859, %v3843
        %v4052 = vpack.c.bf16 %v3860, %v3844
        %v4053 = vpack.c.bf16 %v3861, %v3845
        %v4054 = vpack.c.bf16 %v3862, %v3846
        %v4055 = vpack.c.bf16 %v3863, %v3847
        %v4056 = vpack.c.bf16 %v3864, %v3848
        %v4057 = vpack.c.bf16 %v3865, %v3849
        %v4058 = vpack.c.bf16 %v3866, %v3850
        %v4059 = vpack.c.bf16 %v3867, %v3851
        %v4060 = vpack.c.bf16 %v3868, %v3852
        %v4061 = vpack.c.bf16 %v3869, %v3853
        %v4062 = vpack.c.bf16 %v3870, %v3854
        %v4063 = vpack.c.bf16 %v3871, %v3855
        %v4064 = vpack.c.bf16 %v3872, %v3856
        %v4065 = vpack.c.bf16 %v3873, %v3857
        %v4066 = vpack.c.bf16 %v3874, %v3858
        %v4067 = vpack.c.bf16 %v3891, %v3875
        %v4068 = vpack.c.bf16 %v3892, %v3876
        %v4069 = vpack.c.bf16 %v3893, %v3877
        %v4070 = vpack.c.bf16 %v3894, %v3878
        %v4071 = vpack.c.bf16 %v3895, %v3879
        %v4072 = vpack.c.bf16 %v3896, %v3880
        %v4073 = vpack.c.bf16 %v3897, %v3881
        %v4074 = vpack.c.bf16 %v3898, %v3882
        %v4075 = vpack.c.bf16 %v3899, %v3883
        %v4076 = vpack.c.bf16 %v3900, %v3884
        %v4077 = vpack.c.bf16 %v3901, %v3885
        %v4078 = vpack.c.bf16 %v3902, %v3886
        %v4079 = vpack.c.bf16 %v3903, %v3887
        %v4080 = vpack.c.bf16 %v3904, %v3888
        %v4081 = vpack.c.bf16 %v3905, %v3889
        %v4082 = vpack.c.bf16 %v3906, %v3890
        %v4083 = vpack.c.bf16 %v3923, %v3907
        %v4084 = vpack.c.bf16 %v3924, %v3908
        %v4085 = vpack.c.bf16 %v3925, %v3909
        %v4086 = vpack.c.bf16 %v3926, %v3910
        %v4087 = vpack.c.bf16 %v3927, %v3911
        %v4088 = vpack.c.bf16 %v3928, %v3912
        %v4089 = vpack.c.bf16 %v3929, %v3913
        %v4090 = vpack.c.bf16 %v3930, %v3914
        %v4091 = vpack.c.bf16 %v3931, %v3915
        %v4092 = vpack.c.bf16 %v3932, %v3916
        %v4093 = vpack.c.bf16 %v3933, %v3917
        %v4094 = vpack.c.bf16 %v3934, %v3918
        %v4095 = vpack.c.bf16 %v3935, %v3919
        %v4096 = vpack.c.bf16 %v3936, %v3920
        %v4097 = vpack.c.bf16 %v3937, %v3921
        %v4098 = vpack.c.bf16 %v3938, %v3922
        %v4099 = vpack.c.bf16 %v3955, %v3939
        %v4100 = vpack.c.bf16 %v3956, %v3940
        %v4101 = vpack.c.bf16 %v3957, %v3941
        %v4102 = vpack.c.bf16 %v3958, %v3942
        %v4103 = vpack.c.bf16 %v3959, %v3943
        %v4104 = vpack.c.bf16 %v3960, %v3944
        %v4105 = vpack.c.bf16 %v3961, %v3945
        %v4106 = vpack.c.bf16 %v3962, %v3946
        %v4107 = vpack.c.bf16 %v3963, %v3947
        %v4108 = vpack.c.bf16 %v3964, %v3948
        %v4109 = vpack.c.bf16 %v3965, %v3949
        %v4110 = vpack.c.bf16 %v3966, %v3950
        %v4111 = vpack.c.bf16 %v3967, %v3951
        %v4112 = vpack.c.bf16 %v3968, %v3952
        %v4113 = vpack.c.bf16 %v3969, %v3953
        %v4114 = vpack.c.bf16 %v3970, %v3954
        %v4115 = vld [vmem:[%s6] sm:$0xff]
        %v4116 = vld [vmem:[%s6 + $0x8] sm:$0xff]
        %v4117 = vld [vmem:[%s6 + $0x10] sm:$0xff]
        %v4118 = vld [vmem:[%s6 + $0x18] sm:$0xff]
        %v4119 = vld [vmem:[%s6 + $0x20] sm:$0xff]
        %v4120 = vld [vmem:[%s6 + $0x28] sm:$0xff]
        %v4121 = vld [vmem:[%s6 + $0x30] sm:$0xff]
        %v4122 = vld [vmem:[%s6 + $0x38] sm:$0xff]
        %v4123 = vld [vmem:[%s6 + $0x40] sm:$0xff]
        %v4124 = vld [vmem:[%s6 + $0x48] sm:$0xff]
        %v4125 = vld [vmem:[%s6 + $0x50] sm:$0xff]
        %v4126 = vld [vmem:[%s6 + $0x58] sm:$0xff]
        %v4127 = vld [vmem:[%s6 + $0x60] sm:$0xff]
        %v4128 = vld [vmem:[%s6 + $0x68] sm:$0xff]
        %v4129 = vld [vmem:[%s6 + $0x70] sm:$0xff]
        %v4130 = vld [vmem:[%s6 + $0x78] sm:$0xff]
        %4132 = vset.pattern.permute.xlu0 0
        %4133 = vperm.xlu0 %4132, %v4115
        %v4134 = vpop.permute.xlu0 %4133
        %4137 = vset.pattern.permute.xlu0 0
        %4138 = vperm.xlu0 %4137, %v4116
        %v4139 = vpop.permute.xlu0 %4138
        %4142 = vset.pattern.permute.xlu0 0
        %4143 = vperm.xlu0 %4142, %v4117
        %v4144 = vpop.permute.xlu0 %4143
        %4147 = vset.pattern.permute.xlu0 0
        %4148 = vperm.xlu0 %4147, %v4118
        %v4149 = vpop.permute.xlu0 %4148
        %4152 = vset.pattern.permute.xlu0 0
        %4153 = vperm.xlu0 %4152, %v4119
        %v4154 = vpop.permute.xlu0 %4153
        %4157 = vset.pattern.permute.xlu0 0
        %4158 = vperm.xlu0 %4157, %v4120
        %v4159 = vpop.permute.xlu0 %4158
        %4162 = vset.pattern.permute.xlu0 0
        %4163 = vperm.xlu0 %4162, %v4121
        %v4164 = vpop.permute.xlu0 %4163
        %4167 = vset.pattern.permute.xlu0 0
        %4168 = vperm.xlu0 %4167, %v4122
        %v4169 = vpop.permute.xlu0 %4168
        %4172 = vset.pattern.permute.xlu0 0
        %4173 = vperm.xlu0 %4172, %v4123
        %v4174 = vpop.permute.xlu0 %4173
        %4177 = vset.pattern.permute.xlu0 0
        %4178 = vperm.xlu0 %4177, %v4124
        %v4179 = vpop.permute.xlu0 %4178
        %4182 = vset.pattern.permute.xlu0 0
        %4183 = vperm.xlu0 %4182, %v4125
        %v4184 = vpop.permute.xlu0 %4183
        %4187 = vset.pattern.permute.xlu0 0
        %4188 = vperm.xlu0 %4187, %v4126
        %v4189 = vpop.permute.xlu0 %4188
        %4192 = vset.pattern.permute.xlu0 0
        %4193 = vperm.xlu0 %4192, %v4127
        %v4194 = vpop.permute.xlu0 %4193
        %4197 = vset.pattern.permute.xlu0 0
        %4198 = vperm.xlu0 %4197, %v4128
        %v4199 = vpop.permute.xlu0 %4198
        %4202 = vset.pattern.permute.xlu0 0
        %4203 = vperm.xlu0 %4202, %v4129
        %v4204 = vpop.permute.xlu0 %4203
        %4207 = vset.pattern.permute.xlu0 0
        %4208 = vperm.xlu0 %4207, %v4130
        %v4209 = vpop.permute.xlu0 %4208
        %v4227 = vunpack.c.l.b16 %v3971
        %v4228 = vunpack.c.l.b16 %v3972
        %v4229 = vunpack.c.l.b16 %v3973
        %v4230 = vunpack.c.l.b16 %v3974
        %v4231 = vunpack.c.l.b16 %v3975
        %v4232 = vunpack.c.l.b16 %v3976
        %v4233 = vunpack.c.l.b16 %v3977
        %v4234 = vunpack.c.l.b16 %v3978
        %v4235 = vunpack.c.l.b16 %v3979
        %v4236 = vunpack.c.l.b16 %v3980
        %v4237 = vunpack.c.l.b16 %v3981
        %v4238 = vunpack.c.l.b16 %v3982
        %v4239 = vunpack.c.l.b16 %v3983
        %v4240 = vunpack.c.l.b16 %v3984
        %v4241 = vunpack.c.l.b16 %v3985
        %v4242 = vunpack.c.l.b16 %v3986
        %v4243 = vpack.c.b16 %v4228, %v4227
        %v4244 = vpack.c.b16 %v4230, %v4229
        %v4245 = vpack.c.b16 %v4232, %v4231
        %v4246 = vpack.c.b16 %v4234, %v4233
        %v4247 = vpack.c.b16 %v4236, %v4235
        %v4248 = vpack.c.b16 %v4238, %v4237
        %v4249 = vpack.c.b16 %v4240, %v4239
        %v4250 = vpack.c.b16 %v4242, %v4241
        %4259 = vmatpush.bf16.msra.mxu0 %v4099
        %4260 = vmatpush.bf16.msra.mxu0 %v4083
        %4261 = vmatpush.bf16.msra.mxu0 %v4067
        %4262 = vmatpush.bf16.msra.mxu0 %v4051
        %4263 = vmatpush.bf16.msra.mxu0 %v4035
        %4264 = vmatpush.bf16.msra.mxu0 %v4019
        %4265 = vmatpush.bf16.msra.mxu0 %v4003
        %4266 = vmatpush.bf16.msra.mxu0 %v3987
        %4267 = vmatmul.bf16.gmra.mxu0 %v4243
        %v4268 = vpop.f32.mrf.mxu0
        %v4269 = vadd.f32 %v4134, %v4268
        %v4270 = vpop.f32.mrf.mxu0
        %v4271 = vadd.f32 %v4139, %v4270
        %4272 = vmatmul.bf16.gmra.mxu0 %v4244
        %v4273 = vpop.f32.mrf.mxu0
        %v4274 = vadd.f32 %v4144, %v4273
        %v4275 = vpop.f32.mrf.mxu0
        %v4276 = vadd.f32 %v4149, %v4275
        %4277 = vmatmul.bf16.gmra.mxu0 %v4245
        %v4278 = vpop.f32.mrf.mxu0
        %v4279 = vadd.f32 %v4154, %v4278
        %v4280 = vpop.f32.mrf.mxu0
        %v4281 = vadd.f32 %v4159, %v4280
        %4282 = vmatmul.bf16.gmra.mxu0 %v4246
        %v4283 = vpop.f32.mrf.mxu0
        %v4284 = vadd.f32 %v4164, %v4283
        %v4285 = vpop.f32.mrf.mxu0
        %v4286 = vadd.f32 %v4169, %v4285
        %4287 = vmatmul.bf16.gmra.mxu0 %v4247
        %v4288 = vpop.f32.mrf.mxu0
        %v4289 = vadd.f32 %v4174, %v4288
        %v4290 = vpop.f32.mrf.mxu0
        %v4291 = vadd.f32 %v4179, %v4290
        %4292 = vmatmul.bf16.gmra.mxu0 %v4248
        %v4293 = vpop.f32.mrf.mxu0
        %v4294 = vadd.f32 %v4184, %v4293
        %v4295 = vpop.f32.mrf.mxu0
        %v4296 = vadd.f32 %v4189, %v4295
        %4297 = vmatmul.bf16.gmra.mxu0 %v4249
        %v4298 = vpop.f32.mrf.mxu0
        %v4299 = vadd.f32 %v4194, %v4298
        %v4300 = vpop.f32.mrf.mxu0
        %v4301 = vadd.f32 %v4199, %v4300
        %4302 = vmatmul.bf16.gmra.mxu0 %v4250
        %v4303 = vpop.f32.mrf.mxu0
        %v4304 = vadd.f32 %v4204, %v4303
        %v4305 = vpop.f32.mrf.mxu0
        %v4306 = vadd.f32 %v4209, %v4305
        %4307 = vdwg.mxu0
        %4308 = vmatpush.bf16.msra.mxu0 %v4100
        %4309 = vmatpush.bf16.msra.mxu0 %v4084
        %4310 = vmatpush.bf16.msra.mxu0 %v4068
        %4311 = vmatpush.bf16.msra.mxu0 %v4052
        %4312 = vmatpush.bf16.msra.mxu0 %v4036
        %4313 = vmatpush.bf16.msra.mxu0 %v4020
        %4314 = vmatpush.bf16.msra.mxu0 %v4004
        %4315 = vmatpush.bf16.msra.mxu0 %v3988
        %4316 = vmatmul.bf16.gmra.mxu0 %v4243
        %v4317 = vpop.f32.mrf.mxu0
        %v4318 = vadd.f32 %v4134, %v4317
        %v4319 = vpop.f32.mrf.mxu0
        %v4320 = vadd.f32 %v4139, %v4319
        %4321 = vmatmul.bf16.gmra.mxu0 %v4244
        %v4322 = vpop.f32.mrf.mxu0
        %v4323 = vadd.f32 %v4144, %v4322
        %v4324 = vpop.f32.mrf.mxu0
        %v4325 = vadd.f32 %v4149, %v4324
        %4326 = vmatmul.bf16.gmra.mxu0 %v4245
        %v4327 = vpop.f32.mrf.mxu0
        %v4328 = vadd.f32 %v4154, %v4327
        %v4329 = vpop.f32.mrf.mxu0
        %v4330 = vadd.f32 %v4159, %v4329
        %4331 = vmatmul.bf16.gmra.mxu0 %v4246
        %v4332 = vpop.f32.mrf.mxu0
        %v4333 = vadd.f32 %v4164, %v4332
        %v4334 = vpop.f32.mrf.mxu0
        %v4335 = vadd.f32 %v4169, %v4334
        %4336 = vmatmul.bf16.gmra.mxu0 %v4247
        %v4337 = vpop.f32.mrf.mxu0
        %v4338 = vadd.f32 %v4174, %v4337
        %v4339 = vpop.f32.mrf.mxu0
        %v4340 = vadd.f32 %v4179, %v4339
        %4341 = vmatmul.bf16.gmra.mxu0 %v4248
        %v4342 = vpop.f32.mrf.mxu0
        %v4343 = vadd.f32 %v4184, %v4342
        %v4344 = vpop.f32.mrf.mxu0
        %v4345 = vadd.f32 %v4189, %v4344
        %4346 = vmatmul.bf16.gmra.mxu0 %v4249
        %v4347 = vpop.f32.mrf.mxu0
        %v4348 = vadd.f32 %v4194, %v4347
        %v4349 = vpop.f32.mrf.mxu0
        %v4350 = vadd.f32 %v4199, %v4349
        %4351 = vmatmul.bf16.gmra.mxu0 %v4250
        %v4352 = vpop.f32.mrf.mxu0
        %v4353 = vadd.f32 %v4204, %v4352
        %v4354 = vpop.f32.mrf.mxu0
        %v4355 = vadd.f32 %v4209, %v4354
        %4356 = vdwg.mxu0
        %4357 = vmatpush.bf16.msra.mxu0 %v4101
        %4358 = vmatpush.bf16.msra.mxu0 %v4085
        %4359 = vmatpush.bf16.msra.mxu0 %v4069
        %4360 = vmatpush.bf16.msra.mxu0 %v4053
        %4361 = vmatpush.bf16.msra.mxu0 %v4037
        %4362 = vmatpush.bf16.msra.mxu0 %v4021
        %4363 = vmatpush.bf16.msra.mxu0 %v4005
        %4364 = vmatpush.bf16.msra.mxu0 %v3989
        %4365 = vmatmul.bf16.gmra.mxu0 %v4243
        %v4366 = vpop.f32.mrf.mxu0
        %v4367 = vadd.f32 %v4134, %v4366
        %v4368 = vpop.f32.mrf.mxu0
        %v4369 = vadd.f32 %v4139, %v4368
        %4370 = vmatmul.bf16.gmra.mxu0 %v4244
        %v4371 = vpop.f32.mrf.mxu0
        %v4372 = vadd.f32 %v4144, %v4371
        %v4373 = vpop.f32.mrf.mxu0
        %v4374 = vadd.f32 %v4149, %v4373
        %4375 = vmatmul.bf16.gmra.mxu0 %v4245
        %v4376 = vpop.f32.mrf.mxu0
        %v4377 = vadd.f32 %v4154, %v4376
        %v4378 = vpop.f32.mrf.mxu0
        %v4379 = vadd.f32 %v4159, %v4378
        %4380 = vmatmul.bf16.gmra.mxu0 %v4246
        %v4381 = vpop.f32.mrf.mxu0
        %v4382 = vadd.f32 %v4164, %v4381
        %v4383 = vpop.f32.mrf.mxu0
        %v4384 = vadd.f32 %v4169, %v4383
        %4385 = vmatmul.bf16.gmra.mxu0 %v4247
        %v4386 = vpop.f32.mrf.mxu0
        %v4387 = vadd.f32 %v4174, %v4386
        %v4388 = vpop.f32.mrf.mxu0
        %v4389 = vadd.f32 %v4179, %v4388
        %4390 = vmatmul.bf16.gmra.mxu0 %v4248
        %v4391 = vpop.f32.mrf.mxu0
        %v4392 = vadd.f32 %v4184, %v4391
        %v4393 = vpop.f32.mrf.mxu0
        %v4394 = vadd.f32 %v4189, %v4393
        %4395 = vmatmul.bf16.gmra.mxu0 %v4249
        %v4396 = vpop.f32.mrf.mxu0
        %v4397 = vadd.f32 %v4194, %v4396
        %v4398 = vpop.f32.mrf.mxu0
        %v4399 = vadd.f32 %v4199, %v4398
        %4400 = vmatmul.bf16.gmra.mxu0 %v4250
        %v4401 = vpop.f32.mrf.mxu0
        %v4402 = vadd.f32 %v4204, %v4401
        %v4403 = vpop.f32.mrf.mxu0
        %v4404 = vadd.f32 %v4209, %v4403
        %4405 = vdwg.mxu0
        %4406 = vmatpush.bf16.msra.mxu0 %v4102
        %4407 = vmatpush.bf16.msra.mxu0 %v4086
        %4408 = vmatpush.bf16.msra.mxu0 %v4070
        %4409 = vmatpush.bf16.msra.mxu0 %v4054
        %4410 = vmatpush.bf16.msra.mxu0 %v4038
        %4411 = vmatpush.bf16.msra.mxu0 %v4022
        %4412 = vmatpush.bf16.msra.mxu0 %v4006
        %4413 = vmatpush.bf16.msra.mxu0 %v3990
        %4414 = vmatmul.bf16.gmra.mxu0 %v4243
        %v4415 = vpop.f32.mrf.mxu0
        %v4416 = vadd.f32 %v4134, %v4415
        %v4417 = vpop.f32.mrf.mxu0
        %v4418 = vadd.f32 %v4139, %v4417
        %4419 = vmatmul.bf16.gmra.mxu0 %v4244
        %v4420 = vpop.f32.mrf.mxu0
        %v4421 = vadd.f32 %v4144, %v4420
        %v4422 = vpop.f32.mrf.mxu0
        %v4423 = vadd.f32 %v4149, %v4422
        %4424 = vmatmul.bf16.gmra.mxu0 %v4245
        %v4425 = vpop.f32.mrf.mxu0
        %v4426 = vadd.f32 %v4154, %v4425
        %v4427 = vpop.f32.mrf.mxu0
        %v4428 = vadd.f32 %v4159, %v4427
        %4429 = vmatmul.bf16.gmra.mxu0 %v4246
        %v4430 = vpop.f32.mrf.mxu0
        %v4431 = vadd.f32 %v4164, %v4430
        %v4432 = vpop.f32.mrf.mxu0
        %v4433 = vadd.f32 %v4169, %v4432
        %4434 = vmatmul.bf16.gmra.mxu0 %v4247
        %v4435 = vpop.f32.mrf.mxu0
        %v4436 = vadd.f32 %v4174, %v4435
        %v4437 = vpop.f32.mrf.mxu0
        %v4438 = vadd.f32 %v4179, %v4437
        %4439 = vmatmul.bf16.gmra.mxu0 %v4248
        %v4440 = vpop.f32.mrf.mxu0
        %v4441 = vadd.f32 %v4184, %v4440
        %v4442 = vpop.f32.mrf.mxu0
        %v4443 = vadd.f32 %v4189, %v4442
        %4444 = vmatmul.bf16.gmra.mxu0 %v4249
        %v4445 = vpop.f32.mrf.mxu0
        %v4446 = vadd.f32 %v4194, %v4445
        %v4447 = vpop.f32.mrf.mxu0
        %v4448 = vadd.f32 %v4199, %v4447
        %4449 = vmatmul.bf16.gmra.mxu0 %v4250
        %v4450 = vpop.f32.mrf.mxu0
        %v4451 = vadd.f32 %v4204, %v4450
        %v4452 = vpop.f32.mrf.mxu0
        %v4453 = vadd.f32 %v4209, %v4452
        %4454 = vdwg.mxu0
        %4455 = vmatpush.bf16.msra.mxu0 %v4103
        %4456 = vmatpush.bf16.msra.mxu0 %v4087
        %4457 = vmatpush.bf16.msra.mxu0 %v4071
        %4458 = vmatpush.bf16.msra.mxu0 %v4055
        %4459 = vmatpush.bf16.msra.mxu0 %v4039
        %4460 = vmatpush.bf16.msra.mxu0 %v4023
        %4461 = vmatpush.bf16.msra.mxu0 %v4007
        %4462 = vmatpush.bf16.msra.mxu0 %v3991
        %4463 = vmatmul.bf16.gmra.mxu0 %v4243
        %v4464 = vpop.f32.mrf.mxu0
        %v4465 = vadd.f32 %v4134, %v4464
        %v4466 = vpop.f32.mrf.mxu0
        %v4467 = vadd.f32 %v4139, %v4466
        %4468 = vmatmul.bf16.gmra.mxu0 %v4244
        %v4469 = vpop.f32.mrf.mxu0
        %v4470 = vadd.f32 %v4144, %v4469
        %v4471 = vpop.f32.mrf.mxu0
        %v4472 = vadd.f32 %v4149, %v4471
        %4473 = vmatmul.bf16.gmra.mxu0 %v4245
        %v4474 = vpop.f32.mrf.mxu0
        %v4475 = vadd.f32 %v4154, %v4474
        %v4476 = vpop.f32.mrf.mxu0
        %v4477 = vadd.f32 %v4159, %v4476
        %4478 = vmatmul.bf16.gmra.mxu0 %v4246
        %v4479 = vpop.f32.mrf.mxu0
        %v4480 = vadd.f32 %v4164, %v4479
        %v4481 = vpop.f32.mrf.mxu0
        %v4482 = vadd.f32 %v4169, %v4481
        %4483 = vmatmul.bf16.gmra.mxu0 %v4247
        %v4484 = vpop.f32.mrf.mxu0
        %v4485 = vadd.f32 %v4174, %v4484
        %v4486 = vpop.f32.mrf.mxu0
        %v4487 = vadd.f32 %v4179, %v4486
        %4488 = vmatmul.bf16.gmra.mxu0 %v4248
        %v4489 = vpop.f32.mrf.mxu0
        %v4490 = vadd.f32 %v4184, %v4489
        %v4491 = vpop.f32.mrf.mxu0
        %v4492 = vadd.f32 %v4189, %v4491
        %4493 = vmatmul.bf16.gmra.mxu0 %v4249
        %v4494 = vpop.f32.mrf.mxu0
        %v4495 = vadd.f32 %v4194, %v4494
        %v4496 = vpop.f32.mrf.mxu0
        %v4497 = vadd.f32 %v4199, %v4496
        %4498 = vmatmul.bf16.gmra.mxu0 %v4250
        %v4499 = vpop.f32.mrf.mxu0
        %v4500 = vadd.f32 %v4204, %v4499
        %v4501 = vpop.f32.mrf.mxu0
        %v4502 = vadd.f32 %v4209, %v4501
        %4503 = vdwg.mxu0
        %4504 = vmatpush.bf16.msra.mxu0 %v4104
        %4505 = vmatpush.bf16.msra.mxu0 %v4088
        %4506 = vmatpush.bf16.msra.mxu0 %v4072
        %4507 = vmatpush.bf16.msra.mxu0 %v4056
        %4508 = vmatpush.bf16.msra.mxu0 %v4040
        %4509 = vmatpush.bf16.msra.mxu0 %v4024
        %4510 = vmatpush.bf16.msra.mxu0 %v4008
        %4511 = vmatpush.bf16.msra.mxu0 %v3992
        %4512 = vmatmul.bf16.gmra.mxu0 %v4243
        %v4513 = vpop.f32.mrf.mxu0
        %v4514 = vadd.f32 %v4134, %v4513
        %v4515 = vpop.f32.mrf.mxu0
        %v4516 = vadd.f32 %v4139, %v4515
        %4517 = vmatmul.bf16.gmra.mxu0 %v4244
        %v4518 = vpop.f32.mrf.mxu0
        %v4519 = vadd.f32 %v4144, %v4518
        %v4520 = vpop.f32.mrf.mxu0
        %v4521 = vadd.f32 %v4149, %v4520
        %4522 = vmatmul.bf16.gmra.mxu0 %v4245
        %v4523 = vpop.f32.mrf.mxu0
        %v4524 = vadd.f32 %v4154, %v4523
        %v4525 = vpop.f32.mrf.mxu0
        %v4526 = vadd.f32 %v4159, %v4525
        %4527 = vmatmul.bf16.gmra.mxu0 %v4246
        %v4528 = vpop.f32.mrf.mxu0
        %v4529 = vadd.f32 %v4164, %v4528
        %v4530 = vpop.f32.mrf.mxu0
        %v4531 = vadd.f32 %v4169, %v4530
        %4532 = vmatmul.bf16.gmra.mxu0 %v4247
        %v4533 = vpop.f32.mrf.mxu0
        %v4534 = vadd.f32 %v4174, %v4533
        %v4535 = vpop.f32.mrf.mxu0
        %v4536 = vadd.f32 %v4179, %v4535
        %4537 = vmatmul.bf16.gmra.mxu0 %v4248
        %v4538 = vpop.f32.mrf.mxu0
        %v4539 = vadd.f32 %v4184, %v4538
        %v4540 = vpop.f32.mrf.mxu0
        %v4541 = vadd.f32 %v4189, %v4540
        %4542 = vmatmul.bf16.gmra.mxu0 %v4249
        %v4543 = vpop.f32.mrf.mxu0
        %v4544 = vadd.f32 %v4194, %v4543
        %v4545 = vpop.f32.mrf.mxu0
        %v4546 = vadd.f32 %v4199, %v4545
        %4547 = vmatmul.bf16.gmra.mxu0 %v4250
        %v4548 = vpop.f32.mrf.mxu0
        %v4549 = vadd.f32 %v4204, %v4548
        %v4550 = vpop.f32.mrf.mxu0
        %v4551 = vadd.f32 %v4209, %v4550
        %4552 = vdwg.mxu0
        %4553 = vmatpush.bf16.msra.mxu0 %v4105
        %4554 = vmatpush.bf16.msra.mxu0 %v4089
        %4555 = vmatpush.bf16.msra.mxu0 %v4073
        %4556 = vmatpush.bf16.msra.mxu0 %v4057
        %4557 = vmatpush.bf16.msra.mxu0 %v4041
        %4558 = vmatpush.bf16.msra.mxu0 %v4025
        %4559 = vmatpush.bf16.msra.mxu0 %v4009
        %4560 = vmatpush.bf16.msra.mxu0 %v3993
        %4561 = vmatmul.bf16.gmra.mxu0 %v4243
        %v4562 = vpop.f32.mrf.mxu0
        %v4563 = vadd.f32 %v4134, %v4562
        %v4564 = vpop.f32.mrf.mxu0
        %v4565 = vadd.f32 %v4139, %v4564
        %4566 = vmatmul.bf16.gmra.mxu0 %v4244
        %v4567 = vpop.f32.mrf.mxu0
        %v4568 = vadd.f32 %v4144, %v4567
        %v4569 = vpop.f32.mrf.mxu0
        %v4570 = vadd.f32 %v4149, %v4569
        %4571 = vmatmul.bf16.gmra.mxu0 %v4245
        %v4572 = vpop.f32.mrf.mxu0
        %v4573 = vadd.f32 %v4154, %v4572
        %v4574 = vpop.f32.mrf.mxu0
        %v4575 = vadd.f32 %v4159, %v4574
        %4576 = vmatmul.bf16.gmra.mxu0 %v4246
        %v4577 = vpop.f32.mrf.mxu0
        %v4578 = vadd.f32 %v4164, %v4577
        %v4579 = vpop.f32.mrf.mxu0
        %v4580 = vadd.f32 %v4169, %v4579
        %4581 = vmatmul.bf16.gmra.mxu0 %v4247
        %v4582 = vpop.f32.mrf.mxu0
        %v4583 = vadd.f32 %v4174, %v4582
        %v4584 = vpop.f32.mrf.mxu0
        %v4585 = vadd.f32 %v4179, %v4584
        %4586 = vmatmul.bf16.gmra.mxu0 %v4248
        %v4587 = vpop.f32.mrf.mxu0
        %v4588 = vadd.f32 %v4184, %v4587
        %v4589 = vpop.f32.mrf.mxu0
        %v4590 = vadd.f32 %v4189, %v4589
        %4591 = vmatmul.bf16.gmra.mxu0 %v4249
        %v4592 = vpop.f32.mrf.mxu0
        %v4593 = vadd.f32 %v4194, %v4592
        %v4594 = vpop.f32.mrf.mxu0
        %v4595 = vadd.f32 %v4199, %v4594
        %4596 = vmatmul.bf16.gmra.mxu0 %v4250
        %v4597 = vpop.f32.mrf.mxu0
        %v4598 = vadd.f32 %v4204, %v4597
        %v4599 = vpop.f32.mrf.mxu0
        %v4600 = vadd.f32 %v4209, %v4599
        %4601 = vdwg.mxu0
        %4602 = vmatpush.bf16.msra.mxu0 %v4106
        %4603 = vmatpush.bf16.msra.mxu0 %v4090
        %4604 = vmatpush.bf16.msra.mxu0 %v4074
        %4605 = vmatpush.bf16.msra.mxu0 %v4058
        %4606 = vmatpush.bf16.msra.mxu0 %v4042
        %4607 = vmatpush.bf16.msra.mxu0 %v4026
        %4608 = vmatpush.bf16.msra.mxu0 %v4010
        %4609 = vmatpush.bf16.msra.mxu0 %v3994
        %4610 = vmatmul.bf16.gmra.mxu0 %v4243
        %v4611 = vpop.f32.mrf.mxu0
        %v4612 = vadd.f32 %v4134, %v4611
        %v4613 = vpop.f32.mrf.mxu0
        %v4614 = vadd.f32 %v4139, %v4613
        %4615 = vmatmul.bf16.gmra.mxu0 %v4244
        %v4616 = vpop.f32.mrf.mxu0
        %v4617 = vadd.f32 %v4144, %v4616
        %v4618 = vpop.f32.mrf.mxu0
        %v4619 = vadd.f32 %v4149, %v4618
        %4620 = vmatmul.bf16.gmra.mxu0 %v4245
        %v4621 = vpop.f32.mrf.mxu0
        %v4622 = vadd.f32 %v4154, %v4621
        %v4623 = vpop.f32.mrf.mxu0
        %v4624 = vadd.f32 %v4159, %v4623
        %4625 = vmatmul.bf16.gmra.mxu0 %v4246
        %v4626 = vpop.f32.mrf.mxu0
        %v4627 = vadd.f32 %v4164, %v4626
        %v4628 = vpop.f32.mrf.mxu0
        %v4629 = vadd.f32 %v4169, %v4628
        %4630 = vmatmul.bf16.gmra.mxu0 %v4247
        %v4631 = vpop.f32.mrf.mxu0
        %v4632 = vadd.f32 %v4174, %v4631
        %v4633 = vpop.f32.mrf.mxu0
        %v4634 = vadd.f32 %v4179, %v4633
        %4635 = vmatmul.bf16.gmra.mxu0 %v4248
        %v4636 = vpop.f32.mrf.mxu0
        %v4637 = vadd.f32 %v4184, %v4636
        %v4638 = vpop.f32.mrf.mxu0
        %v4639 = vadd.f32 %v4189, %v4638
        %4640 = vmatmul.bf16.gmra.mxu0 %v4249
        %v4641 = vpop.f32.mrf.mxu0
        %v4642 = vadd.f32 %v4194, %v4641
        %v4643 = vpop.f32.mrf.mxu0
        %v4644 = vadd.f32 %v4199, %v4643
        %4645 = vmatmul.bf16.gmra.mxu0 %v4250
        %v4646 = vpop.f32.mrf.mxu0
        %v4647 = vadd.f32 %v4204, %v4646
        %v4648 = vpop.f32.mrf.mxu0
        %v4649 = vadd.f32 %v4209, %v4648
        %4650 = vdwg.mxu0
        %4651 = vmatpush.bf16.msra.mxu0 %v4107
        %4652 = vmatpush.bf16.msra.mxu0 %v4091
        %4653 = vmatpush.bf16.msra.mxu0 %v4075
        %4654 = vmatpush.bf16.msra.mxu0 %v4059
        %4655 = vmatpush.bf16.msra.mxu0 %v4043
        %4656 = vmatpush.bf16.msra.mxu0 %v4027
        %4657 = vmatpush.bf16.msra.mxu0 %v4011
        %4658 = vmatpush.bf16.msra.mxu0 %v3995
        %4659 = vmatmul.bf16.gmra.mxu0 %v4243
        %v4660 = vpop.f32.mrf.mxu0
        %v4661 = vadd.f32 %v4134, %v4660
        %v4662 = vpop.f32.mrf.mxu0
        %v4663 = vadd.f32 %v4139, %v4662
        %4664 = vmatmul.bf16.gmra.mxu0 %v4244
        %v4665 = vpop.f32.mrf.mxu0
        %v4666 = vadd.f32 %v4144, %v4665
        %v4667 = vpop.f32.mrf.mxu0
        %v4668 = vadd.f32 %v4149, %v4667
        %4669 = vmatmul.bf16.gmra.mxu0 %v4245
        %v4670 = vpop.f32.mrf.mxu0
        %v4671 = vadd.f32 %v4154, %v4670
        %v4672 = vpop.f32.mrf.mxu0
        %v4673 = vadd.f32 %v4159, %v4672
        %4674 = vmatmul.bf16.gmra.mxu0 %v4246
        %v4675 = vpop.f32.mrf.mxu0
        %v4676 = vadd.f32 %v4164, %v4675
        %v4677 = vpop.f32.mrf.mxu0
        %v4678 = vadd.f32 %v4169, %v4677
        %4679 = vmatmul.bf16.gmra.mxu0 %v4247
        %v4680 = vpop.f32.mrf.mxu0
        %v4681 = vadd.f32 %v4174, %v4680
        %v4682 = vpop.f32.mrf.mxu0
        %v4683 = vadd.f32 %v4179, %v4682
        %4684 = vmatmul.bf16.gmra.mxu0 %v4248
        %v4685 = vpop.f32.mrf.mxu0
        %v4686 = vadd.f32 %v4184, %v4685
        %v4687 = vpop.f32.mrf.mxu0
        %v4688 = vadd.f32 %v4189, %v4687
        %4689 = vmatmul.bf16.gmra.mxu0 %v4249
        %v4690 = vpop.f32.mrf.mxu0
        %v4691 = vadd.f32 %v4194, %v4690
        %v4692 = vpop.f32.mrf.mxu0
        %v4693 = vadd.f32 %v4199, %v4692
        %4694 = vmatmul.bf16.gmra.mxu0 %v4250
        %v4695 = vpop.f32.mrf.mxu0
        %v4696 = vadd.f32 %v4204, %v4695
        %v4697 = vpop.f32.mrf.mxu0
        %v4698 = vadd.f32 %v4209, %v4697
        %4699 = vdwg.mxu0
        %4700 = vmatpush.bf16.msra.mxu0 %v4108
        %4701 = vmatpush.bf16.msra.mxu0 %v4092
        %4702 = vmatpush.bf16.msra.mxu0 %v4076
        %4703 = vmatpush.bf16.msra.mxu0 %v4060
        %4704 = vmatpush.bf16.msra.mxu0 %v4044
        %4705 = vmatpush.bf16.msra.mxu0 %v4028
        %4706 = vmatpush.bf16.msra.mxu0 %v4012
        %4707 = vmatpush.bf16.msra.mxu0 %v3996
        %4708 = vmatmul.bf16.gmra.mxu0 %v4243
        %v4709 = vpop.f32.mrf.mxu0
        %v4710 = vadd.f32 %v4134, %v4709
        %v4711 = vpop.f32.mrf.mxu0
        %v4712 = vadd.f32 %v4139, %v4711
        %4713 = vmatmul.bf16.gmra.mxu0 %v4244
        %v4714 = vpop.f32.mrf.mxu0
        %v4715 = vadd.f32 %v4144, %v4714
        %v4716 = vpop.f32.mrf.mxu0
        %v4717 = vadd.f32 %v4149, %v4716
        %4718 = vmatmul.bf16.gmra.mxu0 %v4245
        %v4719 = vpop.f32.mrf.mxu0
        %v4720 = vadd.f32 %v4154, %v4719
        %v4721 = vpop.f32.mrf.mxu0
        %v4722 = vadd.f32 %v4159, %v4721
        %4723 = vmatmul.bf16.gmra.mxu0 %v4246
        %v4724 = vpop.f32.mrf.mxu0
        %v4725 = vadd.f32 %v4164, %v4724
        %v4726 = vpop.f32.mrf.mxu0
        %v4727 = vadd.f32 %v4169, %v4726
        %4728 = vmatmul.bf16.gmra.mxu0 %v4247
        %v4729 = vpop.f32.mrf.mxu0
        %v4730 = vadd.f32 %v4174, %v4729
        %v4731 = vpop.f32.mrf.mxu0
        %v4732 = vadd.f32 %v4179, %v4731
        %4733 = vmatmul.bf16.gmra.mxu0 %v4248
        %v4734 = vpop.f32.mrf.mxu0
        %v4735 = vadd.f32 %v4184, %v4734
        %v4736 = vpop.f32.mrf.mxu0
        %v4737 = vadd.f32 %v4189, %v4736
        %4738 = vmatmul.bf16.gmra.mxu0 %v4249
        %v4739 = vpop.f32.mrf.mxu0
        %v4740 = vadd.f32 %v4194, %v4739
        %v4741 = vpop.f32.mrf.mxu0
        %v4742 = vadd.f32 %v4199, %v4741
        %4743 = vmatmul.bf16.gmra.mxu0 %v4250
        %v4744 = vpop.f32.mrf.mxu0
        %v4745 = vadd.f32 %v4204, %v4744
        %v4746 = vpop.f32.mrf.mxu0
        %v4747 = vadd.f32 %v4209, %v4746
        %4748 = vdwg.mxu0
        %4749 = vmatpush.bf16.msra.mxu0 %v4109
        %4750 = vmatpush.bf16.msra.mxu0 %v4093
        %4751 = vmatpush.bf16.msra.mxu0 %v4077
        %4752 = vmatpush.bf16.msra.mxu0 %v4061
        %4753 = vmatpush.bf16.msra.mxu0 %v4045
        %4754 = vmatpush.bf16.msra.mxu0 %v4029
        %4755 = vmatpush.bf16.msra.mxu0 %v4013
        %4756 = vmatpush.bf16.msra.mxu0 %v3997
        %4757 = vmatmul.bf16.gmra.mxu0 %v4243
        %v4758 = vpop.f32.mrf.mxu0
        %v4759 = vadd.f32 %v4134, %v4758
        %v4760 = vpop.f32.mrf.mxu0
        %v4761 = vadd.f32 %v4139, %v4760
        %4762 = vmatmul.bf16.gmra.mxu0 %v4244
        %v4763 = vpop.f32.mrf.mxu0
        %v4764 = vadd.f32 %v4144, %v4763
        %v4765 = vpop.f32.mrf.mxu0
        %v4766 = vadd.f32 %v4149, %v4765
        %4767 = vmatmul.bf16.gmra.mxu0 %v4245
        %v4768 = vpop.f32.mrf.mxu0
        %v4769 = vadd.f32 %v4154, %v4768
        %v4770 = vpop.f32.mrf.mxu0
        %v4771 = vadd.f32 %v4159, %v4770
        %4772 = vmatmul.bf16.gmra.mxu0 %v4246
        %v4773 = vpop.f32.mrf.mxu0
        %v4774 = vadd.f32 %v4164, %v4773
        %v4775 = vpop.f32.mrf.mxu0
        %v4776 = vadd.f32 %v4169, %v4775
        %4777 = vmatmul.bf16.gmra.mxu0 %v4247
        %v4778 = vpop.f32.mrf.mxu0
        %v4779 = vadd.f32 %v4174, %v4778
        %v4780 = vpop.f32.mrf.mxu0
        %v4781 = vadd.f32 %v4179, %v4780
        %4782 = vmatmul.bf16.gmra.mxu0 %v4248
        %v4783 = vpop.f32.mrf.mxu0
        %v4784 = vadd.f32 %v4184, %v4783
        %v4785 = vpop.f32.mrf.mxu0
        %v4786 = vadd.f32 %v4189, %v4785
        %4787 = vmatmul.bf16.gmra.mxu0 %v4249
        %v4788 = vpop.f32.mrf.mxu0
        %v4789 = vadd.f32 %v4194, %v4788
        %v4790 = vpop.f32.mrf.mxu0
        %v4791 = vadd.f32 %v4199, %v4790
        %4792 = vmatmul.bf16.gmra.mxu0 %v4250
        %v4793 = vpop.f32.mrf.mxu0
        %v4794 = vadd.f32 %v4204, %v4793
        %v4795 = vpop.f32.mrf.mxu0
        %v4796 = vadd.f32 %v4209, %v4795
        %4797 = vdwg.mxu0
        %4798 = vmatpush.bf16.msra.mxu0 %v4110
        %4799 = vmatpush.bf16.msra.mxu0 %v4094
        %4800 = vmatpush.bf16.msra.mxu0 %v4078
        %4801 = vmatpush.bf16.msra.mxu0 %v4062
        %4802 = vmatpush.bf16.msra.mxu0 %v4046
        %4803 = vmatpush.bf16.msra.mxu0 %v4030
        %4804 = vmatpush.bf16.msra.mxu0 %v4014
        %4805 = vmatpush.bf16.msra.mxu0 %v3998
        %4806 = vmatmul.bf16.gmra.mxu0 %v4243
        %v4807 = vpop.f32.mrf.mxu0
        %v4808 = vadd.f32 %v4134, %v4807
        %v4809 = vpop.f32.mrf.mxu0
        %v4810 = vadd.f32 %v4139, %v4809
        %4811 = vmatmul.bf16.gmra.mxu0 %v4244
        %v4812 = vpop.f32.mrf.mxu0
        %v4813 = vadd.f32 %v4144, %v4812
        %v4814 = vpop.f32.mrf.mxu0
        %v4815 = vadd.f32 %v4149, %v4814
        %4816 = vmatmul.bf16.gmra.mxu0 %v4245
        %v4817 = vpop.f32.mrf.mxu0
        %v4818 = vadd.f32 %v4154, %v4817
        %v4819 = vpop.f32.mrf.mxu0
        %v4820 = vadd.f32 %v4159, %v4819
        %4821 = vmatmul.bf16.gmra.mxu0 %v4246
        %v4822 = vpop.f32.mrf.mxu0
        %v4823 = vadd.f32 %v4164, %v4822
        %v4824 = vpop.f32.mrf.mxu0
        %v4825 = vadd.f32 %v4169, %v4824
        %4826 = vmatmul.bf16.gmra.mxu0 %v4247
        %v4827 = vpop.f32.mrf.mxu0
        %v4828 = vadd.f32 %v4174, %v4827
        %v4829 = vpop.f32.mrf.mxu0
        %v4830 = vadd.f32 %v4179, %v4829
        %4831 = vmatmul.bf16.gmra.mxu0 %v4248
        %v4832 = vpop.f32.mrf.mxu0
        %v4833 = vadd.f32 %v4184, %v4832
        %v4834 = vpop.f32.mrf.mxu0
        %v4835 = vadd.f32 %v4189, %v4834
        %4836 = vmatmul.bf16.gmra.mxu0 %v4249
        %v4837 = vpop.f32.mrf.mxu0
        %v4838 = vadd.f32 %v4194, %v4837
        %v4839 = vpop.f32.mrf.mxu0
        %v4840 = vadd.f32 %v4199, %v4839
        %4841 = vmatmul.bf16.gmra.mxu0 %v4250
        %v4842 = vpop.f32.mrf.mxu0
        %v4843 = vadd.f32 %v4204, %v4842
        %v4844 = vpop.f32.mrf.mxu0
        %v4845 = vadd.f32 %v4209, %v4844
        %4846 = vdwg.mxu0
        %4847 = vmatpush.bf16.msra.mxu0 %v4111
        %4848 = vmatpush.bf16.msra.mxu0 %v4095
        %4849 = vmatpush.bf16.msra.mxu0 %v4079
        %4850 = vmatpush.bf16.msra.mxu0 %v4063
        %4851 = vmatpush.bf16.msra.mxu0 %v4047
        %4852 = vmatpush.bf16.msra.mxu0 %v4031
        %4853 = vmatpush.bf16.msra.mxu0 %v4015
        %4854 = vmatpush.bf16.msra.mxu0 %v3999
        %4855 = vmatmul.bf16.gmra.mxu0 %v4243
        %v4856 = vpop.f32.mrf.mxu0
        %v4857 = vadd.f32 %v4134, %v4856
        %v4858 = vpop.f32.mrf.mxu0
        %v4859 = vadd.f32 %v4139, %v4858
        %4860 = vmatmul.bf16.gmra.mxu0 %v4244
        %v4861 = vpop.f32.mrf.mxu0
        %v4862 = vadd.f32 %v4144, %v4861
        %v4863 = vpop.f32.mrf.mxu0
        %v4864 = vadd.f32 %v4149, %v4863
        %4865 = vmatmul.bf16.gmra.mxu0 %v4245
        %v4866 = vpop.f32.mrf.mxu0
        %v4867 = vadd.f32 %v4154, %v4866
        %v4868 = vpop.f32.mrf.mxu0
        %v4869 = vadd.f32 %v4159, %v4868
        %4870 = vmatmul.bf16.gmra.mxu0 %v4246
        %v4871 = vpop.f32.mrf.mxu0
        %v4872 = vadd.f32 %v4164, %v4871
        %v4873 = vpop.f32.mrf.mxu0
        %v4874 = vadd.f32 %v4169, %v4873
        %4875 = vmatmul.bf16.gmra.mxu0 %v4247
        %v4876 = vpop.f32.mrf.mxu0
        %v4877 = vadd.f32 %v4174, %v4876
        %v4878 = vpop.f32.mrf.mxu0
        %v4879 = vadd.f32 %v4179, %v4878
        %4880 = vmatmul.bf16.gmra.mxu0 %v4248
        %v4881 = vpop.f32.mrf.mxu0
        %v4882 = vadd.f32 %v4184, %v4881
        %v4883 = vpop.f32.mrf.mxu0
        %v4884 = vadd.f32 %v4189, %v4883
        %4885 = vmatmul.bf16.gmra.mxu0 %v4249
        %v4886 = vpop.f32.mrf.mxu0
        %v4887 = vadd.f32 %v4194, %v4886
        %v4888 = vpop.f32.mrf.mxu0
        %v4889 = vadd.f32 %v4199, %v4888
        %4890 = vmatmul.bf16.gmra.mxu0 %v4250
        %v4891 = vpop.f32.mrf.mxu0
        %v4892 = vadd.f32 %v4204, %v4891
        %v4893 = vpop.f32.mrf.mxu0
        %v4894 = vadd.f32 %v4209, %v4893
        %4895 = vdwg.mxu0
        %4896 = vmatpush.bf16.msra.mxu0 %v4112
        %4897 = vmatpush.bf16.msra.mxu0 %v4096
        %4898 = vmatpush.bf16.msra.mxu0 %v4080
        %4899 = vmatpush.bf16.msra.mxu0 %v4064
        %4900 = vmatpush.bf16.msra.mxu0 %v4048
        %4901 = vmatpush.bf16.msra.mxu0 %v4032
        %4902 = vmatpush.bf16.msra.mxu0 %v4016
        %4903 = vmatpush.bf16.msra.mxu0 %v4000
        %4904 = vmatmul.bf16.gmra.mxu0 %v4243
        %v4905 = vpop.f32.mrf.mxu0
        %v4906 = vadd.f32 %v4134, %v4905
        %v4907 = vpop.f32.mrf.mxu0
        %v4908 = vadd.f32 %v4139, %v4907
        %4909 = vmatmul.bf16.gmra.mxu0 %v4244
        %v4910 = vpop.f32.mrf.mxu0
        %v4911 = vadd.f32 %v4144, %v4910
        %v4912 = vpop.f32.mrf.mxu0
        %v4913 = vadd.f32 %v4149, %v4912
        %4914 = vmatmul.bf16.gmra.mxu0 %v4245
        %v4915 = vpop.f32.mrf.mxu0
        %v4916 = vadd.f32 %v4154, %v4915
        %v4917 = vpop.f32.mrf.mxu0
        %v4918 = vadd.f32 %v4159, %v4917
        %4919 = vmatmul.bf16.gmra.mxu0 %v4246
        %v4920 = vpop.f32.mrf.mxu0
        %v4921 = vadd.f32 %v4164, %v4920
        %v4922 = vpop.f32.mrf.mxu0
        %v4923 = vadd.f32 %v4169, %v4922
        %4924 = vmatmul.bf16.gmra.mxu0 %v4247
        %v4925 = vpop.f32.mrf.mxu0
        %v4926 = vadd.f32 %v4174, %v4925
        %v4927 = vpop.f32.mrf.mxu0
        %v4928 = vadd.f32 %v4179, %v4927
        %4929 = vmatmul.bf16.gmra.mxu0 %v4248
        %v4930 = vpop.f32.mrf.mxu0
        %v4931 = vadd.f32 %v4184, %v4930
        %v4932 = vpop.f32.mrf.mxu0
        %v4933 = vadd.f32 %v4189, %v4932
        %4934 = vmatmul.bf16.gmra.mxu0 %v4249
        %v4935 = vpop.f32.mrf.mxu0
        %v4936 = vadd.f32 %v4194, %v4935
        %v4937 = vpop.f32.mrf.mxu0
        %v4938 = vadd.f32 %v4199, %v4937
        %4939 = vmatmul.bf16.gmra.mxu0 %v4250
        %v4940 = vpop.f32.mrf.mxu0
        %v4941 = vadd.f32 %v4204, %v4940
        %v4942 = vpop.f32.mrf.mxu0
        %v4943 = vadd.f32 %v4209, %v4942
        %4944 = vdwg.mxu0
        %4945 = vmatpush.bf16.msra.mxu0 %v4113
        %4946 = vmatpush.bf16.msra.mxu0 %v4097
        %4947 = vmatpush.bf16.msra.mxu0 %v4081
        %4948 = vmatpush.bf16.msra.mxu0 %v4065
        %4949 = vmatpush.bf16.msra.mxu0 %v4049
        %4950 = vmatpush.bf16.msra.mxu0 %v4033
        %4951 = vmatpush.bf16.msra.mxu0 %v4017
        %4952 = vmatpush.bf16.msra.mxu0 %v4001
        %4953 = vmatmul.bf16.gmra.mxu0 %v4243
        %v4954 = vpop.f32.mrf.mxu0
        %v4955 = vadd.f32 %v4134, %v4954
        %v4956 = vpop.f32.mrf.mxu0
        %v4957 = vadd.f32 %v4139, %v4956
        %4958 = vmatmul.bf16.gmra.mxu0 %v4244
        %v4959 = vpop.f32.mrf.mxu0
        %v4960 = vadd.f32 %v4144, %v4959
        %v4961 = vpop.f32.mrf.mxu0
        %v4962 = vadd.f32 %v4149, %v4961
        %4963 = vmatmul.bf16.gmra.mxu0 %v4245
        %v4964 = vpop.f32.mrf.mxu0
        %v4965 = vadd.f32 %v4154, %v4964
        %v4966 = vpop.f32.mrf.mxu0
        %v4967 = vadd.f32 %v4159, %v4966
        %4968 = vmatmul.bf16.gmra.mxu0 %v4246
        %v4969 = vpop.f32.mrf.mxu0
        %v4970 = vadd.f32 %v4164, %v4969
        %v4971 = vpop.f32.mrf.mxu0
        %v4972 = vadd.f32 %v4169, %v4971
        %4973 = vmatmul.bf16.gmra.mxu0 %v4247
        %v4974 = vpop.f32.mrf.mxu0
        %v4975 = vadd.f32 %v4174, %v4974
        %v4976 = vpop.f32.mrf.mxu0
        %v4977 = vadd.f32 %v4179, %v4976
        %4978 = vmatmul.bf16.gmra.mxu0 %v4248
        %v4979 = vpop.f32.mrf.mxu0
        %v4980 = vadd.f32 %v4184, %v4979
        %v4981 = vpop.f32.mrf.mxu0
        %v4982 = vadd.f32 %v4189, %v4981
        %4983 = vmatmul.bf16.gmra.mxu0 %v4249
        %v4984 = vpop.f32.mrf.mxu0
        %v4985 = vadd.f32 %v4194, %v4984
        %v4986 = vpop.f32.mrf.mxu0
        %v4987 = vadd.f32 %v4199, %v4986
        %4988 = vmatmul.bf16.gmra.mxu0 %v4250
        %v4989 = vpop.f32.mrf.mxu0
        %v4990 = vadd.f32 %v4204, %v4989
        %v4991 = vpop.f32.mrf.mxu0
        %v4992 = vadd.f32 %v4209, %v4991
        %4993 = vdwg.mxu0
        %4994 = vmatpush.bf16.msra.mxu0 %v4114
        %4995 = vmatpush.bf16.msra.mxu0 %v4098
        %4996 = vmatpush.bf16.msra.mxu0 %v4082
        %4997 = vmatpush.bf16.msra.mxu0 %v4066
        %4998 = vmatpush.bf16.msra.mxu0 %v4050
        %4999 = vmatpush.bf16.msra.mxu0 %v4034
        %5000 = vmatpush.bf16.msra.mxu0 %v4018
        %5001 = vmatpush.bf16.msra.mxu0 %v4002
        %5002 = vmatmul.bf16.gmra.mxu0 %v4243
        %v5003 = vpop.f32.mrf.mxu0
        %v5004 = vadd.f32 %v4134, %v5003
        %v5005 = vpop.f32.mrf.mxu0
        %v5006 = vadd.f32 %v4139, %v5005
        %5007 = vmatmul.bf16.gmra.mxu0 %v4244
        %v5008 = vpop.f32.mrf.mxu0
        %v5009 = vadd.f32 %v4144, %v5008
        %v5010 = vpop.f32.mrf.mxu0
        %v5011 = vadd.f32 %v4149, %v5010
        %5012 = vmatmul.bf16.gmra.mxu0 %v4245
        %v5013 = vpop.f32.mrf.mxu0
        %v5014 = vadd.f32 %v4154, %v5013
        %v5015 = vpop.f32.mrf.mxu0
        %v5016 = vadd.f32 %v4159, %v5015
        %5017 = vmatmul.bf16.gmra.mxu0 %v4246
        %v5018 = vpop.f32.mrf.mxu0
        %v5019 = vadd.f32 %v4164, %v5018
        %v5020 = vpop.f32.mrf.mxu0
        %v5021 = vadd.f32 %v4169, %v5020
        %5022 = vmatmul.bf16.gmra.mxu0 %v4247
        %v5023 = vpop.f32.mrf.mxu0
        %v5024 = vadd.f32 %v4174, %v5023
        %v5025 = vpop.f32.mrf.mxu0
        %v5026 = vadd.f32 %v4179, %v5025
        %5027 = vmatmul.bf16.gmra.mxu0 %v4248
        %v5028 = vpop.f32.mrf.mxu0
        %v5029 = vadd.f32 %v4184, %v5028
        %v5030 = vpop.f32.mrf.mxu0
        %v5031 = vadd.f32 %v4189, %v5030
        %5032 = vmatmul.bf16.gmra.mxu0 %v4249
        %v5033 = vpop.f32.mrf.mxu0
        %v5034 = vadd.f32 %v4194, %v5033
        %v5035 = vpop.f32.mrf.mxu0
        %v5036 = vadd.f32 %v4199, %v5035
        %5037 = vmatmul.bf16.gmra.mxu0 %v4250
        %v5038 = vpop.f32.mrf.mxu0
        %v5039 = vadd.f32 %v4204, %v5038
        %v5040 = vpop.f32.mrf.mxu0
        %v5041 = vadd.f32 %v4209, %v5040
        %5042 = vdwg.mxu0
        %vm5043 = vcmp.ge.f32.partialorder %v4269, 0.0
        %vm5044 = vcmp.ge.f32.partialorder %v4318, 0.0
        %vm5045 = vcmp.ge.f32.partialorder %v4367, 0.0
        %vm5046 = vcmp.ge.f32.partialorder %v4416, 0.0
        %vm5047 = vcmp.ge.f32.partialorder %v4465, 0.0
        %vm5048 = vcmp.ge.f32.partialorder %v4514, 0.0
        %vm5049 = vcmp.ge.f32.partialorder %v4563, 0.0
        %vm5050 = vcmp.ge.f32.partialorder %v4612, 0.0
        %vm5051 = vcmp.ge.f32.partialorder %v4661, 0.0
        %vm5052 = vcmp.ge.f32.partialorder %v4710, 0.0
        %vm5053 = vcmp.ge.f32.partialorder %v4759, 0.0
        %vm5054 = vcmp.ge.f32.partialorder %v4808, 0.0
        %vm5055 = vcmp.ge.f32.partialorder %v4857, 0.0
        %vm5056 = vcmp.ge.f32.partialorder %v4906, 0.0
        %vm5057 = vcmp.ge.f32.partialorder %v4955, 0.0
        %vm5058 = vcmp.ge.f32.partialorder %v5004, 0.0
        %vm5059 = vcmp.ge.f32.partialorder %v4271, 0.0
        %vm5060 = vcmp.ge.f32.partialorder %v4320, 0.0
        %vm5061 = vcmp.ge.f32.partialorder %v4369, 0.0
        %vm5062 = vcmp.ge.f32.partialorder %v4418, 0.0
        %vm5063 = vcmp.ge.f32.partialorder %v4467, 0.0
        %vm5064 = vcmp.ge.f32.partialorder %v4516, 0.0
        %vm5065 = vcmp.ge.f32.partialorder %v4565, 0.0
        %vm5066 = vcmp.ge.f32.partialorder %v4614, 0.0
        %vm5067 = vcmp.ge.f32.partialorder %v4663, 0.0
        %vm5068 = vcmp.ge.f32.partialorder %v4712, 0.0
        %vm5069 = vcmp.ge.f32.partialorder %v4761, 0.0
        %vm5070 = vcmp.ge.f32.partialorder %v4810, 0.0
        %vm5071 = vcmp.ge.f32.partialorder %v4859, 0.0
        %vm5072 = vcmp.ge.f32.partialorder %v4908, 0.0
        %vm5073 = vcmp.ge.f32.partialorder %v4957, 0.0
        %vm5074 = vcmp.ge.f32.partialorder %v5006, 0.0
        %vm5075 = vcmp.ge.f32.partialorder %v4274, 0.0
        %vm5076 = vcmp.ge.f32.partialorder %v4323, 0.0
        %vm5077 = vcmp.ge.f32.partialorder %v4372, 0.0
        %vm5078 = vcmp.ge.f32.partialorder %v4421, 0.0
        %vm5079 = vcmp.ge.f32.partialorder %v4470, 0.0
        %vm5080 = vcmp.ge.f32.partialorder %v4519, 0.0
        %vm5081 = vcmp.ge.f32.partialorder %v4568, 0.0
        %vm5082 = vcmp.ge.f32.partialorder %v4617, 0.0
        %vm5083 = vcmp.ge.f32.partialorder %v4666, 0.0
        %vm5084 = vcmp.ge.f32.partialorder %v4715, 0.0
        %vm5085 = vcmp.ge.f32.partialorder %v4764, 0.0
        %vm5086 = vcmp.ge.f32.partialorder %v4813, 0.0
        %vm5087 = vcmp.ge.f32.partialorder %v4862, 0.0
        %vm5088 = vcmp.ge.f32.partialorder %v4911, 0.0
        %vm5089 = vcmp.ge.f32.partialorder %v4960, 0.0
        %vm5090 = vcmp.ge.f32.partialorder %v5009, 0.0
        %vm5091 = vcmp.ge.f32.partialorder %v4276, 0.0
        %vm5092 = vcmp.ge.f32.partialorder %v4325, 0.0
        %vm5093 = vcmp.ge.f32.partialorder %v4374, 0.0
        %vm5094 = vcmp.ge.f32.partialorder %v4423, 0.0
        %vm5095 = vcmp.ge.f32.partialorder %v4472, 0.0
        %vm5096 = vcmp.ge.f32.partialorder %v4521, 0.0
        %vm5097 = vcmp.ge.f32.partialorder %v4570, 0.0
        %vm5098 = vcmp.ge.f32.partialorder %v4619, 0.0
        %vm5099 = vcmp.ge.f32.partialorder %v4668, 0.0
        %vm5100 = vcmp.ge.f32.partialorder %v4717, 0.0
        %vm5101 = vcmp.ge.f32.partialorder %v4766, 0.0
        %vm5102 = vcmp.ge.f32.partialorder %v4815, 0.0
        %vm5103 = vcmp.ge.f32.partialorder %v4864, 0.0
        %vm5104 = vcmp.ge.f32.partialorder %v4913, 0.0
        %vm5105 = vcmp.ge.f32.partialorder %v4962, 0.0
        %vm5106 = vcmp.ge.f32.partialorder %v5011, 0.0
        %vm5107 = vcmp.ge.f32.partialorder %v4279, 0.0
        %vm5108 = vcmp.ge.f32.partialorder %v4328, 0.0
        %vm5109 = vcmp.ge.f32.partialorder %v4377, 0.0
        %vm5110 = vcmp.ge.f32.partialorder %v4426, 0.0
        %vm5111 = vcmp.ge.f32.partialorder %v4475, 0.0
        %vm5112 = vcmp.ge.f32.partialorder %v4524, 0.0
        %vm5113 = vcmp.ge.f32.partialorder %v4573, 0.0
        %vm5114 = vcmp.ge.f32.partialorder %v4622, 0.0
        %vm5115 = vcmp.ge.f32.partialorder %v4671, 0.0
        %vm5116 = vcmp.ge.f32.partialorder %v4720, 0.0
        %vm5117 = vcmp.ge.f32.partialorder %v4769, 0.0
        %vm5118 = vcmp.ge.f32.partialorder %v4818, 0.0
        %vm5119 = vcmp.ge.f32.partialorder %v4867, 0.0
        %vm5120 = vcmp.ge.f32.partialorder %v4916, 0.0
        %vm5121 = vcmp.ge.f32.partialorder %v4965, 0.0
        %vm5122 = vcmp.ge.f32.partialorder %v5014, 0.0
        %vm5123 = vcmp.ge.f32.partialorder %v4281, 0.0
        %vm5124 = vcmp.ge.f32.partialorder %v4330, 0.0
        %vm5125 = vcmp.ge.f32.partialorder %v4379, 0.0
        %vm5126 = vcmp.ge.f32.partialorder %v4428, 0.0
        %vm5127 = vcmp.ge.f32.partialorder %v4477, 0.0
        %vm5128 = vcmp.ge.f32.partialorder %v4526, 0.0
        %vm5129 = vcmp.ge.f32.partialorder %v4575, 0.0
        %vm5130 = vcmp.ge.f32.partialorder %v4624, 0.0
        %vm5131 = vcmp.ge.f32.partialorder %v4673, 0.0
        %vm5132 = vcmp.ge.f32.partialorder %v4722, 0.0
        %vm5133 = vcmp.ge.f32.partialorder %v4771, 0.0
        %vm5134 = vcmp.ge.f32.partialorder %v4820, 0.0
        %vm5135 = vcmp.ge.f32.partialorder %v4869, 0.0
        %vm5136 = vcmp.ge.f32.partialorder %v4918, 0.0
        %vm5137 = vcmp.ge.f32.partialorder %v4967, 0.0
        %vm5138 = vcmp.ge.f32.partialorder %v5016, 0.0
        %vm5139 = vcmp.ge.f32.partialorder %v4284, 0.0
        %vm5140 = vcmp.ge.f32.partialorder %v4333, 0.0
        %vm5141 = vcmp.ge.f32.partialorder %v4382, 0.0
        %vm5142 = vcmp.ge.f32.partialorder %v4431, 0.0
        %vm5143 = vcmp.ge.f32.partialorder %v4480, 0.0
        %vm5144 = vcmp.ge.f32.partialorder %v4529, 0.0
        %vm5145 = vcmp.ge.f32.partialorder %v4578, 0.0
        %vm5146 = vcmp.ge.f32.partialorder %v4627, 0.0
        %vm5147 = vcmp.ge.f32.partialorder %v4676, 0.0
        %vm5148 = vcmp.ge.f32.partialorder %v4725, 0.0
        %vm5149 = vcmp.ge.f32.partialorder %v4774, 0.0
        %vm5150 = vcmp.ge.f32.partialorder %v4823, 0.0
        %vm5151 = vcmp.ge.f32.partialorder %v4872, 0.0
        %vm5152 = vcmp.ge.f32.partialorder %v4921, 0.0
        %vm5153 = vcmp.ge.f32.partialorder %v4970, 0.0
        %vm5154 = vcmp.ge.f32.partialorder %v5019, 0.0
        %vm5155 = vcmp.ge.f32.partialorder %v4286, 0.0
        %vm5156 = vcmp.ge.f32.partialorder %v4335, 0.0
        %vm5157 = vcmp.ge.f32.partialorder %v4384, 0.0
        %vm5158 = vcmp.ge.f32.partialorder %v4433, 0.0
        %vm5159 = vcmp.ge.f32.partialorder %v4482, 0.0
        %vm5160 = vcmp.ge.f32.partialorder %v4531, 0.0
        %vm5161 = vcmp.ge.f32.partialorder %v4580, 0.0
        %vm5162 = vcmp.ge.f32.partialorder %v4629, 0.0
        %vm5163 = vcmp.ge.f32.partialorder %v4678, 0.0
        %vm5164 = vcmp.ge.f32.partialorder %v4727, 0.0
        %vm5165 = vcmp.ge.f32.partialorder %v4776, 0.0
        %vm5166 = vcmp.ge.f32.partialorder %v4825, 0.0
        %vm5167 = vcmp.ge.f32.partialorder %v4874, 0.0
        %vm5168 = vcmp.ge.f32.partialorder %v4923, 0.0
        %vm5169 = vcmp.ge.f32.partialorder %v4972, 0.0
        %vm5170 = vcmp.ge.f32.partialorder %v5021, 0.0
        %vm5171 = vcmp.ge.f32.partialorder %v4289, 0.0
        %vm5172 = vcmp.ge.f32.partialorder %v4338, 0.0
        %vm5173 = vcmp.ge.f32.partialorder %v4387, 0.0
        %vm5174 = vcmp.ge.f32.partialorder %v4436, 0.0
        %vm5175 = vcmp.ge.f32.partialorder %v4485, 0.0
        %vm5176 = vcmp.ge.f32.partialorder %v4534, 0.0
        %vm5177 = vcmp.ge.f32.partialorder %v4583, 0.0
        %vm5178 = vcmp.ge.f32.partialorder %v4632, 0.0
        %vm5179 = vcmp.ge.f32.partialorder %v4681, 0.0
        %vm5180 = vcmp.ge.f32.partialorder %v4730, 0.0
        %vm5181 = vcmp.ge.f32.partialorder %v4779, 0.0
        %vm5182 = vcmp.ge.f32.partialorder %v4828, 0.0
        %vm5183 = vcmp.ge.f32.partialorder %v4877, 0.0
        %vm5184 = vcmp.ge.f32.partialorder %v4926, 0.0
        %vm5185 = vcmp.ge.f32.partialorder %v4975, 0.0
        %vm5186 = vcmp.ge.f32.partialorder %v5024, 0.0
        %vm5187 = vcmp.ge.f32.partialorder %v4291, 0.0
        %vm5188 = vcmp.ge.f32.partialorder %v4340, 0.0
        %vm5189 = vcmp.ge.f32.partialorder %v4389, 0.0
        %vm5190 = vcmp.ge.f32.partialorder %v4438, 0.0
        %vm5191 = vcmp.ge.f32.partialorder %v4487, 0.0
        %vm5192 = vcmp.ge.f32.partialorder %v4536, 0.0
        %vm5193 = vcmp.ge.f32.partialorder %v4585, 0.0
        %vm5194 = vcmp.ge.f32.partialorder %v4634, 0.0
        %vm5195 = vcmp.ge.f32.partialorder %v4683, 0.0
        %vm5196 = vcmp.ge.f32.partialorder %v4732, 0.0
        %vm5197 = vcmp.ge.f32.partialorder %v4781, 0.0
        %vm5198 = vcmp.ge.f32.partialorder %v4830, 0.0
        %vm5199 = vcmp.ge.f32.partialorder %v4879, 0.0
        %vm5200 = vcmp.ge.f32.partialorder %v4928, 0.0
        %vm5201 = vcmp.ge.f32.partialorder %v4977, 0.0
        %vm5202 = vcmp.ge.f32.partialorder %v5026, 0.0
        %vm5203 = vcmp.ge.f32.partialorder %v4294, 0.0
        %vm5204 = vcmp.ge.f32.partialorder %v4343, 0.0
        %vm5205 = vcmp.ge.f32.partialorder %v4392, 0.0
        %vm5206 = vcmp.ge.f32.partialorder %v4441, 0.0
        %vm5207 = vcmp.ge.f32.partialorder %v4490, 0.0
        %vm5208 = vcmp.ge.f32.partialorder %v4539, 0.0
        %vm5209 = vcmp.ge.f32.partialorder %v4588, 0.0
        %vm5210 = vcmp.ge.f32.partialorder %v4637, 0.0
        %vm5211 = vcmp.ge.f32.partialorder %v4686, 0.0
        %vm5212 = vcmp.ge.f32.partialorder %v4735, 0.0
        %vm5213 = vcmp.ge.f32.partialorder %v4784, 0.0
        %vm5214 = vcmp.ge.f32.partialorder %v4833, 0.0
        %vm5215 = vcmp.ge.f32.partialorder %v4882, 0.0
        %vm5216 = vcmp.ge.f32.partialorder %v4931, 0.0
        %vm5217 = vcmp.ge.f32.partialorder %v4980, 0.0
        %vm5218 = vcmp.ge.f32.partialorder %v5029, 0.0
        %vm5219 = vcmp.ge.f32.partialorder %v4296, 0.0
        %vm5220 = vcmp.ge.f32.partialorder %v4345, 0.0
        %vm5221 = vcmp.ge.f32.partialorder %v4394, 0.0
        %vm5222 = vcmp.ge.f32.partialorder %v4443, 0.0
        %vm5223 = vcmp.ge.f32.partialorder %v4492, 0.0
        %vm5224 = vcmp.ge.f32.partialorder %v4541, 0.0
        %vm5225 = vcmp.ge.f32.partialorder %v4590, 0.0
        %vm5226 = vcmp.ge.f32.partialorder %v4639, 0.0
        %vm5227 = vcmp.ge.f32.partialorder %v4688, 0.0
        %vm5228 = vcmp.ge.f32.partialorder %v4737, 0.0
        %vm5229 = vcmp.ge.f32.partialorder %v4786, 0.0
        %vm5230 = vcmp.ge.f32.partialorder %v4835, 0.0
        %vm5231 = vcmp.ge.f32.partialorder %v4884, 0.0
        %vm5232 = vcmp.ge.f32.partialorder %v4933, 0.0
        %vm5233 = vcmp.ge.f32.partialorder %v4982, 0.0
        %vm5234 = vcmp.ge.f32.partialorder %v5031, 0.0
        %vm5235 = vcmp.ge.f32.partialorder %v4299, 0.0
        %vm5236 = vcmp.ge.f32.partialorder %v4348, 0.0
        %vm5237 = vcmp.ge.f32.partialorder %v4397, 0.0
        %vm5238 = vcmp.ge.f32.partialorder %v4446, 0.0
        %vm5239 = vcmp.ge.f32.partialorder %v4495, 0.0
        %vm5240 = vcmp.ge.f32.partialorder %v4544, 0.0
        %vm5241 = vcmp.ge.f32.partialorder %v4593, 0.0
        %vm5242 = vcmp.ge.f32.partialorder %v4642, 0.0
        %vm5243 = vcmp.ge.f32.partialorder %v4691, 0.0
        %vm5244 = vcmp.ge.f32.partialorder %v4740, 0.0
        %vm5245 = vcmp.ge.f32.partialorder %v4789, 0.0
        %vm5246 = vcmp.ge.f32.partialorder %v4838, 0.0
        %vm5247 = vcmp.ge.f32.partialorder %v4887, 0.0
        %vm5248 = vcmp.ge.f32.partialorder %v4936, 0.0
        %vm5249 = vcmp.ge.f32.partialorder %v4985, 0.0
        %vm5250 = vcmp.ge.f32.partialorder %v5034, 0.0
        %vm5251 = vcmp.ge.f32.partialorder %v4301, 0.0
        %vm5252 = vcmp.ge.f32.partialorder %v4350, 0.0
        %vm5253 = vcmp.ge.f32.partialorder %v4399, 0.0
        %vm5254 = vcmp.ge.f32.partialorder %v4448, 0.0
        %vm5255 = vcmp.ge.f32.partialorder %v4497, 0.0
        %vm5256 = vcmp.ge.f32.partialorder %v4546, 0.0
        %vm5257 = vcmp.ge.f32.partialorder %v4595, 0.0
        %vm5258 = vcmp.ge.f32.partialorder %v4644, 0.0
        %vm5259 = vcmp.ge.f32.partialorder %v4693, 0.0
        %vm5260 = vcmp.ge.f32.partialorder %v4742, 0.0
        %vm5261 = vcmp.ge.f32.partialorder %v4791, 0.0
        %vm5262 = vcmp.ge.f32.partialorder %v4840, 0.0
        %vm5263 = vcmp.ge.f32.partialorder %v4889, 0.0
        %vm5264 = vcmp.ge.f32.partialorder %v4938, 0.0
        %vm5265 = vcmp.ge.f32.partialorder %v4987, 0.0
        %vm5266 = vcmp.ge.f32.partialorder %v5036, 0.0
        %vm5267 = vcmp.ge.f32.partialorder %v4304, 0.0
        %vm5268 = vcmp.ge.f32.partialorder %v4353, 0.0
        %vm5269 = vcmp.ge.f32.partialorder %v4402, 0.0
        %vm5270 = vcmp.ge.f32.partialorder %v4451, 0.0
        %vm5271 = vcmp.ge.f32.partialorder %v4500, 0.0
        %vm5272 = vcmp.ge.f32.partialorder %v4549, 0.0
        %vm5273 = vcmp.ge.f32.partialorder %v4598, 0.0
        %vm5274 = vcmp.ge.f32.partialorder %v4647, 0.0
        %vm5275 = vcmp.ge.f32.partialorder %v4696, 0.0
        %vm5276 = vcmp.ge.f32.partialorder %v4745, 0.0
        %vm5277 = vcmp.ge.f32.partialorder %v4794, 0.0
        %vm5278 = vcmp.ge.f32.partialorder %v4843, 0.0
        %vm5279 = vcmp.ge.f32.partialorder %v4892, 0.0
        %vm5280 = vcmp.ge.f32.partialorder %v4941, 0.0
        %vm5281 = vcmp.ge.f32.partialorder %v4990, 0.0
        %vm5282 = vcmp.ge.f32.partialorder %v5039, 0.0
        %vm5283 = vcmp.ge.f32.partialorder %v4306, 0.0
        %vm5284 = vcmp.ge.f32.partialorder %v4355, 0.0
        %vm5285 = vcmp.ge.f32.partialorder %v4404, 0.0
        %vm5286 = vcmp.ge.f32.partialorder %v4453, 0.0
        %vm5287 = vcmp.ge.f32.partialorder %v4502, 0.0
        %vm5288 = vcmp.ge.f32.partialorder %v4551, 0.0
        %vm5289 = vcmp.ge.f32.partialorder %v4600, 0.0
        %vm5290 = vcmp.ge.f32.partialorder %v4649, 0.0
        %vm5291 = vcmp.ge.f32.partialorder %v4698, 0.0
        %vm5292 = vcmp.ge.f32.partialorder %v4747, 0.0
        %vm5293 = vcmp.ge.f32.partialorder %v4796, 0.0
        %vm5294 = vcmp.ge.f32.partialorder %v4845, 0.0
        %vm5295 = vcmp.ge.f32.partialorder %v4894, 0.0
        %vm5296 = vcmp.ge.f32.partialorder %v4943, 0.0
        %vm5297 = vcmp.ge.f32.partialorder %v4992, 0.0
        %vm5298 = vcmp.ge.f32.partialorder %v5041, 0.0
        %v5299 = vmul.f32 %v4269, 0.2
        %v5300 = vmul.f32 %v4318, 0.2
        %v5301 = vmul.f32 %v4367, 0.2
        %v5302 = vmul.f32 %v4416, 0.2
        %v5303 = vmul.f32 %v4465, 0.2
        %v5304 = vmul.f32 %v4514, 0.2
        %v5305 = vmul.f32 %v4563, 0.2
        %v5306 = vmul.f32 %v4612, 0.2
        %v5307 = vmul.f32 %v4661, 0.2
        %v5308 = vmul.f32 %v4710, 0.2
        %v5309 = vmul.f32 %v4759, 0.2
        %v5310 = vmul.f32 %v4808, 0.2
        %v5311 = vmul.f32 %v4857, 0.2
        %v5312 = vmul.f32 %v4906, 0.2
        %v5313 = vmul.f32 %v4955, 0.2
        %v5314 = vmul.f32 %v5004, 0.2
        %v5315 = vmul.f32 %v4271, 0.2
        %v5316 = vmul.f32 %v4320, 0.2
        %v5317 = vmul.f32 %v4369, 0.2
        %v5318 = vmul.f32 %v4418, 0.2
        %v5319 = vmul.f32 %v4467, 0.2
        %v5320 = vmul.f32 %v4516, 0.2
        %v5321 = vmul.f32 %v4565, 0.2
        %v5322 = vmul.f32 %v4614, 0.2
        %v5323 = vmul.f32 %v4663, 0.2
        %v5324 = vmul.f32 %v4712, 0.2
        %v5325 = vmul.f32 %v4761, 0.2
        %v5326 = vmul.f32 %v4810, 0.2
        %v5327 = vmul.f32 %v4859, 0.2
        %v5328 = vmul.f32 %v4908, 0.2
        %v5329 = vmul.f32 %v4957, 0.2
        %v5330 = vmul.f32 %v5006, 0.2
        %v5331 = vmul.f32 %v4274, 0.2
        %v5332 = vmul.f32 %v4323, 0.2
        %v5333 = vmul.f32 %v4372, 0.2
        %v5334 = vmul.f32 %v4421, 0.2
        %v5335 = vmul.f32 %v4470, 0.2
        %v5336 = vmul.f32 %v4519, 0.2
        %v5337 = vmul.f32 %v4568, 0.2
        %v5338 = vmul.f32 %v4617, 0.2
        %v5339 = vmul.f32 %v4666, 0.2
        %v5340 = vmul.f32 %v4715, 0.2
        %v5341 = vmul.f32 %v4764, 0.2
        %v5342 = vmul.f32 %v4813, 0.2
        %v5343 = vmul.f32 %v4862, 0.2
        %v5344 = vmul.f32 %v4911, 0.2
        %v5345 = vmul.f32 %v4960, 0.2
        %v5346 = vmul.f32 %v5009, 0.2
        %v5347 = vmul.f32 %v4276, 0.2
        %v5348 = vmul.f32 %v4325, 0.2
        %v5349 = vmul.f32 %v4374, 0.2
        %v5350 = vmul.f32 %v4423, 0.2
        %v5351 = vmul.f32 %v4472, 0.2
        %v5352 = vmul.f32 %v4521, 0.2
        %v5353 = vmul.f32 %v4570, 0.2
        %v5354 = vmul.f32 %v4619, 0.2
        %v5355 = vmul.f32 %v4668, 0.2
        %v5356 = vmul.f32 %v4717, 0.2
        %v5357 = vmul.f32 %v4766, 0.2
        %v5358 = vmul.f32 %v4815, 0.2
        %v5359 = vmul.f32 %v4864, 0.2
        %v5360 = vmul.f32 %v4913, 0.2
        %v5361 = vmul.f32 %v4962, 0.2
        %v5362 = vmul.f32 %v5011, 0.2
        %v5363 = vmul.f32 %v4279, 0.2
        %v5364 = vmul.f32 %v4328, 0.2
        %v5365 = vmul.f32 %v4377, 0.2
        %v5366 = vmul.f32 %v4426, 0.2
        %v5367 = vmul.f32 %v4475, 0.2
        %v5368 = vmul.f32 %v4524, 0.2
        %v5369 = vmul.f32 %v4573, 0.2
        %v5370 = vmul.f32 %v4622, 0.2
        %v5371 = vmul.f32 %v4671, 0.2
        %v5372 = vmul.f32 %v4720, 0.2
        %v5373 = vmul.f32 %v4769, 0.2
        %v5374 = vmul.f32 %v4818, 0.2
        %v5375 = vmul.f32 %v4867, 0.2
        %v5376 = vmul.f32 %v4916, 0.2
        %v5377 = vmul.f32 %v4965, 0.2
        %v5378 = vmul.f32 %v5014, 0.2
        %v5379 = vmul.f32 %v4281, 0.2
        %v5380 = vmul.f32 %v4330, 0.2
        %v5381 = vmul.f32 %v4379, 0.2
        %v5382 = vmul.f32 %v4428, 0.2
        %v5383 = vmul.f32 %v4477, 0.2
        %v5384 = vmul.f32 %v4526, 0.2
        %v5385 = vmul.f32 %v4575, 0.2
        %v5386 = vmul.f32 %v4624, 0.2
        %v5387 = vmul.f32 %v4673, 0.2
        %v5388 = vmul.f32 %v4722, 0.2
        %v5389 = vmul.f32 %v4771, 0.2
        %v5390 = vmul.f32 %v4820, 0.2
        %v5391 = vmul.f32 %v4869, 0.2
        %v5392 = vmul.f32 %v4918, 0.2
        %v5393 = vmul.f32 %v4967, 0.2
        %v5394 = vmul.f32 %v5016, 0.2
        %v5395 = vmul.f32 %v4284, 0.2
        %v5396 = vmul.f32 %v4333, 0.2
        %v5397 = vmul.f32 %v4382, 0.2
        %v5398 = vmul.f32 %v4431, 0.2
        %v5399 = vmul.f32 %v4480, 0.2
        %v5400 = vmul.f32 %v4529, 0.2
        %v5401 = vmul.f32 %v4578, 0.2
        %v5402 = vmul.f32 %v4627, 0.2
        %v5403 = vmul.f32 %v4676, 0.2
        %v5404 = vmul.f32 %v4725, 0.2
        %v5405 = vmul.f32 %v4774, 0.2
        %v5406 = vmul.f32 %v4823, 0.2
        %v5407 = vmul.f32 %v4872, 0.2
        %v5408 = vmul.f32 %v4921, 0.2
        %v5409 = vmul.f32 %v4970, 0.2
        %v5410 = vmul.f32 %v5019, 0.2
        %v5411 = vmul.f32 %v4286, 0.2
        %v5412 = vmul.f32 %v4335, 0.2
        %v5413 = vmul.f32 %v4384, 0.2
        %v5414 = vmul.f32 %v4433, 0.2
        %v5415 = vmul.f32 %v4482, 0.2
        %v5416 = vmul.f32 %v4531, 0.2
        %v5417 = vmul.f32 %v4580, 0.2
        %v5418 = vmul.f32 %v4629, 0.2
        %v5419 = vmul.f32 %v4678, 0.2
        %v5420 = vmul.f32 %v4727, 0.2
        %v5421 = vmul.f32 %v4776, 0.2
        %v5422 = vmul.f32 %v4825, 0.2
        %v5423 = vmul.f32 %v4874, 0.2
        %v5424 = vmul.f32 %v4923, 0.2
        %v5425 = vmul.f32 %v4972, 0.2
        %v5426 = vmul.f32 %v5021, 0.2
        %v5427 = vmul.f32 %v4289, 0.2
        %v5428 = vmul.f32 %v4338, 0.2
        %v5429 = vmul.f32 %v4387, 0.2
        %v5430 = vmul.f32 %v4436, 0.2
        %v5431 = vmul.f32 %v4485, 0.2
        %v5432 = vmul.f32 %v4534, 0.2
        %v5433 = vmul.f32 %v4583, 0.2
        %v5434 = vmul.f32 %v4632, 0.2
        %v5435 = vmul.f32 %v4681, 0.2
        %v5436 = vmul.f32 %v4730, 0.2
        %v5437 = vmul.f32 %v4779, 0.2
        %v5438 = vmul.f32 %v4828, 0.2
        %v5439 = vmul.f32 %v4877, 0.2
        %v5440 = vmul.f32 %v4926, 0.2
        %v5441 = vmul.f32 %v4975, 0.2
        %v5442 = vmul.f32 %v5024, 0.2
        %v5443 = vmul.f32 %v4291, 0.2
        %v5444 = vmul.f32 %v4340, 0.2
        %v5445 = vmul.f32 %v4389, 0.2
        %v5446 = vmul.f32 %v4438, 0.2
        %v5447 = vmul.f32 %v4487, 0.2
        %v5448 = vmul.f32 %v4536, 0.2
        %v5449 = vmul.f32 %v4585, 0.2
        %v5450 = vmul.f32 %v4634, 0.2
        %v5451 = vmul.f32 %v4683, 0.2
        %v5452 = vmul.f32 %v4732, 0.2
        %v5453 = vmul.f32 %v4781, 0.2
        %v5454 = vmul.f32 %v4830, 0.2
        %v5455 = vmul.f32 %v4879, 0.2
        %v5456 = vmul.f32 %v4928, 0.2
        %v5457 = vmul.f32 %v4977, 0.2
        %v5458 = vmul.f32 %v5026, 0.2
        %v5459 = vmul.f32 %v4294, 0.2
        %v5460 = vmul.f32 %v4343, 0.2
        %v5461 = vmul.f32 %v4392, 0.2
        %v5462 = vmul.f32 %v4441, 0.2
        %v5463 = vmul.f32 %v4490, 0.2
        %v5464 = vmul.f32 %v4539, 0.2
        %v5465 = vmul.f32 %v4588, 0.2
        %v5466 = vmul.f32 %v4637, 0.2
        %v5467 = vmul.f32 %v4686, 0.2
        %v5468 = vmul.f32 %v4735, 0.2
        %v5469 = vmul.f32 %v4784, 0.2
        %v5470 = vmul.f32 %v4833, 0.2
        %v5471 = vmul.f32 %v4882, 0.2
        %v5472 = vmul.f32 %v4931, 0.2
        %v5473 = vmul.f32 %v4980, 0.2
        %v5474 = vmul.f32 %v5029, 0.2
        %v5475 = vmul.f32 %v4296, 0.2
        %v5476 = vmul.f32 %v4345, 0.2
        %v5477 = vmul.f32 %v4394, 0.2
        %v5478 = vmul.f32 %v4443, 0.2
        %v5479 = vmul.f32 %v4492, 0.2
        %v5480 = vmul.f32 %v4541, 0.2
        %v5481 = vmul.f32 %v4590, 0.2
        %v5482 = vmul.f32 %v4639, 0.2
        %v5483 = vmul.f32 %v4688, 0.2
        %v5484 = vmul.f32 %v4737, 0.2
        %v5485 = vmul.f32 %v4786, 0.2
        %v5486 = vmul.f32 %v4835, 0.2
        %v5487 = vmul.f32 %v4884, 0.2
        %v5488 = vmul.f32 %v4933, 0.2
        %v5489 = vmul.f32 %v4982, 0.2
        %v5490 = vmul.f32 %v5031, 0.2
        %v5491 = vmul.f32 %v4299, 0.2
        %v5492 = vmul.f32 %v4348, 0.2
        %v5493 = vmul.f32 %v4397, 0.2
        %v5494 = vmul.f32 %v4446, 0.2
        %v5495 = vmul.f32 %v4495, 0.2
        %v5496 = vmul.f32 %v4544, 0.2
        %v5497 = vmul.f32 %v4593, 0.2
        %v5498 = vmul.f32 %v4642, 0.2
        %v5499 = vmul.f32 %v4691, 0.2
        %v5500 = vmul.f32 %v4740, 0.2
        %v5501 = vmul.f32 %v4789, 0.2
        %v5502 = vmul.f32 %v4838, 0.2
        %v5503 = vmul.f32 %v4887, 0.2
        %v5504 = vmul.f32 %v4936, 0.2
        %v5505 = vmul.f32 %v4985, 0.2
        %v5506 = vmul.f32 %v5034, 0.2
        %v5507 = vmul.f32 %v4301, 0.2
        %v5508 = vmul.f32 %v4350, 0.2
        %v5509 = vmul.f32 %v4399, 0.2
        %v5510 = vmul.f32 %v4448, 0.2
        %v5511 = vmul.f32 %v4497, 0.2
        %v5512 = vmul.f32 %v4546, 0.2
        %v5513 = vmul.f32 %v4595, 0.2
        %v5514 = vmul.f32 %v4644, 0.2
        %v5515 = vmul.f32 %v4693, 0.2
        %v5516 = vmul.f32 %v4742, 0.2
        %v5517 = vmul.f32 %v4791, 0.2
        %v5518 = vmul.f32 %v4840, 0.2
        %v5519 = vmul.f32 %v4889, 0.2
        %v5520 = vmul.f32 %v4938, 0.2
        %v5521 = vmul.f32 %v4987, 0.2
        %v5522 = vmul.f32 %v5036, 0.2
        %v5523 = vmul.f32 %v4304, 0.2
        %v5524 = vmul.f32 %v4353, 0.2
        %v5525 = vmul.f32 %v4402, 0.2
        %v5526 = vmul.f32 %v4451, 0.2
        %v5527 = vmul.f32 %v4500, 0.2
        %v5528 = vmul.f32 %v4549, 0.2
        %v5529 = vmul.f32 %v4598, 0.2
        %v5530 = vmul.f32 %v4647, 0.2
        %v5531 = vmul.f32 %v4696, 0.2
        %v5532 = vmul.f32 %v4745, 0.2
        %v5533 = vmul.f32 %v4794, 0.2
        %v5534 = vmul.f32 %v4843, 0.2
        %v5535 = vmul.f32 %v4892, 0.2
        %v5536 = vmul.f32 %v4941, 0.2
        %v5537 = vmul.f32 %v4990, 0.2
        %v5538 = vmul.f32 %v5039, 0.2
        %v5539 = vmul.f32 %v4306, 0.2
        %v5540 = vmul.f32 %v4355, 0.2
        %v5541 = vmul.f32 %v4404, 0.2
        %v5542 = vmul.f32 %v4453, 0.2
        %v5543 = vmul.f32 %v4502, 0.2
        %v5544 = vmul.f32 %v4551, 0.2
        %v5545 = vmul.f32 %v4600, 0.2
        %v5546 = vmul.f32 %v4649, 0.2
        %v5547 = vmul.f32 %v4698, 0.2
        %v5548 = vmul.f32 %v4747, 0.2
        %v5549 = vmul.f32 %v4796, 0.2
        %v5550 = vmul.f32 %v4845, 0.2
        %v5551 = vmul.f32 %v4894, 0.2
        %v5552 = vmul.f32 %v4943, 0.2
        %v5553 = vmul.f32 %v4992, 0.2
        %v5554 = vmul.f32 %v5041, 0.2
        %v5555 = vsel %vm5043, %v4269, %v5299
        %v5556 = vsel %vm5044, %v4318, %v5300
        %v5557 = vsel %vm5045, %v4367, %v5301
        %v5558 = vsel %vm5046, %v4416, %v5302
        %v5559 = vsel %vm5047, %v4465, %v5303
        %v5560 = vsel %vm5048, %v4514, %v5304
        %v5561 = vsel %vm5049, %v4563, %v5305
        %v5562 = vsel %vm5050, %v4612, %v5306
        %v5563 = vsel %vm5051, %v4661, %v5307
        %v5564 = vsel %vm5052, %v4710, %v5308
        %v5565 = vsel %vm5053, %v4759, %v5309
        %v5566 = vsel %vm5054, %v4808, %v5310
        %v5567 = vsel %vm5055, %v4857, %v5311
        %v5568 = vsel %vm5056, %v4906, %v5312
        %v5569 = vsel %vm5057, %v4955, %v5313
        %v5570 = vsel %vm5058, %v5004, %v5314
        %v5571 = vsel %vm5059, %v4271, %v5315
        %v5572 = vsel %vm5060, %v4320, %v5316
        %v5573 = vsel %vm5061, %v4369, %v5317
        %v5574 = vsel %vm5062, %v4418, %v5318
        %v5575 = vsel %vm5063, %v4467, %v5319
        %v5576 = vsel %vm5064, %v4516, %v5320
        %v5577 = vsel %vm5065, %v4565, %v5321
        %v5578 = vsel %vm5066, %v4614, %v5322
        %v5579 = vsel %vm5067, %v4663, %v5323
        %v5580 = vsel %vm5068, %v4712, %v5324
        %v5581 = vsel %vm5069, %v4761, %v5325
        %v5582 = vsel %vm5070, %v4810, %v5326
        %v5583 = vsel %vm5071, %v4859, %v5327
        %v5584 = vsel %vm5072, %v4908, %v5328
        %v5585 = vsel %vm5073, %v4957, %v5329
        %v5586 = vsel %vm5074, %v5006, %v5330
        %v5587 = vsel %vm5075, %v4274, %v5331
        %v5588 = vsel %vm5076, %v4323, %v5332
        %v5589 = vsel %vm5077, %v4372, %v5333
        %v5590 = vsel %vm5078, %v4421, %v5334
        %v5591 = vsel %vm5079, %v4470, %v5335
        %v5592 = vsel %vm5080, %v4519, %v5336
        %v5593 = vsel %vm5081, %v4568, %v5337
        %v5594 = vsel %vm5082, %v4617, %v5338
        %v5595 = vsel %vm5083, %v4666, %v5339
        %v5596 = vsel %vm5084, %v4715, %v5340
        %v5597 = vsel %vm5085, %v4764, %v5341
        %v5598 = vsel %vm5086, %v4813, %v5342
        %v5599 = vsel %vm5087, %v4862, %v5343
        %v5600 = vsel %vm5088, %v4911, %v5344
        %v5601 = vsel %vm5089, %v4960, %v5345
        %v5602 = vsel %vm5090, %v5009, %v5346
        %v5603 = vsel %vm5091, %v4276, %v5347
        %v5604 = vsel %vm5092, %v4325, %v5348
        %v5605 = vsel %vm5093, %v4374, %v5349
        %v5606 = vsel %vm5094, %v4423, %v5350
        %v5607 = vsel %vm5095, %v4472, %v5351
        %v5608 = vsel %vm5096, %v4521, %v5352
        %v5609 = vsel %vm5097, %v4570, %v5353
        %v5610 = vsel %vm5098, %v4619, %v5354
        %v5611 = vsel %vm5099, %v4668, %v5355
        %v5612 = vsel %vm5100, %v4717, %v5356
        %v5613 = vsel %vm5101, %v4766, %v5357
        %v5614 = vsel %vm5102, %v4815, %v5358
        %v5615 = vsel %vm5103, %v4864, %v5359
        %v5616 = vsel %vm5104, %v4913, %v5360
        %v5617 = vsel %vm5105, %v4962, %v5361
        %v5618 = vsel %vm5106, %v5011, %v5362
        %v5619 = vsel %vm5107, %v4279, %v5363
        %v5620 = vsel %vm5108, %v4328, %v5364
        %v5621 = vsel %vm5109, %v4377, %v5365
        %v5622 = vsel %vm5110, %v4426, %v5366
        %v5623 = vsel %vm5111, %v4475, %v5367
        %v5624 = vsel %vm5112, %v4524, %v5368
        %v5625 = vsel %vm5113, %v4573, %v5369
        %v5626 = vsel %vm5114, %v4622, %v5370
        %v5627 = vsel %vm5115, %v4671, %v5371
        %v5628 = vsel %vm5116, %v4720, %v5372
        %v5629 = vsel %vm5117, %v4769, %v5373
        %v5630 = vsel %vm5118, %v4818, %v5374
        %v5631 = vsel %vm5119, %v4867, %v5375
        %v5632 = vsel %vm5120, %v4916, %v5376
        %v5633 = vsel %vm5121, %v4965, %v5377
        %v5634 = vsel %vm5122, %v5014, %v5378
        %v5635 = vsel %vm5123, %v4281, %v5379
        %v5636 = vsel %vm5124, %v4330, %v5380
        %v5637 = vsel %vm5125, %v4379, %v5381
        %v5638 = vsel %vm5126, %v4428, %v5382
        %v5639 = vsel %vm5127, %v4477, %v5383
        %v5640 = vsel %vm5128, %v4526, %v5384
        %v5641 = vsel %vm5129, %v4575, %v5385
        %v5642 = vsel %vm5130, %v4624, %v5386
        %v5643 = vsel %vm5131, %v4673, %v5387
        %v5644 = vsel %vm5132, %v4722, %v5388
        %v5645 = vsel %vm5133, %v4771, %v5389
        %v5646 = vsel %vm5134, %v4820, %v5390
        %v5647 = vsel %vm5135, %v4869, %v5391
        %v5648 = vsel %vm5136, %v4918, %v5392
        %v5649 = vsel %vm5137, %v4967, %v5393
        %v5650 = vsel %vm5138, %v5016, %v5394
        %v5651 = vsel %vm5139, %v4284, %v5395
        %v5652 = vsel %vm5140, %v4333, %v5396
        %v5653 = vsel %vm5141, %v4382, %v5397
        %v5654 = vsel %vm5142, %v4431, %v5398
        %v5655 = vsel %vm5143, %v4480, %v5399
        %v5656 = vsel %vm5144, %v4529, %v5400
        %v5657 = vsel %vm5145, %v4578, %v5401
        %v5658 = vsel %vm5146, %v4627, %v5402
        %v5659 = vsel %vm5147, %v4676, %v5403
        %v5660 = vsel %vm5148, %v4725, %v5404
        %v5661 = vsel %vm5149, %v4774, %v5405
        %v5662 = vsel %vm5150, %v4823, %v5406
        %v5663 = vsel %vm5151, %v4872, %v5407
        %v5664 = vsel %vm5152, %v4921, %v5408
        %v5665 = vsel %vm5153, %v4970, %v5409
        %v5666 = vsel %vm5154, %v5019, %v5410
        %v5667 = vsel %vm5155, %v4286, %v5411
        %v5668 = vsel %vm5156, %v4335, %v5412
        %v5669 = vsel %vm5157, %v4384, %v5413
        %v5670 = vsel %vm5158, %v4433, %v5414
        %v5671 = vsel %vm5159, %v4482, %v5415
        %v5672 = vsel %vm5160, %v4531, %v5416
        %v5673 = vsel %vm5161, %v4580, %v5417
        %v5674 = vsel %vm5162, %v4629, %v5418
        %v5675 = vsel %vm5163, %v4678, %v5419
        %v5676 = vsel %vm5164, %v4727, %v5420
        %v5677 = vsel %vm5165, %v4776, %v5421
        %v5678 = vsel %vm5166, %v4825, %v5422
        %v5679 = vsel %vm5167, %v4874, %v5423
        %v5680 = vsel %vm5168, %v4923, %v5424
        %v5681 = vsel %vm5169, %v4972, %v5425
        %v5682 = vsel %vm5170, %v5021, %v5426
        %v5683 = vsel %vm5171, %v4289, %v5427
        %v5684 = vsel %vm5172, %v4338, %v5428
        %v5685 = vsel %vm5173, %v4387, %v5429
        %v5686 = vsel %vm5174, %v4436, %v5430
        %v5687 = vsel %vm5175, %v4485, %v5431
        %v5688 = vsel %vm5176, %v4534, %v5432
        %v5689 = vsel %vm5177, %v4583, %v5433
        %v5690 = vsel %vm5178, %v4632, %v5434
        %v5691 = vsel %vm5179, %v4681, %v5435
        %v5692 = vsel %vm5180, %v4730, %v5436
        %v5693 = vsel %vm5181, %v4779, %v5437
        %v5694 = vsel %vm5182, %v4828, %v5438
        %v5695 = vsel %vm5183, %v4877, %v5439
        %v5696 = vsel %vm5184, %v4926, %v5440
        %v5697 = vsel %vm5185, %v4975, %v5441
        %v5698 = vsel %vm5186, %v5024, %v5442
        %v5699 = vsel %vm5187, %v4291, %v5443
        %v5700 = vsel %vm5188, %v4340, %v5444
        %v5701 = vsel %vm5189, %v4389, %v5445
        %v5702 = vsel %vm5190, %v4438, %v5446
        %v5703 = vsel %vm5191, %v4487, %v5447
        %v5704 = vsel %vm5192, %v4536, %v5448
        %v5705 = vsel %vm5193, %v4585, %v5449
        %v5706 = vsel %vm5194, %v4634, %v5450
        %v5707 = vsel %vm5195, %v4683, %v5451
        %v5708 = vsel %vm5196, %v4732, %v5452
        %v5709 = vsel %vm5197, %v4781, %v5453
        %v5710 = vsel %vm5198, %v4830, %v5454
        %v5711 = vsel %vm5199, %v4879, %v5455
        %v5712 = vsel %vm5200, %v4928, %v5456
        %v5713 = vsel %vm5201, %v4977, %v5457
        %v5714 = vsel %vm5202, %v5026, %v5458
        %v5715 = vsel %vm5203, %v4294, %v5459
        %v5716 = vsel %vm5204, %v4343, %v5460
        %v5717 = vsel %vm5205, %v4392, %v5461
        %v5718 = vsel %vm5206, %v4441, %v5462
        %v5719 = vsel %vm5207, %v4490, %v5463
        %v5720 = vsel %vm5208, %v4539, %v5464
        %v5721 = vsel %vm5209, %v4588, %v5465
        %v5722 = vsel %vm5210, %v4637, %v5466
        %v5723 = vsel %vm5211, %v4686, %v5467
        %v5724 = vsel %vm5212, %v4735, %v5468
        %v5725 = vsel %vm5213, %v4784, %v5469
        %v5726 = vsel %vm5214, %v4833, %v5470
        %v5727 = vsel %vm5215, %v4882, %v5471
        %v5728 = vsel %vm5216, %v4931, %v5472
        %v5729 = vsel %vm5217, %v4980, %v5473
        %v5730 = vsel %vm5218, %v5029, %v5474
        %v5731 = vsel %vm5219, %v4296, %v5475
        %v5732 = vsel %vm5220, %v4345, %v5476
        %v5733 = vsel %vm5221, %v4394, %v5477
        %v5734 = vsel %vm5222, %v4443, %v5478
        %v5735 = vsel %vm5223, %v4492, %v5479
        %v5736 = vsel %vm5224, %v4541, %v5480
        %v5737 = vsel %vm5225, %v4590, %v5481
        %v5738 = vsel %vm5226, %v4639, %v5482
        %v5739 = vsel %vm5227, %v4688, %v5483
        %v5740 = vsel %vm5228, %v4737, %v5484
        %v5741 = vsel %vm5229, %v4786, %v5485
        %v5742 = vsel %vm5230, %v4835, %v5486
        %v5743 = vsel %vm5231, %v4884, %v5487
        %v5744 = vsel %vm5232, %v4933, %v5488
        %v5745 = vsel %vm5233, %v4982, %v5489
        %v5746 = vsel %vm5234, %v5031, %v5490
        %v5747 = vsel %vm5235, %v4299, %v5491
        %v5748 = vsel %vm5236, %v4348, %v5492
        %v5749 = vsel %vm5237, %v4397, %v5493
        %v5750 = vsel %vm5238, %v4446, %v5494
        %v5751 = vsel %vm5239, %v4495, %v5495
        %v5752 = vsel %vm5240, %v4544, %v5496
        %v5753 = vsel %vm5241, %v4593, %v5497
        %v5754 = vsel %vm5242, %v4642, %v5498
        %v5755 = vsel %vm5243, %v4691, %v5499
        %v5756 = vsel %vm5244, %v4740, %v5500
        %v5757 = vsel %vm5245, %v4789, %v5501
        %v5758 = vsel %vm5246, %v4838, %v5502
        %v5759 = vsel %vm5247, %v4887, %v5503
        %v5760 = vsel %vm5248, %v4936, %v5504
        %v5761 = vsel %vm5249, %v4985, %v5505
        %v5762 = vsel %vm5250, %v5034, %v5506
        %v5763 = vsel %vm5251, %v4301, %v5507
        %v5764 = vsel %vm5252, %v4350, %v5508
        %v5765 = vsel %vm5253, %v4399, %v5509
        %v5766 = vsel %vm5254, %v4448, %v5510
        %v5767 = vsel %vm5255, %v4497, %v5511
        %v5768 = vsel %vm5256, %v4546, %v5512
        %v5769 = vsel %vm5257, %v4595, %v5513
        %v5770 = vsel %vm5258, %v4644, %v5514
        %v5771 = vsel %vm5259, %v4693, %v5515
        %v5772 = vsel %vm5260, %v4742, %v5516
        %v5773 = vsel %vm5261, %v4791, %v5517
        %v5774 = vsel %vm5262, %v4840, %v5518
        %v5775 = vsel %vm5263, %v4889, %v5519
        %v5776 = vsel %vm5264, %v4938, %v5520
        %v5777 = vsel %vm5265, %v4987, %v5521
        %v5778 = vsel %vm5266, %v5036, %v5522
        %v5779 = vsel %vm5267, %v4304, %v5523
        %v5780 = vsel %vm5268, %v4353, %v5524
        %v5781 = vsel %vm5269, %v4402, %v5525
        %v5782 = vsel %vm5270, %v4451, %v5526
        %v5783 = vsel %vm5271, %v4500, %v5527
        %v5784 = vsel %vm5272, %v4549, %v5528
        %v5785 = vsel %vm5273, %v4598, %v5529
        %v5786 = vsel %vm5274, %v4647, %v5530
        %v5787 = vsel %vm5275, %v4696, %v5531
        %v5788 = vsel %vm5276, %v4745, %v5532
        %v5789 = vsel %vm5277, %v4794, %v5533
        %v5790 = vsel %vm5278, %v4843, %v5534
        %v5791 = vsel %vm5279, %v4892, %v5535
        %v5792 = vsel %vm5280, %v4941, %v5536
        %v5793 = vsel %vm5281, %v4990, %v5537
        %v5794 = vsel %vm5282, %v5039, %v5538
        %v5795 = vsel %vm5283, %v4306, %v5539
        %v5796 = vsel %vm5284, %v4355, %v5540
        %v5797 = vsel %vm5285, %v4404, %v5541
        %v5798 = vsel %vm5286, %v4453, %v5542
        %v5799 = vsel %vm5287, %v4502, %v5543
        %v5800 = vsel %vm5288, %v4551, %v5544
        %v5801 = vsel %vm5289, %v4600, %v5545
        %v5802 = vsel %vm5290, %v4649, %v5546
        %v5803 = vsel %vm5291, %v4698, %v5547
        %v5804 = vsel %vm5292, %v4747, %v5548
        %v5805 = vsel %vm5293, %v4796, %v5549
        %v5806 = vsel %vm5294, %v4845, %v5550
        %v5807 = vsel %vm5295, %v4894, %v5551
        %v5808 = vsel %vm5296, %v4943, %v5552
        %v5809 = vsel %vm5297, %v4992, %v5553
        %v5810 = vsel %vm5298, %v5041, %v5554
        %v5811 = vld [vmem:[%s7] sm:$0xf]
        %v5812 = vld [vmem:[%s7 + $0x4] sm:$0xf]
        %v5813 = vld [vmem:[%s7 + $0x8] sm:$0xf]
        %v5814 = vld [vmem:[%s7 + $0xc] sm:$0xf]
        %v5815 = vld [vmem:[%s7 + $0x10] sm:$0xf]
        %v5816 = vld [vmem:[%s7 + $0x14] sm:$0xf]
        %v5817 = vld [vmem:[%s7 + $0x18] sm:$0xf]
        %v5818 = vld [vmem:[%s7 + $0x1c] sm:$0xf]
        %v5819 = vld [vmem:[%s7 + $0x20] sm:$0xf]
        %v5820 = vld [vmem:[%s7 + $0x24] sm:$0xf]
        %v5821 = vld [vmem:[%s7 + $0x28] sm:$0xf]
        %v5822 = vld [vmem:[%s7 + $0x2c] sm:$0xf]
        %v5823 = vld [vmem:[%s7 + $0x30] sm:$0xf]
        %v5824 = vld [vmem:[%s7 + $0x34] sm:$0xf]
        %v5825 = vld [vmem:[%s7 + $0x38] sm:$0xf]
        %v5826 = vld [vmem:[%s7 + $0x3c] sm:$0xf]
        %v5827 = vpack.c.bf16 %v5571, %v5555
        %v5828 = vpack.c.bf16 %v5572, %v5556
        %v5829 = vpack.c.bf16 %v5573, %v5557
        %v5830 = vpack.c.bf16 %v5574, %v5558
        %v5831 = vpack.c.bf16 %v5575, %v5559
        %v5832 = vpack.c.bf16 %v5576, %v5560
        %v5833 = vpack.c.bf16 %v5577, %v5561
        %v5834 = vpack.c.bf16 %v5578, %v5562
        %v5835 = vpack.c.bf16 %v5579, %v5563
        %v5836 = vpack.c.bf16 %v5580, %v5564
        %v5837 = vpack.c.bf16 %v5581, %v5565
        %v5838 = vpack.c.bf16 %v5582, %v5566
        %v5839 = vpack.c.bf16 %v5583, %v5567
        %v5840 = vpack.c.bf16 %v5584, %v5568
        %v5841 = vpack.c.bf16 %v5585, %v5569
        %v5842 = vpack.c.bf16 %v5586, %v5570
        %v5843 = vpack.c.bf16 %v5603, %v5587
        %v5844 = vpack.c.bf16 %v5604, %v5588
        %v5845 = vpack.c.bf16 %v5605, %v5589
        %v5846 = vpack.c.bf16 %v5606, %v5590
        %v5847 = vpack.c.bf16 %v5607, %v5591
        %v5848 = vpack.c.bf16 %v5608, %v5592
        %v5849 = vpack.c.bf16 %v5609, %v5593
        %v5850 = vpack.c.bf16 %v5610, %v5594
        %v5851 = vpack.c.bf16 %v5611, %v5595
        %v5852 = vpack.c.bf16 %v5612, %v5596
        %v5853 = vpack.c.bf16 %v5613, %v5597
        %v5854 = vpack.c.bf16 %v5614, %v5598
        %v5855 = vpack.c.bf16 %v5615, %v5599
        %v5856 = vpack.c.bf16 %v5616, %v5600
        %v5857 = vpack.c.bf16 %v5617, %v5601
        %v5858 = vpack.c.bf16 %v5618, %v5602
        %v5859 = vpack.c.bf16 %v5635, %v5619
        %v5860 = vpack.c.bf16 %v5636, %v5620
        %v5861 = vpack.c.bf16 %v5637, %v5621
        %v5862 = vpack.c.bf16 %v5638, %v5622
        %v5863 = vpack.c.bf16 %v5639, %v5623
        %v5864 = vpack.c.bf16 %v5640, %v5624
        %v5865 = vpack.c.bf16 %v5641, %v5625
        %v5866 = vpack.c.bf16 %v5642, %v5626
        %v5867 = vpack.c.bf16 %v5643, %v5627
        %v5868 = vpack.c.bf16 %v5644, %v5628
        %v5869 = vpack.c.bf16 %v5645, %v5629
        %v5870 = vpack.c.bf16 %v5646, %v5630
        %v5871 = vpack.c.bf16 %v5647, %v5631
        %v5872 = vpack.c.bf16 %v5648, %v5632
        %v5873 = vpack.c.bf16 %v5649, %v5633
        %v5874 = vpack.c.bf16 %v5650, %v5634
        %v5875 = vpack.c.bf16 %v5667, %v5651
        %v5876 = vpack.c.bf16 %v5668, %v5652
        %v5877 = vpack.c.bf16 %v5669, %v5653
        %v5878 = vpack.c.bf16 %v5670, %v5654
        %v5879 = vpack.c.bf16 %v5671, %v5655
        %v5880 = vpack.c.bf16 %v5672, %v5656
        %v5881 = vpack.c.bf16 %v5673, %v5657
        %v5882 = vpack.c.bf16 %v5674, %v5658
        %v5883 = vpack.c.bf16 %v5675, %v5659
        %v5884 = vpack.c.bf16 %v5676, %v5660
        %v5885 = vpack.c.bf16 %v5677, %v5661
        %v5886 = vpack.c.bf16 %v5678, %v5662
        %v5887 = vpack.c.bf16 %v5679, %v5663
        %v5888 = vpack.c.bf16 %v5680, %v5664
        %v5889 = vpack.c.bf16 %v5681, %v5665
        %v5890 = vpack.c.bf16 %v5682, %v5666
        %v5891 = vpack.c.bf16 %v5699, %v5683
        %v5892 = vpack.c.bf16 %v5700, %v5684
        %v5893 = vpack.c.bf16 %v5701, %v5685
        %v5894 = vpack.c.bf16 %v5702, %v5686
        %v5895 = vpack.c.bf16 %v5703, %v5687
        %v5896 = vpack.c.bf16 %v5704, %v5688
        %v5897 = vpack.c.bf16 %v5705, %v5689
        %v5898 = vpack.c.bf16 %v5706, %v5690
        %v5899 = vpack.c.bf16 %v5707, %v5691
        %v5900 = vpack.c.bf16 %v5708, %v5692
        %v5901 = vpack.c.bf16 %v5709, %v5693
        %v5902 = vpack.c.bf16 %v5710, %v5694
        %v5903 = vpack.c.bf16 %v5711, %v5695
        %v5904 = vpack.c.bf16 %v5712, %v5696
        %v5905 = vpack.c.bf16 %v5713, %v5697
        %v5906 = vpack.c.bf16 %v5714, %v5698
        %v5907 = vpack.c.bf16 %v5731, %v5715
        %v5908 = vpack.c.bf16 %v5732, %v5716
        %v5909 = vpack.c.bf16 %v5733, %v5717
        %v5910 = vpack.c.bf16 %v5734, %v5718
        %v5911 = vpack.c.bf16 %v5735, %v5719
        %v5912 = vpack.c.bf16 %v5736, %v5720
        %v5913 = vpack.c.bf16 %v5737, %v5721
        %v5914 = vpack.c.bf16 %v5738, %v5722
        %v5915 = vpack.c.bf16 %v5739, %v5723
        %v5916 = vpack.c.bf16 %v5740, %v5724
        %v5917 = vpack.c.bf16 %v5741, %v5725
        %v5918 = vpack.c.bf16 %v5742, %v5726
        %v5919 = vpack.c.bf16 %v5743, %v5727
        %v5920 = vpack.c.bf16 %v5744, %v5728
        %v5921 = vpack.c.bf16 %v5745, %v5729
        %v5922 = vpack.c.bf16 %v5746, %v5730
        %v5923 = vpack.c.bf16 %v5763, %v5747
        %v5924 = vpack.c.bf16 %v5764, %v5748
        %v5925 = vpack.c.bf16 %v5765, %v5749
        %v5926 = vpack.c.bf16 %v5766, %v5750
        %v5927 = vpack.c.bf16 %v5767, %v5751
        %v5928 = vpack.c.bf16 %v5768, %v5752
        %v5929 = vpack.c.bf16 %v5769, %v5753
        %v5930 = vpack.c.bf16 %v5770, %v5754
        %v5931 = vpack.c.bf16 %v5771, %v5755
        %v5932 = vpack.c.bf16 %v5772, %v5756
        %v5933 = vpack.c.bf16 %v5773, %v5757
        %v5934 = vpack.c.bf16 %v5774, %v5758
        %v5935 = vpack.c.bf16 %v5775, %v5759
        %v5936 = vpack.c.bf16 %v5776, %v5760
        %v5937 = vpack.c.bf16 %v5777, %v5761
        %v5938 = vpack.c.bf16 %v5778, %v5762
        %v5939 = vpack.c.bf16 %v5795, %v5779
        %v5940 = vpack.c.bf16 %v5796, %v5780
        %v5941 = vpack.c.bf16 %v5797, %v5781
        %v5942 = vpack.c.bf16 %v5798, %v5782
        %v5943 = vpack.c.bf16 %v5799, %v5783
        %v5944 = vpack.c.bf16 %v5800, %v5784
        %v5945 = vpack.c.bf16 %v5801, %v5785
        %v5946 = vpack.c.bf16 %v5802, %v5786
        %v5947 = vpack.c.bf16 %v5803, %v5787
        %v5948 = vpack.c.bf16 %v5804, %v5788
        %v5949 = vpack.c.bf16 %v5805, %v5789
        %v5950 = vpack.c.bf16 %v5806, %v5790
        %v5951 = vpack.c.bf16 %v5807, %v5791
        %v5952 = vpack.c.bf16 %v5808, %v5792
        %v5953 = vpack.c.bf16 %v5809, %v5793
        %v5954 = vpack.c.bf16 %v5810, %v5794
        %v5955 = vld [vmem:[%s8] sm:$0xff]
        %v5956 = vld [vmem:[%s8 + $0x8] sm:$0xff]
        %v5957 = vld [vmem:[%s8 + $0x10] sm:$0xff]
        %v5958 = vld [vmem:[%s8 + $0x18] sm:$0xff]
        %v5959 = vld [vmem:[%s8 + $0x20] sm:$0xff]
        %v5960 = vld [vmem:[%s8 + $0x28] sm:$0xff]
        %v5961 = vld [vmem:[%s8 + $0x30] sm:$0xff]
        %v5962 = vld [vmem:[%s8 + $0x38] sm:$0xff]
        %v5963 = vld [vmem:[%s8 + $0x40] sm:$0xff]
        %v5964 = vld [vmem:[%s8 + $0x48] sm:$0xff]
        %v5965 = vld [vmem:[%s8 + $0x50] sm:$0xff]
        %v5966 = vld [vmem:[%s8 + $0x58] sm:$0xff]
        %v5967 = vld [vmem:[%s8 + $0x60] sm:$0xff]
        %v5968 = vld [vmem:[%s8 + $0x68] sm:$0xff]
        %v5969 = vld [vmem:[%s8 + $0x70] sm:$0xff]
        %v5970 = vld [vmem:[%s8 + $0x78] sm:$0xff]
        %5972 = vset.pattern.permute.xlu0 0
        %5973 = vperm.xlu0 %5972, %v5955
        %v5974 = vpop.permute.xlu0 %5973
        %5977 = vset.pattern.permute.xlu0 0
        %5978 = vperm.xlu0 %5977, %v5956
        %v5979 = vpop.permute.xlu0 %5978
        %5982 = vset.pattern.permute.xlu0 0
        %5983 = vperm.xlu0 %5982, %v5957
        %v5984 = vpop.permute.xlu0 %5983
        %5986 = vset.pattern.permute.xlu0 0
        %5987 = vperm.xlu0 %5986, %v5958
        %v5988 = vpop.permute.xlu0 %5987
        %5990 = vset.pattern.permute.xlu0 0
        %5991 = vperm.xlu0 %5990, %v5959
        %v5992 = vpop.permute.xlu0 %5991
        %5994 = vset.pattern.permute.xlu0 0
        %5995 = vperm.xlu0 %5994, %v5960
        %v5996 = vpop.permute.xlu0 %5995
        %5998 = vset.pattern.permute.xlu0 0
        %5999 = vperm.xlu0 %5998, %v5961
        %v6000 = vpop.permute.xlu0 %5999
        %6002 = vset.pattern.permute.xlu0 0
        %6003 = vperm.xlu0 %6002, %v5962
        %v6004 = vpop.permute.xlu0 %6003
        %6006 = vset.pattern.permute.xlu0 0
        %6007 = vperm.xlu0 %6006, %v5963
        %v6008 = vpop.permute.xlu0 %6007
        %6010 = vset.pattern.permute.xlu0 0
        %6011 = vperm.xlu0 %6010, %v5964
        %v6012 = vpop.permute.xlu0 %6011
        %6014 = vset.pattern.permute.xlu0 0
        %6015 = vperm.xlu0 %6014, %v5965
        %v6016 = vpop.permute.xlu0 %6015
        %6018 = vset.pattern.permute.xlu0 0
        %6019 = vperm.xlu0 %6018, %v5966
        %v6020 = vpop.permute.xlu0 %6019
        %6022 = vset.pattern.permute.xlu0 0
        %6023 = vperm.xlu0 %6022, %v5967
        %v6024 = vpop.permute.xlu0 %6023
        %6026 = vset.pattern.permute.xlu0 0
        %6027 = vperm.xlu0 %6026, %v5968
        %v6028 = vpop.permute.xlu0 %6027
        %6030 = vset.pattern.permute.xlu0 0
        %6031 = vperm.xlu0 %6030, %v5969
        %v6032 = vpop.permute.xlu0 %6031
        %6034 = vset.pattern.permute.xlu0 0
        %6035 = vperm.xlu0 %6034, %v5970
        %v6036 = vpop.permute.xlu0 %6035
        %v6053 = vunpack.c.l.b16 %v5811
        %v6054 = vunpack.c.l.b16 %v5812
        %v6055 = vunpack.c.l.b16 %v5813
        %v6056 = vunpack.c.l.b16 %v5814
        %v6057 = vunpack.c.l.b16 %v5815
        %v6058 = vunpack.c.l.b16 %v5816
        %v6059 = vunpack.c.l.b16 %v5817
        %v6060 = vunpack.c.l.b16 %v5818
        %v6061 = vunpack.c.l.b16 %v5819
        %v6062 = vunpack.c.l.b16 %v5820
        %v6063 = vunpack.c.l.b16 %v5821
        %v6064 = vunpack.c.l.b16 %v5822
        %v6065 = vunpack.c.l.b16 %v5823
        %v6066 = vunpack.c.l.b16 %v5824
        %v6067 = vunpack.c.l.b16 %v5825
        %v6068 = vunpack.c.l.b16 %v5826
        %v6069 = vpack.c.b16 %v6054, %v6053
        %v6070 = vpack.c.b16 %v6056, %v6055
        %v6071 = vpack.c.b16 %v6058, %v6057
        %v6072 = vpack.c.b16 %v6060, %v6059
        %v6073 = vpack.c.b16 %v6062, %v6061
        %v6074 = vpack.c.b16 %v6064, %v6063
        %v6075 = vpack.c.b16 %v6066, %v6065
        %v6076 = vpack.c.b16 %v6068, %v6067
        %6085 = vmatpush.bf16.msra.mxu0 %v5939
        %6086 = vmatpush.bf16.msra.mxu0 %v5923
        %6087 = vmatpush.bf16.msra.mxu0 %v5907
        %6088 = vmatpush.bf16.msra.mxu0 %v5891
        %6089 = vmatpush.bf16.msra.mxu0 %v5875
        %6090 = vmatpush.bf16.msra.mxu0 %v5859
        %6091 = vmatpush.bf16.msra.mxu0 %v5843
        %6092 = vmatpush.bf16.msra.mxu0 %v5827
        %6093 = vmatmul.bf16.gmra.mxu0 %v6069
        %v6094 = vpop.f32.mrf.mxu0
        %v6095 = vadd.f32 %v5974, %v6094
        %v6096 = vpop.f32.mrf.mxu0
        %v6097 = vadd.f32 %v5979, %v6096
        %6098 = vmatmul.bf16.gmra.mxu0 %v6070
        %v6099 = vpop.f32.mrf.mxu0
        %v6100 = vpop.f32.mrf.mxu0
        %6101 = vmatmul.bf16.gmra.mxu0 %v6071
        %v6102 = vpop.f32.mrf.mxu0
        %v6103 = vpop.f32.mrf.mxu0
        %6104 = vmatmul.bf16.gmra.mxu0 %v6072
        %v6105 = vpop.f32.mrf.mxu0
        %v6106 = vpop.f32.mrf.mxu0
        %6107 = vmatmul.bf16.gmra.mxu0 %v6073
        %v6108 = vpop.f32.mrf.mxu0
        %v6109 = vpop.f32.mrf.mxu0
        %6110 = vmatmul.bf16.gmra.mxu0 %v6074
        %v6111 = vpop.f32.mrf.mxu0
        %v6112 = vpop.f32.mrf.mxu0
        %6113 = vmatmul.bf16.gmra.mxu0 %v6075
        %v6114 = vpop.f32.mrf.mxu0
        %v6115 = vpop.f32.mrf.mxu0
        %6116 = vmatmul.bf16.gmra.mxu0 %v6076
        %v6117 = vpop.f32.mrf.mxu0
        %v6118 = vpop.f32.mrf.mxu0
        %6119 = vdwg.mxu0
        %6120 = vmatpush.bf16.msra.mxu0 %v5940
        %6121 = vmatpush.bf16.msra.mxu0 %v5924
        %6122 = vmatpush.bf16.msra.mxu0 %v5908
        %6123 = vmatpush.bf16.msra.mxu0 %v5892
        %6124 = vmatpush.bf16.msra.mxu0 %v5876
        %6125 = vmatpush.bf16.msra.mxu0 %v5860
        %6126 = vmatpush.bf16.msra.mxu0 %v5844
        %6127 = vmatpush.bf16.msra.mxu0 %v5828
        %6128 = vmatmul.bf16.gmra.mxu0 %v6069
        %v6129 = vpop.f32.mrf.mxu0
        %v6130 = vadd.f32 %v5974, %v6129
        %v6131 = vpop.f32.mrf.mxu0
        %v6132 = vadd.f32 %v5979, %v6131
        %6133 = vmatmul.bf16.gmra.mxu0 %v6070
        %v6134 = vpop.f32.mrf.mxu0
        %v6135 = vpop.f32.mrf.mxu0
        %6136 = vmatmul.bf16.gmra.mxu0 %v6071
        %v6137 = vpop.f32.mrf.mxu0
        %v6138 = vpop.f32.mrf.mxu0
        %6139 = vmatmul.bf16.gmra.mxu0 %v6072
        %v6140 = vpop.f32.mrf.mxu0
        %v6141 = vpop.f32.mrf.mxu0
        %6142 = vmatmul.bf16.gmra.mxu0 %v6073
        %v6143 = vpop.f32.mrf.mxu0
        %v6144 = vpop.f32.mrf.mxu0
        %6145 = vmatmul.bf16.gmra.mxu0 %v6074
        %v6146 = vpop.f32.mrf.mxu0
        %v6147 = vpop.f32.mrf.mxu0
        %6148 = vmatmul.bf16.gmra.mxu0 %v6075
        %v6149 = vpop.f32.mrf.mxu0
        %v6150 = vpop.f32.mrf.mxu0
        %6151 = vmatmul.bf16.gmra.mxu0 %v6076
        %v6152 = vpop.f32.mrf.mxu0
        %v6153 = vpop.f32.mrf.mxu0
        %6154 = vdwg.mxu0
        %6155 = vmatpush.bf16.msra.mxu0 %v5941
        %6156 = vmatpush.bf16.msra.mxu0 %v5925
        %6157 = vmatpush.bf16.msra.mxu0 %v5909
        %6158 = vmatpush.bf16.msra.mxu0 %v5893
        %6159 = vmatpush.bf16.msra.mxu0 %v5877
        %6160 = vmatpush.bf16.msra.mxu0 %v5861
        %6161 = vmatpush.bf16.msra.mxu0 %v5845
        %6162 = vmatpush.bf16.msra.mxu0 %v5829
        %6163 = vmatmul.bf16.gmra.mxu0 %v6069
        %v6164 = vpop.f32.mrf.mxu0
        %v6165 = vadd.f32 %v5974, %v6164
        %v6166 = vpop.f32.mrf.mxu0
        %v6167 = vadd.f32 %v5979, %v6166
        %6168 = vmatmul.bf16.gmra.mxu0 %v6070
        %v6169 = vpop.f32.mrf.mxu0
        %v6170 = vpop.f32.mrf.mxu0
        %6171 = vmatmul.bf16.gmra.mxu0 %v6071
        %v6172 = vpop.f32.mrf.mxu0
        %v6173 = vpop.f32.mrf.mxu0
        %6174 = vmatmul.bf16.gmra.mxu0 %v6072
        %v6175 = vpop.f32.mrf.mxu0
        %v6176 = vpop.f32.mrf.mxu0
        %6177 = vmatmul.bf16.gmra.mxu0 %v6073
        %v6178 = vpop.f32.mrf.mxu0
        %v6179 = vpop.f32.mrf.mxu0
        %6180 = vmatmul.bf16.gmra.mxu0 %v6074
        %v6181 = vpop.f32.mrf.mxu0
        %v6182 = vpop.f32.mrf.mxu0
        %6183 = vmatmul.bf16.gmra.mxu0 %v6075
        %v6184 = vpop.f32.mrf.mxu0
        %v6185 = vpop.f32.mrf.mxu0
        %6186 = vmatmul.bf16.gmra.mxu0 %v6076
        %v6187 = vpop.f32.mrf.mxu0
        %v6188 = vpop.f32.mrf.mxu0
        %6189 = vdwg.mxu0
        %6190 = vmatpush.bf16.msra.mxu0 %v5942
        %6191 = vmatpush.bf16.msra.mxu0 %v5926
        %6192 = vmatpush.bf16.msra.mxu0 %v5910
        %6193 = vmatpush.bf16.msra.mxu0 %v5894
        %6194 = vmatpush.bf16.msra.mxu0 %v5878
        %6195 = vmatpush.bf16.msra.mxu0 %v5862
        %6196 = vmatpush.bf16.msra.mxu0 %v5846
        %6197 = vmatpush.bf16.msra.mxu0 %v5830
        %6198 = vmatmul.bf16.gmra.mxu0 %v6069
        %v6199 = vpop.f32.mrf.mxu0
        %v6200 = vadd.f32 %v5974, %v6199
        %v6201 = vpop.f32.mrf.mxu0
        %v6202 = vadd.f32 %v5979, %v6201
        %6203 = vmatmul.bf16.gmra.mxu0 %v6070
        %v6204 = vpop.f32.mrf.mxu0
        %v6205 = vpop.f32.mrf.mxu0
        %6206 = vmatmul.bf16.gmra.mxu0 %v6071
        %v6207 = vpop.f32.mrf.mxu0
        %v6208 = vpop.f32.mrf.mxu0
        %6209 = vmatmul.bf16.gmra.mxu0 %v6072
        %v6210 = vpop.f32.mrf.mxu0
        %v6211 = vpop.f32.mrf.mxu0
        %6212 = vmatmul.bf16.gmra.mxu0 %v6073
        %v6213 = vpop.f32.mrf.mxu0
        %v6214 = vpop.f32.mrf.mxu0
        %6215 = vmatmul.bf16.gmra.mxu0 %v6074
        %v6216 = vpop.f32.mrf.mxu0
        %v6217 = vpop.f32.mrf.mxu0
        %6218 = vmatmul.bf16.gmra.mxu0 %v6075
        %v6219 = vpop.f32.mrf.mxu0
        %v6220 = vpop.f32.mrf.mxu0
        %6221 = vmatmul.bf16.gmra.mxu0 %v6076
        %v6222 = vpop.f32.mrf.mxu0
        %v6223 = vpop.f32.mrf.mxu0
        %6224 = vdwg.mxu0
        %6225 = vmatpush.bf16.msra.mxu0 %v5943
        %6226 = vmatpush.bf16.msra.mxu0 %v5927
        %6227 = vmatpush.bf16.msra.mxu0 %v5911
        %6228 = vmatpush.bf16.msra.mxu0 %v5895
        %6229 = vmatpush.bf16.msra.mxu0 %v5879
        %6230 = vmatpush.bf16.msra.mxu0 %v5863
        %6231 = vmatpush.bf16.msra.mxu0 %v5847
        %6232 = vmatpush.bf16.msra.mxu0 %v5831
        %6233 = vmatmul.bf16.gmra.mxu0 %v6069
        %v6234 = vpop.f32.mrf.mxu0
        %v6235 = vadd.f32 %v5974, %v6234
        %v6236 = vpop.f32.mrf.mxu0
        %v6237 = vadd.f32 %v5979, %v6236
        %6238 = vmatmul.bf16.gmra.mxu0 %v6070
        %v6239 = vpop.f32.mrf.mxu0
        %v6240 = vpop.f32.mrf.mxu0
        %6241 = vmatmul.bf16.gmra.mxu0 %v6071
        %v6242 = vpop.f32.mrf.mxu0
        %v6243 = vpop.f32.mrf.mxu0
        %6244 = vmatmul.bf16.gmra.mxu0 %v6072
        %v6245 = vpop.f32.mrf.mxu0
        %v6246 = vpop.f32.mrf.mxu0
        %6247 = vmatmul.bf16.gmra.mxu0 %v6073
        %v6248 = vpop.f32.mrf.mxu0
        %v6249 = vpop.f32.mrf.mxu0
        %6250 = vmatmul.bf16.gmra.mxu0 %v6074
        %v6251 = vpop.f32.mrf.mxu0
        %v6252 = vpop.f32.mrf.mxu0
        %6253 = vmatmul.bf16.gmra.mxu0 %v6075
        %v6254 = vpop.f32.mrf.mxu0
        %v6255 = vpop.f32.mrf.mxu0
        %6256 = vmatmul.bf16.gmra.mxu0 %v6076
        %v6257 = vpop.f32.mrf.mxu0
        %v6258 = vpop.f32.mrf.mxu0
        %6259 = vdwg.mxu0
        %6260 = vmatpush.bf16.msra.mxu0 %v5944
        %6261 = vmatpush.bf16.msra.mxu0 %v5928
        %6262 = vmatpush.bf16.msra.mxu0 %v5912
        %6263 = vmatpush.bf16.msra.mxu0 %v5896
        %6264 = vmatpush.bf16.msra.mxu0 %v5880
        %6265 = vmatpush.bf16.msra.mxu0 %v5864
        %6266 = vmatpush.bf16.msra.mxu0 %v5848
        %6267 = vmatpush.bf16.msra.mxu0 %v5832
        %6268 = vmatmul.bf16.gmra.mxu0 %v6069
        %v6269 = vpop.f32.mrf.mxu0
        %v6270 = vadd.f32 %v5974, %v6269
        %v6271 = vpop.f32.mrf.mxu0
        %v6272 = vadd.f32 %v5979, %v6271
        %6273 = vmatmul.bf16.gmra.mxu0 %v6070
        %v6274 = vpop.f32.mrf.mxu0
        %v6275 = vpop.f32.mrf.mxu0
        %6276 = vmatmul.bf16.gmra.mxu0 %v6071
        %v6277 = vpop.f32.mrf.mxu0
        %v6278 = vpop.f32.mrf.mxu0
        %6279 = vmatmul.bf16.gmra.mxu0 %v6072
        %v6280 = vpop.f32.mrf.mxu0
        %v6281 = vpop.f32.mrf.mxu0
        %6282 = vmatmul.bf16.gmra.mxu0 %v6073
        %v6283 = vpop.f32.mrf.mxu0
        %v6284 = vpop.f32.mrf.mxu0
        %6285 = vmatmul.bf16.gmra.mxu0 %v6074
        %v6286 = vpop.f32.mrf.mxu0
        %v6287 = vpop.f32.mrf.mxu0
        %6288 = vmatmul.bf16.gmra.mxu0 %v6075
        %v6289 = vpop.f32.mrf.mxu0
        %v6290 = vpop.f32.mrf.mxu0
        %6291 = vmatmul.bf16.gmra.mxu0 %v6076
        %v6292 = vpop.f32.mrf.mxu0
        %v6293 = vpop.f32.mrf.mxu0
        %6294 = vdwg.mxu0
        %6295 = vmatpush.bf16.msra.mxu0 %v5945
        %6296 = vmatpush.bf16.msra.mxu0 %v5929
        %6297 = vmatpush.bf16.msra.mxu0 %v5913
        %6298 = vmatpush.bf16.msra.mxu0 %v5897
        %6299 = vmatpush.bf16.msra.mxu0 %v5881
        %6300 = vmatpush.bf16.msra.mxu0 %v5865
        %6301 = vmatpush.bf16.msra.mxu0 %v5849
        %6302 = vmatpush.bf16.msra.mxu0 %v5833
        %6303 = vmatmul.bf16.gmra.mxu0 %v6069
        %v6304 = vpop.f32.mrf.mxu0
        %v6305 = vadd.f32 %v5974, %v6304
        %v6306 = vpop.f32.mrf.mxu0
        %v6307 = vadd.f32 %v5979, %v6306
        %6308 = vmatmul.bf16.gmra.mxu0 %v6070
        %v6309 = vpop.f32.mrf.mxu0
        %v6310 = vpop.f32.mrf.mxu0
        %6311 = vmatmul.bf16.gmra.mxu0 %v6071
        %v6312 = vpop.f32.mrf.mxu0
        %v6313 = vpop.f32.mrf.mxu0
        %6314 = vmatmul.bf16.gmra.mxu0 %v6072
        %v6315 = vpop.f32.mrf.mxu0
        %v6316 = vpop.f32.mrf.mxu0
        %6317 = vmatmul.bf16.gmra.mxu0 %v6073
        %v6318 = vpop.f32.mrf.mxu0
        %v6319 = vpop.f32.mrf.mxu0
        %6320 = vmatmul.bf16.gmra.mxu0 %v6074
        %v6321 = vpop.f32.mrf.mxu0
        %v6322 = vpop.f32.mrf.mxu0
        %6323 = vmatmul.bf16.gmra.mxu0 %v6075
        %v6324 = vpop.f32.mrf.mxu0
        %v6325 = vpop.f32.mrf.mxu0
        %6326 = vmatmul.bf16.gmra.mxu0 %v6076
        %v6327 = vpop.f32.mrf.mxu0
        %v6328 = vpop.f32.mrf.mxu0
        %6329 = vdwg.mxu0
        %6330 = vmatpush.bf16.msra.mxu0 %v5946
        %6331 = vmatpush.bf16.msra.mxu0 %v5930
        %6332 = vmatpush.bf16.msra.mxu0 %v5914
        %6333 = vmatpush.bf16.msra.mxu0 %v5898
        %6334 = vmatpush.bf16.msra.mxu0 %v5882
        %6335 = vmatpush.bf16.msra.mxu0 %v5866
        %6336 = vmatpush.bf16.msra.mxu0 %v5850
        %6337 = vmatpush.bf16.msra.mxu0 %v5834
        %6338 = vmatmul.bf16.gmra.mxu0 %v6069
        %v6339 = vpop.f32.mrf.mxu0
        %v6340 = vadd.f32 %v5974, %v6339
        %v6341 = vpop.f32.mrf.mxu0
        %v6342 = vadd.f32 %v5979, %v6341
        %6343 = vmatmul.bf16.gmra.mxu0 %v6070
        %v6344 = vpop.f32.mrf.mxu0
        %v6345 = vpop.f32.mrf.mxu0
        %6346 = vmatmul.bf16.gmra.mxu0 %v6071
        %v6347 = vpop.f32.mrf.mxu0
        %v6348 = vpop.f32.mrf.mxu0
        %6349 = vmatmul.bf16.gmra.mxu0 %v6072
        %v6350 = vpop.f32.mrf.mxu0
        %v6351 = vpop.f32.mrf.mxu0
        %6352 = vmatmul.bf16.gmra.mxu0 %v6073
        %v6353 = vpop.f32.mrf.mxu0
        %v6354 = vpop.f32.mrf.mxu0
        %6355 = vmatmul.bf16.gmra.mxu0 %v6074
        %v6356 = vpop.f32.mrf.mxu0
        %v6357 = vpop.f32.mrf.mxu0
        %6358 = vmatmul.bf16.gmra.mxu0 %v6075
        %v6359 = vpop.f32.mrf.mxu0
        %v6360 = vpop.f32.mrf.mxu0
        %6361 = vmatmul.bf16.gmra.mxu0 %v6076
        %v6362 = vpop.f32.mrf.mxu0
        %v6363 = vpop.f32.mrf.mxu0
        %6364 = vdwg.mxu0
        %6365 = vmatpush.bf16.msra.mxu0 %v5947
        %6366 = vmatpush.bf16.msra.mxu0 %v5931
        %6367 = vmatpush.bf16.msra.mxu0 %v5915
        %6368 = vmatpush.bf16.msra.mxu0 %v5899
        %6369 = vmatpush.bf16.msra.mxu0 %v5883
        %6370 = vmatpush.bf16.msra.mxu0 %v5867
        %6371 = vmatpush.bf16.msra.mxu0 %v5851
        %6372 = vmatpush.bf16.msra.mxu0 %v5835
        %6373 = vmatmul.bf16.gmra.mxu0 %v6069
        %v6374 = vpop.f32.mrf.mxu0
        %v6375 = vadd.f32 %v5974, %v6374
        %v6376 = vpop.f32.mrf.mxu0
        %v6377 = vadd.f32 %v5979, %v6376
        %6378 = vmatmul.bf16.gmra.mxu0 %v6070
        %v6379 = vpop.f32.mrf.mxu0
        %v6380 = vpop.f32.mrf.mxu0
        %6381 = vmatmul.bf16.gmra.mxu0 %v6071
        %v6382 = vpop.f32.mrf.mxu0
        %v6383 = vpop.f32.mrf.mxu0
        %6384 = vmatmul.bf16.gmra.mxu0 %v6072
        %v6385 = vpop.f32.mrf.mxu0
        %v6386 = vpop.f32.mrf.mxu0
        %6387 = vmatmul.bf16.gmra.mxu0 %v6073
        %v6388 = vpop.f32.mrf.mxu0
        %v6389 = vpop.f32.mrf.mxu0
        %6390 = vmatmul.bf16.gmra.mxu0 %v6074
        %v6391 = vpop.f32.mrf.mxu0
        %v6392 = vpop.f32.mrf.mxu0
        %6393 = vmatmul.bf16.gmra.mxu0 %v6075
        %v6394 = vpop.f32.mrf.mxu0
        %v6395 = vpop.f32.mrf.mxu0
        %6396 = vmatmul.bf16.gmra.mxu0 %v6076
        %v6397 = vpop.f32.mrf.mxu0
        %v6398 = vpop.f32.mrf.mxu0
        %6399 = vdwg.mxu0
        %6400 = vmatpush.bf16.msra.mxu0 %v5948
        %6401 = vmatpush.bf16.msra.mxu0 %v5932
        %6402 = vmatpush.bf16.msra.mxu0 %v5916
        %6403 = vmatpush.bf16.msra.mxu0 %v5900
        %6404 = vmatpush.bf16.msra.mxu0 %v5884
        %6405 = vmatpush.bf16.msra.mxu0 %v5868
        %6406 = vmatpush.bf16.msra.mxu0 %v5852
        %6407 = vmatpush.bf16.msra.mxu0 %v5836
        %6408 = vmatmul.bf16.gmra.mxu0 %v6069
        %v6409 = vpop.f32.mrf.mxu0
        %v6410 = vadd.f32 %v5974, %v6409
        %v6411 = vpop.f32.mrf.mxu0
        %v6412 = vadd.f32 %v5979, %v6411
        %6413 = vmatmul.bf16.gmra.mxu0 %v6070
        %v6414 = vpop.f32.mrf.mxu0
        %v6415 = vpop.f32.mrf.mxu0
        %6416 = vmatmul.bf16.gmra.mxu0 %v6071
        %v6417 = vpop.f32.mrf.mxu0
        %v6418 = vpop.f32.mrf.mxu0
        %6419 = vmatmul.bf16.gmra.mxu0 %v6072
        %v6420 = vpop.f32.mrf.mxu0
        %v6421 = vpop.f32.mrf.mxu0
        %6422 = vmatmul.bf16.gmra.mxu0 %v6073
        %v6423 = vpop.f32.mrf.mxu0
        %v6424 = vpop.f32.mrf.mxu0
        %6425 = vmatmul.bf16.gmra.mxu0 %v6074
        %v6426 = vpop.f32.mrf.mxu0
        %v6427 = vpop.f32.mrf.mxu0
        %6428 = vmatmul.bf16.gmra.mxu0 %v6075
        %v6429 = vpop.f32.mrf.mxu0
        %v6430 = vpop.f32.mrf.mxu0
        %6431 = vmatmul.bf16.gmra.mxu0 %v6076
        %v6432 = vpop.f32.mrf.mxu0
        %v6433 = vpop.f32.mrf.mxu0
        %6434 = vdwg.mxu0
        %6435 = vmatpush.bf16.msra.mxu0 %v5949
        %6436 = vmatpush.bf16.msra.mxu0 %v5933
        %6437 = vmatpush.bf16.msra.mxu0 %v5917
        %6438 = vmatpush.bf16.msra.mxu0 %v5901
        %6439 = vmatpush.bf16.msra.mxu0 %v5885
        %6440 = vmatpush.bf16.msra.mxu0 %v5869
        %6441 = vmatpush.bf16.msra.mxu0 %v5853
        %6442 = vmatpush.bf16.msra.mxu0 %v5837
        %6443 = vmatmul.bf16.gmra.mxu0 %v6069
        %v6444 = vpop.f32.mrf.mxu0
        %v6445 = vadd.f32 %v5974, %v6444
        %v6446 = vpop.f32.mrf.mxu0
        %v6447 = vadd.f32 %v5979, %v6446
        %6448 = vmatmul.bf16.gmra.mxu0 %v6070
        %v6449 = vpop.f32.mrf.mxu0
        %v6450 = vpop.f32.mrf.mxu0
        %6451 = vmatmul.bf16.gmra.mxu0 %v6071
        %v6452 = vpop.f32.mrf.mxu0
        %v6453 = vpop.f32.mrf.mxu0
        %6454 = vmatmul.bf16.gmra.mxu0 %v6072
        %v6455 = vpop.f32.mrf.mxu0
        %v6456 = vpop.f32.mrf.mxu0
        %6457 = vmatmul.bf16.gmra.mxu0 %v6073
        %v6458 = vpop.f32.mrf.mxu0
        %v6459 = vpop.f32.mrf.mxu0
        %6460 = vmatmul.bf16.gmra.mxu0 %v6074
        %v6461 = vpop.f32.mrf.mxu0
        %v6462 = vpop.f32.mrf.mxu0
        %6463 = vmatmul.bf16.gmra.mxu0 %v6075
        %v6464 = vpop.f32.mrf.mxu0
        %v6465 = vpop.f32.mrf.mxu0
        %6466 = vmatmul.bf16.gmra.mxu0 %v6076
        %v6467 = vpop.f32.mrf.mxu0
        %v6468 = vpop.f32.mrf.mxu0
        %6469 = vdwg.mxu0
        %6470 = vmatpush.bf16.msra.mxu0 %v5950
        %6471 = vmatpush.bf16.msra.mxu0 %v5934
        %6472 = vmatpush.bf16.msra.mxu0 %v5918
        %6473 = vmatpush.bf16.msra.mxu0 %v5902
        %6474 = vmatpush.bf16.msra.mxu0 %v5886
        %6475 = vmatpush.bf16.msra.mxu0 %v5870
        %6476 = vmatpush.bf16.msra.mxu0 %v5854
        %6477 = vmatpush.bf16.msra.mxu0 %v5838
        %6478 = vmatmul.bf16.gmra.mxu0 %v6069
        %v6479 = vpop.f32.mrf.mxu0
        %v6480 = vadd.f32 %v5974, %v6479
        %v6481 = vpop.f32.mrf.mxu0
        %v6482 = vadd.f32 %v5979, %v6481
        %6483 = vmatmul.bf16.gmra.mxu0 %v6070
        %v6484 = vpop.f32.mrf.mxu0
        %v6485 = vpop.f32.mrf.mxu0
        %6486 = vmatmul.bf16.gmra.mxu0 %v6071
        %v6487 = vpop.f32.mrf.mxu0
        %v6488 = vpop.f32.mrf.mxu0
        %6489 = vmatmul.bf16.gmra.mxu0 %v6072
        %v6490 = vpop.f32.mrf.mxu0
        %v6491 = vpop.f32.mrf.mxu0
        %6492 = vmatmul.bf16.gmra.mxu0 %v6073
        %v6493 = vpop.f32.mrf.mxu0
        %v6494 = vpop.f32.mrf.mxu0
        %6495 = vmatmul.bf16.gmra.mxu0 %v6074
        %v6496 = vpop.f32.mrf.mxu0
        %v6497 = vpop.f32.mrf.mxu0
        %6498 = vmatmul.bf16.gmra.mxu0 %v6075
        %v6499 = vpop.f32.mrf.mxu0
        %v6500 = vpop.f32.mrf.mxu0
        %6501 = vmatmul.bf16.gmra.mxu0 %v6076
        %v6502 = vpop.f32.mrf.mxu0
        %v6503 = vpop.f32.mrf.mxu0
        %6504 = vdwg.mxu0
        %6505 = vmatpush.bf16.msra.mxu0 %v5951
        %6506 = vmatpush.bf16.msra.mxu0 %v5935
        %6507 = vmatpush.bf16.msra.mxu0 %v5919
        %6508 = vmatpush.bf16.msra.mxu0 %v5903
        %6509 = vmatpush.bf16.msra.mxu0 %v5887
        %6510 = vmatpush.bf16.msra.mxu0 %v5871
        %6511 = vmatpush.bf16.msra.mxu0 %v5855
        %6512 = vmatpush.bf16.msra.mxu0 %v5839
        %6513 = vmatmul.bf16.gmra.mxu0 %v6069
        %v6514 = vpop.f32.mrf.mxu0
        %v6515 = vadd.f32 %v5974, %v6514
        %v6516 = vpop.f32.mrf.mxu0
        %v6517 = vadd.f32 %v5979, %v6516
        %6518 = vmatmul.bf16.gmra.mxu0 %v6070
        %v6519 = vpop.f32.mrf.mxu0
        %v6520 = vpop.f32.mrf.mxu0
        %6521 = vmatmul.bf16.gmra.mxu0 %v6071
        %v6522 = vpop.f32.mrf.mxu0
        %v6523 = vpop.f32.mrf.mxu0
        %6524 = vmatmul.bf16.gmra.mxu0 %v6072
        %v6525 = vpop.f32.mrf.mxu0
        %v6526 = vpop.f32.mrf.mxu0
        %6527 = vmatmul.bf16.gmra.mxu0 %v6073
        %v6528 = vpop.f32.mrf.mxu0
        %v6529 = vpop.f32.mrf.mxu0
        %6530 = vmatmul.bf16.gmra.mxu0 %v6074
        %v6531 = vpop.f32.mrf.mxu0
        %v6532 = vpop.f32.mrf.mxu0
        %6533 = vmatmul.bf16.gmra.mxu0 %v6075
        %v6534 = vpop.f32.mrf.mxu0
        %v6535 = vpop.f32.mrf.mxu0
        %6536 = vmatmul.bf16.gmra.mxu0 %v6076
        %v6537 = vpop.f32.mrf.mxu0
        %v6538 = vpop.f32.mrf.mxu0
        %6539 = vdwg.mxu0
        %6540 = vmatpush.bf16.msra.mxu0 %v5952
        %6541 = vmatpush.bf16.msra.mxu0 %v5936
        %6542 = vmatpush.bf16.msra.mxu0 %v5920
        %6543 = vmatpush.bf16.msra.mxu0 %v5904
        %6544 = vmatpush.bf16.msra.mxu0 %v5888
        %6545 = vmatpush.bf16.msra.mxu0 %v5872
        %6546 = vmatpush.bf16.msra.mxu0 %v5856
        %6547 = vmatpush.bf16.msra.mxu0 %v5840
        %6548 = vmatmul.bf16.gmra.mxu0 %v6069
        %v6549 = vpop.f32.mrf.mxu0
        %v6550 = vadd.f32 %v5974, %v6549
        %v6551 = vpop.f32.mrf.mxu0
        %v6552 = vadd.f32 %v5979, %v6551
        %6553 = vmatmul.bf16.gmra.mxu0 %v6070
        %v6554 = vpop.f32.mrf.mxu0
        %v6555 = vpop.f32.mrf.mxu0
        %6556 = vmatmul.bf16.gmra.mxu0 %v6071
        %v6557 = vpop.f32.mrf.mxu0
        %v6558 = vpop.f32.mrf.mxu0
        %6559 = vmatmul.bf16.gmra.mxu0 %v6072
        %v6560 = vpop.f32.mrf.mxu0
        %v6561 = vpop.f32.mrf.mxu0
        %6562 = vmatmul.bf16.gmra.mxu0 %v6073
        %v6563 = vpop.f32.mrf.mxu0
        %v6564 = vpop.f32.mrf.mxu0
        %6565 = vmatmul.bf16.gmra.mxu0 %v6074
        %v6566 = vpop.f32.mrf.mxu0
        %v6567 = vpop.f32.mrf.mxu0
        %6568 = vmatmul.bf16.gmra.mxu0 %v6075
        %v6569 = vpop.f32.mrf.mxu0
        %v6570 = vpop.f32.mrf.mxu0
        %6571 = vmatmul.bf16.gmra.mxu0 %v6076
        %v6572 = vpop.f32.mrf.mxu0
        %v6573 = vpop.f32.mrf.mxu0
        %6574 = vdwg.mxu0
        %6575 = vmatpush.bf16.msra.mxu0 %v5953
        %6576 = vmatpush.bf16.msra.mxu0 %v5937
        %6577 = vmatpush.bf16.msra.mxu0 %v5921
        %6578 = vmatpush.bf16.msra.mxu0 %v5905
        %6579 = vmatpush.bf16.msra.mxu0 %v5889
        %6580 = vmatpush.bf16.msra.mxu0 %v5873
        %6581 = vmatpush.bf16.msra.mxu0 %v5857
        %6582 = vmatpush.bf16.msra.mxu0 %v5841
        %6583 = vmatmul.bf16.gmra.mxu0 %v6069
        %v6584 = vpop.f32.mrf.mxu0
        %v6585 = vadd.f32 %v5974, %v6584
        %v6586 = vpop.f32.mrf.mxu0
        %v6587 = vadd.f32 %v5979, %v6586
        %6588 = vmatmul.bf16.gmra.mxu0 %v6070
        %v6589 = vpop.f32.mrf.mxu0
        %v6590 = vpop.f32.mrf.mxu0
        %6591 = vmatmul.bf16.gmra.mxu0 %v6071
        %v6592 = vpop.f32.mrf.mxu0
        %v6593 = vpop.f32.mrf.mxu0
        %6594 = vmatmul.bf16.gmra.mxu0 %v6072
        %v6595 = vpop.f32.mrf.mxu0
        %v6596 = vpop.f32.mrf.mxu0
        %6597 = vmatmul.bf16.gmra.mxu0 %v6073
        %v6598 = vpop.f32.mrf.mxu0
        %v6599 = vpop.f32.mrf.mxu0
        %6600 = vmatmul.bf16.gmra.mxu0 %v6074
        %v6601 = vpop.f32.mrf.mxu0
        %v6602 = vpop.f32.mrf.mxu0
        %6603 = vmatmul.bf16.gmra.mxu0 %v6075
        %v6604 = vpop.f32.mrf.mxu0
        %v6605 = vpop.f32.mrf.mxu0
        %6606 = vmatmul.bf16.gmra.mxu0 %v6076
        %v6607 = vpop.f32.mrf.mxu0
        %v6608 = vpop.f32.mrf.mxu0
        %6609 = vdwg.mxu0
        %6610 = vmatpush.bf16.msra.mxu0 %v5954
        %6611 = vmatpush.bf16.msra.mxu0 %v5938
        %6612 = vmatpush.bf16.msra.mxu0 %v5922
        %6613 = vmatpush.bf16.msra.mxu0 %v5906
        %6614 = vmatpush.bf16.msra.mxu0 %v5890
        %6615 = vmatpush.bf16.msra.mxu0 %v5874
        %6616 = vmatpush.bf16.msra.mxu0 %v5858
        %6617 = vmatpush.bf16.msra.mxu0 %v5842
        %6618 = vmatmul.bf16.gmra.mxu0 %v6069
        %v6619 = vpop.f32.mrf.mxu0
        %v6620 = vadd.f32 %v5974, %v6619
        %v6621 = vpop.f32.mrf.mxu0
        %v6622 = vadd.f32 %v5979, %v6621
        %6623 = vmatmul.bf16.gmra.mxu0 %v6070
        %v6624 = vpop.f32.mrf.mxu0
        %v6625 = vpop.f32.mrf.mxu0
        %6626 = vmatmul.bf16.gmra.mxu0 %v6071
        %v6627 = vpop.f32.mrf.mxu0
        %v6628 = vpop.f32.mrf.mxu0
        %6629 = vmatmul.bf16.gmra.mxu0 %v6072
        %v6630 = vpop.f32.mrf.mxu0
        %v6631 = vpop.f32.mrf.mxu0
        %6632 = vmatmul.bf16.gmra.mxu0 %v6073
        %v6633 = vpop.f32.mrf.mxu0
        %v6634 = vpop.f32.mrf.mxu0
        %6635 = vmatmul.bf16.gmra.mxu0 %v6074
        %v6636 = vpop.f32.mrf.mxu0
        %v6637 = vpop.f32.mrf.mxu0
        %6638 = vmatmul.bf16.gmra.mxu0 %v6075
        %v6639 = vpop.f32.mrf.mxu0
        %v6640 = vpop.f32.mrf.mxu0
        %6641 = vmatmul.bf16.gmra.mxu0 %v6076
        %v6642 = vpop.f32.mrf.mxu0
        %v6643 = vpop.f32.mrf.mxu0
        %6644 = vdwg.mxu0
        %v6645 = vsub.f32 0.0, %v6095
        %v6646 = vsub.f32 0.0, %v6130
        %v6647 = vsub.f32 0.0, %v6165
        %v6648 = vsub.f32 0.0, %v6200
        %v6649 = vsub.f32 0.0, %v6235
        %v6650 = vsub.f32 0.0, %v6270
        %v6651 = vsub.f32 0.0, %v6305
        %v6652 = vsub.f32 0.0, %v6340
        %v6653 = vsub.f32 0.0, %v6375
        %v6654 = vsub.f32 0.0, %v6410
        %v6655 = vsub.f32 0.0, %v6445
        %v6656 = vsub.f32 0.0, %v6480
        %v6657 = vsub.f32 0.0, %v6515
        %v6658 = vsub.f32 0.0, %v6550
        %v6659 = vsub.f32 0.0, %v6585
        %v6660 = vsub.f32 0.0, %v6620
        %v6661 = vsub.f32 0.0, %v6097
        %v6662 = vsub.f32 0.0, %v6132
        %v6663 = vsub.f32 0.0, %v6167
        %v6664 = vsub.f32 0.0, %v6202
        %v6665 = vsub.f32 0.0, %v6237
        %v6666 = vsub.f32 0.0, %v6272
        %v6667 = vsub.f32 0.0, %v6307
        %v6668 = vsub.f32 0.0, %v6342
        %v6669 = vsub.f32 0.0, %v6377
        %v6670 = vsub.f32 0.0, %v6412
        %v6671 = vsub.f32 0.0, %v6447
        %v6672 = vsub.f32 0.0, %v6482
        %v6673 = vsub.f32 0.0, %v6517
        %v6674 = vsub.f32 0.0, %v6552
        %v6675 = vsub.f32 0.0, %v6587
        %v6676 = vsub.f32 0.0, %v6622
        %v6677 = vmul.f32 %v6645, 1.442695
        %v6678 = vpow.pop %v6677
        %v6679 = vmul.f32 %v6646, 1.442695
        %v6680 = vpow.pop %v6679
        %v6681 = vmul.f32 %v6647, 1.442695
        %v6682 = vpow.pop %v6681
        %v6683 = vmul.f32 %v6648, 1.442695
        %v6684 = vpow.pop %v6683
        %v6685 = vmul.f32 %v6649, 1.442695
        %v6686 = vpow.pop %v6685
        %v6687 = vmul.f32 %v6650, 1.442695
        %v6688 = vpow.pop %v6687
        %v6689 = vmul.f32 %v6651, 1.442695
        %v6690 = vpow.pop %v6689
        %v6691 = vmul.f32 %v6652, 1.442695
        %v6692 = vpow.pop %v6691
        %v6693 = vmul.f32 %v6653, 1.442695
        %v6694 = vpow.pop %v6693
        %v6695 = vmul.f32 %v6654, 1.442695
        %v6696 = vpow.pop %v6695
        %v6697 = vmul.f32 %v6655, 1.442695
        %v6698 = vpow.pop %v6697
        %v6699 = vmul.f32 %v6656, 1.442695
        %v6700 = vpow.pop %v6699
        %v6701 = vmul.f32 %v6657, 1.442695
        %v6702 = vpow.pop %v6701
        %v6703 = vmul.f32 %v6658, 1.442695
        %v6704 = vpow.pop %v6703
        %v6705 = vmul.f32 %v6659, 1.442695
        %v6706 = vpow.pop %v6705
        %v6707 = vmul.f32 %v6660, 1.442695
        %v6708 = vpow.pop %v6707
        %v6709 = vmul.f32 %v6661, 1.442695
        %v6710 = vpow.pop %v6709
        %v6711 = vmul.f32 %v6662, 1.442695
        %v6712 = vpow.pop %v6711
        %v6713 = vmul.f32 %v6663, 1.442695
        %v6714 = vpow.pop %v6713
        %v6715 = vmul.f32 %v6664, 1.442695
        %v6716 = vpow.pop %v6715
        %v6717 = vmul.f32 %v6665, 1.442695
        %v6718 = vpow.pop %v6717
        %v6719 = vmul.f32 %v6666, 1.442695
        %v6720 = vpow.pop %v6719
        %v6721 = vmul.f32 %v6667, 1.442695
        %v6722 = vpow.pop %v6721
        %v6723 = vmul.f32 %v6668, 1.442695
        %v6724 = vpow.pop %v6723
        %v6725 = vmul.f32 %v6669, 1.442695
        %v6726 = vpow.pop %v6725
        %v6727 = vmul.f32 %v6670, 1.442695
        %v6728 = vpow.pop %v6727
        %v6729 = vmul.f32 %v6671, 1.442695
        %v6730 = vpow.pop %v6729
        %v6731 = vmul.f32 %v6672, 1.442695
        %v6732 = vpow.pop %v6731
        %v6733 = vmul.f32 %v6673, 1.442695
        %v6734 = vpow.pop %v6733
        %v6735 = vmul.f32 %v6674, 1.442695
        %v6736 = vpow.pop %v6735
        %v6737 = vmul.f32 %v6675, 1.442695
        %v6738 = vpow.pop %v6737
        %v6739 = vmul.f32 %v6676, 1.442695
        %v6740 = vpow.pop %v6739
        %v6741 = vadd.f32 %v6678, 1.0
        %v6742 = vadd.f32 %v6680, 1.0
        %v6743 = vadd.f32 %v6682, 1.0
        %v6744 = vadd.f32 %v6684, 1.0
        %v6745 = vadd.f32 %v6686, 1.0
        %v6746 = vadd.f32 %v6688, 1.0
        %v6747 = vadd.f32 %v6690, 1.0
        %v6748 = vadd.f32 %v6692, 1.0
        %v6749 = vadd.f32 %v6694, 1.0
        %v6750 = vadd.f32 %v6696, 1.0
        %v6751 = vadd.f32 %v6698, 1.0
        %v6752 = vadd.f32 %v6700, 1.0
        %v6753 = vadd.f32 %v6702, 1.0
        %v6754 = vadd.f32 %v6704, 1.0
        %v6755 = vadd.f32 %v6706, 1.0
        %v6756 = vadd.f32 %v6708, 1.0
        %v6757 = vadd.f32 %v6710, 1.0
        %v6758 = vadd.f32 %v6712, 1.0
        %v6759 = vadd.f32 %v6714, 1.0
        %v6760 = vadd.f32 %v6716, 1.0
        %v6761 = vadd.f32 %v6718, 1.0
        %v6762 = vadd.f32 %v6720, 1.0
        %v6763 = vadd.f32 %v6722, 1.0
        %v6764 = vadd.f32 %v6724, 1.0
        %v6765 = vadd.f32 %v6726, 1.0
        %v6766 = vadd.f32 %v6728, 1.0
        %v6767 = vadd.f32 %v6730, 1.0
        %v6768 = vadd.f32 %v6732, 1.0
        %v6769 = vadd.f32 %v6734, 1.0
        %v6770 = vadd.f32 %v6736, 1.0
        %v6771 = vadd.f32 %v6738, 1.0
        %v6772 = vadd.f32 %v6740, 1.0
        %v6773 = vrcp.pop %v6741
        %v6774 = vmul.f32 %v6741, %v6773
        %v6775 = vsub.f32 1.0, %v6774
        %v6776 = vmul.f32 %v6773, %v6775
        %v6777 = vadd.f32 %v6773, %v6776
        %vm6778 = vweird.f32 %v6741
        %vm6779 = vweird.f32 %v6773
        %vm6780 = vmor %vm6778, %vm6779
        %v6781 = vsel %vm6780, %v6773, %v6777
        %v6782 = vand.u32 2147483647, %v6741
        %vm6783 = vcmp.eq.f32.partialorder %v6782, 8.507059e+37
        %v6784 = vand.u32 %v6741, 2147483648
        %v6785 = vor.u32 1.1754944e-38, %v6784
        %v6786 = vsel %vm6783, %v6785, %v6781
        %v6787 = vmul.f32 1.0, %v6786
        %v6788 = vrcp.pop %v6742
        %v6789 = vmul.f32 %v6742, %v6788
        %v6790 = vsub.f32 1.0, %v6789
        %v6791 = vmul.f32 %v6788, %v6790
        %v6792 = vadd.f32 %v6788, %v6791
        %vm6793 = vweird.f32 %v6742
        %vm6794 = vweird.f32 %v6788
        %vm6795 = vmor %vm6793, %vm6794
        %v6796 = vsel %vm6795, %v6788, %v6792
        %v6797 = vand.u32 2147483647, %v6742
        %vm6798 = vcmp.eq.f32.partialorder %v6797, 8.507059e+37
        %v6799 = vand.u32 %v6742, 2147483648
        %v6800 = vor.u32 1.1754944e-38, %v6799
        %v6801 = vsel %vm6798, %v6800, %v6796
        %v6802 = vmul.f32 1.0, %v6801
        %v6803 = vrcp.pop %v6743
        %v6804 = vmul.f32 %v6743, %v6803
        %v6805 = vsub.f32 1.0, %v6804
        %v6806 = vmul.f32 %v6803, %v6805
        %v6807 = vadd.f32 %v6803, %v6806
        %vm6808 = vweird.f32 %v6743
        %vm6809 = vweird.f32 %v6803
        %vm6810 = vmor %vm6808, %vm6809
        %v6811 = vsel %vm6810, %v6803, %v6807
        %v6812 = vand.u32 2147483647, %v6743
        %vm6813 = vcmp.eq.f32.partialorder %v6812, 8.507059e+37
        %v6814 = vand.u32 %v6743, 2147483648
        %v6815 = vor.u32 1.1754944e-38, %v6814
        %v6816 = vsel %vm6813, %v6815, %v6811
        %v6817 = vmul.f32 1.0, %v6816
        %v6818 = vrcp.pop %v6744
        %v6819 = vmul.f32 %v6744, %v6818
        %v6820 = vsub.f32 1.0, %v6819
        %v6821 = vmul.f32 %v6818, %v6820
        %v6822 = vadd.f32 %v6818, %v6821
        %vm6823 = vweird.f32 %v6744
        %vm6824 = vweird.f32 %v6818
        %vm6825 = vmor %vm6823, %vm6824
        %v6826 = vsel %vm6825, %v6818, %v6822
        %v6827 = vand.u32 2147483647, %v6744
        %vm6828 = vcmp.eq.f32.partialorder %v6827, 8.507059e+37
        %v6829 = vand.u32 %v6744, 2147483648
        %v6830 = vor.u32 1.1754944e-38, %v6829
        %v6831 = vsel %vm6828, %v6830, %v6826
        %v6832 = vmul.f32 1.0, %v6831
        %v6833 = vrcp.pop %v6745
        %v6834 = vmul.f32 %v6745, %v6833
        %v6835 = vsub.f32 1.0, %v6834
        %v6836 = vmul.f32 %v6833, %v6835
        %v6837 = vadd.f32 %v6833, %v6836
        %vm6838 = vweird.f32 %v6745
        %vm6839 = vweird.f32 %v6833
        %vm6840 = vmor %vm6838, %vm6839
        %v6841 = vsel %vm6840, %v6833, %v6837
        %v6842 = vand.u32 2147483647, %v6745
        %vm6843 = vcmp.eq.f32.partialorder %v6842, 8.507059e+37
        %v6844 = vand.u32 %v6745, 2147483648
        %v6845 = vor.u32 1.1754944e-38, %v6844
        %v6846 = vsel %vm6843, %v6845, %v6841
        %v6847 = vmul.f32 1.0, %v6846
        %v6848 = vrcp.pop %v6746
        %v6849 = vmul.f32 %v6746, %v6848
        %v6850 = vsub.f32 1.0, %v6849
        %v6851 = vmul.f32 %v6848, %v6850
        %v6852 = vadd.f32 %v6848, %v6851
        %vm6853 = vweird.f32 %v6746
        %vm6854 = vweird.f32 %v6848
        %vm6855 = vmor %vm6853, %vm6854
        %v6856 = vsel %vm6855, %v6848, %v6852
        %v6857 = vand.u32 2147483647, %v6746
        %vm6858 = vcmp.eq.f32.partialorder %v6857, 8.507059e+37
        %v6859 = vand.u32 %v6746, 2147483648
        %v6860 = vor.u32 1.1754944e-38, %v6859
        %v6861 = vsel %vm6858, %v6860, %v6856
        %v6862 = vmul.f32 1.0, %v6861
        %v6863 = vrcp.pop %v6747
        %v6864 = vmul.f32 %v6747, %v6863
        %v6865 = vsub.f32 1.0, %v6864
        %v6866 = vmul.f32 %v6863, %v6865
        %v6867 = vadd.f32 %v6863, %v6866
        %vm6868 = vweird.f32 %v6747
        %vm6869 = vweird.f32 %v6863
        %vm6870 = vmor %vm6868, %vm6869
        %v6871 = vsel %vm6870, %v6863, %v6867
        %v6872 = vand.u32 2147483647, %v6747
        %vm6873 = vcmp.eq.f32.partialorder %v6872, 8.507059e+37
        %v6874 = vand.u32 %v6747, 2147483648
        %v6875 = vor.u32 1.1754944e-38, %v6874
        %v6876 = vsel %vm6873, %v6875, %v6871
        %v6877 = vmul.f32 1.0, %v6876
        %v6878 = vrcp.pop %v6748
        %v6879 = vmul.f32 %v6748, %v6878
        %v6880 = vsub.f32 1.0, %v6879
        %v6881 = vmul.f32 %v6878, %v6880
        %v6882 = vadd.f32 %v6878, %v6881
        %vm6883 = vweird.f32 %v6748
        %vm6884 = vweird.f32 %v6878
        %vm6885 = vmor %vm6883, %vm6884
        %v6886 = vsel %vm6885, %v6878, %v6882
        %v6887 = vand.u32 2147483647, %v6748
        %vm6888 = vcmp.eq.f32.partialorder %v6887, 8.507059e+37
        %v6889 = vand.u32 %v6748, 2147483648
        %v6890 = vor.u32 1.1754944e-38, %v6889
        %v6891 = vsel %vm6888, %v6890, %v6886
        %v6892 = vmul.f32 1.0, %v6891
        %v6893 = vrcp.pop %v6749
        %v6894 = vmul.f32 %v6749, %v6893
        %v6895 = vsub.f32 1.0, %v6894
        %v6896 = vmul.f32 %v6893, %v6895
        %v6897 = vadd.f32 %v6893, %v6896
        %vm6898 = vweird.f32 %v6749
        %vm6899 = vweird.f32 %v6893
        %vm6900 = vmor %vm6898, %vm6899
        %v6901 = vsel %vm6900, %v6893, %v6897
        %v6902 = vand.u32 2147483647, %v6749
        %vm6903 = vcmp.eq.f32.partialorder %v6902, 8.507059e+37
        %v6904 = vand.u32 %v6749, 2147483648
        %v6905 = vor.u32 1.1754944e-38, %v6904
        %v6906 = vsel %vm6903, %v6905, %v6901
        %v6907 = vmul.f32 1.0, %v6906
        %v6908 = vrcp.pop %v6750
        %v6909 = vmul.f32 %v6750, %v6908
        %v6910 = vsub.f32 1.0, %v6909
        %v6911 = vmul.f32 %v6908, %v6910
        %v6912 = vadd.f32 %v6908, %v6911
        %vm6913 = vweird.f32 %v6750
        %vm6914 = vweird.f32 %v6908
        %vm6915 = vmor %vm6913, %vm6914
        %v6916 = vsel %vm6915, %v6908, %v6912
        %v6917 = vand.u32 2147483647, %v6750
        %vm6918 = vcmp.eq.f32.partialorder %v6917, 8.507059e+37
        %v6919 = vand.u32 %v6750, 2147483648
        %v6920 = vor.u32 1.1754944e-38, %v6919
        %v6921 = vsel %vm6918, %v6920, %v6916
        %v6922 = vmul.f32 1.0, %v6921
        %v6923 = vrcp.pop %v6751
        %v6924 = vmul.f32 %v6751, %v6923
        %v6925 = vsub.f32 1.0, %v6924
        %v6926 = vmul.f32 %v6923, %v6925
        %v6927 = vadd.f32 %v6923, %v6926
        %vm6928 = vweird.f32 %v6751
        %vm6929 = vweird.f32 %v6923
        %vm6930 = vmor %vm6928, %vm6929
        %v6931 = vsel %vm6930, %v6923, %v6927
        %v6932 = vand.u32 2147483647, %v6751
        %vm6933 = vcmp.eq.f32.partialorder %v6932, 8.507059e+37
        %v6934 = vand.u32 %v6751, 2147483648
        %v6935 = vor.u32 1.1754944e-38, %v6934
        %v6936 = vsel %vm6933, %v6935, %v6931
        %v6937 = vmul.f32 1.0, %v6936
        %v6938 = vrcp.pop %v6752
        %v6939 = vmul.f32 %v6752, %v6938
        %v6940 = vsub.f32 1.0, %v6939
        %v6941 = vmul.f32 %v6938, %v6940
        %v6942 = vadd.f32 %v6938, %v6941
        %vm6943 = vweird.f32 %v6752
        %vm6944 = vweird.f32 %v6938
        %vm6945 = vmor %vm6943, %vm6944
        %v6946 = vsel %vm6945, %v6938, %v6942
        %v6947 = vand.u32 2147483647, %v6752
        %vm6948 = vcmp.eq.f32.partialorder %v6947, 8.507059e+37
        %v6949 = vand.u32 %v6752, 2147483648
        %v6950 = vor.u32 1.1754944e-38, %v6949
        %v6951 = vsel %vm6948, %v6950, %v6946
        %v6952 = vmul.f32 1.0, %v6951
        %v6953 = vrcp.pop %v6753
        %v6954 = vmul.f32 %v6753, %v6953
        %v6955 = vsub.f32 1.0, %v6954
        %v6956 = vmul.f32 %v6953, %v6955
        %v6957 = vadd.f32 %v6953, %v6956
        %vm6958 = vweird.f32 %v6753
        %vm6959 = vweird.f32 %v6953
        %vm6960 = vmor %vm6958, %vm6959
        %v6961 = vsel %vm6960, %v6953, %v6957
        %v6962 = vand.u32 2147483647, %v6753
        %vm6963 = vcmp.eq.f32.partialorder %v6962, 8.507059e+37
        %v6964 = vand.u32 %v6753, 2147483648
        %v6965 = vor.u32 1.1754944e-38, %v6964
        %v6966 = vsel %vm6963, %v6965, %v6961
        %v6967 = vmul.f32 1.0, %v6966
        %v6968 = vrcp.pop %v6754
        %v6969 = vmul.f32 %v6754, %v6968
        %v6970 = vsub.f32 1.0, %v6969
        %v6971 = vmul.f32 %v6968, %v6970
        %v6972 = vadd.f32 %v6968, %v6971
        %vm6973 = vweird.f32 %v6754
        %vm6974 = vweird.f32 %v6968
        %vm6975 = vmor %vm6973, %vm6974
        %v6976 = vsel %vm6975, %v6968, %v6972
        %v6977 = vand.u32 2147483647, %v6754
        %vm6978 = vcmp.eq.f32.partialorder %v6977, 8.507059e+37
        %v6979 = vand.u32 %v6754, 2147483648
        %v6980 = vor.u32 1.1754944e-38, %v6979
        %v6981 = vsel %vm6978, %v6980, %v6976
        %v6982 = vmul.f32 1.0, %v6981
        %v6983 = vrcp.pop %v6755
        %v6984 = vmul.f32 %v6755, %v6983
        %v6985 = vsub.f32 1.0, %v6984
        %v6986 = vmul.f32 %v6983, %v6985
        %v6987 = vadd.f32 %v6983, %v6986
        %vm6988 = vweird.f32 %v6755
        %vm6989 = vweird.f32 %v6983
        %vm6990 = vmor %vm6988, %vm6989
        %v6991 = vsel %vm6990, %v6983, %v6987
        %v6992 = vand.u32 2147483647, %v6755
        %vm6993 = vcmp.eq.f32.partialorder %v6992, 8.507059e+37
        %v6994 = vand.u32 %v6755, 2147483648
        %v6995 = vor.u32 1.1754944e-38, %v6994
        %v6996 = vsel %vm6993, %v6995, %v6991
        %v6997 = vmul.f32 1.0, %v6996
        %v6998 = vrcp.pop %v6756
        %v6999 = vmul.f32 %v6756, %v6998
        %v7000 = vsub.f32 1.0, %v6999
        %v7001 = vmul.f32 %v6998, %v7000
        %v7002 = vadd.f32 %v6998, %v7001
        %vm7003 = vweird.f32 %v6756
        %vm7004 = vweird.f32 %v6998
        %vm7005 = vmor %vm7003, %vm7004
        %v7006 = vsel %vm7005, %v6998, %v7002
        %v7007 = vand.u32 2147483647, %v6756
        %vm7008 = vcmp.eq.f32.partialorder %v7007, 8.507059e+37
        %v7009 = vand.u32 %v6756, 2147483648
        %v7010 = vor.u32 1.1754944e-38, %v7009
        %v7011 = vsel %vm7008, %v7010, %v7006
        %v7012 = vmul.f32 1.0, %v7011
        %v7013 = vrcp.pop %v6757
        %v7014 = vmul.f32 %v6757, %v7013
        %v7015 = vsub.f32 1.0, %v7014
        %v7016 = vmul.f32 %v7013, %v7015
        %v7017 = vadd.f32 %v7013, %v7016
        %vm7018 = vweird.f32 %v6757
        %vm7019 = vweird.f32 %v7013
        %vm7020 = vmor %vm7018, %vm7019
        %v7021 = vsel %vm7020, %v7013, %v7017
        %v7022 = vand.u32 2147483647, %v6757
        %vm7023 = vcmp.eq.f32.partialorder %v7022, 8.507059e+37
        %v7024 = vand.u32 %v6757, 2147483648
        %v7025 = vor.u32 1.1754944e-38, %v7024
        %v7026 = vsel %vm7023, %v7025, %v7021
        %v7027 = vmul.f32 1.0, %v7026
        %v7028 = vrcp.pop %v6758
        %v7029 = vmul.f32 %v6758, %v7028
        %v7030 = vsub.f32 1.0, %v7029
        %v7031 = vmul.f32 %v7028, %v7030
        %v7032 = vadd.f32 %v7028, %v7031
        %vm7033 = vweird.f32 %v6758
        %vm7034 = vweird.f32 %v7028
        %vm7035 = vmor %vm7033, %vm7034
        %v7036 = vsel %vm7035, %v7028, %v7032
        %v7037 = vand.u32 2147483647, %v6758
        %vm7038 = vcmp.eq.f32.partialorder %v7037, 8.507059e+37
        %v7039 = vand.u32 %v6758, 2147483648
        %v7040 = vor.u32 1.1754944e-38, %v7039
        %v7041 = vsel %vm7038, %v7040, %v7036
        %v7042 = vmul.f32 1.0, %v7041
        %v7043 = vrcp.pop %v6759
        %v7044 = vmul.f32 %v6759, %v7043
        %v7045 = vsub.f32 1.0, %v7044
        %v7046 = vmul.f32 %v7043, %v7045
        %v7047 = vadd.f32 %v7043, %v7046
        %vm7048 = vweird.f32 %v6759
        %vm7049 = vweird.f32 %v7043
        %vm7050 = vmor %vm7048, %vm7049
        %v7051 = vsel %vm7050, %v7043, %v7047
        %v7052 = vand.u32 2147483647, %v6759
        %vm7053 = vcmp.eq.f32.partialorder %v7052, 8.507059e+37
        %v7054 = vand.u32 %v6759, 2147483648
        %v7055 = vor.u32 1.1754944e-38, %v7054
        %v7056 = vsel %vm7053, %v7055, %v7051
        %v7057 = vmul.f32 1.0, %v7056
        %v7058 = vrcp.pop %v6760
        %v7059 = vmul.f32 %v6760, %v7058
        %v7060 = vsub.f32 1.0, %v7059
        %v7061 = vmul.f32 %v7058, %v7060
        %v7062 = vadd.f32 %v7058, %v7061
        %vm7063 = vweird.f32 %v6760
        %vm7064 = vweird.f32 %v7058
        %vm7065 = vmor %vm7063, %vm7064
        %v7066 = vsel %vm7065, %v7058, %v7062
        %v7067 = vand.u32 2147483647, %v6760
        %vm7068 = vcmp.eq.f32.partialorder %v7067, 8.507059e+37
        %v7069 = vand.u32 %v6760, 2147483648
        %v7070 = vor.u32 1.1754944e-38, %v7069
        %v7071 = vsel %vm7068, %v7070, %v7066
        %v7072 = vmul.f32 1.0, %v7071
        %v7073 = vrcp.pop %v6761
        %v7074 = vmul.f32 %v6761, %v7073
        %v7075 = vsub.f32 1.0, %v7074
        %v7076 = vmul.f32 %v7073, %v7075
        %v7077 = vadd.f32 %v7073, %v7076
        %vm7078 = vweird.f32 %v6761
        %vm7079 = vweird.f32 %v7073
        %vm7080 = vmor %vm7078, %vm7079
        %v7081 = vsel %vm7080, %v7073, %v7077
        %v7082 = vand.u32 2147483647, %v6761
        %vm7083 = vcmp.eq.f32.partialorder %v7082, 8.507059e+37
        %v7084 = vand.u32 %v6761, 2147483648
        %v7085 = vor.u32 1.1754944e-38, %v7084
        %v7086 = vsel %vm7083, %v7085, %v7081
        %v7087 = vmul.f32 1.0, %v7086
        %v7088 = vrcp.pop %v6762
        %v7089 = vmul.f32 %v6762, %v7088
        %v7090 = vsub.f32 1.0, %v7089
        %v7091 = vmul.f32 %v7088, %v7090
        %v7092 = vadd.f32 %v7088, %v7091
        %vm7093 = vweird.f32 %v6762
        %vm7094 = vweird.f32 %v7088
        %vm7095 = vmor %vm7093, %vm7094
        %v7096 = vsel %vm7095, %v7088, %v7092
        %v7097 = vand.u32 2147483647, %v6762
        %vm7098 = vcmp.eq.f32.partialorder %v7097, 8.507059e+37
        %v7099 = vand.u32 %v6762, 2147483648
        %v7100 = vor.u32 1.1754944e-38, %v7099
        %v7101 = vsel %vm7098, %v7100, %v7096
        %v7102 = vmul.f32 1.0, %v7101
        %v7103 = vrcp.pop %v6763
        %v7104 = vmul.f32 %v6763, %v7103
        %v7105 = vsub.f32 1.0, %v7104
        %v7106 = vmul.f32 %v7103, %v7105
        %v7107 = vadd.f32 %v7103, %v7106
        %vm7108 = vweird.f32 %v6763
        %vm7109 = vweird.f32 %v7103
        %vm7110 = vmor %vm7108, %vm7109
        %v7111 = vsel %vm7110, %v7103, %v7107
        %v7112 = vand.u32 2147483647, %v6763
        %vm7113 = vcmp.eq.f32.partialorder %v7112, 8.507059e+37
        %v7114 = vand.u32 %v6763, 2147483648
        %v7115 = vor.u32 1.1754944e-38, %v7114
        %v7116 = vsel %vm7113, %v7115, %v7111
        %v7117 = vmul.f32 1.0, %v7116
        %v7118 = vrcp.pop %v6764
        %v7119 = vmul.f32 %v6764, %v7118
        %v7120 = vsub.f32 1.0, %v7119
        %v7121 = vmul.f32 %v7118, %v7120
        %v7122 = vadd.f32 %v7118, %v7121
        %vm7123 = vweird.f32 %v6764
        %vm7124 = vweird.f32 %v7118
        %vm7125 = vmor %vm7123, %vm7124
        %v7126 = vsel %vm7125, %v7118, %v7122
        %v7127 = vand.u32 2147483647, %v6764
        %vm7128 = vcmp.eq.f32.partialorder %v7127, 8.507059e+37
        %v7129 = vand.u32 %v6764, 2147483648
        %v7130 = vor.u32 1.1754944e-38, %v7129
        %v7131 = vsel %vm7128, %v7130, %v7126
        %v7132 = vmul.f32 1.0, %v7131
        %v7133 = vrcp.pop %v6765
        %v7134 = vmul.f32 %v6765, %v7133
        %v7135 = vsub.f32 1.0, %v7134
        %v7136 = vmul.f32 %v7133, %v7135
        %v7137 = vadd.f32 %v7133, %v7136
        %vm7138 = vweird.f32 %v6765
        %vm7139 = vweird.f32 %v7133
        %vm7140 = vmor %vm7138, %vm7139
        %v7141 = vsel %vm7140, %v7133, %v7137
        %v7142 = vand.u32 2147483647, %v6765
        %vm7143 = vcmp.eq.f32.partialorder %v7142, 8.507059e+37
        %v7144 = vand.u32 %v6765, 2147483648
        %v7145 = vor.u32 1.1754944e-38, %v7144
        %v7146 = vsel %vm7143, %v7145, %v7141
        %v7147 = vmul.f32 1.0, %v7146
        %v7148 = vrcp.pop %v6766
        %v7149 = vmul.f32 %v6766, %v7148
        %v7150 = vsub.f32 1.0, %v7149
        %v7151 = vmul.f32 %v7148, %v7150
        %v7152 = vadd.f32 %v7148, %v7151
        %vm7153 = vweird.f32 %v6766
        %vm7154 = vweird.f32 %v7148
        %vm7155 = vmor %vm7153, %vm7154
        %v7156 = vsel %vm7155, %v7148, %v7152
        %v7157 = vand.u32 2147483647, %v6766
        %vm7158 = vcmp.eq.f32.partialorder %v7157, 8.507059e+37
        %v7159 = vand.u32 %v6766, 2147483648
        %v7160 = vor.u32 1.1754944e-38, %v7159
        %v7161 = vsel %vm7158, %v7160, %v7156
        %v7162 = vmul.f32 1.0, %v7161
        %v7163 = vrcp.pop %v6767
        %v7164 = vmul.f32 %v6767, %v7163
        %v7165 = vsub.f32 1.0, %v7164
        %v7166 = vmul.f32 %v7163, %v7165
        %v7167 = vadd.f32 %v7163, %v7166
        %vm7168 = vweird.f32 %v6767
        %vm7169 = vweird.f32 %v7163
        %vm7170 = vmor %vm7168, %vm7169
        %v7171 = vsel %vm7170, %v7163, %v7167
        %v7172 = vand.u32 2147483647, %v6767
        %vm7173 = vcmp.eq.f32.partialorder %v7172, 8.507059e+37
        %v7174 = vand.u32 %v6767, 2147483648
        %v7175 = vor.u32 1.1754944e-38, %v7174
        %v7176 = vsel %vm7173, %v7175, %v7171
        %v7177 = vmul.f32 1.0, %v7176
        %v7178 = vrcp.pop %v6768
        %v7179 = vmul.f32 %v6768, %v7178
        %v7180 = vsub.f32 1.0, %v7179
        %v7181 = vmul.f32 %v7178, %v7180
        %v7182 = vadd.f32 %v7178, %v7181
        %vm7183 = vweird.f32 %v6768
        %vm7184 = vweird.f32 %v7178
        %vm7185 = vmor %vm7183, %vm7184
        %v7186 = vsel %vm7185, %v7178, %v7182
        %v7187 = vand.u32 2147483647, %v6768
        %vm7188 = vcmp.eq.f32.partialorder %v7187, 8.507059e+37
        %v7189 = vand.u32 %v6768, 2147483648
        %v7190 = vor.u32 1.1754944e-38, %v7189
        %v7191 = vsel %vm7188, %v7190, %v7186
        %v7192 = vmul.f32 1.0, %v7191
        %v7193 = vrcp.pop %v6769
        %v7194 = vmul.f32 %v6769, %v7193
        %v7195 = vsub.f32 1.0, %v7194
        %v7196 = vmul.f32 %v7193, %v7195
        %v7197 = vadd.f32 %v7193, %v7196
        %vm7198 = vweird.f32 %v6769
        %vm7199 = vweird.f32 %v7193
        %vm7200 = vmor %vm7198, %vm7199
        %v7201 = vsel %vm7200, %v7193, %v7197
        %v7202 = vand.u32 2147483647, %v6769
        %vm7203 = vcmp.eq.f32.partialorder %v7202, 8.507059e+37
        %v7204 = vand.u32 %v6769, 2147483648
        %v7205 = vor.u32 1.1754944e-38, %v7204
        %v7206 = vsel %vm7203, %v7205, %v7201
        %v7207 = vmul.f32 1.0, %v7206
        %v7208 = vrcp.pop %v6770
        %v7209 = vmul.f32 %v6770, %v7208
        %v7210 = vsub.f32 1.0, %v7209
        %v7211 = vmul.f32 %v7208, %v7210
        %v7212 = vadd.f32 %v7208, %v7211
        %vm7213 = vweird.f32 %v6770
        %vm7214 = vweird.f32 %v7208
        %vm7215 = vmor %vm7213, %vm7214
        %v7216 = vsel %vm7215, %v7208, %v7212
        %v7217 = vand.u32 2147483647, %v6770
        %vm7218 = vcmp.eq.f32.partialorder %v7217, 8.507059e+37
        %v7219 = vand.u32 %v6770, 2147483648
        %v7220 = vor.u32 1.1754944e-38, %v7219
        %v7221 = vsel %vm7218, %v7220, %v7216
        %v7222 = vmul.f32 1.0, %v7221
        %v7223 = vrcp.pop %v6771
        %v7224 = vmul.f32 %v6771, %v7223
        %v7225 = vsub.f32 1.0, %v7224
        %v7226 = vmul.f32 %v7223, %v7225
        %v7227 = vadd.f32 %v7223, %v7226
        %vm7228 = vweird.f32 %v6771
        %vm7229 = vweird.f32 %v7223
        %vm7230 = vmor %vm7228, %vm7229
        %v7231 = vsel %vm7230, %v7223, %v7227
        %v7232 = vand.u32 2147483647, %v6771
        %vm7233 = vcmp.eq.f32.partialorder %v7232, 8.507059e+37
        %v7234 = vand.u32 %v6771, 2147483648
        %v7235 = vor.u32 1.1754944e-38, %v7234
        %v7236 = vsel %vm7233, %v7235, %v7231
        %v7237 = vmul.f32 1.0, %v7236
        %v7238 = vrcp.pop %v6772
        %v7239 = vmul.f32 %v6772, %v7238
        %v7240 = vsub.f32 1.0, %v7239
        %v7241 = vmul.f32 %v7238, %v7240
        %v7242 = vadd.f32 %v7238, %v7241
        %vm7243 = vweird.f32 %v6772
        %vm7244 = vweird.f32 %v7238
        %vm7245 = vmor %vm7243, %vm7244
        %v7246 = vsel %vm7245, %v7238, %v7242
        %v7247 = vand.u32 2147483647, %v6772
        %vm7248 = vcmp.eq.f32.partialorder %v7247, 8.507059e+37
        %v7249 = vand.u32 %v6772, 2147483648
        %v7250 = vor.u32 1.1754944e-38, %v7249
        %v7251 = vsel %vm7248, %v7250, %v7246
        %v7252 = vmul.f32 1.0, %v7251
        %7253 = vst [vmem:[%s324] sm:$0xff] %v6787
        %7254 = vst [vmem:[%s324 + $0x8] sm:$0xff] %v6802
        %7255 = vst [vmem:[%s324 + $0x10] sm:$0xff] %v6817
        %7256 = vst [vmem:[%s324 + $0x18] sm:$0xff] %v6832
        %7257 = vst [vmem:[%s324 + $0x20] sm:$0xff] %v6847
        %7258 = vst [vmem:[%s324 + $0x28] sm:$0xff] %v6862
        %7259 = vst [vmem:[%s324 + $0x30] sm:$0xff] %v6877
        %7260 = vst [vmem:[%s324 + $0x38] sm:$0xff] %v6892
        %7261 = vst [vmem:[%s324 + $0x40] sm:$0xff] %v6907
        %7262 = vst [vmem:[%s324 + $0x48] sm:$0xff] %v6922
        %7263 = vst [vmem:[%s324 + $0x50] sm:$0xff] %v6937
        %7264 = vst [vmem:[%s324 + $0x58] sm:$0xff] %v6952
        %7265 = vst [vmem:[%s324 + $0x60] sm:$0xff] %v6967
        %7266 = vst [vmem:[%s324 + $0x68] sm:$0xff] %v6982
        %7267 = vst [vmem:[%s324 + $0x70] sm:$0xff] %v6997
        %7268 = vst [vmem:[%s324 + $0x78] sm:$0xff] %v7012
        %7269 = vst [vmem:[%s324 + $0x80] sm:$0xff] %v7027
        %7270 = vst [vmem:[%s324 + $0x88] sm:$0xff] %v7042
        %7271 = vst [vmem:[%s324 + $0x90] sm:$0xff] %v7057
        %7272 = vst [vmem:[%s324 + $0x98] sm:$0xff] %v7072
        %7273 = vst [vmem:[%s324 + $0xa0] sm:$0xff] %v7087
        %7274 = vst [vmem:[%s324 + $0xa8] sm:$0xff] %v7102
        %7275 = vst [vmem:[%s324 + $0xb0] sm:$0xff] %v7117
        %7276 = vst [vmem:[%s324 + $0xb8] sm:$0xff] %v7132
        %7277 = vst [vmem:[%s324 + $0xc0] sm:$0xff] %v7147
        %7278 = vst [vmem:[%s324 + $0xc8] sm:$0xff] %v7162
        %7279 = vst [vmem:[%s324 + $0xd0] sm:$0xff] %v7177
        %7280 = vst [vmem:[%s324 + $0xd8] sm:$0xff] %v7192
        %7281 = vst [vmem:[%s324 + $0xe0] sm:$0xff] %v7207
        %7282 = vst [vmem:[%s324 + $0xe8] sm:$0xff] %v7222
        %7283 = vst [vmem:[%s324 + $0xf0] sm:$0xff] %v7237
        %7284 = vst [vmem:[%s324 + $0xf8] sm:$0xff] %v7252
        %s7285 = sand.u32 %s222, 1
        %s7286 = sand.u32 %s222, 1
        %s7287 = smul.addr %s7286, 256
        %s7288 = scalar_lea.vmem [#allocation2], %s7287
        // Predicated region
        $region57: #{_lambda_.3} parent=55 // pred_check
          %p7289 = pneg %p232
        $region58: #{_lambda_.3} parent=55 // pred_check_branch
          %7291 = sbr.rel (%p7289) target = $region60
        $region59: #{_lambda_.3} parent=55 // pred_region
          %s7292 = smul.u32 16, %s20
          %s7293 = smul.addr %s7292, 8
          %s7294 = scalar_lea.vmem %s9, %s7293
          // Predicated region
          $region61: #{_lambda_.3} parent=59 // pred_check
            _
          $region62: #{_lambda_.3} parent=59 // pred_check_branch
            %7296 = sbr.rel (0) target = $region64
          $region63: #{_lambda_.3} parent=59 // pred_region
            // Predicated region
            $region65: #{_lambda_.3} parent=63 // pred_check
              _
            $region66: #{_lambda_.3} parent=63 // pred_check_branch
              %7298 = sbr.rel (0) target = $region68
            $region67: #{_lambda_.3} parent=63 // pred_region
              loop: start=0, step=1, limit=1
              $region69: #{_lambda_.3} parent=67 // loop_pre_header
                _
              $region70: #{_lambda_.3} parent=67 // loop_header
                %s7300 = sphi 0, %s7304
                %p7301 = scmp.ge.s32.totalorder %s7300, 1
                %s7305 = sphi %s7288, %s7288
                %s7306 = sphi %s7294, %s7294
              $region71: #{_lambda_.3} parent=67 // loop_header_branch
                %7303 = sbr.rel (%p7301) target = $region75
              $region72: #{_lambda_.3} parent=67 // loop_body
                %v7307 = vld [vmem:[%s7305] sm:$0xff]
                %7308 = vst [vmem:[%s7306] sm:$0xff] %v7307
                %v7309 = vld [vmem:[%s7305 + $0x8] sm:$0xff]
                %7310 = vst [vmem:[%s7306 + $0x8] sm:$0xff] %v7309
                %v7311 = vld [vmem:[%s7305 + $0x10] sm:$0xff]
                %7312 = vst [vmem:[%s7306 + $0x10] sm:$0xff] %v7311
                %v7313 = vld [vmem:[%s7305 + $0x18] sm:$0xff]
                %7314 = vst [vmem:[%s7306 + $0x18] sm:$0xff] %v7313
                %v7315 = vld [vmem:[%s7305 + $0x20] sm:$0xff]
                %7316 = vst [vmem:[%s7306 + $0x20] sm:$0xff] %v7315
                %v7317 = vld [vmem:[%s7305 + $0x28] sm:$0xff]
                %7318 = vst [vmem:[%s7306 + $0x28] sm:$0xff] %v7317
                %v7319 = vld [vmem:[%s7305 + $0x30] sm:$0xff]
                %7320 = vst [vmem:[%s7306 + $0x30] sm:$0xff] %v7319
                %v7321 = vld [vmem:[%s7305 + $0x38] sm:$0xff]
                %7322 = vst [vmem:[%s7306 + $0x38] sm:$0xff] %v7321
                %v7323 = vld [vmem:[%s7305 + $0x40] sm:$0xff]
                %7324 = vst [vmem:[%s7306 + $0x40] sm:$0xff] %v7323
                %v7325 = vld [vmem:[%s7305 + $0x48] sm:$0xff]
                %7326 = vst [vmem:[%s7306 + $0x48] sm:$0xff] %v7325
                %v7327 = vld [vmem:[%s7305 + $0x50] sm:$0xff]
                %7328 = vst [vmem:[%s7306 + $0x50] sm:$0xff] %v7327
                %v7329 = vld [vmem:[%s7305 + $0x58] sm:$0xff]
                %7330 = vst [vmem:[%s7306 + $0x58] sm:$0xff] %v7329
                %v7331 = vld [vmem:[%s7305 + $0x60] sm:$0xff]
                %7332 = vst [vmem:[%s7306 + $0x60] sm:$0xff] %v7331
                %v7333 = vld [vmem:[%s7305 + $0x68] sm:$0xff]
                %7334 = vst [vmem:[%s7306 + $0x68] sm:$0xff] %v7333
                %v7335 = vld [vmem:[%s7305 + $0x70] sm:$0xff]
                %7336 = vst [vmem:[%s7306 + $0x70] sm:$0xff] %v7335
                %v7337 = vld [vmem:[%s7305 + $0x78] sm:$0xff]
                %7338 = vst [vmem:[%s7306 + $0x78] sm:$0xff] %v7337
                %v7339 = vld [vmem:[%s7305 + $0x80] sm:$0xff]
                %7340 = vst [vmem:[%s7306 + $0x200] sm:$0xff] %v7339
                %v7341 = vld [vmem:[%s7305 + $0x88] sm:$0xff]
                %7342 = vst [vmem:[%s7306 + $0x208] sm:$0xff] %v7341
                %v7343 = vld [vmem:[%s7305 + $0x90] sm:$0xff]
                %7344 = vst [vmem:[%s7306 + $0x210] sm:$0xff] %v7343
                %v7345 = vld [vmem:[%s7305 + $0x98] sm:$0xff]
                %7346 = vst [vmem:[%s7306 + $0x218] sm:$0xff] %v7345
                %v7347 = vld [vmem:[%s7305 + $0xa0] sm:$0xff]
                %7348 = vst [vmem:[%s7306 + $0x220] sm:$0xff] %v7347
                %v7349 = vld [vmem:[%s7305 + $0xa8] sm:$0xff]
                %7350 = vst [vmem:[%s7306 + $0x228] sm:$0xff] %v7349
                %v7351 = vld [vmem:[%s7305 + $0xb0] sm:$0xff]
                %7352 = vst [vmem:[%s7306 + $0x230] sm:$0xff] %v7351
                %v7353 = vld [vmem:[%s7305 + $0xb8] sm:$0xff]
                %7354 = vst [vmem:[%s7306 + $0x238] sm:$0xff] %v7353
                %v7355 = vld [vmem:[%s7305 + $0xc0] sm:$0xff]
                %7356 = vst [vmem:[%s7306 + $0x240] sm:$0xff] %v7355
                %v7357 = vld [vmem:[%s7305 + $0xc8] sm:$0xff]
                %7358 = vst [vmem:[%s7306 + $0x248] sm:$0xff] %v7357
                %v7359 = vld [vmem:[%s7305 + $0xd0] sm:$0xff]
                %7360 = vst [vmem:[%s7306 + $0x250] sm:$0xff] %v7359
                %v7361 = vld [vmem:[%s7305 + $0xd8] sm:$0xff]
                %7362 = vst [vmem:[%s7306 + $0x258] sm:$0xff] %v7361
                %v7363 = vld [vmem:[%s7305 + $0xe0] sm:$0xff]
                %7364 = vst [vmem:[%s7306 + $0x260] sm:$0xff] %v7363
                %v7365 = vld [vmem:[%s7305 + $0xe8] sm:$0xff]
                %7366 = vst [vmem:[%s7306 + $0x268] sm:$0xff] %v7365
                %v7367 = vld [vmem:[%s7305 + $0xf0] sm:$0xff]
                %7368 = vst [vmem:[%s7306 + $0x270] sm:$0xff] %v7367
                %v7369 = vld [vmem:[%s7305 + $0xf8] sm:$0xff]
                %7370 = vst [vmem:[%s7306 + $0x278] sm:$0xff] %v7369
              $region73: #{_lambda_.3} parent=67 // loop_footer
                %s7304 = sadd.s32 1, %s7300
              $region74: #{_lambda_.3} parent=67 // loop_footer_branch
                %7299 = sbr.rel target = $region70
              $region75: #{_lambda_.3} parent=67 // loop_exit
                _
            $region68: #{_lambda_.3} parent=63 // pred_fallthru
              _
            // Predicated region
            $region76: #{_lambda_.3} parent=63 // pred_check
              _
            $region77: #{_lambda_.3} parent=63 // pred_check_branch
              %7372 = sbr.rel target = $region79
            $region78: #{_lambda_.3} parent=63 // pred_region
              _
            $region79: #{_lambda_.3} parent=63 // pred_fallthru
              _
          $region64: #{_lambda_.3} parent=59 // pred_fallthru
            _
          %7373 = vnop
        $region60: #{_lambda_.3} parent=55 // pred_fallthru
          _
      $region56: #{_lambda_.3} parent=5 // pred_fallthru
        _
      %p7374 = scmp.le.s32.totalorder 2, %s15
      // Predicated region
      $region80: #{_lambda_.3} parent=5 // pred_check
        %p7375 = pneg %p7374
      $region81: #{_lambda_.3} parent=5 // pred_check_branch
        %7377 = sbr.rel (%p7375) target = $region83
      $region82: #{_lambda_.3} parent=5 // pred_region
        %s7378 = ssub.s32 %s15, 2
        // Predicated region
        $region84: #{_lambda_.3} parent=82 // pred_check
          %p7379 = pneg %p238
        $region85: #{_lambda_.3} parent=82 // pred_check_branch
          %7381 = sbr.rel (%p7379) target = $region87
        $region86: #{_lambda_.3} parent=82 // pred_region
          %s7382 = sand.u32 %s223, 1
          %s7383 = sand.u32 %s223, 1
          %s7384 = smul.addr %s7383, 256
          %s7385 = scalar_lea.vmem [#allocation2], %s7384
        $region87: #{_lambda_.3} parent=82 // pred_fallthru
          _
      $region83: #{_lambda_.3} parent=5 // pred_fallthru
        _
    $region6: #{_lambda_.3} parent=1 // loop_footer
      %s19 = sadd.s32 1, %s15
    $region7: #{_lambda_.3} parent=1 // loop_footer_branch
      %14 = sbr.rel target = $region3
    $region8: #{_lambda_.3} parent=1 // loop_exit
      _

</llo_original>
